<compile_context>
chip_gen: v6e
topology: v6e:2x2x1
jax: 0.10.0
libtpu: 0.0.40
codegen_flags: <defaults>
</compile_context>

<pallas_src>
import functools

import jax
import jax.numpy as jnp
from jax.experimental import pallas as pl
from jax.experimental.pallas import tpu as pltpu

LN_EPS = 1e-5          # torch.nn.LayerNorm default
LEAKY_SLOPE = 0.01     # torch.nn.LeakyReLU default
GAT_SLOPE = 0.2        # PyG GATConv negative_slope default
PROJ_W = 384           # lane-dense (3x128) width for the fused GAT projections
VMEM_LIMIT = 48 * 1024 * 1024   # safe on v5e/v6e (128 MiB) and v7x (64 MiB)


def _round_up(x, m):
    return (x + m - 1) // m * m


# --------------------------------------------------------------------------
# Shared in-kernel Linear(+LayerNorm)(+activation) chain applier
# --------------------------------------------------------------------------
def _apply_layers(h, p, layers):
    """Apply a chain of (use_bias, use_ln, act) layers; params consumed in order."""
    i = 0
    for use_bias, use_ln, act in layers:
        w = p[i][...]
        i += 1
        y = jnp.dot(h.astype(w.dtype), w, preferred_element_type=jnp.float32)
        if use_bias:
            y = y + p[i][...]
            i += 1
        if use_ln:
            g = p[i][...]
            be = p[i + 1][...]
            i += 2
            mu = jnp.mean(y, axis=-1, keepdims=True)
            var = jnp.mean(jnp.square(y - mu), axis=-1, keepdims=True)
            y = (y - mu) * jax.lax.rsqrt(var + LN_EPS) * g + be
        if act == "leaky":
            y = jnp.where(y > 0, y, LEAKY_SLOPE * y)
        elif act == "sigmoid":
            y = 1.0 / (1.0 + jnp.exp(-y))
        h = y
    return h, i


# --------------------------------------------------------------------------
# Kernel 1: generic fused MLP chain, row-tiled
# --------------------------------------------------------------------------
def _mlp_chain_kernel(x_ref, *refs, layers):
    o_ref = refs[-1]
    h, _ = _apply_layers(x_ref[...], refs[:-1], layers)
    o_ref[...] = h.astype(o_ref.dtype)


def mlp_chain(x, layer_params, layers, *, out_dim, out_dtype=jnp.float32,
              row_tile=1024):
    """Fused Linear(+LN)(+act) chain; grid over row tiles of `x`."""
    n_rows, f_in = x.shape
    tm = min(row_tile, _round_up(n_rows, 8))
    n_pad = _round_up(n_rows, tm)
    xc = x.astype(layer_params[0].dtype)
    if n_pad != n_rows:
        xc = jnp.pad(xc, ((0, n_pad - n_rows), (0, 0)))

    in_specs = [pl.BlockSpec((tm, f_in), lambda i: (i, 0))]
    for a in layer_params:
        in_specs.append(pl.BlockSpec(a.shape, lambda i: (0, 0)))

    y = pl.pallas_call(
        functools.partial(_mlp_chain_kernel, layers=tuple(layers)),
        grid=(n_pad // tm,),
        in_specs=in_specs,
        out_specs=pl.BlockSpec((tm, out_dim), lambda i: (i, 0)),
        out_shape=jax.ShapeDtypeStruct((n_pad, out_dim), out_dtype),
        compiler_params=pltpu.CompilerParams(
            dimension_semantics=("parallel",),
            vmem_limit_bytes=VMEM_LIMIT),
    )(xc, *layer_params)
    return y[:n_rows]


def _w_cast(w):
    # bf16 only where the operand is big enough to matter on the MXU/DMA path.
    if w.shape[0] >= 16 and w.shape[1] >= 16:
        return w.astype(jnp.bfloat16)
    return w.astype(jnp.float32)


def _prep_linear(w, b=None, gamma=None, beta=None):
    out = [_w_cast(w)]
    if b is not None:
        out.append(b.reshape(1, -1).astype(jnp.float32))
    if gamma is not None:
        out.append(gamma.reshape(1, -1).astype(jnp.float32))
        out.append(beta.reshape(1, -1).astype(jnp.float32))
    return out


# --------------------------------------------------------------------------
# Kernel 2: fused front-end  NN_seq -> cat(raw_x) -> NN_node -> GAT1 proj
# --------------------------------------------------------------------------
def _frontend_kernel(seq_ref, raw_ref, *refs, seq_layers, node_rest_layers):
    o_ref = refs[-1]
    p = refs[:-1]
    # NN_seq chain -> [tm, 1]
    h, i = _apply_layers(seq_ref[...], p, seq_layers)
    # NN_node layer 1 on cat([raw_x, seq_out]) without materializing the concat
    # (Linear(2, 128) split into two rank-1 broadcasts).
    w1 = p[i][...]
    b1 = p[i + 1][...]
    g1 = p[i + 2][...]
    be1 = p[i + 3][...]
    i += 4
    y = raw_ref[...] * w1[0:1, :] + h * w1[1:2, :] + b1          # [tm, 128]
    mu = jnp.mean(y, axis=-1, keepdims=True)
    var = jnp.mean(jnp.square(y - mu), axis=-1, keepdims=True)
    y = (y - mu) * jax.lax.rsqrt(var + LN_EPS) * g1 + be1
    y = jnp.where(y > 0, y, LEAKY_SLOPE * y)
    # remaining NN_node layers + fused GAT1 projection (f32, lane-padded 384)
    h2, _ = _apply_layers(y, p[i:], node_rest_layers)
    o_ref[...] = h2.astype(o_ref.dtype)


def frontend(seq_data, raw_x, seq_params, seq_layers, node1_params,
             node_rest_params, node_rest_layers, *, out_dim, row_tile=1024):
    n, f = seq_data.shape
    tm = min(row_tile, _round_up(n, 8))
    n_pad = _round_up(n, tm)
    seq_c = seq_data.astype(seq_params[0].dtype)
    raw_c = raw_x.astype(jnp.float32)
    if n_pad != n:
        seq_c = jnp.pad(seq_c, ((0, n_pad - n), (0, 0)))
        raw_c = jnp.pad(raw_c, ((0, n_pad - n), (0, 0)))
    params = list(seq_params) + list(node1_params) + list(node_rest_params)
    in_specs = [pl.BlockSpec((tm, f), lambda i: (i, 0)),
                pl.BlockSpec((tm, 1), lambda i: (i, 0))]
    for a in params:
        in_specs.append(pl.BlockSpec(a.shape, lambda i: (0, 0)))

    y = pl.pallas_call(
        functools.partial(_frontend_kernel, seq_layers=tuple(seq_layers),
                          node_rest_layers=tuple(node_rest_layers)),
        grid=(n_pad // tm,),
        in_specs=in_specs,
        out_specs=pl.BlockSpec((tm, out_dim), lambda i: (i, 0)),
        out_shape=jax.ShapeDtypeStruct((n_pad, out_dim), jnp.float32),
        compiler_params=pltpu.CompilerParams(
            dimension_semantics=("parallel",),
            vmem_limit_bytes=VMEM_LIMIT),
    )(seq_c, raw_c, *params)
    return y[:n]


# --------------------------------------------------------------------------
# Kernel 3: GAT edge softmax + aggregation (dst-grouped edge tiles,
#           scalar-prefetched node-window offsets, resident accumulators)
# --------------------------------------------------------------------------
def _gat_agg_kernel(row_ref, dst_ref, alpha_ref, xsrc_ref, rep_b_ref, rep_f_ref,
                    bias_ref, out_ref, den_ref, *rest, tw, need_ea):
    ea_ref = rest[0] if need_ea else None
    t = pl.program_id(0)

    @pl.when(t == 0)
    def _init():
        out_ref[...] = jnp.zeros_like(out_ref)
        den_ref[...] = jnp.zeros_like(den_ref)

    te = alpha_ref.shape[0]
    row_lo = pl.multiple_of(row_ref[t], 8)        # window start (node row)

    # alpha was leaky-relu'd + segment-max shifted outside -> exp() in (0, 1].
    ea = jnp.exp(alpha_ref[...])                                 # [TE, H] f32
    if need_ea:
        ea_ref[...] = ea
    ea_b = ea.astype(jnp.bfloat16)

    # One-hot only over the TW-row node window this edge tile touches.
    # Padded edges carry dst = -1 and therefore an all-zero column.
    local = dst_ref[...] - row_lo                                # [1, TE]
    iota = jax.lax.broadcasted_iota(jnp.int32, (tw, te), 0)
    oh = jnp.where(iota == local, 1.0, 0.0).astype(jnp.bfloat16)  # [TW, TE]

    # Segment sums on the MXU (bf16 operands, f32 accumulation) straight into
    # the grid-resident output blocks.
    den_ref[pl.ds(row_lo, tw), :] += jnp.dot(
        oh, ea_b, preferred_element_type=jnp.float32)            # [TW, H]

    ea_full = jnp.dot(ea_b, rep_b_ref[...],
                      preferred_element_type=jnp.float32)        # [TE, H*C]
    weighted = (xsrc_ref[...] * ea_full).astype(jnp.bfloat16)    # [TE, H*C]
    out_ref[pl.ds(row_lo, tw), :] += jnp.dot(
        oh, weighted, preferred_element_type=jnp.float32)        # [TW, H*C]

    @pl.when(t == pl.num_programs(0) - 1)
    def _finalize():
        # den is either 0 (no incoming edge -> out rows are exactly 0) or >= 1.
        inv = 1.0 / jnp.maximum(den_ref[...], 1e-30)             # [N, H]
        inv_full = jnp.dot(inv, rep_f_ref[...],
                           preferred_element_type=jnp.float32)   # [N, H*C]
        out_ref[...] = out_ref[...] * inv_full + bias_ref[...]


def gat_aggregate(alpha_lay, xsrc_lay, dst_lay, row_off, bias, heads, ch,
                  n_pad, tw, te, *, need_ea):
    l_tot = alpha_lay.shape[0]
    hc = heads * ch
    num_tiles = l_tot // te
    rep_f = jnp.repeat(jnp.eye(heads, dtype=jnp.float32), ch, axis=1)  # [H, HC]
    rep_b = rep_f.astype(jnp.bfloat16)
    dst2d = dst_lay.reshape(1, l_tot)
    bias2d = bias.reshape(1, hc).astype(jnp.float32)

    in_specs = [
        pl.BlockSpec((1, te), lambda t, ro: (0, t)),        # dst indices
        pl.BlockSpec((te, heads), lambda t, ro: (t, 0)),    # shifted logits
        pl.BlockSpec((te, hc), lambda t, ro: (t, 0)),       # gathered xsrc bf16
        pl.BlockSpec((heads, hc), lambda t, ro: (0, 0)),    # rep (bf16)
        pl.BlockSpec((heads, hc), lambda t, ro: (0, 0)),    # rep (f32, finalize)
        pl.BlockSpec((1, hc), lambda t, ro: (0, 0)),        # bias
    ]
    out_specs = [
        pl.BlockSpec((n_pad, hc), lambda t, ro: (0, 0)),     # resident output
        pl.BlockSpec((n_pad, heads), lambda t, ro: (0, 0)),  # resident denom
    ]
    out_shape = [
        jax.ShapeDtypeStruct((n_pad, hc), jnp.float32),
        jax.ShapeDtypeStruct((n_pad, heads), jnp.float32),
    ]
    if need_ea:
        out_specs.append(pl.BlockSpec((te, heads), lambda t, ro: (t, 0)))
        out_shape.append(jax.ShapeDtypeStruct((l_tot, heads), jnp.float32))

    return pl.pallas_call(
        functools.partial(_gat_agg_kernel, tw=tw, need_ea=need_ea),
        grid_spec=pltpu.PrefetchScalarGridSpec(
            num_scalar_prefetch=1,
            grid=(num_tiles,),
            in_specs=in_specs,
            out_specs=tuple(out_specs)),
        out_shape=tuple(out_shape),
        compiler_params=pltpu.CompilerParams(
            dimension_semantics=("arbitrary",),
            vmem_limit_bytes=VMEM_LIMIT),
    )(row_off, dst2d, alpha_lay, xsrc_lay, rep_b, rep_f, bias2d)


def _build_edge_layout(dst, n_pad, tw, te):
    """dst-sorted, window-grouped edge layout with per-window TE padding."""
    e = dst.shape[0]
    n_win = n_pad // tw
    order = jnp.argsort(dst)                       # sort edges by destination
    sdst = dst[order].astype(jnp.int32)
    win = sdst // tw                               # node window of each edge
    cnt = jnp.zeros((n_win,), jnp.int32).at[win].add(1)
    cap = ((cnt + te - 1) // te) * te              # per-window capacity (x TE)
    off = jnp.concatenate([jnp.zeros((1,), jnp.int32), jnp.cumsum(cap)[:-1]])
    start_sorted = jnp.concatenate(
        [jnp.zeros((1,), jnp.int32), jnp.cumsum(cnt)[:-1]])
    rank = jnp.arange(e, dtype=jnp.int32) - start_sorted[win]
    pos = off[win] + rank                          # layout slot of sorted edge
    l_tot = _round_up(e, te) + n_win * te          # static upper bound
    dst_lay = jnp.full((l_tot,), -1, jnp.int32).at[pos].set(sdst)
    first = dst_lay[0::te]                         # first dst of each tile
    row_off = jnp.where(first >= 0, (first // tw) * tw, 0).astype(jnp.int32)
    return order, pos, dst_lay, row_off, l_tot


# --------------------------------------------------------------------------
# GAT layer (PyG GATConv semantics, add_self_loops=False, concat=True, eval)
# --------------------------------------------------------------------------
def _blockdiag(att):
    """[H, C] attention vector -> [H*C, H] block-diagonal matmul operand."""
    h, c = att.shape
    eye = jnp.eye(h, dtype=att.dtype)
    return (att[:, :, None] * eye[:, None, :]).reshape(h * c, h)


def gat_layer(proj, edge_index, bias, heads, ch, n, *, edge_logits=None,
              need_attention=False, node_window=256, edge_tile=512):
    """proj holds [xp | a_src | a_dst | pad] from the fused projection kernel."""
    hc = heads * ch
    xp = proj[:, :hc]
    a_src = proj[:, hc:hc + heads]
    a_dst = proj[:, hc + heads:hc + 2 * heads]
    src, dst = edge_index[0], edge_index[1]

    alpha = a_src[src] + a_dst[dst]                               # [E, H]
    if edge_logits is not None:
        # Edge features only feed the attention logits in GATConv.
        alpha = alpha + edge_logits
    alpha = jnp.where(alpha > 0, alpha, GAT_SLOPE * alpha)        # leaky(0.2)
    # Per-destination max subtraction (PyG softmax semantics, overflow-safe).
    seg_max = jax.ops.segment_max(alpha, dst, num_segments=n)
    alpha = alpha - seg_max[dst]
    # TODO(synk): fold the leaky/seg-max shift into the aggregation kernel.

    tw = min(node_window, _round_up(n, 8))
    n_pad = _round_up(n, tw)
    e = src.shape[0]
    te = min(edge_tile, max(128, _round_up(e, 128)))
    order, pos, dst_lay, row_off, l_tot = _build_edge_layout(dst, n_pad, tw, te)

    alpha_lay = jnp.zeros((l_tot, heads), jnp.float32).at[pos].set(alpha[order])
    src_lay = jnp.zeros((l_tot,), jnp.int32).at[pos].set(
        src[order].astype(jnp.int32))
    xsrc_lay = xp.astype(jnp.bfloat16)[src_lay]                   # [L, HC] bf16

    res = gat_aggregate(alpha_lay, xsrc_lay, dst_lay, row_off, bias,
                        heads, ch, n_pad, tw, te, need_ea=need_attention)
    if need_attention:
        out, den, ea_lay = res
        pos_of_edge = jnp.zeros((e,), pos.dtype).at[order].set(pos)
        alpha_n = ea_lay[pos_of_edge] / den[dst]                  # edge softmax
        return out[:n], alpha_n
    out, _den = res
    return out[:n], None


# --------------------------------------------------------------------------
# Parameters (deterministic synthetic init)
# --------------------------------------------------------------------------
def init_params(key, seq_dim, gene_num, heads=16, hidden=16,
                node_out=8, edge_emb=8):
    keys = iter(jax.random.split(key, 64))

    def lin(fi, fo):
        w = jax.random.normal(next(keys), (fi, fo), jnp.float32) / (fi ** 0.5)
        return w, jnp.zeros((fo,), jnp.float32)

    def ln(d):
        return jnp.ones((d,), jnp.float32), jnp.zeros((d,), jnp.float32)

    def att():
        return jax.random.normal(next(keys), (heads, hidden), jnp.float32) * 0.1

    p = {}
    # NN_seq: seq_dim -> 512 -> 128 -> 1
    p["seq_w1"], p["seq_b1"] = lin(seq_dim, 512); p["seq_g1"], p["seq_be1"] = ln(512)
    p["seq_w2"], p["seq_b2"] = lin(512, 128);     p["seq_g2"], p["seq_be2"] = ln(128)
    p["seq_w3"], p["seq_b3"] = lin(128, 1)
    # NN_node: 2 -> 128 -> 64 -> node_out
    p["node_w1"], p["node_b1"] = lin(2, 128);   p["node_g1"], p["node_be1"] = ln(128)
    p["node_w2"], p["node_b2"] = lin(128, 64);  p["node_g2"], p["node_be2"] = ln(64)
    p["node_w3"], p["node_b3"] = lin(64, node_out)
    # NN_edge: 2 -> 12 -> edge_emb
    p["edge_w1"], p["edge_b1"] = lin(2, 12);    p["edge_g1"], p["edge_be1"] = ln(12)
    p["edge_w2"], p["edge_b2"] = lin(12, edge_emb)
    # GATConv1 (node_out -> hidden, heads, edge_dim=edge_emb)
    p["g1_w"], _ = lin(node_out, heads * hidden)
    p["g1_asrc"], p["g1_adst"], p["g1_aedge"] = att(), att(), att()
    p["g1_we"], _ = lin(edge_emb, heads * hidden)
    p["g1_bias"] = jnp.zeros((heads * hidden,), jnp.float32)
    # NN_flatten1
    p["fl1_w"], p["fl1_b"] = lin(heads * hidden, hidden)
    # GATConv2 (hidden -> hidden, heads)
    p["g2_w"], _ = lin(hidden, heads * hidden)
    p["g2_asrc"], p["g2_adst"] = att(), att()
    p["g2_bias"] = jnp.zeros((heads * hidden,), jnp.float32)
    # NN_flatten2
    p["fl2_w"], p["fl2_b"] = lin(heads * hidden, hidden)
    # NN_cell_type: gene_num -> 128 -> 64 -> 6 (original hardcodes 4457 == gene_num)
    p["ct_w1"], p["ct_b1"] = lin(gene_num, 128); p["ct_g1"], p["ct_be1"] = ln(128)
    p["ct_w2"], p["ct_b2"] = lin(128, 64);       p["ct_g2"], p["ct_be2"] = ln(64)
    p["ct_w3"], p["ct_b3"] = lin(64, 6)
    return p


# --------------------------------------------------------------------------
# SCReGAT forward
# --------------------------------------------------------------------------
def _ln_f32(x, g, b):
    mu = jnp.mean(x, axis=-1, keepdims=True)
    var = jnp.mean(jnp.square(x - mu), axis=-1, keepdims=True)
    return (x - mu) * jax.lax.rsqrt(var + LN_EPS) * g + b


def _leaky(x):
    return jnp.where(x > 0, x, LEAKY_SLOPE * x)


def scregat_forward(params, seq_data, raw_x, edge_index, edge_tf, *, gene_num):
    p = params
    heads, hidden = 16, 16
    hc = heads * hidden
    n = raw_x.shape[0]

    # Fused GAT1 input projection [8, 384]:  xp | a_src | a_dst | zero-pad.
    # Kept in f32 so both layers' attention logits have the same precision.
    wc1 = jnp.concatenate(
        [p["g1_w"],
         p["g1_w"] @ _blockdiag(p["g1_asrc"]),
         p["g1_w"] @ _blockdiag(p["g1_adst"]),
         jnp.zeros((p["g1_w"].shape[0], PROJ_W - hc - 2 * heads), jnp.float32)],
        axis=1)

    # Front-end: NN_seq -> cat(raw_x) -> NN_node -> GAT1 projection, one kernel.
    seq_layers = ((True, True, "leaky"), (True, True, "leaky"), (True, False, None))
    seq_params = (_prep_linear(p["seq_w1"], p["seq_b1"], p["seq_g1"], p["seq_be1"])
                  + _prep_linear(p["seq_w2"], p["seq_b2"], p["seq_g2"], p["seq_be2"])
                  + _prep_linear(p["seq_w3"], p["seq_b3"]))
    node1_params = [p["node_w1"].astype(jnp.float32),
                    p["node_b1"].reshape(1, -1).astype(jnp.float32),
                    p["node_g1"].reshape(1, -1).astype(jnp.float32),
                    p["node_be1"].reshape(1, -1).astype(jnp.float32)]
    node_rest_layers = ((True, True, "leaky"), (True, False, None),
                        (False, False, None))
    node_rest_params = (_prep_linear(p["node_w2"], p["node_b2"],
                                     p["node_g2"], p["node_be2"])
                        + _prep_linear(p["node_w3"], p["node_b3"])
                        + [wc1])
    proj1 = frontend(seq_data, raw_x, seq_params, seq_layers,
                     node1_params, node_rest_params, node_rest_layers,
                     out_dim=PROJ_W)                              # [N, 384]

    # NN_edge: 2 -> 12 -> 8 (sigmoid), row-tiled over edges.
    src, dst = edge_index[0], edge_index[1]
    e_in = jnp.concatenate([raw_x[src], raw_x[dst]], axis=1)      # [E, 2]
    hidden_edge = mlp_chain(
        e_in,
        _prep_linear(p["edge_w1"], p["edge_b1"], p["edge_g1"], p["edge_be1"])
        + _prep_linear(p["edge_w2"], p["edge_b2"]),
        [(True, True, "leaky"), (True, False, "sigmoid")],
        out_dim=8)                                                # [E, 8]
    d = hidden_edge.shape[1]
    # torch.median(dim=1)[0]: lower middle element of each sorted row
    edge_median = jnp.sort(hidden_edge, axis=1)[:, (d - 1) // 2]

    # GATConv 1 (with edge features feeding the attention logits only).
    edge_att_w = p["g1_we"] @ _blockdiag(p["g1_aedge"])           # [8, H]
    g1, atten_w1 = gat_layer(proj1, edge_index, p["g1_bias"], heads, hidden, n,
                             edge_logits=hidden_edge @ edge_att_w,
                             need_attention=True)

    # NN_flatten1 + GAT2 projection in one kernel:
    # output = [data_1 | xp2 | a_src2 | a_dst2 | zero-pad]  (384 lanes).
    comb2 = jnp.concatenate(
        [jnp.eye(hidden, dtype=jnp.float32),
         p["g2_w"],
         p["g2_w"] @ _blockdiag(p["g2_asrc"]),
         p["g2_w"] @ _blockdiag(p["g2_adst"]),
         jnp.zeros((hidden, PROJ_W - hidden - hc - 2 * heads), jnp.float32)],
        axis=1)                                                   # [16, 384]
    f1 = mlp_chain(
        g1,
        [_w_cast(p["fl1_w"]), p["fl1_b"].reshape(1, -1).astype(jnp.float32),
         comb2],
        [(True, False, "leaky"), (False, False, None)],
        out_dim=PROJ_W)                                           # [N, 384]
    data_1 = f1[:, :hidden]                                       # [N, 16]
    proj2 = f1[:, hidden:hidden + hc + 2 * heads]                 # [N, 288]

    # GATConv 2 (edge_tf graph, no edge features, attention weights discarded).
    g2, _atten_w2 = gat_layer(proj2, edge_tf, p["g2_bias"], heads, hidden, n,
                              need_attention=False)
    data_2 = mlp_chain(
        g2,
        [_w_cast(p["fl2_w"]), p["fl2_b"].reshape(1, -1).astype(jnp.float32)],
        [(True, False, "leaky")],
        out_dim=hidden)                                           # [N, 16]

    data_f = data_1 + data_2
    dg = data_f[:gene_num]                                        # [G, 16]
    # Cell-type head: M=1 matmuls -> plain XLA is cheaper than pallas launches.
    ct = jnp.mean(dg, axis=1)[None, :]                            # [1, G]
    h = _leaky(_ln_f32(ct @ p["ct_w1"] + p["ct_b1"], p["ct_g1"], p["ct_be1"]))
    h = _leaky(_ln_f32(h @ p["ct_w2"] + p["ct_b2"], p["ct_g2"], p["ct_be2"]))
    cell_type = jax.nn.softmax(h @ p["ct_w3"] + p["ct_b3"], axis=-1)[0]  # [6]
    # gene_out = -log_softmax(data[:gene_num], dim=1)[:, 0]  (tiny, plain XLA)
    gene_out = -jax.nn.log_softmax(dg, axis=-1)[:, 0]             # [G]
    return gene_out, atten_w1, cell_type, edge_median


# --------------------------------------------------------------------------
if __name__ == "__main__":
    N, E1, E2 = 32, 64, 48          # nodes, edges, TF edges
    SEQ_DIM = 64                    # small stand-in for seq_dim=768
    GENE_NUM = 16                   # small stand-in for gene_num (=4457)

    kin = jax.random.PRNGKey(0)
    k_seq, k_raw, k_e1, k_e2 = jax.random.split(kin, 4)
    seq_data = jax.random.normal(k_seq, (N, SEQ_DIM), jnp.float32)
    raw_x = jax.random.normal(k_raw, (N, 1), jnp.float32)
    edge_index = jax.random.randint(k_e1, (2, E1), 0, N)
    edge_tf = jax.random.randint(k_e2, (2, E2), 0, N)

    params = init_params(jax.random.PRNGKey(42), SEQ_DIM, GENE_NUM)

    fwd = jax.jit(functools.partial(scregat_forward, gene_num=GENE_NUM))
    gene_out, atten_w1, cell_type, edge_median = fwd(
        params, seq_data, raw_x, edge_index, edge_tf)
    jax.block_until_ready((gene_out, atten_w1, cell_type, edge_median))

    assert gene_out.shape == (GENE_NUM,)
    assert atten_w1.shape == (E1, 16)
    assert cell_type.shape == (6,)
    assert edge_median.shape == (E1,)
    assert bool(jnp.isfinite(gene_out).all())
    assert bool(jnp.isfinite(atten_w1).all())
    assert bool(jnp.isfinite(cell_type).all())
    assert bool(jnp.isfinite(edge_median).all())
    print("KERNEL_OK")
</pallas_src>

<mosaic_0001>
module attributes {stable_mosaic.version = 11 : i64} {
  func.func @_frontend_kernel(%arg0: i32, %arg1: memref<32x64xbf16, #tpu.memory_space<vmem>>, %arg2: memref<32x1xf32, #tpu.memory_space<vmem>>, %arg3: memref<64x512xbf16, #tpu.memory_space<vmem>>, %arg4: memref<1x512xf32, #tpu.memory_space<vmem>>, %arg5: memref<1x512xf32, #tpu.memory_space<vmem>>, %arg6: memref<1x512xf32, #tpu.memory_space<vmem>>, %arg7: memref<512x128xbf16, #tpu.memory_space<vmem>>, %arg8: memref<1x128xf32, #tpu.memory_space<vmem>>, %arg9: memref<1x128xf32, #tpu.memory_space<vmem>>, %arg10: memref<1x128xf32, #tpu.memory_space<vmem>>, %arg11: memref<128x1xf32, #tpu.memory_space<vmem>>, %arg12: memref<1x1xf32, #tpu.memory_space<vmem>>, %arg13: memref<2x128xf32, #tpu.memory_space<vmem>>, %arg14: memref<1x128xf32, #tpu.memory_space<vmem>>, %arg15: memref<1x128xf32, #tpu.memory_space<vmem>>, %arg16: memref<1x128xf32, #tpu.memory_space<vmem>>, %arg17: memref<128x64xbf16, #tpu.memory_space<vmem>>, %arg18: memref<1x64xf32, #tpu.memory_space<vmem>>, %arg19: memref<1x64xf32, #tpu.memory_space<vmem>>, %arg20: memref<1x64xf32, #tpu.memory_space<vmem>>, %arg21: memref<64x8xf32, #tpu.memory_space<vmem>>, %arg22: memref<1x8xf32, #tpu.memory_space<vmem>>, %arg23: memref<8x384xf32, #tpu.memory_space<vmem>>, %arg24: memref<32x384xf32, #tpu.memory_space<vmem>>) attributes {dimension_semantics = [#tpu.dimension_semantics<parallel>], iteration_bounds = array<i64: 1>, scalar_prefetch = 0 : i64, scratch_operands = 0 : i64, tpu.core_type = #tpu.core_type<tc>, window_params = [{transform_indices = @transform_0, window_bounds = array<i64: 32, 64>}, {transform_indices = @transform_1, window_bounds = array<i64: 32, 1>}, {pipeline_mode = #tpu.pipeline_mode<synchronous>, transform_indices = @transform_2, window_bounds = array<i64: 64, 512>}, {pipeline_mode = #tpu.pipeline_mode<synchronous>, transform_indices = @transform_3, window_bounds = array<i64: 1, 512>}, {pipeline_mode = #tpu.pipeline_mode<synchronous>, transform_indices = @transform_4, window_bounds = array<i64: 1, 512>}, {pipeline_mode = #tpu.pipeline_mode<synchronous>, transform_indices = @transform_5, window_bounds = array<i64: 1, 512>}, {pipeline_mode = #tpu.pipeline_mode<synchronous>, transform_indices = @transform_6, window_bounds = array<i64: 512, 128>}, {pipeline_mode = #tpu.pipeline_mode<synchronous>, transform_indices = @transform_7, window_bounds = array<i64: 1, 128>}, {pipeline_mode = #tpu.pipeline_mode<synchronous>, transform_indices = @transform_8, window_bounds = array<i64: 1, 128>}, {pipeline_mode = #tpu.pipeline_mode<synchronous>, transform_indices = @transform_9, window_bounds = array<i64: 1, 128>}, {pipeline_mode = #tpu.pipeline_mode<synchronous>, transform_indices = @transform_10, window_bounds = array<i64: 128, 1>}, {pipeline_mode = #tpu.pipeline_mode<synchronous>, transform_indices = @transform_11, window_bounds = array<i64: 1, 1>}, {pipeline_mode = #tpu.pipeline_mode<synchronous>, transform_indices = @transform_12, window_bounds = array<i64: 2, 128>}, {pipeline_mode = #tpu.pipeline_mode<synchronous>, transform_indices = @transform_13, window_bounds = array<i64: 1, 128>}, {pipeline_mode = #tpu.pipeline_mode<synchronous>, transform_indices = @transform_14, window_bounds = array<i64: 1, 128>}, {pipeline_mode = #tpu.pipeline_mode<synchronous>, transform_indices = @transform_15, window_bounds = array<i64: 1, 128>}, {pipeline_mode = #tpu.pipeline_mode<synchronous>, transform_indices = @transform_16, window_bounds = array<i64: 128, 64>}, {pipeline_mode = #tpu.pipeline_mode<synchronous>, transform_indices = @transform_17, window_bounds = array<i64: 1, 64>}, {pipeline_mode = #tpu.pipeline_mode<synchronous>, transform_indices = @transform_18, window_bounds = array<i64: 1, 64>}, {pipeline_mode = #tpu.pipeline_mode<synchronous>, transform_indices = @transform_19, window_bounds = array<i64: 1, 64>}, {pipeline_mode = #tpu.pipeline_mode<synchronous>, transform_indices = @transform_20, window_bounds = array<i64: 64, 8>}, {pipeline_mode = #tpu.pipeline_mode<synchronous>, transform_indices = @transform_21, window_bounds = array<i64: 1, 8>}, {pipeline_mode = #tpu.pipeline_mode<synchronous>, transform_indices = @transform_22, window_bounds = array<i64: 8, 384>}, {transform_indices = @transform_23, window_bounds = array<i64: 32, 384>}]} {
    %c0 = arith.constant 0 : index
    %c0_0 = arith.constant 0 : index
    %0 = vector.load %arg1[%c0, %c0_0] : memref<32x64xbf16, #tpu.memory_space<vmem>>, vector<32x64xbf16>
    %c0_1 = arith.constant 0 : index
    %c0_2 = arith.constant 0 : index
    %1 = vector.load %arg3[%c0_1, %c0_2] : memref<64x512xbf16, #tpu.memory_space<vmem>>, vector<64x512xbf16>
    %cst = arith.constant dense<0.000000e+00> : vector<32x512xf32>
    %2 = tpu.matmul %0, %1, %cst {dimension_numbers = #tpu.dot_dimension_numbers<[1], [0], [0], [1], [0, 0, 1, 1], [], []>} : vector<32x64xbf16>, vector<64x512xbf16>, vector<32x512xf32> -> vector<32x512xf32>
    %c0_3 = arith.constant 0 : index
    %c0_4 = arith.constant 0 : index
    %3 = vector.load %arg4[%c0_3, %c0_4] : memref<1x512xf32, #tpu.memory_space<vmem>>, vector<1x512xf32>
    %4 = vector.broadcast %3 : vector<1x512xf32> to vector<32x512xf32>
    %5 = arith.addf %2, %4 : vector<32x512xf32>
    %c0_5 = arith.constant 0 : index
    %c0_6 = arith.constant 0 : index
    %6 = vector.load %arg5[%c0_5, %c0_6] : memref<1x512xf32, #tpu.memory_space<vmem>>, vector<1x512xf32>
    %c0_7 = arith.constant 0 : index
    %c0_8 = arith.constant 0 : index
    %7 = vector.load %arg6[%c0_7, %c0_8] : memref<1x512xf32, #tpu.memory_space<vmem>>, vector<1x512xf32>
    %cst_9 = arith.constant dense<0.000000e+00> : vector<32xf32>
    %8 = vector.multi_reduction <add>, %5, %cst_9 [1] : vector<32x512xf32> to vector<32xf32>
    %9 = vector.shape_cast %8 : vector<32xf32> to vector<32x1xf32>
    %cst_10 = arith.constant 5.120000e+02 : f32
    %10 = vector.broadcast %cst_10 : f32 to vector<32x1xf32>
    %11 = arith.divf %9, %10 : vector<32x1xf32>
    %12 = vector.broadcast %11 : vector<32x1xf32> to vector<32x512xf32>
    %13 = arith.subf %5, %12 : vector<32x512xf32>
    %14 = arith.mulf %13, %13 : vector<32x512xf32>
    %cst_11 = arith.constant dense<0.000000e+00> : vector<32xf32>
    %15 = vector.multi_reduction <add>, %14, %cst_11 [1] : vector<32x512xf32> to vector<32xf32>
    %16 = vector.shape_cast %15 : vector<32xf32> to vector<32x1xf32>
    %cst_12 = arith.constant 5.120000e+02 : f32
    %17 = vector.broadcast %cst_12 : f32 to vector<32x1xf32>
    %18 = arith.divf %16, %17 : vector<32x1xf32>
    %19 = vector.broadcast %11 : vector<32x1xf32> to vector<32x512xf32>
    %20 = arith.subf %5, %19 : vector<32x512xf32>
    %cst_13 = arith.constant 9.99999974E-6 : f32
    %21 = vector.broadcast %cst_13 : f32 to vector<32x1xf32>
    %22 = arith.addf %18, %21 : vector<32x1xf32>
    %23 = math.rsqrt %22 : vector<32x1xf32>
    %24 = vector.broadcast %23 : vector<32x1xf32> to vector<32x512xf32>
    %25 = arith.mulf %20, %24 : vector<32x512xf32>
    %26 = vector.broadcast %6 : vector<1x512xf32> to vector<32x512xf32>
    %27 = arith.mulf %25, %26 : vector<32x512xf32>
    %28 = vector.broadcast %7 : vector<1x512xf32> to vector<32x512xf32>
    %29 = arith.addf %27, %28 : vector<32x512xf32>
    %cst_14 = arith.constant 0.000000e+00 : f32
    %30 = vector.broadcast %cst_14 : f32 to vector<32x512xf32>
    %31 = arith.cmpf ogt, %29, %30 : vector<32x512xf32>
    %cst_15 = arith.constant 0.00999999977 : f32
    %32 = vector.broadcast %cst_15 : f32 to vector<32x512xf32>
    %33 = arith.mulf %32, %29 : vector<32x512xf32>
    %34 = arith.select %31, %29, %33 : vector<32x512xi1>, vector<32x512xf32>
    %c0_16 = arith.constant 0 : index
    %c0_17 = arith.constant 0 : index
    %35 = vector.load %arg7[%c0_16, %c0_17] : memref<512x128xbf16, #tpu.memory_space<vmem>>, vector<512x128xbf16>
    %36 = arith.truncf %34 : vector<32x512xf32> to vector<32x512xbf16>
    %cst_18 = arith.constant dense<0.000000e+00> : vector<32x128xf32>
    %37 = tpu.matmul %36, %35, %cst_18 {dimension_numbers = #tpu.dot_dimension_numbers<[1], [0], [0], [1], [0, 0, 1, 1], [], []>} : vector<32x512xbf16>, vector<512x128xbf16>, vector<32x128xf32> -> vector<32x128xf32>
    %c0_19 = arith.constant 0 : index
    %c0_20 = arith.constant 0 : index
    %38 = vector.load %arg8[%c0_19, %c0_20] : memref<1x128xf32, #tpu.memory_space<vmem>>, vector<1x128xf32>
    %39 = vector.broadcast %38 : vector<1x128xf32> to vector<32x128xf32>
    %40 = arith.addf %37, %39 : vector<32x128xf32>
    %c0_21 = arith.constant 0 : index
    %c0_22 = arith.constant 0 : index
    %41 = vector.load %arg9[%c0_21, %c0_22] : memref<1x128xf32, #tpu.memory_space<vmem>>, vector<1x128xf32>
    %c0_23 = arith.constant 0 : index
    %c0_24 = arith.constant 0 : index
    %42 = vector.load %arg10[%c0_23, %c0_24] : memref<1x128xf32, #tpu.memory_space<vmem>>, vector<1x128xf32>
    %cst_25 = arith.constant dense<0.000000e+00> : vector<32xf32>
    %43 = vector.multi_reduction <add>, %40, %cst_25 [1] : vector<32x128xf32> to vector<32xf32>
    %44 = vector.shape_cast %43 : vector<32xf32> to vector<32x1xf32>
    %cst_26 = arith.constant 1.280000e+02 : f32
    %45 = vector.broadcast %cst_26 : f32 to vector<32x1xf32>
    %46 = arith.divf %44, %45 : vector<32x1xf32>
    %47 = vector.broadcast %46 : vector<32x1xf32> to vector<32x128xf32>
    %48 = arith.subf %40, %47 : vector<32x128xf32>
    %49 = arith.mulf %48, %48 : vector<32x128xf32>
    %cst_27 = arith.constant dense<0.000000e+00> : vector<32xf32>
    %50 = vector.multi_reduction <add>, %49, %cst_27 [1] : vector<32x128xf32> to vector<32xf32>
    %51 = vector.shape_cast %50 : vector<32xf32> to vector<32x1xf32>
    %cst_28 = arith.constant 1.280000e+02 : f32
    %52 = vector.broadcast %cst_28 : f32 to vector<32x1xf32>
    %53 = arith.divf %51, %52 : vector<32x1xf32>
    %54 = vector.broadcast %46 : vector<32x1xf32> to vector<32x128xf32>
    %55 = arith.subf %40, %54 : vector<32x128xf32>
    %cst_29 = arith.constant 9.99999974E-6 : f32
    %56 = vector.broadcast %cst_29 : f32 to vector<32x1xf32>
    %57 = arith.addf %53, %56 : vector<32x1xf32>
    %58 = math.rsqrt %57 : vector<32x1xf32>
    %59 = vector.broadcast %58 : vector<32x1xf32> to vector<32x128xf32>
    %60 = arith.mulf %55, %59 : vector<32x128xf32>
    %61 = vector.broadcast %41 : vector<1x128xf32> to vector<32x128xf32>
    %62 = arith.mulf %60, %61 : vector<32x128xf32>
    %63 = vector.broadcast %42 : vector<1x128xf32> to vector<32x128xf32>
    %64 = arith.addf %62, %63 : vector<32x128xf32>
    %cst_30 = arith.constant 0.000000e+00 : f32
    %65 = vector.broadcast %cst_30 : f32 to vector<32x128xf32>
    %66 = arith.cmpf ogt, %64, %65 : vector<32x128xf32>
    %cst_31 = arith.constant 0.00999999977 : f32
    %67 = vector.broadcast %cst_31 : f32 to vector<32x128xf32>
    %68 = arith.mulf %67, %64 : vector<32x128xf32>
    %69 = arith.select %66, %64, %68 : vector<32x128xi1>, vector<32x128xf32>
    %c0_32 = arith.constant 0 : index
    %c0_33 = arith.constant 0 : index
    %70 = vector.load %arg11[%c0_32, %c0_33] : memref<128x1xf32, #tpu.memory_space<vmem>>, vector<128x1xf32>
    %cst_34 = arith.constant dense<0.000000e+00> : vector<32x1xf32>
    %71 = tpu.matmul %69, %70, %cst_34 {dimension_numbers = #tpu.dot_dimension_numbers<[1], [0], [0], [1], [0, 0, 1, 1], [], []>} : vector<32x128xf32>, vector<128x1xf32>, vector<32x1xf32> -> vector<32x1xf32>
    %c0_35 = arith.constant 0 : index
    %c0_36 = arith.constant 0 : index
    %72 = vector.load %arg12[%c0_35, %c0_36] : memref<1x1xf32, #tpu.memory_space<vmem>>, vector<1x1xf32>
    %73 = vector.broadcast %72 : vector<1x1xf32> to vector<32x1xf32>
    %74 = arith.addf %71, %73 : vector<32x1xf32>
    %c0_37 = arith.constant 0 : index
    %c0_38 = arith.constant 0 : index
    %75 = vector.load %arg13[%c0_37, %c0_38] : memref<2x128xf32, #tpu.memory_space<vmem>>, vector<2x128xf32>
    %c0_39 = arith.constant 0 : index
    %c0_40 = arith.constant 0 : index
    %76 = vector.load %arg14[%c0_39, %c0_40] : memref<1x128xf32, #tpu.memory_space<vmem>>, vector<1x128xf32>
    %c0_41 = arith.constant 0 : index
    %c0_42 = arith.constant 0 : index
    %77 = vector.load %arg15[%c0_41, %c0_42] : memref<1x128xf32, #tpu.memory_space<vmem>>, vector<1x128xf32>
    %c0_43 = arith.constant 0 : index
    %c0_44 = arith.constant 0 : index
    %78 = vector.load %arg16[%c0_43, %c0_44] : memref<1x128xf32, #tpu.memory_space<vmem>>, vector<1x128xf32>
    %c0_45 = arith.constant 0 : index
    %c0_46 = arith.constant 0 : index
    %79 = vector.load %arg2[%c0_45, %c0_46] : memref<32x1xf32, #tpu.memory_space<vmem>>, vector<32x1xf32>
    %80 = vector.extract_strided_slice %75 {offsets = [0, 0], sizes = [1, 128], strides = [1, 1]} : vector<2x128xf32> to vector<1x128xf32>
    %81 = vector.broadcast %79 : vector<32x1xf32> to vector<32x128xf32>
    %82 = vector.broadcast %80 : vector<1x128xf32> to vector<32x128xf32>
    %83 = arith.mulf %81, %82 : vector<32x128xf32>
    %84 = vector.extract_strided_slice %75 {offsets = [1, 0], sizes = [1, 128], strides = [1, 1]} : vector<2x128xf32> to vector<1x128xf32>
    %85 = vector.broadcast %74 : vector<32x1xf32> to vector<32x128xf32>
    %86 = vector.broadcast %84 : vector<1x128xf32> to vector<32x128xf32>
    %87 = arith.mulf %85, %86 : vector<32x128xf32>
    %88 = arith.addf %83, %87 : vector<32x128xf32>
    %89 = vector.broadcast %76 : vector<1x128xf32> to vector<32x128xf32>
    %90 = arith.addf %88, %89 : vector<32x128xf32>
    %cst_47 = arith.constant dense<0.000000e+00> : vector<32xf32>
    %91 = vector.multi_reduction <add>, %90, %cst_47 [1] : vector<32x128xf32> to vector<32xf32>
    %92 = vector.shape_cast %91 : vector<32xf32> to vector<32x1xf32>
    %cst_48 = arith.constant 1.280000e+02 : f32
    %93 = vector.broadcast %cst_48 : f32 to vector<32x1xf32>
    %94 = arith.divf %92, %93 : vector<32x1xf32>
    %95 = vector.broadcast %94 : vector<32x1xf32> to vector<32x128xf32>
    %96 = arith.subf %90, %95 : vector<32x128xf32>
    %97 = arith.mulf %96, %96 : vector<32x128xf32>
    %cst_49 = arith.constant dense<0.000000e+00> : vector<32xf32>
    %98 = vector.multi_reduction <add>, %97, %cst_49 [1] : vector<32x128xf32> to vector<32xf32>
    %99 = vector.shape_cast %98 : vector<32xf32> to vector<32x1xf32>
    %cst_50 = arith.constant 1.280000e+02 : f32
    %100 = vector.broadcast %cst_50 : f32 to vector<32x1xf32>
    %101 = arith.divf %99, %100 : vector<32x1xf32>
    %102 = vector.broadcast %94 : vector<32x1xf32> to vector<32x128xf32>
    %103 = arith.subf %90, %102 : vector<32x128xf32>
    %cst_51 = arith.constant 9.99999974E-6 : f32
    %104 = vector.broadcast %cst_51 : f32 to vector<32x1xf32>
    %105 = arith.addf %101, %104 : vector<32x1xf32>
    %106 = math.rsqrt %105 : vector<32x1xf32>
    %107 = vector.broadcast %106 : vector<32x1xf32> to vector<32x128xf32>
    %108 = arith.mulf %103, %107 : vector<32x128xf32>
    %109 = vector.broadcast %77 : vector<1x128xf32> to vector<32x128xf32>
    %110 = arith.mulf %108, %109 : vector<32x128xf32>
    %111 = vector.broadcast %78 : vector<1x128xf32> to vector<32x128xf32>
    %112 = arith.addf %110, %111 : vector<32x128xf32>
    %cst_52 = arith.constant 0.000000e+00 : f32
    %113 = vector.broadcast %cst_52 : f32 to vector<32x128xf32>
    %114 = arith.cmpf ogt, %112, %113 : vector<32x128xf32>
    %cst_53 = arith.constant 0.00999999977 : f32
    %115 = vector.broadcast %cst_53 : f32 to vector<32x128xf32>
    %116 = arith.mulf %115, %112 : vector<32x128xf32>
    %117 = arith.select %114, %112, %116 : vector<32x128xi1>, vector<32x128xf32>
    %c0_54 = arith.constant 0 : index
    %c0_55 = arith.constant 0 : index
    %118 = vector.load %arg17[%c0_54, %c0_55] : memref<128x64xbf16, #tpu.memory_space<vmem>>, vector<128x64xbf16>
    %119 = arith.truncf %117 : vector<32x128xf32> to vector<32x128xbf16>
    %cst_56 = arith.constant dense<0.000000e+00> : vector<32x64xf32>
    %120 = tpu.matmul %119, %118, %cst_56 {dimension_numbers = #tpu.dot_dimension_numbers<[1], [0], [0], [1], [0, 0, 1, 1], [], []>} : vector<32x128xbf16>, vector<128x64xbf16>, vector<32x64xf32> -> vector<32x64xf32>
    %c0_57 = arith.constant 0 : index
    %c0_58 = arith.constant 0 : index
    %121 = vector.load %arg18[%c0_57, %c0_58] : memref<1x64xf32, #tpu.memory_space<vmem>>, vector<1x64xf32>
    %122 = vector.broadcast %121 : vector<1x64xf32> to vector<32x64xf32>
    %123 = arith.addf %120, %122 : vector<32x64xf32>
    %c0_59 = arith.constant 0 : index
    %c0_60 = arith.constant 0 : index
    %124 = vector.load %arg19[%c0_59, %c0_60] : memref<1x64xf32, #tpu.memory_space<vmem>>, vector<1x64xf32>
    %c0_61 = arith.constant 0 : index
    %c0_62 = arith.constant 0 : index
    %125 = vector.load %arg20[%c0_61, %c0_62] : memref<1x64xf32, #tpu.memory_space<vmem>>, vector<1x64xf32>
    %cst_63 = arith.constant dense<0.000000e+00> : vector<32xf32>
    %126 = vector.multi_reduction <add>, %123, %cst_63 [1] : vector<32x64xf32> to vector<32xf32>
    %127 = vector.shape_cast %126 : vector<32xf32> to vector<32x1xf32>
    %cst_64 = arith.constant 6.400000e+01 : f32
    %128 = vector.broadcast %cst_64 : f32 to vector<32x1xf32>
    %129 = arith.divf %127, %128 : vector<32x1xf32>
    %130 = vector.broadcast %129 : vector<32x1xf32> to vector<32x64xf32>
    %131 = arith.subf %123, %130 : vector<32x64xf32>
    %132 = arith.mulf %131, %131 : vector<32x64xf32>
    %cst_65 = arith.constant dense<0.000000e+00> : vector<32xf32>
    %133 = vector.multi_reduction <add>, %132, %cst_65 [1] : vector<32x64xf32> to vector<32xf32>
    %134 = vector.shape_cast %133 : vector<32xf32> to vector<32x1xf32>
    %cst_66 = arith.constant 6.400000e+01 : f32
    %135 = vector.broadcast %cst_66 : f32 to vector<32x1xf32>
    %136 = arith.divf %134, %135 : vector<32x1xf32>
    %137 = vector.broadcast %129 : vector<32x1xf32> to vector<32x64xf32>
    %138 = arith.subf %123, %137 : vector<32x64xf32>
    %cst_67 = arith.constant 9.99999974E-6 : f32
    %139 = vector.broadcast %cst_67 : f32 to vector<32x1xf32>
    %140 = arith.addf %136, %139 : vector<32x1xf32>
    %141 = math.rsqrt %140 : vector<32x1xf32>
    %142 = vector.broadcast %141 : vector<32x1xf32> to vector<32x64xf32>
    %143 = arith.mulf %138, %142 : vector<32x64xf32>
    %144 = vector.broadcast %124 : vector<1x64xf32> to vector<32x64xf32>
    %145 = arith.mulf %143, %144 : vector<32x64xf32>
    %146 = vector.broadcast %125 : vector<1x64xf32> to vector<32x64xf32>
    %147 = arith.addf %145, %146 : vector<32x64xf32>
    %cst_68 = arith.constant 0.000000e+00 : f32
    %148 = vector.broadcast %cst_68 : f32 to vector<32x64xf32>
    %149 = arith.cmpf ogt, %147, %148 : vector<32x64xf32>
    %cst_69 = arith.constant 0.00999999977 : f32
    %150 = vector.broadcast %cst_69 : f32 to vector<32x64xf32>
    %151 = arith.mulf %150, %147 : vector<32x64xf32>
    %152 = arith.select %149, %147, %151 : vector<32x64xi1>, vector<32x64xf32>
    %c0_70 = arith.constant 0 : index
    %c0_71 = arith.constant 0 : index
    %153 = vector.load %arg21[%c0_70, %c0_71] : memref<64x8xf32, #tpu.memory_space<vmem>>, vector<64x8xf32>
    %cst_72 = arith.constant dense<0.000000e+00> : vector<32x8xf32>
    %154 = tpu.matmul %152, %153, %cst_72 {dimension_numbers = #tpu.dot_dimension_numbers<[1], [0], [0], [1], [0, 0, 1, 1], [], []>} : vector<32x64xf32>, vector<64x8xf32>, vector<32x8xf32> -> vector<32x8xf32>
    %c0_73 = arith.constant 0 : index
    %c0_74 = arith.constant 0 : index
    %155 = vector.load %arg22[%c0_73, %c0_74] : memref<1x8xf32, #tpu.memory_space<vmem>>, vector<1x8xf32>
    %156 = vector.broadcast %155 : vector<1x8xf32> to vector<32x8xf32>
    %157 = arith.addf %154, %156 : vector<32x8xf32>
    %c0_75 = arith.constant 0 : index
    %c0_76 = arith.constant 0 : index
    %158 = vector.load %arg23[%c0_75, %c0_76] : memref<8x384xf32, #tpu.memory_space<vmem>>, vector<8x384xf32>
    %cst_77 = arith.constant dense<0.000000e+00> : vector<32x384xf32>
    %159 = tpu.matmul %157, %158, %cst_77 {dimension_numbers = #tpu.dot_dimension_numbers<[1], [0], [0], [1], [0, 0, 1, 1], [], []>} : vector<32x8xf32>, vector<8x384xf32>, vector<32x384xf32> -> vector<32x384xf32>
    %c0_78 = arith.constant 0 : index
    %c0_79 = arith.constant 0 : index
    %160 = vector.load %arg24[%c0_78, %c0_79] : memref<32x384xf32, #tpu.memory_space<vmem>>, vector<32x384xf32>
    tpu.vector_store %arg24[%c0_78, %c0_79], %159 {strides = array<i32>} : memref<32x384xf32, #tpu.memory_space<vmem>>, vector<32x384xf32>,
    return
  }
  func.func @transform_0(%arg0: i32) -> (i32, i32) {
    %c0_i32 = arith.constant 0 : i32
    %c0_i32_0 = arith.constant 0 : i32
    return %arg0, %c0_i32 : i32, i32
  }
  func.func @transform_1(%arg0: i32) -> (i32, i32) {
    %c0_i32 = arith.constant 0 : i32
    %c0_i32_0 = arith.constant 0 : i32
    return %arg0, %c0_i32 : i32, i32
  }
  func.func @transform_2(%arg0: i32) -> (i32, i32) {
    %c0_i32 = arith.constant 0 : i32
    %c0_i32_0 = arith.constant 0 : i32
    %c0_i32_1 = arith.constant 0 : i32
    return %c0_i32, %c0_i32_0 : i32, i32
  }
  func.func @transform_3(%arg0: i32) -> (i32, i32) {
    %c0_i32 = arith.constant 0 : i32
    %c0_i32_0 = arith.constant 0 : i32
    %c0_i32_1 = arith.constant 0 : i32
    return %c0_i32, %c0_i32_0 : i32, i32
  }
  func.func @transform_4(%arg0: i32) -> (i32, i32) {
    %c0_i32 = arith.constant 0 : i32
    %c0_i32_0 = arith.constant 0 : i32
    %c0_i32_1 = arith.constant 0 : i32
    return %c0_i32, %c0_i32_0 : i32, i32
  }
  func.func @transform_5(%arg0: i32) -> (i32, i32) {
    %c0_i32 = arith.constant 0 : i32
    %c0_i32_0 = arith.constant 0 : i32
    %c0_i32_1 = arith.constant 0 : i32
    return %c0_i32, %c0_i32_0 : i32, i32
  }
  func.func @transform_6(%arg0: i32) -> (i32, i32) {
    %c0_i32 = arith.constant 0 : i32
    %c0_i32_0 = arith.constant 0 : i32
    %c0_i32_1 = arith.constant 0 : i32
    return %c0_i32, %c0_i32_0 : i32, i32
  }
  func.func @transform_7(%arg0: i32) -> (i32, i32) {
    %c0_i32 = arith.constant 0 : i32
    %c0_i32_0 = arith.constant 0 : i32
    %c0_i32_1 = arith.constant 0 : i32
    return %c0_i32, %c0_i32_0 : i32, i32
  }
  func.func @transform_8(%arg0: i32) -> (i32, i32) {
    %c0_i32 = arith.constant 0 : i32
    %c0_i32_0 = arith.constant 0 : i32
    %c0_i32_1 = arith.constant 0 : i32
    return %c0_i32, %c0_i32_0 : i32, i32
  }
  func.func @transform_9(%arg0: i32) -> (i32, i32) {
    %c0_i32 = arith.constant 0 : i32
    %c0_i32_0 = arith.constant 0 : i32
    %c0_i32_1 = arith.constant 0 : i32
    return %c0_i32, %c0_i32_0 : i32, i32
  }
  func.func @transform_10(%arg0: i32) -> (i32, i32) {
    %c0_i32 = arith.constant 0 : i32
    %c0_i32_0 = arith.constant 0 : i32
    %c0_i32_1 = arith.constant 0 : i32
    return %c0_i32, %c0_i32_0 : i32, i32
  }
  func.func @transform_11(%arg0: i32) -> (i32, i32) {
    %c0_i32 = arith.constant 0 : i32
    %c0_i32_0 = arith.constant 0 : i32
    %c0_i32_1 = arith.constant 0 : i32
    return %c0_i32, %c0_i32_0 : i32, i32
  }
  func.func @transform_12(%arg0: i32) -> (i32, i32) {
    %c0_i32 = arith.constant 0 : i32
    %c0_i32_0 = arith.constant 0 : i32
    %c0_i32_1 = arith.constant 0 : i32
    return %c0_i32, %c0_i32_0 : i32, i32
  }
  func.func @transform_13(%arg0: i32) -> (i32, i32) {
    %c0_i32 = arith.constant 0 : i32
    %c0_i32_0 = arith.constant 0 : i32
    %c0_i32_1 = arith.constant 0 : i32
    return %c0_i32, %c0_i32_0 : i32, i32
  }
  func.func @transform_14(%arg0: i32) -> (i32, i32) {
    %c0_i32 = arith.constant 0 : i32
    %c0_i32_0 = arith.constant 0 : i32
    %c0_i32_1 = arith.constant 0 : i32
    return %c0_i32, %c0_i32_0 : i32, i32
  }
  func.func @transform_15(%arg0: i32) -> (i32, i32) {
    %c0_i32 = arith.constant 0 : i32
    %c0_i32_0 = arith.constant 0 : i32
    %c0_i32_1 = arith.constant 0 : i32
    return %c0_i32, %c0_i32_0 : i32, i32
  }
  func.func @transform_16(%arg0: i32) -> (i32, i32) {
    %c0_i32 = arith.constant 0 : i32
    %c0_i32_0 = arith.constant 0 : i32
    %c0_i32_1 = arith.constant 0 : i32
    return %c0_i32, %c0_i32_0 : i32, i32
  }
  func.func @transform_17(%arg0: i32) -> (i32, i32) {
    %c0_i32 = arith.constant 0 : i32
    %c0_i32_0 = arith.constant 0 : i32
    %c0_i32_1 = arith.constant 0 : i32
    return %c0_i32, %c0_i32_0 : i32, i32
  }
  func.func @transform_18(%arg0: i32) -> (i32, i32) {
    %c0_i32 = arith.constant 0 : i32
    %c0_i32_0 = arith.constant 0 : i32
    %c0_i32_1 = arith.constant 0 : i32
    return %c0_i32, %c0_i32_0 : i32, i32
  }
  func.func @transform_19(%arg0: i32) -> (i32, i32) {
    %c0_i32 = arith.constant 0 : i32
    %c0_i32_0 = arith.constant 0 : i32
    %c0_i32_1 = arith.constant 0 : i32
    return %c0_i32, %c0_i32_0 : i32, i32
  }
  func.func @transform_20(%arg0: i32) -> (i32, i32) {
    %c0_i32 = arith.constant 0 : i32
    %c0_i32_0 = arith.constant 0 : i32
    %c0_i32_1 = arith.constant 0 : i32
    return %c0_i32, %c0_i32_0 : i32, i32
  }
  func.func @transform_21(%arg0: i32) -> (i32, i32) {
    %c0_i32 = arith.constant 0 : i32
    %c0_i32_0 = arith.constant 0 : i32
    %c0_i32_1 = arith.constant 0 : i32
    return %c0_i32, %c0_i32_0 : i32, i32
  }
  func.func @transform_22(%arg0: i32) -> (i32, i32) {
    %c0_i32 = arith.constant 0 : i32
    %c0_i32_0 = arith.constant 0 : i32
    %c0_i32_1 = arith.constant 0 : i32
    return %c0_i32, %c0_i32_0 : i32, i32
  }
  func.func @transform_23(%arg0: i32) -> (i32, i32) {
    %c0_i32 = arith.constant 0 : i32
    %c0_i32_0 = arith.constant 0 : i32
    return %arg0, %c0_i32 : i32, i32
  }
}

module attributes {stable_mosaic.version = 11 : i64} {
  func.func @_mlp_chain_kernel(%arg0: i32, %arg1: memref<64x2xf32, #tpu.memory_space<vmem>>, %arg2: memref<2x12xf32, #tpu.memory_space<vmem>>, %arg3: memref<1x12xf32, #tpu.memory_space<vmem>>, %arg4: memref<1x12xf32, #tpu.memory_space<vmem>>, %arg5: memref<1x12xf32, #tpu.memory_space<vmem>>, %arg6: memref<12x8xf32, #tpu.memory_space<vmem>>, %arg7: memref<1x8xf32, #tpu.memory_space<vmem>>, %arg8: memref<64x8xf32, #tpu.memory_space<vmem>>) attributes {dimension_semantics = [#tpu.dimension_semantics<parallel>], iteration_bounds = array<i64: 1>, scalar_prefetch = 0 : i64, scratch_operands = 0 : i64, tpu.core_type = #tpu.core_type<tc>, window_params = [{transform_indices = @transform_0, window_bounds = array<i64: 64, 2>}, {pipeline_mode = #tpu.pipeline_mode<synchronous>, transform_indices = @transform_1, window_bounds = array<i64: 2, 12>}, {pipeline_mode = #tpu.pipeline_mode<synchronous>, transform_indices = @transform_2, window_bounds = array<i64: 1, 12>}, {pipeline_mode = #tpu.pipeline_mode<synchronous>, transform_indices = @transform_3, window_bounds = array<i64: 1, 12>}, {pipeline_mode = #tpu.pipeline_mode<synchronous>, transform_indices = @transform_4, window_bounds = array<i64: 1, 12>}, {pipeline_mode = #tpu.pipeline_mode<synchronous>, transform_indices = @transform_5, window_bounds = array<i64: 12, 8>}, {pipeline_mode = #tpu.pipeline_mode<synchronous>, transform_indices = @transform_6, window_bounds = array<i64: 1, 8>}, {transform_indices = @transform_7, window_bounds = array<i64: 64, 8>}]} {
    %c0 = arith.constant 0 : index
    %c0_0 = arith.constant 0 : index
    %0 = vector.load %arg1[%c0, %c0_0] : memref<64x2xf32, #tpu.memory_space<vmem>>, vector<64x2xf32>
    %c0_1 = arith.constant 0 : index
    %c0_2 = arith.constant 0 : index
    %1 = vector.load %arg2[%c0_1, %c0_2] : memref<2x12xf32, #tpu.memory_space<vmem>>, vector<2x12xf32>
    %cst = arith.constant dense<0.000000e+00> : vector<64x12xf32>
    %2 = tpu.matmul %0, %1, %cst {dimension_numbers = #tpu.dot_dimension_numbers<[1], [0], [0], [1], [0, 0, 1, 1], [], []>} : vector<64x2xf32>, vector<2x12xf32>, vector<64x12xf32> -> vector<64x12xf32>
    %c0_3 = arith.constant 0 : index
    %c0_4 = arith.constant 0 : index
    %3 = vector.load %arg3[%c0_3, %c0_4] : memref<1x12xf32, #tpu.memory_space<vmem>>, vector<1x12xf32>
    %4 = vector.broadcast %3 : vector<1x12xf32> to vector<64x12xf32>
    %5 = arith.addf %2, %4 : vector<64x12xf32>
    %c0_5 = arith.constant 0 : index
    %c0_6 = arith.constant 0 : index
    %6 = vector.load %arg4[%c0_5, %c0_6] : memref<1x12xf32, #tpu.memory_space<vmem>>, vector<1x12xf32>
    %c0_7 = arith.constant 0 : index
    %c0_8 = arith.constant 0 : index
    %7 = vector.load %arg5[%c0_7, %c0_8] : memref<1x12xf32, #tpu.memory_space<vmem>>, vector<1x12xf32>
    %cst_9 = arith.constant dense<0.000000e+00> : vector<64xf32>
    %8 = vector.multi_reduction <add>, %5, %cst_9 [1] : vector<64x12xf32> to vector<64xf32>
    %9 = vector.shape_cast %8 : vector<64xf32> to vector<64x1xf32>
    %cst_10 = arith.constant 1.200000e+01 : f32
    %10 = vector.broadcast %cst_10 : f32 to vector<64x1xf32>
    %11 = arith.divf %9, %10 : vector<64x1xf32>
    %12 = vector.broadcast %11 : vector<64x1xf32> to vector<64x12xf32>
    %13 = arith.subf %5, %12 : vector<64x12xf32>
    %14 = arith.mulf %13, %13 : vector<64x12xf32>
    %cst_11 = arith.constant dense<0.000000e+00> : vector<64xf32>
    %15 = vector.multi_reduction <add>, %14, %cst_11 [1] : vector<64x12xf32> to vector<64xf32>
    %16 = vector.shape_cast %15 : vector<64xf32> to vector<64x1xf32>
    %cst_12 = arith.constant 1.200000e+01 : f32
    %17 = vector.broadcast %cst_12 : f32 to vector<64x1xf32>
    %18 = arith.divf %16, %17 : vector<64x1xf32>
    %19 = vector.broadcast %11 : vector<64x1xf32> to vector<64x12xf32>
    %20 = arith.subf %5, %19 : vector<64x12xf32>
    %cst_13 = arith.constant 9.99999974E-6 : f32
    %21 = vector.broadcast %cst_13 : f32 to vector<64x1xf32>
    %22 = arith.addf %18, %21 : vector<64x1xf32>
    %23 = math.rsqrt %22 : vector<64x1xf32>
    %24 = vector.broadcast %23 : vector<64x1xf32> to vector<64x12xf32>
    %25 = arith.mulf %20, %24 : vector<64x12xf32>
    %26 = vector.broadcast %6 : vector<1x12xf32> to vector<64x12xf32>
    %27 = arith.mulf %25, %26 : vector<64x12xf32>
    %28 = vector.broadcast %7 : vector<1x12xf32> to vector<64x12xf32>
    %29 = arith.addf %27, %28 : vector<64x12xf32>
    %cst_14 = arith.constant 0.000000e+00 : f32
    %30 = vector.broadcast %cst_14 : f32 to vector<64x12xf32>
    %31 = arith.cmpf ogt, %29, %30 : vector<64x12xf32>
    %cst_15 = arith.constant 0.00999999977 : f32
    %32 = vector.broadcast %cst_15 : f32 to vector<64x12xf32>
    %33 = arith.mulf %32, %29 : vector<64x12xf32>
    %34 = arith.select %31, %29, %33 : vector<64x12xi1>, vector<64x12xf32>
    %c0_16 = arith.constant 0 : index
    %c0_17 = arith.constant 0 : index
    %35 = vector.load %arg6[%c0_16, %c0_17] : memref<12x8xf32, #tpu.memory_space<vmem>>, vector<12x8xf32>
    %cst_18 = arith.constant dense<0.000000e+00> : vector<64x8xf32>
    %36 = tpu.matmul %34, %35, %cst_18 {dimension_numbers = #tpu.dot_dimension_numbers<[1], [0], [0], [1], [0, 0, 1, 1], [], []>} : vector<64x12xf32>, vector<12x8xf32>, vector<64x8xf32> -> vector<64x8xf32>
    %c0_19 = arith.constant 0 : index
    %c0_20 = arith.constant 0 : index
    %37 = vector.load %arg7[%c0_19, %c0_20] : memref<1x8xf32, #tpu.memory_space<vmem>>, vector<1x8xf32>
    %38 = vector.broadcast %37 : vector<1x8xf32> to vector<64x8xf32>
    %39 = arith.addf %36, %38 : vector<64x8xf32>
    %cst_21 = arith.constant 0.000000e+00 : f32
    %40 = vector.broadcast %cst_21 : f32 to vector<64x8xf32>
    %41 = arith.subf %40, %39 : vector<64x8xf32>
    %42 = math.exp %41 : vector<64x8xf32>
    %cst_22 = arith.constant 1.000000e+00 : f32
    %43 = vector.broadcast %cst_22 : f32 to vector<64x8xf32>
    %44 = arith.addf %43, %42 : vector<64x8xf32>
    %cst_23 = arith.constant 1.000000e+00 : f32
    %45 = vector.broadcast %cst_23 : f32 to vector<64x8xf32>
    %46 = arith.divf %45, %44 : vector<64x8xf32>
    %c0_24 = arith.constant 0 : index
    %c0_25 = arith.constant 0 : index
    %47 = vector.load %arg8[%c0_24, %c0_25] : memref<64x8xf32, #tpu.memory_space<vmem>>, vector<64x8xf32>
    tpu.vector_store %arg8[%c0_24, %c0_25], %46 {strides = array<i32>} : memref<64x8xf32, #tpu.memory_space<vmem>>, vector<64x8xf32>,
    return
  }
  func.func @transform_0(%arg0: i32) -> (i32, i32) {
    %c0_i32 = arith.constant 0 : i32
    %c0_i32_0 = arith.constant 0 : i32
    return %arg0, %c0_i32 : i32, i32
  }
  func.func @transform_1(%arg0: i32) -> (i32, i32) {
    %c0_i32 = arith.constant 0 : i32
    %c0_i32_0 = arith.constant 0 : i32
    %c0_i32_1 = arith.constant 0 : i32
    return %c0_i32, %c0_i32_0 : i32, i32
  }
  func.func @transform_2(%arg0: i32) -> (i32, i32) {
    %c0_i32 = arith.constant 0 : i32
    %c0_i32_0 = arith.constant 0 : i32
    %c0_i32_1 = arith.constant 0 : i32
    return %c0_i32, %c0_i32_0 : i32, i32
  }
  func.func @transform_3(%arg0: i32) -> (i32, i32) {
    %c0_i32 = arith.constant 0 : i32
    %c0_i32_0 = arith.constant 0 : i32
    %c0_i32_1 = arith.constant 0 : i32
    return %c0_i32, %c0_i32_0 : i32, i32
  }
  func.func @transform_4(%arg0: i32) -> (i32, i32) {
    %c0_i32 = arith.constant 0 : i32
    %c0_i32_0 = arith.constant 0 : i32
    %c0_i32_1 = arith.constant 0 : i32
    return %c0_i32, %c0_i32_0 : i32, i32
  }
  func.func @transform_5(%arg0: i32) -> (i32, i32) {
    %c0_i32 = arith.constant 0 : i32
    %c0_i32_0 = arith.constant 0 : i32
    %c0_i32_1 = arith.constant 0 : i32
    return %c0_i32, %c0_i32_0 : i32, i32
  }
  func.func @transform_6(%arg0: i32) -> (i32, i32) {
    %c0_i32 = arith.constant 0 : i32
    %c0_i32_0 = arith.constant 0 : i32
    %c0_i32_1 = arith.constant 0 : i32
    return %c0_i32, %c0_i32_0 : i32, i32
  }
  func.func @transform_7(%arg0: i32) -> (i32, i32) {
    %c0_i32 = arith.constant 0 : i32
    %c0_i32_0 = arith.constant 0 : i32
    return %arg0, %c0_i32 : i32, i32
  }
}

module attributes {stable_mosaic.version = 11 : i64} {
  func.func @_gat_agg_kernel(%arg0: i32, %arg1: memref<2xi32, #tpu.memory_space<smem>>, %arg2: memref<1x128xi32, #tpu.memory_space<vmem>>, %arg3: memref<128x16xf32, #tpu.memory_space<vmem>>, %arg4: memref<128x256xbf16, #tpu.memory_space<vmem>>, %arg5: memref<16x256xbf16, #tpu.memory_space<vmem>>, %arg6: memref<16x256xf32, #tpu.memory_space<vmem>>, %arg7: memref<1x256xf32, #tpu.memory_space<vmem>>, %arg8: memref<32x256xf32, #tpu.memory_space<vmem>>, %arg9: memref<32x16xf32, #tpu.memory_space<vmem>>, %arg10: memref<128x16xf32, #tpu.memory_space<vmem>>) attributes {dimension_semantics = [#tpu.dimension_semantics<arbitrary>], iteration_bounds = array<i64: 2>, scalar_prefetch = 1 : i64, scratch_operands = 0 : i64, tpu.core_type = #tpu.core_type<tc>, window_params = [{transform_indices = @transform_0, window_bounds = array<i64: 1, 128>}, {transform_indices = @transform_1, window_bounds = array<i64: 128, 16>}, {transform_indices = @transform_2, window_bounds = array<i64: 128, 256>}, {pipeline_mode = #tpu.pipeline_mode<synchronous>, transform_indices = @transform_3, window_bounds = array<i64: 16, 256>}, {pipeline_mode = #tpu.pipeline_mode<synchronous>, transform_indices = @transform_4, window_bounds = array<i64: 16, 256>}, {pipeline_mode = #tpu.pipeline_mode<synchronous>, transform_indices = @transform_5, window_bounds = array<i64: 1, 256>}, {pipeline_mode = #tpu.pipeline_mode<synchronous>, transform_indices = @transform_6, window_bounds = array<i64: 32, 256>}, {pipeline_mode = #tpu.pipeline_mode<synchronous>, transform_indices = @transform_7, window_bounds = array<i64: 32, 16>}, {transform_indices = @transform_8, window_bounds = array<i64: 128, 16>}]} {
    %c0_i32 = arith.constant 0 : i32
    %0 = arith.cmpi eq, %arg0, %c0_i32 : i32
    %1 = arith.extui %0 : i1 to i32
    %c0_i32_0 = arith.constant 0 : i32
    %2 = arith.cmpi ne, %1, %c0_i32_0 : i32
    scf.if %2 {
      %cst_19 = arith.constant 0.000000e+00 : f32
      %41 = vector.broadcast %cst_19 : f32 to vector<32x256xf32>
      %c0_20 = arith.constant 0 : index
      %c0_21 = arith.constant 0 : index
      %42 = vector.load %arg8[%c0_20, %c0_21] : memref<32x256xf32, #tpu.memory_space<vmem>>, vector<32x256xf32>
      tpu.vector_store %arg8[%c0_20, %c0_21], %41 {strides = array<i32>} : memref<32x256xf32, #tpu.memory_space<vmem>>, vector<32x256xf32>,
      %cst_22 = arith.constant 0.000000e+00 : f32
      %43 = vector.broadcast %cst_22 : f32 to vector<32x16xf32>
      %c0_23 = arith.constant 0 : index
      %c0_24 = arith.constant 0 : index
      %44 = vector.load %arg9[%c0_23, %c0_24] : memref<32x16xf32, #tpu.memory_space<vmem>>, vector<32x16xf32>
      tpu.vector_store %arg9[%c0_23, %c0_24], %43 {strides = array<i32>} : memref<32x16xf32, #tpu.memory_space<vmem>>, vector<32x16xf32>,
    } else {
    }
    %3 = arith.index_cast %arg0 : i32 to index
    %4 = memref.load %arg1[%3] : memref<2xi32, #tpu.memory_space<smem>>
    %5 = tpu.assume_multiple %4, 8 : i32
    %c0 = arith.constant 0 : index
    %c0_1 = arith.constant 0 : index
    %6 = vector.load %arg3[%c0, %c0_1] : memref<128x16xf32, #tpu.memory_space<vmem>>, vector<128x16xf32>
    %7 = math.exp %6 : vector<128x16xf32>
    %c0_2 = arith.constant 0 : index
    %c0_3 = arith.constant 0 : index
    %8 = vector.load %arg10[%c0_2, %c0_3] : memref<128x16xf32, #tpu.memory_space<vmem>>, vector<128x16xf32>
    tpu.vector_store %arg10[%c0_2, %c0_3], %7 {strides = array<i32>} : memref<128x16xf32, #tpu.memory_space<vmem>>, vector<128x16xf32>,
    %9 = arith.truncf %7 : vector<128x16xf32> to vector<128x16xbf16>
    %c0_4 = arith.constant 0 : index
    %c0_5 = arith.constant 0 : index
    %10 = vector.load %arg2[%c0_4, %c0_5] : memref<1x128xi32, #tpu.memory_space<vmem>>, vector<1x128xi32>
    %11 = vector.broadcast %5 : i32 to vector<1x128xi32>
    %12 = arith.subi %10, %11 : vector<1x128xi32>
    %13 = tpu.iota {dimensions = array<i32: 0>} : vector<32x128xi32>
    %14 = vector.broadcast %12 : vector<1x128xi32> to vector<32x128xi32>
    %15 = arith.cmpi eq, %13, %14 : vector<32x128xi32>
    %cst = arith.constant 1.000000e+00 : f32
    %cst_6 = arith.constant 0.000000e+00 : f32
    %16 = vector.broadcast %cst : f32 to vector<32x128xf32>
    %17 = vector.broadcast %cst_6 : f32 to vector<32x128xf32>
    %18 = arith.select %15, %16, %17 : vector<32x128xi1>, vector<32x128xf32>
    %19 = arith.truncf %18 : vector<32x128xf32> to vector<32x128xbf16>
    %20 = arith.index_cast %5 : i32 to index
    %c0_7 = arith.constant 0 : index
    %21 = vector.load %arg9[%20, %c0_7] : memref<32x16xf32, #tpu.memory_space<vmem>>, vector<32x16xf32>
    %cst_8 = arith.constant dense<0.000000e+00> : vector<32x16xf32>
    %22 = tpu.matmul %19, %9, %cst_8 {dimension_numbers = #tpu.dot_dimension_numbers<[1], [0], [0], [1], [0, 0, 1, 1], [], []>} : vector<32x128xbf16>, vector<128x16xbf16>, vector<32x16xf32> -> vector<32x16xf32>
    %23 = arith.addf %21, %22 : vector<32x16xf32>
    %24 = arith.index_cast %5 : i32 to index
    %c0_9 = arith.constant 0 : index
    %25 = vector.load %arg9[%24, %c0_9] : memref<32x16xf32, #tpu.memory_space<vmem>>, vector<32x16xf32>
    tpu.vector_store %arg9[%24, %c0_9], %23 {strides = array<i32>} : memref<32x16xf32, #tpu.memory_space<vmem>>, vector<32x16xf32>,
    %c0_10 = arith.constant 0 : index
    %c0_11 = arith.constant 0 : index
    %26 = vector.load %arg5[%c0_10, %c0_11] : memref<16x256xbf16, #tpu.memory_space<vmem>>, vector<16x256xbf16>
    %cst_12 = arith.constant dense<0.000000e+00> : vector<128x256xf32>
    %27 = tpu.matmul %9, %26, %cst_12 {dimension_numbers = #tpu.dot_dimension_numbers<[1], [0], [0], [1], [0, 0, 1, 1], [], []>} : vector<128x16xbf16>, vector<16x256xbf16>, vector<128x256xf32> -> vector<128x256xf32>
    %c0_13 = arith.constant 0 : index
    %c0_14 = arith.constant 0 : index
    %28 = vector.load %arg4[%c0_13, %c0_14] : memref<128x256xbf16, #tpu.memory_space<vmem>>, vector<128x256xbf16>
    %29 = arith.extf %28 : vector<128x256xbf16> to vector<128x256xf32>
    %30 = arith.mulf %29, %27 : vector<128x256xf32>
    %31 = arith.truncf %30 : vector<128x256xf32> to vector<128x256xbf16>
    %32 = arith.index_cast %5 : i32 to index
    %c0_15 = arith.constant 0 : index
    %33 = vector.load %arg8[%32, %c0_15] : memref<32x256xf32, #tpu.memory_space<vmem>>, vector<32x256xf32>
    %cst_16 = arith.constant dense<0.000000e+00> : vector<32x256xf32>
    %34 = tpu.matmul %19, %31, %cst_16 {dimension_numbers = #tpu.dot_dimension_numbers<[1], [0], [0], [1], [0, 0, 1, 1], [], []>} : vector<32x128xbf16>, vector<128x256xbf16>, vector<32x256xf32> -> vector<32x256xf32>
    %35 = arith.addf %33, %34 : vector<32x256xf32>
    %36 = arith.index_cast %5 : i32 to index
    %c0_17 = arith.constant 0 : index
    %37 = vector.load %arg8[%36, %c0_17] : memref<32x256xf32, #tpu.memory_space<vmem>>, vector<32x256xf32>
    tpu.vector_store %arg8[%36, %c0_17], %35 {strides = array<i32>} : memref<32x256xf32, #tpu.memory_space<vmem>>, vector<32x256xf32>,
    %c1_i32 = arith.constant 1 : i32
    %38 = arith.cmpi eq, %arg0, %c1_i32 : i32
    %39 = arith.extui %38 : i1 to i32
    %c0_i32_18 = arith.constant 0 : i32
    %40 = arith.cmpi ne, %39, %c0_i32_18 : i32
    scf.if %40 {
      %c0_19 = arith.constant 0 : index
      %c0_20 = arith.constant 0 : index
      %41 = vector.load %arg9[%c0_19, %c0_20] : memref<32x16xf32, #tpu.memory_space<vmem>>, vector<32x16xf32>
      %cst_21 = arith.constant 1.000000e-30 : f32
      %42 = vector.broadcast %cst_21 : f32 to vector<32x16xf32>
      %43 = arith.maximumf %41, %42 : vector<32x16xf32>
      %cst_22 = arith.constant 1.000000e+00 : f32
      %44 = vector.broadcast %cst_22 : f32 to vector<32x16xf32>
      %45 = arith.divf %44, %43 : vector<32x16xf32>
      %c0_23 = arith.constant 0 : index
      %c0_24 = arith.constant 0 : index
      %46 = vector.load %arg6[%c0_23, %c0_24] : memref<16x256xf32, #tpu.memory_space<vmem>>, vector<16x256xf32>
      %cst_25 = arith.constant dense<0.000000e+00> : vector<32x256xf32>
      %47 = tpu.matmul %45, %46, %cst_25 {dimension_numbers = #tpu.dot_dimension_numbers<[1], [0], [0], [1], [0, 0, 1, 1], [], []>} : vector<32x16xf32>, vector<16x256xf32>, vector<32x256xf32> -> vector<32x256xf32>
      %c0_26 = arith.constant 0 : index
      %c0_27 = arith.constant 0 : index
      %48 = vector.load %arg8[%c0_26, %c0_27] : memref<32x256xf32, #tpu.memory_space<vmem>>, vector<32x256xf32>
      %49 = arith.mulf %48, %47 : vector<32x256xf32>
      %c0_28 = arith.constant 0 : index
      %c0_29 = arith.constant 0 : index
      %50 = vector.load %arg7[%c0_28, %c0_29] : memref<1x256xf32, #tpu.memory_space<vmem>>, vector<1x256xf32>
      %51 = vector.broadcast %50 : vector<1x256xf32> to vector<32x256xf32>
      %52 = arith.addf %49, %51 : vector<32x256xf32>
      %c0_30 = arith.constant 0 : index
      %c0_31 = arith.constant 0 : index
      %53 = vector.load %arg8[%c0_30, %c0_31] : memref<32x256xf32, #tpu.memory_space<vmem>>, vector<32x256xf32>
      tpu.vector_store %arg8[%c0_30, %c0_31], %52 {strides = array<i32>} : memref<32x256xf32, #tpu.memory_space<vmem>>, vector<32x256xf32>,
    } else {
    }
    return
  }
  func.func @transform_0(%arg0: i32, %arg1: memref<2xi32, #tpu.memory_space<smem>>) -> (i32, i32) {
    %c0_i32 = arith.constant 0 : i32
    %c0_i32_0 = arith.constant 0 : i32
    return %c0_i32, %arg0 : i32, i32
  }
  func.func @transform_1(%arg0: i32, %arg1: memref<2xi32, #tpu.memory_space<smem>>) -> (i32, i32) {
    %c0_i32 = arith.constant 0 : i32
    %c0_i32_0 = arith.constant 0 : i32
    return %arg0, %c0_i32 : i32, i32
  }
  func.func @transform_2(%arg0: i32, %arg1: memref<2xi32, #tpu.memory_space<smem>>) -> (i32, i32) {
    %c0_i32 = arith.constant 0 : i32
    %c0_i32_0 = arith.constant 0 : i32
    return %arg0, %c0_i32 : i32, i32
  }
  func.func @transform_3(%arg0: i32, %arg1: memref<2xi32, #tpu.memory_space<smem>>) -> (i32, i32) {
    %c0_i32 = arith.constant 0 : i32
    %c0_i32_0 = arith.constant 0 : i32
    %c0_i32_1 = arith.constant 0 : i32
    return %c0_i32, %c0_i32_0 : i32, i32
  }
  func.func @transform_4(%arg0: i32, %arg1: memref<2xi32, #tpu.memory_space<smem>>) -> (i32, i32) {
    %c0_i32 = arith.constant 0 : i32
    %c0_i32_0 = arith.constant 0 : i32
    %c0_i32_1 = arith.constant 0 : i32
    return %c0_i32, %c0_i32_0 : i32, i32
  }
  func.func @transform_5(%arg0: i32, %arg1: memref<2xi32, #tpu.memory_space<smem>>) -> (i32, i32) {
    %c0_i32 = arith.constant 0 : i32
    %c0_i32_0 = arith.constant 0 : i32
    %c0_i32_1 = arith.constant 0 : i32
    return %c0_i32, %c0_i32_0 : i32, i32
  }
  func.func @transform_6(%arg0: i32, %arg1: memref<2xi32, #tpu.memory_space<smem>>) -> (i32, i32) {
    %c0_i32 = arith.constant 0 : i32
    %c0_i32_0 = arith.constant 0 : i32
    %c0_i32_1 = arith.constant 0 : i32
    return %c0_i32, %c0_i32_0 : i32, i32
  }
  func.func @transform_7(%arg0: i32, %arg1: memref<2xi32, #tpu.memory_space<smem>>) -> (i32, i32) {
    %c0_i32 = arith.constant 0 : i32
    %c0_i32_0 = arith.constant 0 : i32
    %c0_i32_1 = arith.constant 0 : i32
    return %c0_i32, %c0_i32_0 : i32, i32
  }
  func.func @transform_8(%arg0: i32, %arg1: memref<2xi32, #tpu.memory_space<smem>>) -> (i32, i32) {
    %c0_i32 = arith.constant 0 : i32
    %c0_i32_0 = arith.constant 0 : i32
    return %arg0, %c0_i32 : i32, i32
  }
}

module attributes {stable_mosaic.version = 11 : i64} {
  func.func @_mlp_chain_kernel(%arg0: i32, %arg1: memref<32x256xbf16, #tpu.memory_space<vmem>>, %arg2: memref<256x16xbf16, #tpu.memory_space<vmem>>, %arg3: memref<1x16xf32, #tpu.memory_space<vmem>>, %arg4: memref<16x384xf32, #tpu.memory_space<vmem>>, %arg5: memref<32x384xf32, #tpu.memory_space<vmem>>) attributes {dimension_semantics = [#tpu.dimension_semantics<parallel>], iteration_bounds = array<i64: 1>, scalar_prefetch = 0 : i64, scratch_operands = 0 : i64, tpu.core_type = #tpu.core_type<tc>, window_params = [{transform_indices = @transform_0, window_bounds = array<i64: 32, 256>}, {pipeline_mode = #tpu.pipeline_mode<synchronous>, transform_indices = @transform_1, window_bounds = array<i64: 256, 16>}, {pipeline_mode = #tpu.pipeline_mode<synchronous>, transform_indices = @transform_2, window_bounds = array<i64: 1, 16>}, {pipeline_mode = #tpu.pipeline_mode<synchronous>, transform_indices = @transform_3, window_bounds = array<i64: 16, 384>}, {transform_indices = @transform_4, window_bounds = array<i64: 32, 384>}]} {
    %c0 = arith.constant 0 : index
    %c0_0 = arith.constant 0 : index
    %0 = vector.load %arg1[%c0, %c0_0] : memref<32x256xbf16, #tpu.memory_space<vmem>>, vector<32x256xbf16>
    %c0_1 = arith.constant 0 : index
    %c0_2 = arith.constant 0 : index
    %1 = vector.load %arg2[%c0_1, %c0_2] : memref<256x16xbf16, #tpu.memory_space<vmem>>, vector<256x16xbf16>
    %cst = arith.constant dense<0.000000e+00> : vector<32x16xf32>
    %2 = tpu.matmul %0, %1, %cst {dimension_numbers = #tpu.dot_dimension_numbers<[1], [0], [0], [1], [0, 0, 1, 1], [], []>} : vector<32x256xbf16>, vector<256x16xbf16>, vector<32x16xf32> -> vector<32x16xf32>
    %c0_3 = arith.constant 0 : index
    %c0_4 = arith.constant 0 : index
    %3 = vector.load %arg3[%c0_3, %c0_4] : memref<1x16xf32, #tpu.memory_space<vmem>>, vector<1x16xf32>
    %4 = vector.broadcast %3 : vector<1x16xf32> to vector<32x16xf32>
    %5 = arith.addf %2, %4 : vector<32x16xf32>
    %cst_5 = arith.constant 0.000000e+00 : f32
    %6 = vector.broadcast %cst_5 : f32 to vector<32x16xf32>
    %7 = arith.cmpf ogt, %5, %6 : vector<32x16xf32>
    %cst_6 = arith.constant 0.00999999977 : f32
    %8 = vector.broadcast %cst_6 : f32 to vector<32x16xf32>
    %9 = arith.mulf %8, %5 : vector<32x16xf32>
    %10 = arith.select %7, %5, %9 : vector<32x16xi1>, vector<32x16xf32>
    %c0_7 = arith.constant 0 : index
    %c0_8 = arith.constant 0 : index
    %11 = vector.load %arg4[%c0_7, %c0_8] : memref<16x384xf32, #tpu.memory_space<vmem>>, vector<16x384xf32>
    %cst_9 = arith.constant dense<0.000000e+00> : vector<32x384xf32>
    %12 = tpu.matmul %10, %11, %cst_9 {dimension_numbers = #tpu.dot_dimension_numbers<[1], [0], [0], [1], [0, 0, 1, 1], [], []>} : vector<32x16xf32>, vector<16x384xf32>, vector<32x384xf32> -> vector<32x384xf32>
    %c0_10 = arith.constant 0 : index
    %c0_11 = arith.constant 0 : index
    %13 = vector.load %arg5[%c0_10, %c0_11] : memref<32x384xf32, #tpu.memory_space<vmem>>, vector<32x384xf32>
    tpu.vector_store %arg5[%c0_10, %c0_11], %12 {strides = array<i32>} : memref<32x384xf32, #tpu.memory_space<vmem>>, vector<32x384xf32>,
    return
  }
  func.func @transform_0(%arg0: i32) -> (i32, i32) {
    %c0_i32 = arith.constant 0 : i32
    %c0_i32_0 = arith.constant 0 : i32
    return %arg0, %c0_i32 : i32, i32
  }
  func.func @transform_1(%arg0: i32) -> (i32, i32) {
    %c0_i32 = arith.constant 0 : i32
    %c0_i32_0 = arith.constant 0 : i32
    %c0_i32_1 = arith.constant 0 : i32
    return %c0_i32, %c0_i32_0 : i32, i32
  }
  func.func @transform_2(%arg0: i32) -> (i32, i32) {
    %c0_i32 = arith.constant 0 : i32
    %c0_i32_0 = arith.constant 0 : i32
    %c0_i32_1 = arith.constant 0 : i32
    return %c0_i32, %c0_i32_0 : i32, i32
  }
  func.func @transform_3(%arg0: i32) -> (i32, i32) {
    %c0_i32 = arith.constant 0 : i32
    %c0_i32_0 = arith.constant 0 : i32
    %c0_i32_1 = arith.constant 0 : i32
    return %c0_i32, %c0_i32_0 : i32, i32
  }
  func.func @transform_4(%arg0: i32) -> (i32, i32) {
    %c0_i32 = arith.constant 0 : i32
    %c0_i32_0 = arith.constant 0 : i32
    return %arg0, %c0_i32 : i32, i32
  }
}

module attributes {stable_mosaic.version = 11 : i64} {
  func.func @_gat_agg_kernel(%arg0: i32, %arg1: memref<2xi32, #tpu.memory_space<smem>>, %arg2: memref<1x128xi32, #tpu.memory_space<vmem>>, %arg3: memref<128x16xf32, #tpu.memory_space<vmem>>, %arg4: memref<128x256xbf16, #tpu.memory_space<vmem>>, %arg5: memref<16x256xbf16, #tpu.memory_space<vmem>>, %arg6: memref<16x256xf32, #tpu.memory_space<vmem>>, %arg7: memref<1x256xf32, #tpu.memory_space<vmem>>, %arg8: memref<32x256xf32, #tpu.memory_space<vmem>>, %arg9: memref<32x16xf32, #tpu.memory_space<vmem>>) attributes {dimension_semantics = [#tpu.dimension_semantics<arbitrary>], iteration_bounds = array<i64: 2>, scalar_prefetch = 1 : i64, scratch_operands = 0 : i64, tpu.core_type = #tpu.core_type<tc>, window_params = [{transform_indices = @transform_0, window_bounds = array<i64: 1, 128>}, {transform_indices = @transform_1, window_bounds = array<i64: 128, 16>}, {transform_indices = @transform_2, window_bounds = array<i64: 128, 256>}, {pipeline_mode = #tpu.pipeline_mode<synchronous>, transform_indices = @transform_3, window_bounds = array<i64: 16, 256>}, {pipeline_mode = #tpu.pipeline_mode<synchronous>, transform_indices = @transform_4, window_bounds = array<i64: 16, 256>}, {pipeline_mode = #tpu.pipeline_mode<synchronous>, transform_indices = @transform_5, window_bounds = array<i64: 1, 256>}, {pipeline_mode = #tpu.pipeline_mode<synchronous>, transform_indices = @transform_6, window_bounds = array<i64: 32, 256>}, {pipeline_mode = #tpu.pipeline_mode<synchronous>, transform_indices = @transform_7, window_bounds = array<i64: 32, 16>}]} {
    %c0_i32 = arith.constant 0 : i32
    %0 = arith.cmpi eq, %arg0, %c0_i32 : i32
    %1 = arith.extui %0 : i1 to i32
    %c0_i32_0 = arith.constant 0 : i32
    %2 = arith.cmpi ne, %1, %c0_i32_0 : i32
    scf.if %2 {
      %cst_17 = arith.constant 0.000000e+00 : f32
      %40 = vector.broadcast %cst_17 : f32 to vector<32x256xf32>
      %c0_18 = arith.constant 0 : index
      %c0_19 = arith.constant 0 : index
      %41 = vector.load %arg8[%c0_18, %c0_19] : memref<32x256xf32, #tpu.memory_space<vmem>>, vector<32x256xf32>
      tpu.vector_store %arg8[%c0_18, %c0_19], %40 {strides = array<i32>} : memref<32x256xf32, #tpu.memory_space<vmem>>, vector<32x256xf32>,
      %cst_20 = arith.constant 0.000000e+00 : f32
      %42 = vector.broadcast %cst_20 : f32 to vector<32x16xf32>
      %c0_21 = arith.constant 0 : index
      %c0_22 = arith.constant 0 : index
      %43 = vector.load %arg9[%c0_21, %c0_22] : memref<32x16xf32, #tpu.memory_space<vmem>>, vector<32x16xf32>
      tpu.vector_store %arg9[%c0_21, %c0_22], %42 {strides = array<i32>} : memref<32x16xf32, #tpu.memory_space<vmem>>, vector<32x16xf32>,
    } else {
    }
    %3 = arith.index_cast %arg0 : i32 to index
    %4 = memref.load %arg1[%3] : memref<2xi32, #tpu.memory_space<smem>>
    %5 = tpu.assume_multiple %4, 8 : i32
    %c0 = arith.constant 0 : index
    %c0_1 = arith.constant 0 : index
    %6 = vector.load %arg3[%c0, %c0_1] : memref<128x16xf32, #tpu.memory_space<vmem>>, vector<128x16xf32>
    %7 = math.exp %6 : vector<128x16xf32>
    %8 = arith.truncf %7 : vector<128x16xf32> to vector<128x16xbf16>
    %c0_2 = arith.constant 0 : index
    %c0_3 = arith.constant 0 : index
    %9 = vector.load %arg2[%c0_2, %c0_3] : memref<1x128xi32, #tpu.memory_space<vmem>>, vector<1x128xi32>
    %10 = vector.broadcast %5 : i32 to vector<1x128xi32>
    %11 = arith.subi %9, %10 : vector<1x128xi32>
    %12 = tpu.iota {dimensions = array<i32: 0>} : vector<32x128xi32>
    %13 = vector.broadcast %11 : vector<1x128xi32> to vector<32x128xi32>
    %14 = arith.cmpi eq, %12, %13 : vector<32x128xi32>
    %cst = arith.constant 1.000000e+00 : f32
    %cst_4 = arith.constant 0.000000e+00 : f32
    %15 = vector.broadcast %cst : f32 to vector<32x128xf32>
    %16 = vector.broadcast %cst_4 : f32 to vector<32x128xf32>
    %17 = arith.select %14, %15, %16 : vector<32x128xi1>, vector<32x128xf32>
    %18 = arith.truncf %17 : vector<32x128xf32> to vector<32x128xbf16>
    %19 = arith.index_cast %5 : i32 to index
    %c0_5 = arith.constant 0 : index
    %20 = vector.load %arg9[%19, %c0_5] : memref<32x16xf32, #tpu.memory_space<vmem>>, vector<32x16xf32>
    %cst_6 = arith.constant dense<0.000000e+00> : vector<32x16xf32>
    %21 = tpu.matmul %18, %8, %cst_6 {dimension_numbers = #tpu.dot_dimension_numbers<[1], [0], [0], [1], [0, 0, 1, 1], [], []>} : vector<32x128xbf16>, vector<128x16xbf16>, vector<32x16xf32> -> vector<32x16xf32>
    %22 = arith.addf %20, %21 : vector<32x16xf32>
    %23 = arith.index_cast %5 : i32 to index
    %c0_7 = arith.constant 0 : index
    %24 = vector.load %arg9[%23, %c0_7] : memref<32x16xf32, #tpu.memory_space<vmem>>, vector<32x16xf32>
    tpu.vector_store %arg9[%23, %c0_7], %22 {strides = array<i32>} : memref<32x16xf32, #tpu.memory_space<vmem>>, vector<32x16xf32>,
    %c0_8 = arith.constant 0 : index
    %c0_9 = arith.constant 0 : index
    %25 = vector.load %arg5[%c0_8, %c0_9] : memref<16x256xbf16, #tpu.memory_space<vmem>>, vector<16x256xbf16>
    %cst_10 = arith.constant dense<0.000000e+00> : vector<128x256xf32>
    %26 = tpu.matmul %8, %25, %cst_10 {dimension_numbers = #tpu.dot_dimension_numbers<[1], [0], [0], [1], [0, 0, 1, 1], [], []>} : vector<128x16xbf16>, vector<16x256xbf16>, vector<128x256xf32> -> vector<128x256xf32>
    %c0_11 = arith.constant 0 : index
    %c0_12 = arith.constant 0 : index
    %27 = vector.load %arg4[%c0_11, %c0_12] : memref<128x256xbf16, #tpu.memory_space<vmem>>, vector<128x256xbf16>
    %28 = arith.extf %27 : vector<128x256xbf16> to vector<128x256xf32>
    %29 = arith.mulf %28, %26 : vector<128x256xf32>
    %30 = arith.truncf %29 : vector<128x256xf32> to vector<128x256xbf16>
    %31 = arith.index_cast %5 : i32 to index
    %c0_13 = arith.constant 0 : index
    %32 = vector.load %arg8[%31, %c0_13] : memref<32x256xf32, #tpu.memory_space<vmem>>, vector<32x256xf32>
    %cst_14 = arith.constant dense<0.000000e+00> : vector<32x256xf32>
    %33 = tpu.matmul %18, %30, %cst_14 {dimension_numbers = #tpu.dot_dimension_numbers<[1], [0], [0], [1], [0, 0, 1, 1], [], []>} : vector<32x128xbf16>, vector<128x256xbf16>, vector<32x256xf32> -> vector<32x256xf32>
    %34 = arith.addf %32, %33 : vector<32x256xf32>
    %35 = arith.index_cast %5 : i32 to index
    %c0_15 = arith.constant 0 : index
    %36 = vector.load %arg8[%35, %c0_15] : memref<32x256xf32, #tpu.memory_space<vmem>>, vector<32x256xf32>
    tpu.vector_store %arg8[%35, %c0_15], %34 {strides = array<i32>} : memref<32x256xf32, #tpu.memory_space<vmem>>, vector<32x256xf32>,
    %c1_i32 = arith.constant 1 : i32
    %37 = arith.cmpi eq, %arg0, %c1_i32 : i32
    %38 = arith.extui %37 : i1 to i32
    %c0_i32_16 = arith.constant 0 : i32
    %39 = arith.cmpi ne, %38, %c0_i32_16 : i32
    scf.if %39 {
      %c0_17 = arith.constant 0 : index
      %c0_18 = arith.constant 0 : index
      %40 = vector.load %arg9[%c0_17, %c0_18] : memref<32x16xf32, #tpu.memory_space<vmem>>, vector<32x16xf32>
      %cst_19 = arith.constant 1.000000e-30 : f32
      %41 = vector.broadcast %cst_19 : f32 to vector<32x16xf32>
      %42 = arith.maximumf %40, %41 : vector<32x16xf32>
      %cst_20 = arith.constant 1.000000e+00 : f32
      %43 = vector.broadcast %cst_20 : f32 to vector<32x16xf32>
      %44 = arith.divf %43, %42 : vector<32x16xf32>
      %c0_21 = arith.constant 0 : index
      %c0_22 = arith.constant 0 : index
      %45 = vector.load %arg6[%c0_21, %c0_22] : memref<16x256xf32, #tpu.memory_space<vmem>>, vector<16x256xf32>
      %cst_23 = arith.constant dense<0.000000e+00> : vector<32x256xf32>
      %46 = tpu.matmul %44, %45, %cst_23 {dimension_numbers = #tpu.dot_dimension_numbers<[1], [0], [0], [1], [0, 0, 1, 1], [], []>} : vector<32x16xf32>, vector<16x256xf32>, vector<32x256xf32> -> vector<32x256xf32>
      %c0_24 = arith.constant 0 : index
      %c0_25 = arith.constant 0 : index
      %47 = vector.load %arg8[%c0_24, %c0_25] : memref<32x256xf32, #tpu.memory_space<vmem>>, vector<32x256xf32>
      %48 = arith.mulf %47, %46 : vector<32x256xf32>
      %c0_26 = arith.constant 0 : index
      %c0_27 = arith.constant 0 : index
      %49 = vector.load %arg7[%c0_26, %c0_27] : memref<1x256xf32, #tpu.memory_space<vmem>>, vector<1x256xf32>
      %50 = vector.broadcast %49 : vector<1x256xf32> to vector<32x256xf32>
      %51 = arith.addf %48, %50 : vector<32x256xf32>
      %c0_28 = arith.constant 0 : index
      %c0_29 = arith.constant 0 : index
      %52 = vector.load %arg8[%c0_28, %c0_29] : memref<32x256xf32, #tpu.memory_space<vmem>>, vector<32x256xf32>
      tpu.vector_store %arg8[%c0_28, %c0_29], %51 {strides = array<i32>} : memref<32x256xf32, #tpu.memory_space<vmem>>, vector<32x256xf32>,
    } else {
    }
    return
  }
  func.func @transform_0(%arg0: i32, %arg1: memref<2xi32, #tpu.memory_space<smem>>) -> (i32, i32) {
    %c0_i32 = arith.constant 0 : i32
    %c0_i32_0 = arith.constant 0 : i32
    return %c0_i32, %arg0 : i32, i32
  }
  func.func @transform_1(%arg0: i32, %arg1: memref<2xi32, #tpu.memory_space<smem>>) -> (i32, i32) {
    %c0_i32 = arith.constant 0 : i32
    %c0_i32_0 = arith.constant 0 : i32
    return %arg0, %c0_i32 : i32, i32
  }
  func.func @transform_2(%arg0: i32, %arg1: memref<2xi32, #tpu.memory_space<smem>>) -> (i32, i32) {
    %c0_i32 = arith.constant 0 : i32
    %c0_i32_0 = arith.constant 0 : i32
    return %arg0, %c0_i32 : i32, i32
  }
  func.func @transform_3(%arg0: i32, %arg1: memref<2xi32, #tpu.memory_space<smem>>) -> (i32, i32) {
    %c0_i32 = arith.constant 0 : i32
    %c0_i32_0 = arith.constant 0 : i32
    %c0_i32_1 = arith.constant 0 : i32
    return %c0_i32, %c0_i32_0 : i32, i32
  }
  func.func @transform_4(%arg0: i32, %arg1: memref<2xi32, #tpu.memory_space<smem>>) -> (i32, i32) {
    %c0_i32 = arith.constant 0 : i32
    %c0_i32_0 = arith.constant 0 : i32
    %c0_i32_1 = arith.constant 0 : i32
    return %c0_i32, %c0_i32_0 : i32, i32
  }
  func.func @transform_5(%arg0: i32, %arg1: memref<2xi32, #tpu.memory_space<smem>>) -> (i32, i32) {
    %c0_i32 = arith.constant 0 : i32
    %c0_i32_0 = arith.constant 0 : i32
    %c0_i32_1 = arith.constant 0 : i32
    return %c0_i32, %c0_i32_0 : i32, i32
  }
  func.func @transform_6(%arg0: i32, %arg1: memref<2xi32, #tpu.memory_space<smem>>) -> (i32, i32) {
    %c0_i32 = arith.constant 0 : i32
    %c0_i32_0 = arith.constant 0 : i32
    %c0_i32_1 = arith.constant 0 : i32
    return %c0_i32, %c0_i32_0 : i32, i32
  }
  func.func @transform_7(%arg0: i32, %arg1: memref<2xi32, #tpu.memory_space<smem>>) -> (i32, i32) {
    %c0_i32 = arith.constant 0 : i32
    %c0_i32_0 = arith.constant 0 : i32
    %c0_i32_1 = arith.constant 0 : i32
    return %c0_i32, %c0_i32_0 : i32, i32
  }
}

module attributes {stable_mosaic.version = 11 : i64} {
  func.func @_mlp_chain_kernel(%arg0: i32, %arg1: memref<32x256xbf16, #tpu.memory_space<vmem>>, %arg2: memref<256x16xbf16, #tpu.memory_space<vmem>>, %arg3: memref<1x16xf32, #tpu.memory_space<vmem>>, %arg4: memref<32x16xf32, #tpu.memory_space<vmem>>) attributes {dimension_semantics = [#tpu.dimension_semantics<parallel>], iteration_bounds = array<i64: 1>, scalar_prefetch = 0 : i64, scratch_operands = 0 : i64, tpu.core_type = #tpu.core_type<tc>, window_params = [{transform_indices = @transform_0, window_bounds = array<i64: 32, 256>}, {pipeline_mode = #tpu.pipeline_mode<synchronous>, transform_indices = @transform_1, window_bounds = array<i64: 256, 16>}, {pipeline_mode = #tpu.pipeline_mode<synchronous>, transform_indices = @transform_2, window_bounds = array<i64: 1, 16>}, {transform_indices = @transform_3, window_bounds = array<i64: 32, 16>}]} {
    %c0 = arith.constant 0 : index
    %c0_0 = arith.constant 0 : index
    %0 = vector.load %arg1[%c0, %c0_0] : memref<32x256xbf16, #tpu.memory_space<vmem>>, vector<32x256xbf16>
    %c0_1 = arith.constant 0 : index
    %c0_2 = arith.constant 0 : index
    %1 = vector.load %arg2[%c0_1, %c0_2] : memref<256x16xbf16, #tpu.memory_space<vmem>>, vector<256x16xbf16>
    %cst = arith.constant dense<0.000000e+00> : vector<32x16xf32>
    %2 = tpu.matmul %0, %1, %cst {dimension_numbers = #tpu.dot_dimension_numbers<[1], [0], [0], [1], [0, 0, 1, 1], [], []>} : vector<32x256xbf16>, vector<256x16xbf16>, vector<32x16xf32> -> vector<32x16xf32>
    %c0_3 = arith.constant 0 : index
    %c0_4 = arith.constant 0 : index
    %3 = vector.load %arg3[%c0_3, %c0_4] : memref<1x16xf32, #tpu.memory_space<vmem>>, vector<1x16xf32>
    %4 = vector.broadcast %3 : vector<1x16xf32> to vector<32x16xf32>
    %5 = arith.addf %2, %4 : vector<32x16xf32>
    %cst_5 = arith.constant 0.000000e+00 : f32
    %6 = vector.broadcast %cst_5 : f32 to vector<32x16xf32>
    %7 = arith.cmpf ogt, %5, %6 : vector<32x16xf32>
    %cst_6 = arith.constant 0.00999999977 : f32
    %8 = vector.broadcast %cst_6 : f32 to vector<32x16xf32>
    %9 = arith.mulf %8, %5 : vector<32x16xf32>
    %10 = arith.select %7, %5, %9 : vector<32x16xi1>, vector<32x16xf32>
    %c0_7 = arith.constant 0 : index
    %c0_8 = arith.constant 0 : index
    %11 = vector.load %arg4[%c0_7, %c0_8] : memref<32x16xf32, #tpu.memory_space<vmem>>, vector<32x16xf32>
    tpu.vector_store %arg4[%c0_7, %c0_8], %10 {strides = array<i32>} : memref<32x16xf32, #tpu.memory_space<vmem>>, vector<32x16xf32>,
    return
  }
  func.func @transform_0(%arg0: i32) -> (i32, i32) {
    %c0_i32 = arith.constant 0 : i32
    %c0_i32_0 = arith.constant 0 : i32
    return %arg0, %c0_i32 : i32, i32
  }
  func.func @transform_1(%arg0: i32) -> (i32, i32) {
    %c0_i32 = arith.constant 0 : i32
    %c0_i32_0 = arith.constant 0 : i32
    %c0_i32_1 = arith.constant 0 : i32
    return %c0_i32, %c0_i32_0 : i32, i32
  }
  func.func @transform_2(%arg0: i32) -> (i32, i32) {
    %c0_i32 = arith.constant 0 : i32
    %c0_i32_0 = arith.constant 0 : i32
    %c0_i32_1 = arith.constant 0 : i32
    return %c0_i32, %c0_i32_0 : i32, i32
  }
  func.func @transform_3(%arg0: i32) -> (i32, i32) {
    %c0_i32 = arith.constant 0 : i32
    %c0_i32_0 = arith.constant 0 : i32
    return %arg0, %c0_i32 : i32, i32
  }
}

</mosaic_0001>

<llo_original>
// kernel: sub.54
$region0: #{sub.54}
  #allocation0 [shape = 's32[1]{0}', space=sflag, size = 0x4, scoped, tag = 'scoped memory for sub.54']
  %s0 = inlined_call_operand.vmem [shape: f32[64,16], index: 0, kind: input, shape index: {}]
  %s1 = inlined_call_operand.vmem [shape: f32[64,16], index: 1, kind: input, shape index: {}]
  %s2 = inlined_call_operand.vmem [shape: f32[64,16], index: 2, kind: output, shape index: {}]
  %v3 = vld [vmem:[%s0] sm:$0xff]
  %v4 = vld [vmem:[%s1] sm:$0xff]
  %5 = xla_tuple %v3, %v4
  %6 = xla_tuple %5
  %v7 = vsub.f32 %v3, %v4
  %8 = xla_tuple %v7
  %9 = vst [vmem:[%s2] sm:$0xff] %v7
  %s10 = scalar_lea.vmem %s0, 8
  %v11 = vld [vmem:[%s10] sm:$0xff]
  %s12 = scalar_lea.vmem %s1, 8
  %v13 = vld [vmem:[%s12] sm:$0xff]
  %14 = xla_tuple %v11, %v13
  %15 = xla_tuple %14
  %v16 = vsub.f32 %v11, %v13
  %17 = xla_tuple %v16
  %s18 = scalar_lea.vmem %s2, 8
  %19 = vst [vmem:[%s18] sm:$0xff] %v16

// kernel: scregat_forward.7
$region0: #{scregat_forward.7}
  #allocation0 [shape = 'u32[]', space=smem, size = 0x4, offset = 0x4, fixed_abs, tag = 'smem constant byte address 0x4 - core index']
  #allocation1 [shape = 'u32[144,128]{1,0:T(1,128)}', space=vmem, size = 0x12000, scoped, tag = 'internal scratch']
  %s0 = inlined_call_operand.vmem [shape: f32[64,2], index: 0, kind: input, shape index: {}]
  %s1 = inlined_call_operand.vmem [shape: f32[2,12], index: 1, kind: input, shape index: {}]
  %s2 = inlined_call_operand.vmem [shape: f32[1,12], index: 2, kind: input, shape index: {}]
  %s3 = inlined_call_operand.vmem [shape: f32[1,12], index: 3, kind: input, shape index: {}]
  %s4 = inlined_call_operand.vmem [shape: f32[1,12], index: 4, kind: input, shape index: {}]
  %s5 = inlined_call_operand.vmem [shape: f32[12,8], index: 5, kind: input, shape index: {}]
  %s6 = inlined_call_operand.vmem [shape: f32[1,8], index: 6, kind: input, shape index: {}]
  %s7 = inlined_call_operand.vmem [shape: f32[64,8], index: 7, kind: output, shape index: {}]
  %s8 = sld [smem:[#allocation0]]
  $region38: #{scregat_forward.7} parent=0
    _
  %s10 = ssub.s32 1, %s8
  %s11 = scalar_select 0, %s10, %s8
  // Predicated region
  $region2: #{scregat_forward.7} parent=0 // pred_check
    _
  $region3: #{scregat_forward.7} parent=0 // pred_check_branch
    %13 = sbr.rel (0) target = $region5
  $region4: #{scregat_forward.7} parent=0 // pred_region
    _
  $region5: #{scregat_forward.7} parent=0 // pred_fallthru
    _
  // Predicated region
  $region6: #{scregat_forward.7} parent=0 // pred_check
    _
  $region7: #{scregat_forward.7} parent=0 // pred_check_branch
    %15 = sbr.rel (0) target = $region9
  $region8: #{scregat_forward.7} parent=0 // pred_region
    _
  $region9: #{scregat_forward.7} parent=0 // pred_fallthru
    _
  // Predicated region
  $region10: #{scregat_forward.7} parent=0 // pred_check
    _
  $region11: #{scregat_forward.7} parent=0 // pred_check_branch
    %17 = sbr.rel (0) target = $region13
  $region12: #{scregat_forward.7} parent=0 // pred_region
    _
  $region13: #{scregat_forward.7} parent=0 // pred_fallthru
    _
  // Predicated region
  $region14: #{scregat_forward.7} parent=0 // pred_check
    _
  $region15: #{scregat_forward.7} parent=0 // pred_check_branch
    %19 = sbr.rel (0) target = $region17
  $region16: #{scregat_forward.7} parent=0 // pred_region
    _
  $region17: #{scregat_forward.7} parent=0 // pred_fallthru
    _
  // Predicated region
  $region18: #{scregat_forward.7} parent=0 // pred_check
    _
  $region19: #{scregat_forward.7} parent=0 // pred_check_branch
    %21 = sbr.rel (0) target = $region21
  $region20: #{scregat_forward.7} parent=0 // pred_region
    _
  $region21: #{scregat_forward.7} parent=0 // pred_fallthru
    _
  // Predicated region
  $region22: #{scregat_forward.7} parent=0 // pred_check
    _
  $region23: #{scregat_forward.7} parent=0 // pred_check_branch
    %23 = sbr.rel (0) target = $region25
  $region24: #{scregat_forward.7} parent=0 // pred_region
    _
  $region25: #{scregat_forward.7} parent=0 // pred_fallthru
    _
  // Predicated region
  $region26: #{scregat_forward.7} parent=0 // pred_check
    _
  $region27: #{scregat_forward.7} parent=0 // pred_check_branch
    %25 = sbr.rel (0) target = $region29
  $region28: #{scregat_forward.7} parent=0 // pred_region
    _
  $region29: #{scregat_forward.7} parent=0 // pred_fallthru
    _
  %v26 = vld [vmem:[%s0] sm:$0xff]
  %v27 = vld [vmem:[%s0 + $0x8] sm:$0xff]
  %v28 = vld [vmem:[%s0 + $0x10] sm:$0xff]
  %v29 = vld [vmem:[%s0 + $0x18] sm:$0xff]
  %v30 = vld [vmem:[%s0 + $0x20] sm:$0xff]
  %v31 = vld [vmem:[%s0 + $0x28] sm:$0xff]
  %v32 = vld [vmem:[%s0 + $0x30] sm:$0xff]
  %v33 = vld [vmem:[%s0 + $0x38] sm:$0xff]
  %v34 = vld [vmem:[%s1] sm:$0x3]
  %v35 = vld [vmem:[%s2] sm:$0x1]
  %v37 = vlaneseq
  %v38 = vshrl.u32 %v37, 7
  %v39 = vsub.s32 0, %v38
  %v40 = vrot.slane %v35, %v39
  %vm42 = vcmask 15360
  %v44 = vsel %vm42, %v26, 0
  %v47 = vsel %vm42, %v27, 0
  %v50 = vsel %vm42, %v28, 0
  %v53 = vsel %vm42, %v29, 0
  %v56 = vsel %vm42, %v30, 0
  %v59 = vsel %vm42, %v31, 0
  %v62 = vsel %vm42, %v32, 0
  %v65 = vsel %vm42, %v33, 0
  %vm67 = vcmask 1041408
  %v69 = vsel %vm67, %v34, 0
  %71 = vmatprep.subr.mxu0 0.0
  %72 = vmatpush1.msra.mxu0 0.0
  %73 = vmatprep.subr.mxu0 0.0
  %74 = vmatpush1.msra.mxu0 0.0
  %75 = vmatprep.subr.mxu0 0.0
  %76 = vmatpush1.msra.mxu0 0.0
  %77 = vmatprep.subr.mxu0 0.0
  %78 = vmatpush1.msra.mxu0 0.0
  %79 = vmatprep.subr.mxu0 0.0
  %80 = vmatpush1.msra.mxu0 0.0
  %81 = vmatprep.subr.mxu0 0.0
  %82 = vmatpush1.msra.mxu0 0.0
  %83 = vmatprep.subr.mxu0 0.0
  %84 = vmatpush1.msra.mxu0 0.0
  %85 = vmatprep.subr.mxu0 0.0
  %86 = vmatpush1.msra.mxu0 0.0
  %87 = vmatprep.subr.mxu0 0.0
  %88 = vmatpush1.msra.mxu0 0.0
  %89 = vmatprep.subr.mxu0 0.0
  %90 = vmatpush1.msra.mxu0 0.0
  %91 = vmatprep.subr.mxu0 0.0
  %92 = vmatpush1.msra.mxu0 0.0
  %93 = vmatprep.subr.mxu0 0.0
  %94 = vmatpush1.msra.mxu0 0.0
  %95 = vmatprep.subr.mxu0 0.0
  %96 = vmatpush1.msra.mxu0 0.0
  %97 = vmatprep.subr.mxu0 0.0
  %98 = vmatpush1.msra.mxu0 0.0
  %99 = vmatprep.subr.mxu0 0.0
  %100 = vmatpush1.msra.mxu0 0.0
  %101 = vmatprep.subr.mxu0 0.0
  %102 = vmatpush1.msra.mxu0 %v69
  %103 = vmatprep.subr.mxu0 0.0
  %104 = vmatpush2.msra.mxu0 0.0
  %105 = vmatprep.subr.mxu0 0.0
  %106 = vmatpush2.msra.mxu0 0.0
  %107 = vmatprep.subr.mxu0 0.0
  %108 = vmatpush2.msra.mxu0 0.0
  %109 = vmatprep.subr.mxu0 0.0
  %110 = vmatpush2.msra.mxu0 0.0
  %111 = vmatprep.subr.mxu0 0.0
  %112 = vmatpush2.msra.mxu0 0.0
  %113 = vmatprep.subr.mxu0 0.0
  %114 = vmatpush2.msra.mxu0 0.0
  %115 = vmatprep.subr.mxu0 0.0
  %116 = vmatpush2.msra.mxu0 0.0
  %117 = vmatprep.subr.mxu0 0.0
  %118 = vmatpush2.msra.mxu0 0.0
  %119 = vmatprep.subr.mxu0 0.0
  %120 = vmatpush2.msra.mxu0 0.0
  %121 = vmatprep.subr.mxu0 0.0
  %122 = vmatpush2.msra.mxu0 0.0
  %123 = vmatprep.subr.mxu0 0.0
  %124 = vmatpush2.msra.mxu0 0.0
  %125 = vmatprep.subr.mxu0 0.0
  %126 = vmatpush2.msra.mxu0 0.0
  %127 = vmatprep.subr.mxu0 0.0
  %128 = vmatpush2.msra.mxu0 0.0
  %129 = vmatprep.subr.mxu0 0.0
  %130 = vmatpush2.msra.mxu0 0.0
  %131 = vmatprep.subr.mxu0 0.0
  %132 = vmatpush2.msra.mxu0 0.0
  %133 = vmatprep.subr.mxu0 0.0
  %134 = vmatpush2.msra.mxu0 0.0
  %135 = vmatprep.mubr.f32.mxu0 0.0
  %136 = vmatmul.mubr.f32.gmra.mxu0 %v44
  %v137 = vpop.f32.mrf.mxu0
  %v138 = vadd.f32 %v40, %v137
  %v139 = vpop.f32.mrf.mxu0
  %140 = vmatprep.mubr.f32.mxu0 0.0
  %141 = vmatmul.mubr.f32.gmra.mxu0 %v47
  %v142 = vpop.f32.mrf.mxu0
  %v143 = vadd.f32 %v40, %v142
  %v144 = vpop.f32.mrf.mxu0
  %145 = vmatprep.mubr.f32.mxu0 0.0
  %146 = vmatmul.mubr.f32.gmra.mxu0 %v50
  %v147 = vpop.f32.mrf.mxu0
  %v148 = vadd.f32 %v40, %v147
  %v149 = vpop.f32.mrf.mxu0
  %150 = vmatprep.mubr.f32.mxu0 0.0
  %151 = vmatmul.mubr.f32.gmra.mxu0 %v53
  %v152 = vpop.f32.mrf.mxu0
  %v153 = vadd.f32 %v40, %v152
  %v154 = vpop.f32.mrf.mxu0
  %155 = vmatprep.mubr.f32.mxu0 0.0
  %156 = vmatmul.mubr.f32.gmra.mxu0 %v56
  %v157 = vpop.f32.mrf.mxu0
  %v158 = vadd.f32 %v40, %v157
  %v159 = vpop.f32.mrf.mxu0
  %160 = vmatprep.mubr.f32.mxu0 0.0
  %161 = vmatmul.mubr.f32.gmra.mxu0 %v59
  %v162 = vpop.f32.mrf.mxu0
  %v163 = vadd.f32 %v40, %v162
  %v164 = vpop.f32.mrf.mxu0
  %165 = vmatprep.mubr.f32.mxu0 0.0
  %166 = vmatmul.mubr.f32.gmra.mxu0 %v62
  %v167 = vpop.f32.mrf.mxu0
  %v168 = vadd.f32 %v40, %v167
  %v169 = vpop.f32.mrf.mxu0
  %170 = vmatprep.mubr.f32.mxu0 0.0
  %171 = vmatmul.mubr.f32.gmra.mxu0 %v65
  %v172 = vpop.f32.mrf.mxu0
  %v173 = vadd.f32 %v40, %v172
  %v174 = vpop.f32.mrf.mxu0
  %175 = vdwg.mxu0
  %v176 = vld [vmem:[%s3] sm:$0x1]
  %v177 = vld [vmem:[%s4] sm:$0x1]
  %vm178 = vcmask 97280
  %v179 = vsel %vm178, %v138, 0.0
  %180 = vadd.xlane.f32.xlu0 %v179
  %v181 = vpop.xlane.xlu0 %180
  %v182 = vsel %vm178, %v143, 0.0
  %183 = vadd.xlane.f32.xlu0 %v182
  %v184 = vpop.xlane.xlu0 %183
  %v185 = vsel %vm178, %v148, 0.0
  %186 = vadd.xlane.f32.xlu0 %v185
  %v187 = vpop.xlane.xlu0 %186
  %v188 = vsel %vm178, %v153, 0.0
  %189 = vadd.xlane.f32.xlu0 %v188
  %v190 = vpop.xlane.xlu0 %189
  %v191 = vsel %vm178, %v158, 0.0
  %192 = vadd.xlane.f32.xlu0 %v191
  %v193 = vpop.xlane.xlu0 %192
  %v194 = vsel %vm178, %v163, 0.0
  %195 = vadd.xlane.f32.xlu0 %v194
  %v196 = vpop.xlane.xlu0 %195
  %v197 = vsel %vm178, %v168, 0.0
  %198 = vadd.xlane.f32.xlu0 %v197
  %v199 = vpop.xlane.xlu0 %198
  %v200 = vsel %vm178, %v173, 0.0
  %201 = vadd.xlane.f32.xlu0 %v200
  %v202 = vpop.xlane.xlu0 %201
  %v203 = vrcp.pop 12.0
  %v204 = vmul.f32 %v181, %v203
  %v205 = vmul.f32 %v184, %v203
  %v206 = vmul.f32 %v187, %v203
  %v207 = vmul.f32 %v190, %v203
  %v208 = vmul.f32 %v193, %v203
  %v209 = vmul.f32 %v196, %v203
  %v210 = vmul.f32 %v199, %v203
  %v211 = vmul.f32 %v202, %v203
  %v212 = vsub.f32 %v138, %v204
  %v213 = vsub.f32 %v143, %v205
  %v214 = vsub.f32 %v148, %v206
  %v215 = vsub.f32 %v153, %v207
  %v216 = vsub.f32 %v158, %v208
  %v217 = vsub.f32 %v163, %v209
  %v218 = vsub.f32 %v168, %v210
  %v219 = vsub.f32 %v173, %v211
  %v220 = vmul.f32 %v212, %v212
  %v221 = vmul.f32 %v213, %v213
  %v222 = vmul.f32 %v214, %v214
  %v223 = vmul.f32 %v215, %v215
  %v224 = vmul.f32 %v216, %v216
  %v225 = vmul.f32 %v217, %v217
  %v226 = vmul.f32 %v218, %v218
  %v227 = vmul.f32 %v219, %v219
  %v228 = vsel %vm178, %v220, 0.0
  %229 = vadd.xlane.f32.xlu0 %v228
  %v230 = vpop.xlane.xlu0 %229
  %v231 = vsel %vm178, %v221, 0.0
  %232 = vadd.xlane.f32.xlu0 %v231
  %v233 = vpop.xlane.xlu0 %232
  %v234 = vsel %vm178, %v222, 0.0
  %235 = vadd.xlane.f32.xlu0 %v234
  %v236 = vpop.xlane.xlu0 %235
  %v237 = vsel %vm178, %v223, 0.0
  %238 = vadd.xlane.f32.xlu0 %v237
  %v239 = vpop.xlane.xlu0 %238
  %v240 = vsel %vm178, %v224, 0.0
  %241 = vadd.xlane.f32.xlu0 %v240
  %v242 = vpop.xlane.xlu0 %241
  %v243 = vsel %vm178, %v225, 0.0
  %244 = vadd.xlane.f32.xlu0 %v243
  %v245 = vpop.xlane.xlu0 %244
  %v246 = vsel %vm178, %v226, 0.0
  %247 = vadd.xlane.f32.xlu0 %v246
  %v248 = vpop.xlane.xlu0 %247
  %v249 = vsel %vm178, %v227, 0.0
  %250 = vadd.xlane.f32.xlu0 %v249
  %v251 = vpop.xlane.xlu0 %250
  %v252 = vmul.f32 %v230, %v203
  %v253 = vmul.f32 %v233, %v203
  %v254 = vmul.f32 %v236, %v203
  %v255 = vmul.f32 %v239, %v203
  %v256 = vmul.f32 %v242, %v203
  %v257 = vmul.f32 %v245, %v203
  %v258 = vmul.f32 %v248, %v203
  %v259 = vmul.f32 %v251, %v203
  %v260 = vadd.f32 %v252, 1e-05
  %v261 = vadd.f32 %v253, 1e-05
  %v262 = vadd.f32 %v254, 1e-05
  %v263 = vadd.f32 %v255, 1e-05
  %v264 = vadd.f32 %v256, 1e-05
  %v265 = vadd.f32 %v257, 1e-05
  %v266 = vadd.f32 %v258, 1e-05
  %v267 = vadd.f32 %v259, 1e-05
  %v268 = vrsqrt.pop %v260
  %v269 = vrsqrt.pop %v261
  %v270 = vrsqrt.pop %v262
  %v271 = vrsqrt.pop %v263
  %v272 = vrsqrt.pop %v264
  %v273 = vrsqrt.pop %v265
  %v274 = vrsqrt.pop %v266
  %v275 = vrsqrt.pop %v267
  %v276 = vmul.f32 %v212, %v268
  %v277 = vmul.f32 %v213, %v269
  %v278 = vmul.f32 %v214, %v270
  %v279 = vmul.f32 %v215, %v271
  %v280 = vmul.f32 %v216, %v272
  %v281 = vmul.f32 %v217, %v273
  %v282 = vmul.f32 %v218, %v274
  %v283 = vmul.f32 %v219, %v275
  %v285 = vlaneseq
  %v286 = vshrl.u32 %v285, 7
  %v287 = vsub.s32 0, %v286
  %v288 = vrot.slane %v176, %v287
  %v290 = vmul.f32 %v276, %v288
  %v291 = vmul.f32 %v277, %v288
  %v292 = vmul.f32 %v278, %v288
  %v293 = vmul.f32 %v279, %v288
  %v294 = vmul.f32 %v280, %v288
  %v295 = vmul.f32 %v281, %v288
  %v296 = vmul.f32 %v282, %v288
  %v297 = vmul.f32 %v283, %v288
  %v299 = vlaneseq
  %v300 = vshrl.u32 %v299, 7
  %v301 = vsub.s32 0, %v300
  %v302 = vrot.slane %v177, %v301
  %v304 = vadd.f32 %v290, %v302
  %v305 = vadd.f32 %v291, %v302
  %v306 = vadd.f32 %v292, %v302
  %v307 = vadd.f32 %v293, %v302
  %v308 = vadd.f32 %v294, %v302
  %v309 = vadd.f32 %v295, %v302
  %v310 = vadd.f32 %v296, %v302
  %v311 = vadd.f32 %v297, %v302
  %vm312 = vcmp.gt.f32.partialorder %v304, 0.0
  %vm313 = vcmp.gt.f32.partialorder %v305, 0.0
  %vm314 = vcmp.gt.f32.partialorder %v306, 0.0
  %vm315 = vcmp.gt.f32.partialorder %v307, 0.0
  %vm316 = vcmp.gt.f32.partialorder %v308, 0.0
  %vm317 = vcmp.gt.f32.partialorder %v309, 0.0
  %vm318 = vcmp.gt.f32.partialorder %v310, 0.0
  %vm319 = vcmp.gt.f32.partialorder %v311, 0.0
  %v320 = vmul.f32 %v304, 0.01
  %v321 = vmul.f32 %v305, 0.01
  %v322 = vmul.f32 %v306, 0.01
  %v323 = vmul.f32 %v307, 0.01
  %v324 = vmul.f32 %v308, 0.01
  %v325 = vmul.f32 %v309, 0.01
  %v326 = vmul.f32 %v310, 0.01
  %v327 = vmul.f32 %v311, 0.01
  %v328 = vsel %vm312, %v304, %v320
  %v329 = vsel %vm313, %v305, %v321
  %v330 = vsel %vm314, %v306, %v322
  %v331 = vsel %vm315, %v307, %v323
  %v332 = vsel %vm316, %v308, %v324
  %v333 = vsel %vm317, %v309, %v325
  %v334 = vsel %vm318, %v310, %v326
  %v335 = vsel %vm319, %v311, %v327
  %v336 = vld [vmem:[%s5] sm:$0xff]
  %v337 = vld [vmem:[%s5 + $0x8] sm:$0xf]
  %v338 = vld [vmem:[%s6] sm:$0x1]
  %v340 = vlaneseq
  %v341 = vshrl.u32 %v340, 7
  %v342 = vsub.s32 0, %v341
  %v343 = vrot.slane %v338, %v342
  %v346 = vsel %vm178, %v328, 0
  %v349 = vsel %vm178, %v329, 0
  %v352 = vsel %vm178, %v330, 0
  %v355 = vsel %vm178, %v331, 0
  %v358 = vsel %vm178, %v332, 0
  %v361 = vsel %vm178, %v333, 0
  %v364 = vsel %vm178, %v334, 0
  %v367 = vsel %vm178, %v335, 0
  %vm369 = vcmask 1043456
  %v371 = vsel %vm369, %v337, 0
  %373 = vmatprep.subr.mxu0 0.0
  %374 = vmatpush1.msra.mxu0 0.0
  %375 = vmatprep.subr.mxu0 0.0
  %376 = vmatpush1.msra.mxu0 0.0
  %377 = vmatprep.subr.mxu0 0.0
  %378 = vmatpush1.msra.mxu0 0.0
  %379 = vmatprep.subr.mxu0 0.0
  %380 = vmatpush1.msra.mxu0 0.0
  %381 = vmatprep.subr.mxu0 0.0
  %382 = vmatpush1.msra.mxu0 0.0
  %383 = vmatprep.subr.mxu0 0.0
  %384 = vmatpush1.msra.mxu0 0.0
  %385 = vmatprep.subr.mxu0 0.0
  %386 = vmatpush1.msra.mxu0 0.0
  %387 = vmatprep.subr.mxu0 0.0
  %388 = vmatpush1.msra.mxu0 0.0
  %389 = vmatprep.subr.mxu0 0.0
  %390 = vmatpush1.msra.mxu0 0.0
  %391 = vmatprep.subr.mxu0 0.0
  %392 = vmatpush1.msra.mxu0 0.0
  %393 = vmatprep.subr.mxu0 0.0
  %394 = vmatpush1.msra.mxu0 0.0
  %395 = vmatprep.subr.mxu0 0.0
  %396 = vmatpush1.msra.mxu0 0.0
  %397 = vmatprep.subr.mxu0 0.0
  %398 = vmatpush1.msra.mxu0 0.0
  %399 = vmatprep.subr.mxu0 0.0
  %400 = vmatpush1.msra.mxu0 0.0
  %401 = vmatprep.subr.mxu0 0.0
  %402 = vmatpush1.msra.mxu0 %v371
  %403 = vmatprep.subr.mxu0 0.0
  %404 = vmatpush1.msra.mxu0 %v336
  %405 = vmatprep.subr.mxu0 0.0
  %406 = vmatpush2.msra.mxu0 0.0
  %407 = vmatprep.subr.mxu0 0.0
  %408 = vmatpush2.msra.mxu0 0.0
  %409 = vmatprep.subr.mxu0 0.0
  %410 = vmatpush2.msra.mxu0 0.0
  %411 = vmatprep.subr.mxu0 0.0
  %412 = vmatpush2.msra.mxu0 0.0
  %413 = vmatprep.subr.mxu0 0.0
  %414 = vmatpush2.msra.mxu0 0.0
  %415 = vmatprep.subr.mxu0 0.0
  %416 = vmatpush2.msra.mxu0 0.0
  %417 = vmatprep.subr.mxu0 0.0
  %418 = vmatpush2.msra.mxu0 0.0
  %419 = vmatprep.subr.mxu0 0.0
  %420 = vmatpush2.msra.mxu0 0.0
  %421 = vmatprep.subr.mxu0 0.0
  %422 = vmatpush2.msra.mxu0 0.0
  %423 = vmatprep.subr.mxu0 0.0
  %424 = vmatpush2.msra.mxu0 0.0
  %425 = vmatprep.subr.mxu0 0.0
  %426 = vmatpush2.msra.mxu0 0.0
  %427 = vmatprep.subr.mxu0 0.0
  %428 = vmatpush2.msra.mxu0 0.0
  %429 = vmatprep.subr.mxu0 0.0
  %430 = vmatpush2.msra.mxu0 0.0
  %431 = vmatprep.subr.mxu0 0.0
  %432 = vmatpush2.msra.mxu0 0.0
  %433 = vmatprep.subr.mxu0 0.0
  %434 = vmatpush2.msra.mxu0 0.0
  %435 = vmatprep.subr.mxu0 0.0
  %436 = vmatpush2.msra.mxu0 0.0
  %437 = vmatprep.mubr.f32.mxu0 0.0
  %438 = vmatmul.mubr.f32.gmra.mxu0 %v346
  %v439 = vpop.f32.mrf.mxu0
  %v440 = vadd.f32 %v343, %v439
  %v441 = vpop.f32.mrf.mxu0
  %442 = vmatprep.mubr.f32.mxu0 0.0
  %443 = vmatmul.mubr.f32.gmra.mxu0 %v349
  %v444 = vpop.f32.mrf.mxu0
  %v445 = vadd.f32 %v343, %v444
  %v446 = vpop.f32.mrf.mxu0
  %447 = vmatprep.mubr.f32.mxu0 0.0
  %448 = vmatmul.mubr.f32.gmra.mxu0 %v352
  %v449 = vpop.f32.mrf.mxu0
  %v450 = vadd.f32 %v343, %v449
  %v451 = vpop.f32.mrf.mxu0
  %452 = vmatprep.mubr.f32.mxu0 0.0
  %453 = vmatmul.mubr.f32.gmra.mxu0 %v355
  %v454 = vpop.f32.mrf.mxu0
  %v455 = vadd.f32 %v343, %v454
  %v456 = vpop.f32.mrf.mxu0
  %457 = vmatprep.mubr.f32.mxu0 0.0
  %458 = vmatmul.mubr.f32.gmra.mxu0 %v358
  %v459 = vpop.f32.mrf.mxu0
  %v460 = vadd.f32 %v343, %v459
  %v461 = vpop.f32.mrf.mxu0
  %462 = vmatprep.mubr.f32.mxu0 0.0
  %463 = vmatmul.mubr.f32.gmra.mxu0 %v361
  %v464 = vpop.f32.mrf.mxu0
  %v465 = vadd.f32 %v343, %v464
  %v466 = vpop.f32.mrf.mxu0
  %467 = vmatprep.mubr.f32.mxu0 0.0
  %468 = vmatmul.mubr.f32.gmra.mxu0 %v364
  %v469 = vpop.f32.mrf.mxu0
  %v470 = vadd.f32 %v343, %v469
  %v471 = vpop.f32.mrf.mxu0
  %472 = vmatprep.mubr.f32.mxu0 0.0
  %473 = vmatmul.mubr.f32.gmra.mxu0 %v367
  %v474 = vpop.f32.mrf.mxu0
  %v475 = vadd.f32 %v343, %v474
  %v476 = vpop.f32.mrf.mxu0
  %477 = vdwg.mxu0
  %v478 = vsub.f32 0.0, %v440
  %v479 = vsub.f32 0.0, %v445
  %v480 = vsub.f32 0.0, %v450
  %v481 = vsub.f32 0.0, %v455
  %v482 = vsub.f32 0.0, %v460
  %v483 = vsub.f32 0.0, %v465
  %v484 = vsub.f32 0.0, %v470
  %v485 = vsub.f32 0.0, %v475
  %v486 = vmul.f32 %v478, 1.442695
  %v487 = vpow.pop %v486
  %v488 = vmul.f32 %v479, 1.442695
  %v489 = vpow.pop %v488
  %v490 = vmul.f32 %v480, 1.442695
  %v491 = vpow.pop %v490
  %v492 = vmul.f32 %v481, 1.442695
  %v493 = vpow.pop %v492
  %v494 = vmul.f32 %v482, 1.442695
  %v495 = vpow.pop %v494
  %v496 = vmul.f32 %v483, 1.442695
  %v497 = vpow.pop %v496
  %v498 = vmul.f32 %v484, 1.442695
  %v499 = vpow.pop %v498
  %v500 = vmul.f32 %v485, 1.442695
  %v501 = vpow.pop %v500
  %v502 = vadd.f32 %v487, 1.0
  %v503 = vadd.f32 %v489, 1.0
  %v504 = vadd.f32 %v491, 1.0
  %v505 = vadd.f32 %v493, 1.0
  %v506 = vadd.f32 %v495, 1.0
  %v507 = vadd.f32 %v497, 1.0
  %v508 = vadd.f32 %v499, 1.0
  %v509 = vadd.f32 %v501, 1.0
  %v510 = vrcp.pop %v502
  %v511 = vmul.f32 1.0, %v510
  %v512 = vrcp.pop %v503
  %v513 = vmul.f32 1.0, %v512
  %v514 = vrcp.pop %v504
  %v515 = vmul.f32 1.0, %v514
  %v516 = vrcp.pop %v505
  %v517 = vmul.f32 1.0, %v516
  %v518 = vrcp.pop %v506
  %v519 = vmul.f32 1.0, %v518
  %v520 = vrcp.pop %v507
  %v521 = vmul.f32 1.0, %v520
  %v522 = vrcp.pop %v508
  %v523 = vmul.f32 1.0, %v522
  %v524 = vrcp.pop %v509
  %v525 = vmul.f32 1.0, %v524
  %vm526 = vcmask 64512
  %527 = vst.msk [vmem:[%s7] sm:$0xff] %vm526, %v511
  %528 = vst.msk [vmem:[%s7 + $0x8] sm:$0xff] %vm526, %v513
  %529 = vst.msk [vmem:[%s7 + $0x10] sm:$0xff] %vm526, %v515
  %530 = vst.msk [vmem:[%s7 + $0x18] sm:$0xff] %vm526, %v517
  %531 = vst.msk [vmem:[%s7 + $0x20] sm:$0xff] %vm526, %v519
  %532 = vst.msk [vmem:[%s7 + $0x28] sm:$0xff] %vm526, %v521
  %533 = vst.msk [vmem:[%s7 + $0x30] sm:$0xff] %vm526, %v523
  %534 = vst.msk [vmem:[%s7 + $0x38] sm:$0xff] %vm526, %v525
  // Predicated region
  $region30: #{scregat_forward.7} parent=0 // pred_check
    _
  $region31: #{scregat_forward.7} parent=0 // pred_check_branch
    %536 = sbr.rel (0) target = $region33
  $region32: #{scregat_forward.7} parent=0 // pred_region
    _
  $region33: #{scregat_forward.7} parent=0 // pred_fallthru
    _
  // Predicated region
  $region34: #{scregat_forward.7} parent=0 // pred_check
    _
  $region35: #{scregat_forward.7} parent=0 // pred_check_branch
    %538 = sbr.rel (0) target = $region37
  $region36: #{scregat_forward.7} parent=0 // pred_region
    _
  $region37: #{scregat_forward.7} parent=0 // pred_fallthru
    _

// kernel: scregat_forward.6
$region0: #{scregat_forward.6}
  #allocation0 [shape = 'u32[]', space=smem, size = 0x4, offset = 0x4, fixed_abs, tag = 'smem constant byte address 0x4 - core index']
  #allocation1 [shape = 'u32[144,128]{1,0:T(1,128)}', space=vmem, size = 0x12000, scoped, tag = 'internal scratch']
  #allocation2 [shape = 'f32[1,1]{1,0:T(1,128)S(1)}', space=vmem, size = 0x200, scoped, tag = 'scoped memory for scregat_forward.6']
  %s0 = inlined_call_operand.vmem [shape: bf16[32,64], index: 0, kind: input, shape index: {}]
  %s1 = inlined_call_operand.vmem [shape: f32[32,1], index: 1, kind: input, shape index: {}]
  %s2 = inlined_call_operand.vmem [shape: bf16[64,512], index: 2, kind: input, shape index: {}]
  %s3 = inlined_call_operand.vmem [shape: f32[1,512], index: 3, kind: input, shape index: {}]
  %s4 = inlined_call_operand.vmem [shape: f32[1,512], index: 4, kind: input, shape index: {}]
  %s5 = inlined_call_operand.vmem [shape: f32[1,512], index: 5, kind: input, shape index: {}]
  %s6 = inlined_call_operand.vmem [shape: bf16[512,128], index: 6, kind: input, shape index: {}]
  %s7 = inlined_call_operand.vmem [shape: f32[1,128], index: 7, kind: input, shape index: {}]
  %s8 = inlined_call_operand.vmem [shape: f32[1,128], index: 8, kind: input, shape index: {}]
  %s9 = inlined_call_operand.vmem [shape: f32[1,128], index: 9, kind: input, shape index: {}]
  %s10 = inlined_call_operand.vmem [shape: f32[128,1], index: 10, kind: input, shape index: {}]
  %s11 = inlined_call_operand.<no memory space> [shape: f32[1,1], index: 11, kind: input, shape index: {}]
  %s12 = inlined_call_operand.vmem [shape: f32[2,128], index: 12, kind: input, shape index: {}]
  %s13 = inlined_call_operand.vmem [shape: f32[1,128], index: 13, kind: input, shape index: {}]
  %s14 = inlined_call_operand.vmem [shape: f32[1,128], index: 14, kind: input, shape index: {}]
  %s15 = inlined_call_operand.vmem [shape: f32[1,128], index: 15, kind: input, shape index: {}]
  %s16 = inlined_call_operand.vmem [shape: bf16[128,64], index: 16, kind: input, shape index: {}]
  %s17 = inlined_call_operand.vmem [shape: f32[1,64], index: 17, kind: input, shape index: {}]
  %s18 = inlined_call_operand.vmem [shape: f32[1,64], index: 18, kind: input, shape index: {}]
  %s19 = inlined_call_operand.vmem [shape: f32[1,64], index: 19, kind: input, shape index: {}]
  %s20 = inlined_call_operand.vmem [shape: f32[64,8], index: 20, kind: input, shape index: {}]
  %s21 = inlined_call_operand.vmem [shape: f32[1,8], index: 21, kind: input, shape index: {}]
  %s22 = inlined_call_operand.vmem [shape: f32[8,384], index: 22, kind: input, shape index: {}]
  %s23 = inlined_call_operand.vmem [shape: f32[32,384], index: 23, kind: output, shape index: {}]
  %s24 = sld [smem:[#allocation0]]
  $region102: #{scregat_forward.6} parent=0
    _
  %s26 = ssub.s32 1, %s24
  %s27 = scalar_select 0, %s26, %s24
  %v28 = vstv %s11
  %29 = vst [vmem:[#allocation2] sm:$0x1] %v28
  // Predicated region
  $region2: #{scregat_forward.6} parent=0 // pred_check
    _
  $region3: #{scregat_forward.6} parent=0 // pred_check_branch
    %31 = sbr.rel (0) target = $region5
  $region4: #{scregat_forward.6} parent=0 // pred_region
    _
  $region5: #{scregat_forward.6} parent=0 // pred_fallthru
    _
  // Predicated region
  $region6: #{scregat_forward.6} parent=0 // pred_check
    _
  $region7: #{scregat_forward.6} parent=0 // pred_check_branch
    %33 = sbr.rel (0) target = $region9
  $region8: #{scregat_forward.6} parent=0 // pred_region
    _
  $region9: #{scregat_forward.6} parent=0 // pred_fallthru
    _
  // Predicated region
  $region10: #{scregat_forward.6} parent=0 // pred_check
    _
  $region11: #{scregat_forward.6} parent=0 // pred_check_branch
    %35 = sbr.rel (0) target = $region13
  $region12: #{scregat_forward.6} parent=0 // pred_region
    _
  $region13: #{scregat_forward.6} parent=0 // pred_fallthru
    _
  // Predicated region
  $region14: #{scregat_forward.6} parent=0 // pred_check
    _
  $region15: #{scregat_forward.6} parent=0 // pred_check_branch
    %37 = sbr.rel (0) target = $region17
  $region16: #{scregat_forward.6} parent=0 // pred_region
    _
  $region17: #{scregat_forward.6} parent=0 // pred_fallthru
    _
  // Predicated region
  $region18: #{scregat_forward.6} parent=0 // pred_check
    _
  $region19: #{scregat_forward.6} parent=0 // pred_check_branch
    %39 = sbr.rel (0) target = $region21
  $region20: #{scregat_forward.6} parent=0 // pred_region
    _
  $region21: #{scregat_forward.6} parent=0 // pred_fallthru
    _
  // Predicated region
  $region22: #{scregat_forward.6} parent=0 // pred_check
    _
  $region23: #{scregat_forward.6} parent=0 // pred_check_branch
    %41 = sbr.rel (0) target = $region25
  $region24: #{scregat_forward.6} parent=0 // pred_region
    _
  $region25: #{scregat_forward.6} parent=0 // pred_fallthru
    _
  // Predicated region
  $region26: #{scregat_forward.6} parent=0 // pred_check
    _
  $region27: #{scregat_forward.6} parent=0 // pred_check_branch
    %43 = sbr.rel (0) target = $region29
  $region28: #{scregat_forward.6} parent=0 // pred_region
    _
  $region29: #{scregat_forward.6} parent=0 // pred_fallthru
    _
  // Predicated region
  $region30: #{scregat_forward.6} parent=0 // pred_check
    _
  $region31: #{scregat_forward.6} parent=0 // pred_check_branch
    %45 = sbr.rel (0) target = $region33
  $region32: #{scregat_forward.6} parent=0 // pred_region
    _
  $region33: #{scregat_forward.6} parent=0 // pred_fallthru
    _
  // Predicated region
  $region34: #{scregat_forward.6} parent=0 // pred_check
    _
  $region35: #{scregat_forward.6} parent=0 // pred_check_branch
    %47 = sbr.rel (0) target = $region37
  $region36: #{scregat_forward.6} parent=0 // pred_region
    _
  $region37: #{scregat_forward.6} parent=0 // pred_fallthru
    _
  // Predicated region
  $region38: #{scregat_forward.6} parent=0 // pred_check
    _
  $region39: #{scregat_forward.6} parent=0 // pred_check_branch
    %49 = sbr.rel (0) target = $region41
  $region40: #{scregat_forward.6} parent=0 // pred_region
    _
  $region41: #{scregat_forward.6} parent=0 // pred_fallthru
    _
  // Predicated region
  $region42: #{scregat_forward.6} parent=0 // pred_check
    _
  $region43: #{scregat_forward.6} parent=0 // pred_check_branch
    %51 = sbr.rel (0) target = $region45
  $region44: #{scregat_forward.6} parent=0 // pred_region
    _
  $region45: #{scregat_forward.6} parent=0 // pred_fallthru
    _
  // Predicated region
  $region46: #{scregat_forward.6} parent=0 // pred_check
    _
  $region47: #{scregat_forward.6} parent=0 // pred_check_branch
    %53 = sbr.rel (0) target = $region49
  $region48: #{scregat_forward.6} parent=0 // pred_region
    _
  $region49: #{scregat_forward.6} parent=0 // pred_fallthru
    _
  // Predicated region
  $region50: #{scregat_forward.6} parent=0 // pred_check
    _
  $region51: #{scregat_forward.6} parent=0 // pred_check_branch
    %55 = sbr.rel (0) target = $region53
  $region52: #{scregat_forward.6} parent=0 // pred_region
    _
  $region53: #{scregat_forward.6} parent=0 // pred_fallthru
    _
  // Predicated region
  $region54: #{scregat_forward.6} parent=0 // pred_check
    _
  $region55: #{scregat_forward.6} parent=0 // pred_check_branch
    %57 = sbr.rel (0) target = $region57
  $region56: #{scregat_forward.6} parent=0 // pred_region
    _
  $region57: #{scregat_forward.6} parent=0 // pred_fallthru
    _
  // Predicated region
  $region58: #{scregat_forward.6} parent=0 // pred_check
    _
  $region59: #{scregat_forward.6} parent=0 // pred_check_branch
    %59 = sbr.rel (0) target = $region61
  $region60: #{scregat_forward.6} parent=0 // pred_region
    _
  $region61: #{scregat_forward.6} parent=0 // pred_fallthru
    _
  // Predicated region
  $region62: #{scregat_forward.6} parent=0 // pred_check
    _
  $region63: #{scregat_forward.6} parent=0 // pred_check_branch
    %61 = sbr.rel (0) target = $region65
  $region64: #{scregat_forward.6} parent=0 // pred_region
    _
  $region65: #{scregat_forward.6} parent=0 // pred_fallthru
    _
  // Predicated region
  $region66: #{scregat_forward.6} parent=0 // pred_check
    _
  $region67: #{scregat_forward.6} parent=0 // pred_check_branch
    %63 = sbr.rel (0) target = $region69
  $region68: #{scregat_forward.6} parent=0 // pred_region
    _
  $region69: #{scregat_forward.6} parent=0 // pred_fallthru
    _
  // Predicated region
  $region70: #{scregat_forward.6} parent=0 // pred_check
    _
  $region71: #{scregat_forward.6} parent=0 // pred_check_branch
    %65 = sbr.rel (0) target = $region73
  $region72: #{scregat_forward.6} parent=0 // pred_region
    _
  $region73: #{scregat_forward.6} parent=0 // pred_fallthru
    _
  // Predicated region
  $region74: #{scregat_forward.6} parent=0 // pred_check
    _
  $region75: #{scregat_forward.6} parent=0 // pred_check_branch
    %67 = sbr.rel (0) target = $region77
  $region76: #{scregat_forward.6} parent=0 // pred_region
    _
  $region77: #{scregat_forward.6} parent=0 // pred_fallthru
    _
  // Predicated region
  $region78: #{scregat_forward.6} parent=0 // pred_check
    _
  $region79: #{scregat_forward.6} parent=0 // pred_check_branch
    %69 = sbr.rel (0) target = $region81
  $region80: #{scregat_forward.6} parent=0 // pred_region
    _
  $region81: #{scregat_forward.6} parent=0 // pred_fallthru
    _
  // Predicated region
  $region82: #{scregat_forward.6} parent=0 // pred_check
    _
  $region83: #{scregat_forward.6} parent=0 // pred_check_branch
    %71 = sbr.rel (0) target = $region85
  $region84: #{scregat_forward.6} parent=0 // pred_region
    _
  $region85: #{scregat_forward.6} parent=0 // pred_fallthru
    _
  // Predicated region
  $region86: #{scregat_forward.6} parent=0 // pred_check
    _
  $region87: #{scregat_forward.6} parent=0 // pred_check_branch
    %73 = sbr.rel (0) target = $region89
  $region88: #{scregat_forward.6} parent=0 // pred_region
    _
  $region89: #{scregat_forward.6} parent=0 // pred_fallthru
    _
  // Predicated region
  $region90: #{scregat_forward.6} parent=0 // pred_check
    _
  $region91: #{scregat_forward.6} parent=0 // pred_check_branch
    %75 = sbr.rel (0) target = $region93
  $region92: #{scregat_forward.6} parent=0 // pred_region
    _
  $region93: #{scregat_forward.6} parent=0 // pred_fallthru
    _
  %v77 = vld [vmem:[%s0] sm:$0xf]
  %v78 = vld [vmem:[%s0 + $0x4] sm:$0xf]
  %v79 = vld [vmem:[%s0 + $0x8] sm:$0xf]
  %v80 = vld [vmem:[%s0 + $0xc] sm:$0xf]
  %v81 = vld [vmem:[%s2] sm:$0xff]
  %v82 = vld [vmem:[%s2 + $0x8] sm:$0xff]
  %v83 = vld [vmem:[%s2 + $0x10] sm:$0xff]
  %v84 = vld [vmem:[%s2 + $0x18] sm:$0xff]
  %v85 = vld [vmem:[%s2 + $0x20] sm:$0xff]
  %v86 = vld [vmem:[%s2 + $0x28] sm:$0xff]
  %v87 = vld [vmem:[%s2 + $0x30] sm:$0xff]
  %v88 = vld [vmem:[%s2 + $0x38] sm:$0xff]
  %v89 = vld [vmem:[%s2 + $0x40] sm:$0xff]
  %v90 = vld [vmem:[%s2 + $0x48] sm:$0xff]
  %v91 = vld [vmem:[%s2 + $0x50] sm:$0xff]
  %v92 = vld [vmem:[%s2 + $0x58] sm:$0xff]
  %v93 = vld [vmem:[%s2 + $0x60] sm:$0xff]
  %v94 = vld [vmem:[%s2 + $0x68] sm:$0xff]
  %v95 = vld [vmem:[%s2 + $0x70] sm:$0xff]
  %v96 = vld [vmem:[%s2 + $0x78] sm:$0xff]
  %v97 = vld [vmem:[%s3] sm:$0xf]
  %v99 = vlaneseq
  %v100 = vshrl.u32 %v99, 7
  %v101 = vsub.s32 0, %v100
  %v102 = vrot.slane %v97, %v101
  %v103 = vlaneseq
  %v104 = vshrl.u32 %v103, 7
  %v105 = vsub.s32 1, %v104
  %v106 = vrot.slane %v97, %v105
  %v107 = vlaneseq
  %v108 = vshrl.u32 %v107, 7
  %v109 = vsub.s32 2, %v108
  %v110 = vrot.slane %v97, %v109
  %v111 = vlaneseq
  %v112 = vshrl.u32 %v111, 7
  %v113 = vsub.s32 3, %v112
  %v114 = vrot.slane %v97, %v113
  %v123 = vunpack.c.l.b16 %v77
  %v124 = vunpack.c.l.b16 %v78
  %v125 = vunpack.c.l.b16 %v79
  %v126 = vunpack.c.l.b16 %v80
  %v127 = vpack.c.b16 %v124, %v123
  %v128 = vpack.c.b16 %v126, %v125
  %v145 = vunpack.c.l.b16 %v81
  %v146 = vunpack.c.h.b16 %v81
  %v147 = vunpack.c.l.b16 %v82
  %v148 = vunpack.c.h.b16 %v82
  %v149 = vunpack.c.l.b16 %v83
  %v150 = vunpack.c.h.b16 %v83
  %v151 = vunpack.c.l.b16 %v84
  %v152 = vunpack.c.h.b16 %v84
  %v153 = vunpack.c.l.b16 %v85
  %v154 = vunpack.c.h.b16 %v85
  %v155 = vunpack.c.l.b16 %v86
  %v156 = vunpack.c.h.b16 %v86
  %v157 = vunpack.c.l.b16 %v87
  %v158 = vunpack.c.h.b16 %v87
  %v159 = vunpack.c.l.b16 %v88
  %v160 = vunpack.c.h.b16 %v88
  %v161 = vunpack.c.l.b16 %v89
  %v162 = vunpack.c.h.b16 %v89
  %v163 = vunpack.c.l.b16 %v90
  %v164 = vunpack.c.h.b16 %v90
  %v165 = vunpack.c.l.b16 %v91
  %v166 = vunpack.c.h.b16 %v91
  %v167 = vunpack.c.l.b16 %v92
  %v168 = vunpack.c.h.b16 %v92
  %v169 = vunpack.c.l.b16 %v93
  %v170 = vunpack.c.h.b16 %v93
  %v171 = vunpack.c.l.b16 %v94
  %v172 = vunpack.c.h.b16 %v94
  %v173 = vunpack.c.l.b16 %v95
  %v174 = vunpack.c.h.b16 %v95
  %v175 = vunpack.c.l.b16 %v96
  %v176 = vunpack.c.h.b16 %v96
  %v177 = vpack.c.b16 %v149, %v145
  %v178 = vpack.c.b16 %v150, %v146
  %v179 = vpack.c.b16 %v151, %v147
  %v180 = vpack.c.b16 %v152, %v148
  %v181 = vpack.c.b16 %v157, %v153
  %v182 = vpack.c.b16 %v158, %v154
  %v183 = vpack.c.b16 %v159, %v155
  %v184 = vpack.c.b16 %v160, %v156
  %v185 = vpack.c.b16 %v165, %v161
  %v186 = vpack.c.b16 %v166, %v162
  %v187 = vpack.c.b16 %v167, %v163
  %v188 = vpack.c.b16 %v168, %v164
  %v189 = vpack.c.b16 %v173, %v169
  %v190 = vpack.c.b16 %v174, %v170
  %v191 = vpack.c.b16 %v175, %v171
  %v192 = vpack.c.b16 %v176, %v172
  %vm209 = vcmask 523264
  %v211 = vsel %vm209, %v127, 0
  %v214 = vsel %vm209, %v128, 0
  %216 = vmatprep.subr.bf16.mxu0 0
  %217 = vmatpush1.bf16.msra.mxu0 0
  %218 = vmatprep.subr.bf16.mxu0 0
  %219 = vmatpush1.bf16.msra.mxu0 0
  %220 = vmatprep.subr.bf16.mxu0 0
  %221 = vmatpush1.bf16.msra.mxu0 0
  %222 = vmatprep.subr.bf16.mxu0 0
  %223 = vmatpush1.bf16.msra.mxu0 0
  %224 = vmatprep.subr.bf16.mxu0 %v190
  %225 = vmatpush1.bf16.msra.mxu0 %v189
  %226 = vmatprep.subr.bf16.mxu0 %v186
  %227 = vmatpush1.bf16.msra.mxu0 %v185
  %228 = vmatprep.subr.bf16.mxu0 %v182
  %229 = vmatpush1.bf16.msra.mxu0 %v181
  %230 = vmatprep.subr.bf16.mxu0 %v178
  %231 = vmatpush1.bf16.msra.mxu0 %v177
  %232 = vmatprep.subr.bf16.mxu0 0
  %233 = vmatpush2.bf16.msra.mxu0 0
  %234 = vmatprep.subr.bf16.mxu0 0
  %235 = vmatpush2.bf16.msra.mxu0 0
  %236 = vmatprep.subr.bf16.mxu0 0
  %237 = vmatpush2.bf16.msra.mxu0 0
  %238 = vmatprep.subr.bf16.mxu0 0
  %239 = vmatpush2.bf16.msra.mxu0 0
  %240 = vmatprep.subr.bf16.mxu0 0
  %241 = vmatpush2.bf16.msra.mxu0 0
  %242 = vmatprep.subr.bf16.mxu0 0
  %243 = vmatpush2.bf16.msra.mxu0 0
  %244 = vmatprep.subr.bf16.mxu0 0
  %245 = vmatpush2.bf16.msra.mxu0 0
  %246 = vmatprep.subr.bf16.mxu0 0
  %247 = vmatpush2.bf16.msra.mxu0 0
  %248 = vmatprep.mubr.bf16.mxu0 0
  %249 = vmatmul.mubr.bf16.gmra.mxu0 %v211
  %v250 = vpop.f32.mrf.mxu0
  %v251 = vadd.f32 %v102, %v250
  %v252 = vpop.f32.mrf.mxu0
  %v253 = vadd.f32 %v106, %v252
  %v254 = vpop.f32.mrf.mxu0
  %v255 = vadd.f32 %v102, %v254
  %v256 = vpop.f32.mrf.mxu0
  %v257 = vadd.f32 %v106, %v256
  %258 = vmatprep.mubr.bf16.mxu0 0
  %259 = vmatmul.mubr.bf16.gmra.mxu0 %v214
  %v260 = vpop.f32.mrf.mxu0
  %v261 = vadd.f32 %v102, %v260
  %v262 = vpop.f32.mrf.mxu0
  %v263 = vadd.f32 %v106, %v262
  %v264 = vpop.f32.mrf.mxu0
  %v265 = vadd.f32 %v102, %v264
  %v266 = vpop.f32.mrf.mxu0
  %v267 = vadd.f32 %v106, %v266
  %268 = vdwg.mxu0
  %269 = vmatprep.subr.bf16.mxu0 0
  %270 = vmatpush1.bf16.msra.mxu0 0
  %271 = vmatprep.subr.bf16.mxu0 0
  %272 = vmatpush1.bf16.msra.mxu0 0
  %273 = vmatprep.subr.bf16.mxu0 0
  %274 = vmatpush1.bf16.msra.mxu0 0
  %275 = vmatprep.subr.bf16.mxu0 0
  %276 = vmatpush1.bf16.msra.mxu0 0
  %277 = vmatprep.subr.bf16.mxu0 %v192
  %278 = vmatpush1.bf16.msra.mxu0 %v191
  %279 = vmatprep.subr.bf16.mxu0 %v188
  %280 = vmatpush1.bf16.msra.mxu0 %v187
  %281 = vmatprep.subr.bf16.mxu0 %v184
  %282 = vmatpush1.bf16.msra.mxu0 %v183
  %283 = vmatprep.subr.bf16.mxu0 %v180
  %284 = vmatpush1.bf16.msra.mxu0 %v179
  %285 = vmatprep.subr.bf16.mxu0 0
  %286 = vmatpush2.bf16.msra.mxu0 0
  %287 = vmatprep.subr.bf16.mxu0 0
  %288 = vmatpush2.bf16.msra.mxu0 0
  %289 = vmatprep.subr.bf16.mxu0 0
  %290 = vmatpush2.bf16.msra.mxu0 0
  %291 = vmatprep.subr.bf16.mxu0 0
  %292 = vmatpush2.bf16.msra.mxu0 0
  %293 = vmatprep.subr.bf16.mxu0 0
  %294 = vmatpush2.bf16.msra.mxu0 0
  %295 = vmatprep.subr.bf16.mxu0 0
  %296 = vmatpush2.bf16.msra.mxu0 0
  %297 = vmatprep.subr.bf16.mxu0 0
  %298 = vmatpush2.bf16.msra.mxu0 0
  %299 = vmatprep.subr.bf16.mxu0 0
  %300 = vmatpush2.bf16.msra.mxu0 0
  %301 = vmatprep.mubr.bf16.mxu0 0
  %302 = vmatmul.mubr.bf16.gmra.mxu0 %v211
  %v303 = vpop.f32.mrf.mxu0
  %v304 = vadd.f32 %v110, %v303
  %v305 = vpop.f32.mrf.mxu0
  %v306 = vadd.f32 %v114, %v305
  %v307 = vpop.f32.mrf.mxu0
  %v308 = vadd.f32 %v110, %v307
  %v309 = vpop.f32.mrf.mxu0
  %v310 = vadd.f32 %v114, %v309
  %311 = vmatprep.mubr.bf16.mxu0 0
  %312 = vmatmul.mubr.bf16.gmra.mxu0 %v214
  %v313 = vpop.f32.mrf.mxu0
  %v314 = vadd.f32 %v110, %v313
  %v315 = vpop.f32.mrf.mxu0
  %v316 = vadd.f32 %v114, %v315
  %v317 = vpop.f32.mrf.mxu0
  %v318 = vadd.f32 %v110, %v317
  %v319 = vpop.f32.mrf.mxu0
  %v320 = vadd.f32 %v114, %v319
  %321 = vdwg.mxu0
  %v322 = vld [vmem:[%s4] sm:$0xf]
  %v323 = vld [vmem:[%s5] sm:$0xf]
  %v324 = vadd.f32 %v251, %v253
  %v325 = vadd.f32 %v324, %v304
  %v326 = vadd.f32 %v325, %v306
  %327 = vadd.xlane.f32.xlu0 %v326
  %v328 = vpop.xlane.xlu0 %327
  %v329 = vadd.f32 %v255, %v257
  %v330 = vadd.f32 %v329, %v308
  %v331 = vadd.f32 %v330, %v310
  %332 = vadd.xlane.f32.xlu0 %v331
  %v333 = vpop.xlane.xlu0 %332
  %v334 = vadd.f32 %v261, %v263
  %v335 = vadd.f32 %v334, %v314
  %v336 = vadd.f32 %v335, %v316
  %337 = vadd.xlane.f32.xlu0 %v336
  %v338 = vpop.xlane.xlu0 %337
  %v339 = vadd.f32 %v265, %v267
  %v340 = vadd.f32 %v339, %v318
  %v341 = vadd.f32 %v340, %v320
  %342 = vadd.xlane.f32.xlu0 %v341
  %v343 = vpop.xlane.xlu0 %342
  %v344 = vrcp.pop 512.0
  %v345 = vmul.f32 %v328, %v344
  %v346 = vmul.f32 %v333, %v344
  %v347 = vmul.f32 %v338, %v344
  %v348 = vmul.f32 %v343, %v344
  %v349 = vsub.f32 %v251, %v345
  %v350 = vsub.f32 %v253, %v345
  %v351 = vsub.f32 %v304, %v345
  %v352 = vsub.f32 %v306, %v345
  %v353 = vsub.f32 %v255, %v346
  %v354 = vsub.f32 %v257, %v346
  %v355 = vsub.f32 %v308, %v346
  %v356 = vsub.f32 %v310, %v346
  %v357 = vsub.f32 %v261, %v347
  %v358 = vsub.f32 %v263, %v347
  %v359 = vsub.f32 %v314, %v347
  %v360 = vsub.f32 %v316, %v347
  %v361 = vsub.f32 %v265, %v348
  %v362 = vsub.f32 %v267, %v348
  %v363 = vsub.f32 %v318, %v348
  %v364 = vsub.f32 %v320, %v348
  %v365 = vmul.f32 %v349, %v349
  %v366 = vmul.f32 %v350, %v350
  %v367 = vmul.f32 %v351, %v351
  %v368 = vmul.f32 %v352, %v352
  %v369 = vmul.f32 %v353, %v353
  %v370 = vmul.f32 %v354, %v354
  %v371 = vmul.f32 %v355, %v355
  %v372 = vmul.f32 %v356, %v356
  %v373 = vmul.f32 %v357, %v357
  %v374 = vmul.f32 %v358, %v358
  %v375 = vmul.f32 %v359, %v359
  %v376 = vmul.f32 %v360, %v360
  %v377 = vmul.f32 %v361, %v361
  %v378 = vmul.f32 %v362, %v362
  %v379 = vmul.f32 %v363, %v363
  %v380 = vmul.f32 %v364, %v364
  %v381 = vadd.f32 %v365, %v366
  %v382 = vadd.f32 %v381, %v367
  %v383 = vadd.f32 %v382, %v368
  %384 = vadd.xlane.f32.xlu0 %v383
  %v385 = vpop.xlane.xlu0 %384
  %v386 = vadd.f32 %v369, %v370
  %v387 = vadd.f32 %v386, %v371
  %v388 = vadd.f32 %v387, %v372
  %389 = vadd.xlane.f32.xlu0 %v388
  %v390 = vpop.xlane.xlu0 %389
  %v391 = vadd.f32 %v373, %v374
  %v392 = vadd.f32 %v391, %v375
  %v393 = vadd.f32 %v392, %v376
  %394 = vadd.xlane.f32.xlu0 %v393
  %v395 = vpop.xlane.xlu0 %394
  %v396 = vadd.f32 %v377, %v378
  %v397 = vadd.f32 %v396, %v379
  %v398 = vadd.f32 %v397, %v380
  %399 = vadd.xlane.f32.xlu0 %v398
  %v400 = vpop.xlane.xlu0 %399
  %v401 = vmul.f32 %v385, %v344
  %v402 = vmul.f32 %v390, %v344
  %v403 = vmul.f32 %v395, %v344
  %v404 = vmul.f32 %v400, %v344
  %v405 = vadd.f32 %v401, 1e-05
  %v406 = vadd.f32 %v402, 1e-05
  %v407 = vadd.f32 %v403, 1e-05
  %v408 = vadd.f32 %v404, 1e-05
  %v409 = vrsqrt.pop %v405
  %v410 = vrsqrt.pop %v406
  %v411 = vrsqrt.pop %v407
  %v412 = vrsqrt.pop %v408
  %v413 = vmul.f32 %v349, %v409
  %v414 = vmul.f32 %v350, %v409
  %v415 = vmul.f32 %v351, %v409
  %v416 = vmul.f32 %v352, %v409
  %v417 = vmul.f32 %v353, %v410
  %v418 = vmul.f32 %v354, %v410
  %v419 = vmul.f32 %v355, %v410
  %v420 = vmul.f32 %v356, %v410
  %v421 = vmul.f32 %v357, %v411
  %v422 = vmul.f32 %v358, %v411
  %v423 = vmul.f32 %v359, %v411
  %v424 = vmul.f32 %v360, %v411
  %v425 = vmul.f32 %v361, %v412
  %v426 = vmul.f32 %v362, %v412
  %v427 = vmul.f32 %v363, %v412
  %v428 = vmul.f32 %v364, %v412
  %v430 = vlaneseq
  %v431 = vshrl.u32 %v430, 7
  %v432 = vsub.s32 0, %v431
  %v433 = vrot.slane %v322, %v432
  %v434 = vlaneseq
  %v435 = vshrl.u32 %v434, 7
  %v436 = vsub.s32 1, %v435
  %v437 = vrot.slane %v322, %v436
  %v438 = vlaneseq
  %v439 = vshrl.u32 %v438, 7
  %v440 = vsub.s32 2, %v439
  %v441 = vrot.slane %v322, %v440
  %v442 = vlaneseq
  %v443 = vshrl.u32 %v442, 7
  %v444 = vsub.s32 3, %v443
  %v445 = vrot.slane %v322, %v444
  %v450 = vmul.f32 %v413, %v433
  %v451 = vmul.f32 %v414, %v437
  %v452 = vmul.f32 %v415, %v441
  %v453 = vmul.f32 %v416, %v445
  %v454 = vmul.f32 %v417, %v433
  %v455 = vmul.f32 %v418, %v437
  %v456 = vmul.f32 %v419, %v441
  %v457 = vmul.f32 %v420, %v445
  %v458 = vmul.f32 %v421, %v433
  %v459 = vmul.f32 %v422, %v437
  %v460 = vmul.f32 %v423, %v441
  %v461 = vmul.f32 %v424, %v445
  %v462 = vmul.f32 %v425, %v433
  %v463 = vmul.f32 %v426, %v437
  %v464 = vmul.f32 %v427, %v441
  %v465 = vmul.f32 %v428, %v445
  %v467 = vlaneseq
  %v468 = vshrl.u32 %v467, 7
  %v469 = vsub.s32 0, %v468
  %v470 = vrot.slane %v323, %v469
  %v471 = vlaneseq
  %v472 = vshrl.u32 %v471, 7
  %v473 = vsub.s32 1, %v472
  %v474 = vrot.slane %v323, %v473
  %v475 = vlaneseq
  %v476 = vshrl.u32 %v475, 7
  %v477 = vsub.s32 2, %v476
  %v478 = vrot.slane %v323, %v477
  %v479 = vlaneseq
  %v480 = vshrl.u32 %v479, 7
  %v481 = vsub.s32 3, %v480
  %v482 = vrot.slane %v323, %v481
  %v487 = vadd.f32 %v450, %v470
  %v488 = vadd.f32 %v451, %v474
  %v489 = vadd.f32 %v452, %v478
  %v490 = vadd.f32 %v453, %v482
  %v491 = vadd.f32 %v454, %v470
  %v492 = vadd.f32 %v455, %v474
  %v493 = vadd.f32 %v456, %v478
  %v494 = vadd.f32 %v457, %v482
  %v495 = vadd.f32 %v458, %v470
  %v496 = vadd.f32 %v459, %v474
  %v497 = vadd.f32 %v460, %v478
  %v498 = vadd.f32 %v461, %v482
  %v499 = vadd.f32 %v462, %v470
  %v500 = vadd.f32 %v463, %v474
  %v501 = vadd.f32 %v464, %v478
  %v502 = vadd.f32 %v465, %v482
  %vm503 = vcmp.gt.f32.partialorder %v487, 0.0
  %vm504 = vcmp.gt.f32.partialorder %v488, 0.0
  %vm505 = vcmp.gt.f32.partialorder %v489, 0.0
  %vm506 = vcmp.gt.f32.partialorder %v490, 0.0
  %vm507 = vcmp.gt.f32.partialorder %v491, 0.0
  %vm508 = vcmp.gt.f32.partialorder %v492, 0.0
  %vm509 = vcmp.gt.f32.partialorder %v493, 0.0
  %vm510 = vcmp.gt.f32.partialorder %v494, 0.0
  %vm511 = vcmp.gt.f32.partialorder %v495, 0.0
  %vm512 = vcmp.gt.f32.partialorder %v496, 0.0
  %vm513 = vcmp.gt.f32.partialorder %v497, 0.0
  %vm514 = vcmp.gt.f32.partialorder %v498, 0.0
  %vm515 = vcmp.gt.f32.partialorder %v499, 0.0
  %vm516 = vcmp.gt.f32.partialorder %v500, 0.0
  %vm517 = vcmp.gt.f32.partialorder %v501, 0.0
  %vm518 = vcmp.gt.f32.partialorder %v502, 0.0
  %v519 = vmul.f32 %v487, 0.01
  %v520 = vmul.f32 %v488, 0.01
  %v521 = vmul.f32 %v489, 0.01
  %v522 = vmul.f32 %v490, 0.01
  %v523 = vmul.f32 %v491, 0.01
  %v524 = vmul.f32 %v492, 0.01
  %v525 = vmul.f32 %v493, 0.01
  %v526 = vmul.f32 %v494, 0.01
  %v527 = vmul.f32 %v495, 0.01
  %v528 = vmul.f32 %v496, 0.01
  %v529 = vmul.f32 %v497, 0.01
  %v530 = vmul.f32 %v498, 0.01
  %v531 = vmul.f32 %v499, 0.01
  %v532 = vmul.f32 %v500, 0.01
  %v533 = vmul.f32 %v501, 0.01
  %v534 = vmul.f32 %v502, 0.01
  %v535 = vsel %vm503, %v487, %v519
  %v536 = vsel %vm504, %v488, %v520
  %v537 = vsel %vm505, %v489, %v521
  %v538 = vsel %vm506, %v490, %v522
  %v539 = vsel %vm507, %v491, %v523
  %v540 = vsel %vm508, %v492, %v524
  %v541 = vsel %vm509, %v493, %v525
  %v542 = vsel %vm510, %v494, %v526
  %v543 = vsel %vm511, %v495, %v527
  %v544 = vsel %vm512, %v496, %v528
  %v545 = vsel %vm513, %v497, %v529
  %v546 = vsel %vm514, %v498, %v530
  %v547 = vsel %vm515, %v499, %v531
  %v548 = vsel %vm516, %v500, %v532
  %v549 = vsel %vm517, %v501, %v533
  %v550 = vsel %vm518, %v502, %v534
  %v551 = vld [vmem:[%s6] sm:$0xf]
  %v552 = vld [vmem:[%s6 + $0x4] sm:$0xf]
  %v553 = vld [vmem:[%s6 + $0x8] sm:$0xf]
  %v554 = vld [vmem:[%s6 + $0xc] sm:$0xf]
  %v555 = vld [vmem:[%s6 + $0x10] sm:$0xf]
  %v556 = vld [vmem:[%s6 + $0x14] sm:$0xf]
  %v557 = vld [vmem:[%s6 + $0x18] sm:$0xf]
  %v558 = vld [vmem:[%s6 + $0x1c] sm:$0xf]
  %v559 = vld [vmem:[%s6 + $0x20] sm:$0xf]
  %v560 = vld [vmem:[%s6 + $0x24] sm:$0xf]
  %v561 = vld [vmem:[%s6 + $0x28] sm:$0xf]
  %v562 = vld [vmem:[%s6 + $0x2c] sm:$0xf]
  %v563 = vld [vmem:[%s6 + $0x30] sm:$0xf]
  %v564 = vld [vmem:[%s6 + $0x34] sm:$0xf]
  %v565 = vld [vmem:[%s6 + $0x38] sm:$0xf]
  %v566 = vld [vmem:[%s6 + $0x3c] sm:$0xf]
  %v567 = vld [vmem:[%s6 + $0x40] sm:$0xf]
  %v568 = vld [vmem:[%s6 + $0x44] sm:$0xf]
  %v569 = vld [vmem:[%s6 + $0x48] sm:$0xf]
  %v570 = vld [vmem:[%s6 + $0x4c] sm:$0xf]
  %v571 = vld [vmem:[%s6 + $0x50] sm:$0xf]
  %v572 = vld [vmem:[%s6 + $0x54] sm:$0xf]
  %v573 = vld [vmem:[%s6 + $0x58] sm:$0xf]
  %v574 = vld [vmem:[%s6 + $0x5c] sm:$0xf]
  %v575 = vld [vmem:[%s6 + $0x60] sm:$0xf]
  %v576 = vld [vmem:[%s6 + $0x64] sm:$0xf]
  %v577 = vld [vmem:[%s6 + $0x68] sm:$0xf]
  %v578 = vld [vmem:[%s6 + $0x6c] sm:$0xf]
  %v579 = vld [vmem:[%s6 + $0x70] sm:$0xf]
  %v580 = vld [vmem:[%s6 + $0x74] sm:$0xf]
  %v581 = vld [vmem:[%s6 + $0x78] sm:$0xf]
  %v582 = vld [vmem:[%s6 + $0x7c] sm:$0xf]
  %v583 = vld [vmem:[%s6 + $0x80] sm:$0xf]
  %v584 = vld [vmem:[%s6 + $0x84] sm:$0xf]
  %v585 = vld [vmem:[%s6 + $0x88] sm:$0xf]
  %v586 = vld [vmem:[%s6 + $0x8c] sm:$0xf]
  %v587 = vld [vmem:[%s6 + $0x90] sm:$0xf]
  %v588 = vld [vmem:[%s6 + $0x94] sm:$0xf]
  %v589 = vld [vmem:[%s6 + $0x98] sm:$0xf]
  %v590 = vld [vmem:[%s6 + $0x9c] sm:$0xf]
  %v591 = vld [vmem:[%s6 + $0xa0] sm:$0xf]
  %v592 = vld [vmem:[%s6 + $0xa4] sm:$0xf]
  %v593 = vld [vmem:[%s6 + $0xa8] sm:$0xf]
  %v594 = vld [vmem:[%s6 + $0xac] sm:$0xf]
  %v595 = vld [vmem:[%s6 + $0xb0] sm:$0xf]
  %v596 = vld [vmem:[%s6 + $0xb4] sm:$0xf]
  %v597 = vld [vmem:[%s6 + $0xb8] sm:$0xf]
  %v598 = vld [vmem:[%s6 + $0xbc] sm:$0xf]
  %v599 = vld [vmem:[%s6 + $0xc0] sm:$0xf]
  %v600 = vld [vmem:[%s6 + $0xc4] sm:$0xf]
  %v601 = vld [vmem:[%s6 + $0xc8] sm:$0xf]
  %v602 = vld [vmem:[%s6 + $0xcc] sm:$0xf]
  %v603 = vld [vmem:[%s6 + $0xd0] sm:$0xf]
  %v604 = vld [vmem:[%s6 + $0xd4] sm:$0xf]
  %v605 = vld [vmem:[%s6 + $0xd8] sm:$0xf]
  %v606 = vld [vmem:[%s6 + $0xdc] sm:$0xf]
  %v607 = vld [vmem:[%s6 + $0xe0] sm:$0xf]
  %v608 = vld [vmem:[%s6 + $0xe4] sm:$0xf]
  %v609 = vld [vmem:[%s6 + $0xe8] sm:$0xf]
  %v610 = vld [vmem:[%s6 + $0xec] sm:$0xf]
  %v611 = vld [vmem:[%s6 + $0xf0] sm:$0xf]
  %v612 = vld [vmem:[%s6 + $0xf4] sm:$0xf]
  %v613 = vld [vmem:[%s6 + $0xf8] sm:$0xf]
  %v614 = vld [vmem:[%s6 + $0xfc] sm:$0xf]
  %v615 = vpack.c.bf16 %v539, %v535
  %v616 = vpack.c.bf16 %v540, %v536
  %v617 = vpack.c.bf16 %v541, %v537
  %v618 = vpack.c.bf16 %v542, %v538
  %v619 = vpack.c.bf16 %v547, %v543
  %v620 = vpack.c.bf16 %v548, %v544
  %v621 = vpack.c.bf16 %v549, %v545
  %v622 = vpack.c.bf16 %v550, %v546
  %v623 = vld [vmem:[%s7] sm:$0x1]
  %v625 = vlaneseq
  %v626 = vshrl.u32 %v625, 7
  %v627 = vsub.s32 0, %v626
  %v628 = vrot.slane %v623, %v627
  %v694 = vunpack.c.l.b16 %v551
  %v695 = vunpack.c.l.b16 %v552
  %v696 = vunpack.c.l.b16 %v553
  %v697 = vunpack.c.l.b16 %v554
  %v698 = vunpack.c.l.b16 %v555
  %v699 = vunpack.c.l.b16 %v556
  %v700 = vunpack.c.l.b16 %v557
  %v701 = vunpack.c.l.b16 %v558
  %v702 = vunpack.c.l.b16 %v559
  %v703 = vunpack.c.l.b16 %v560
  %v704 = vunpack.c.l.b16 %v561
  %v705 = vunpack.c.l.b16 %v562
  %v706 = vunpack.c.l.b16 %v563
  %v707 = vunpack.c.l.b16 %v564
  %v708 = vunpack.c.l.b16 %v565
  %v709 = vunpack.c.l.b16 %v566
  %v710 = vunpack.c.l.b16 %v567
  %v711 = vunpack.c.l.b16 %v568
  %v712 = vunpack.c.l.b16 %v569
  %v713 = vunpack.c.l.b16 %v570
  %v714 = vunpack.c.l.b16 %v571
  %v715 = vunpack.c.l.b16 %v572
  %v716 = vunpack.c.l.b16 %v573
  %v717 = vunpack.c.l.b16 %v574
  %v718 = vunpack.c.l.b16 %v575
  %v719 = vunpack.c.l.b16 %v576
  %v720 = vunpack.c.l.b16 %v577
  %v721 = vunpack.c.l.b16 %v578
  %v722 = vunpack.c.l.b16 %v579
  %v723 = vunpack.c.l.b16 %v580
  %v724 = vunpack.c.l.b16 %v581
  %v725 = vunpack.c.l.b16 %v582
  %v726 = vunpack.c.l.b16 %v583
  %v727 = vunpack.c.l.b16 %v584
  %v728 = vunpack.c.l.b16 %v585
  %v729 = vunpack.c.l.b16 %v586
  %v730 = vunpack.c.l.b16 %v587
  %v731 = vunpack.c.l.b16 %v588
  %v732 = vunpack.c.l.b16 %v589
  %v733 = vunpack.c.l.b16 %v590
  %v734 = vunpack.c.l.b16 %v591
  %v735 = vunpack.c.l.b16 %v592
  %v736 = vunpack.c.l.b16 %v593
  %v737 = vunpack.c.l.b16 %v594
  %v738 = vunpack.c.l.b16 %v595
  %v739 = vunpack.c.l.b16 %v596
  %v740 = vunpack.c.l.b16 %v597
  %v741 = vunpack.c.l.b16 %v598
  %v742 = vunpack.c.l.b16 %v599
  %v743 = vunpack.c.l.b16 %v600
  %v744 = vunpack.c.l.b16 %v601
  %v745 = vunpack.c.l.b16 %v602
  %v746 = vunpack.c.l.b16 %v603
  %v747 = vunpack.c.l.b16 %v604
  %v748 = vunpack.c.l.b16 %v605
  %v749 = vunpack.c.l.b16 %v606
  %v750 = vunpack.c.l.b16 %v607
  %v751 = vunpack.c.l.b16 %v608
  %v752 = vunpack.c.l.b16 %v609
  %v753 = vunpack.c.l.b16 %v610
  %v754 = vunpack.c.l.b16 %v611
  %v755 = vunpack.c.l.b16 %v612
  %v756 = vunpack.c.l.b16 %v613
  %v757 = vunpack.c.l.b16 %v614
  %v758 = vpack.c.b16 %v695, %v694
  %v759 = vpack.c.b16 %v697, %v696
  %v760 = vpack.c.b16 %v699, %v698
  %v761 = vpack.c.b16 %v701, %v700
  %v762 = vpack.c.b16 %v703, %v702
  %v763 = vpack.c.b16 %v705, %v704
  %v764 = vpack.c.b16 %v707, %v706
  %v765 = vpack.c.b16 %v709, %v708
  %v766 = vpack.c.b16 %v711, %v710
  %v767 = vpack.c.b16 %v713, %v712
  %v768 = vpack.c.b16 %v715, %v714
  %v769 = vpack.c.b16 %v717, %v716
  %v770 = vpack.c.b16 %v719, %v718
  %v771 = vpack.c.b16 %v721, %v720
  %v772 = vpack.c.b16 %v723, %v722
  %v773 = vpack.c.b16 %v725, %v724
  %v774 = vpack.c.b16 %v727, %v726
  %v775 = vpack.c.b16 %v729, %v728
  %v776 = vpack.c.b16 %v731, %v730
  %v777 = vpack.c.b16 %v733, %v732
  %v778 = vpack.c.b16 %v735, %v734
  %v779 = vpack.c.b16 %v737, %v736
  %v780 = vpack.c.b16 %v739, %v738
  %v781 = vpack.c.b16 %v741, %v740
  %v782 = vpack.c.b16 %v743, %v742
  %v783 = vpack.c.b16 %v745, %v744
  %v784 = vpack.c.b16 %v747, %v746
  %v785 = vpack.c.b16 %v749, %v748
  %v786 = vpack.c.b16 %v751, %v750
  %v787 = vpack.c.b16 %v753, %v752
  %v788 = vpack.c.b16 %v755, %v754
  %v789 = vpack.c.b16 %v757, %v756
  %822 = vmatprep.subr.bf16.mxu0 0
  %823 = vmatpush1.bf16.msra.mxu0 %v765
  %824 = vmatprep.subr.bf16.mxu0 0
  %825 = vmatpush1.bf16.msra.mxu0 %v764
  %826 = vmatprep.subr.bf16.mxu0 0
  %827 = vmatpush1.bf16.msra.mxu0 %v763
  %828 = vmatprep.subr.bf16.mxu0 0
  %829 = vmatpush1.bf16.msra.mxu0 %v762
  %830 = vmatprep.subr.bf16.mxu0 0
  %831 = vmatpush1.bf16.msra.mxu0 %v761
  %832 = vmatprep.subr.bf16.mxu0 0
  %833 = vmatpush1.bf16.msra.mxu0 %v760
  %834 = vmatprep.subr.bf16.mxu0 0
  %835 = vmatpush1.bf16.msra.mxu0 %v759
  %836 = vmatprep.subr.bf16.mxu0 0
  %837 = vmatpush1.bf16.msra.mxu0 %v758
  %838 = vmatprep.subr.bf16.mxu0 0
  %839 = vmatpush2.bf16.msra.mxu0 %v773
  %840 = vmatprep.subr.bf16.mxu0 0
  %841 = vmatpush2.bf16.msra.mxu0 %v772
  %842 = vmatprep.subr.bf16.mxu0 0
  %843 = vmatpush2.bf16.msra.mxu0 %v771
  %844 = vmatprep.subr.bf16.mxu0 0
  %845 = vmatpush2.bf16.msra.mxu0 %v770
  %846 = vmatprep.subr.bf16.mxu0 0
  %847 = vmatpush2.bf16.msra.mxu0 %v769
  %848 = vmatprep.subr.bf16.mxu0 0
  %849 = vmatpush2.bf16.msra.mxu0 %v768
  %850 = vmatprep.subr.bf16.mxu0 0
  %851 = vmatpush2.bf16.msra.mxu0 %v767
  %852 = vmatprep.subr.bf16.mxu0 0
  %853 = vmatpush2.bf16.msra.mxu0 %v766
  %854 = vmatprep.mubr.bf16.mxu0 %v616
  %855 = vmatmul.mubr.bf16.gmra.mxu0 %v615
  %v856 = vpop.f32.mrf.mxu0
  %v857 = vadd.f32 %v628, %v856
  %v858 = vpop.f32.mrf.mxu0
  %v859 = vpop.f32.mrf.mxu0
  %v860 = vadd.f32 %v628, %v859
  %v861 = vpop.f32.mrf.mxu0
  %862 = vmatprep.mubr.bf16.mxu0 %v620
  %863 = vmatmul.mubr.bf16.gmra.mxu0 %v619
  %v864 = vpop.f32.mrf.mxu0
  %v865 = vadd.f32 %v628, %v864
  %v866 = vpop.f32.mrf.mxu0
  %v867 = vpop.f32.mrf.mxu0
  %v868 = vadd.f32 %v628, %v867
  %v869 = vpop.f32.mrf.mxu0
  %870 = vdwg.mxu0
  %871 = vmatprep.subr.bf16.mxu0 0
  %872 = vmatpush1.bf16.msra.mxu0 %v781
  %873 = vmatprep.subr.bf16.mxu0 0
  %874 = vmatpush1.bf16.msra.mxu0 %v780
  %875 = vmatprep.subr.bf16.mxu0 0
  %876 = vmatpush1.bf16.msra.mxu0 %v779
  %877 = vmatprep.subr.bf16.mxu0 0
  %878 = vmatpush1.bf16.msra.mxu0 %v778
  %879 = vmatprep.subr.bf16.mxu0 0
  %880 = vmatpush1.bf16.msra.mxu0 %v777
  %881 = vmatprep.subr.bf16.mxu0 0
  %882 = vmatpush1.bf16.msra.mxu0 %v776
  %883 = vmatprep.subr.bf16.mxu0 0
  %884 = vmatpush1.bf16.msra.mxu0 %v775
  %885 = vmatprep.subr.bf16.mxu0 0
  %886 = vmatpush1.bf16.msra.mxu0 %v774
  %887 = vmatprep.subr.bf16.mxu0 0
  %888 = vmatpush2.bf16.msra.mxu0 %v789
  %889 = vmatprep.subr.bf16.mxu0 0
  %890 = vmatpush2.bf16.msra.mxu0 %v788
  %891 = vmatprep.subr.bf16.mxu0 0
  %892 = vmatpush2.bf16.msra.mxu0 %v787
  %893 = vmatprep.subr.bf16.mxu0 0
  %894 = vmatpush2.bf16.msra.mxu0 %v786
  %895 = vmatprep.subr.bf16.mxu0 0
  %896 = vmatpush2.bf16.msra.mxu0 %v785
  %897 = vmatprep.subr.bf16.mxu0 0
  %898 = vmatpush2.bf16.msra.mxu0 %v784
  %899 = vmatprep.subr.bf16.mxu0 0
  %900 = vmatpush2.bf16.msra.mxu0 %v783
  %901 = vmatprep.subr.bf16.mxu0 0
  %902 = vmatpush2.bf16.msra.mxu0 %v782
  %903 = vmatprep.mubr.bf16.mxu0 %v618
  %904 = vmatmul.mubr.bf16.gmra.mxu0 %v617
  %v905 = vpop.f32.mrf.mxu0
  %v906 = vadd.f32 %v857, %v905
  %v907 = vpop.f32.mrf.mxu0
  %v908 = vpop.f32.mrf.mxu0
  %v909 = vadd.f32 %v860, %v908
  %v910 = vpop.f32.mrf.mxu0
  %911 = vmatprep.mubr.bf16.mxu0 %v622
  %912 = vmatmul.mubr.bf16.gmra.mxu0 %v621
  %v913 = vpop.f32.mrf.mxu0
  %v914 = vadd.f32 %v865, %v913
  %v915 = vpop.f32.mrf.mxu0
  %v916 = vpop.f32.mrf.mxu0
  %v917 = vadd.f32 %v868, %v916
  %v918 = vpop.f32.mrf.mxu0
  %919 = vdwg.mxu0
  %v920 = vld [vmem:[%s8] sm:$0x1]
  %v921 = vld [vmem:[%s9] sm:$0x1]
  %922 = vadd.xlane.f32.xlu0 %v906
  %v923 = vpop.xlane.xlu0 %922
  %924 = vadd.xlane.f32.xlu0 %v909
  %v925 = vpop.xlane.xlu0 %924
  %926 = vadd.xlane.f32.xlu0 %v914
  %v927 = vpop.xlane.xlu0 %926
  %928 = vadd.xlane.f32.xlu0 %v917
  %v929 = vpop.xlane.xlu0 %928
  %v930 = vrcp.pop 128.0
  %v931 = vmul.f32 %v923, %v930
  %v932 = vmul.f32 %v925, %v930
  %v933 = vmul.f32 %v927, %v930
  %v934 = vmul.f32 %v929, %v930
  %v935 = vsub.f32 %v906, %v931
  %v936 = vsub.f32 %v909, %v932
  %v937 = vsub.f32 %v914, %v933
  %v938 = vsub.f32 %v917, %v934
  %v939 = vmul.f32 %v935, %v935
  %v940 = vmul.f32 %v936, %v936
  %v941 = vmul.f32 %v937, %v937
  %v942 = vmul.f32 %v938, %v938
  %943 = vadd.xlane.f32.xlu0 %v939
  %v944 = vpop.xlane.xlu0 %943
  %945 = vadd.xlane.f32.xlu0 %v940
  %v946 = vpop.xlane.xlu0 %945
  %947 = vadd.xlane.f32.xlu0 %v941
  %v948 = vpop.xlane.xlu0 %947
  %949 = vadd.xlane.f32.xlu0 %v942
  %v950 = vpop.xlane.xlu0 %949
  %v951 = vmul.f32 %v944, %v930
  %v952 = vmul.f32 %v946, %v930
  %v953 = vmul.f32 %v948, %v930
  %v954 = vmul.f32 %v950, %v930
  %v955 = vadd.f32 %v951, 1e-05
  %v956 = vadd.f32 %v952, 1e-05
  %v957 = vadd.f32 %v953, 1e-05
  %v958 = vadd.f32 %v954, 1e-05
  %v959 = vrsqrt.pop %v955
  %v960 = vrsqrt.pop %v956
  %v961 = vrsqrt.pop %v957
  %v962 = vrsqrt.pop %v958
  %v963 = vmul.f32 %v935, %v959
  %v964 = vmul.f32 %v936, %v960
  %v965 = vmul.f32 %v937, %v961
  %v966 = vmul.f32 %v938, %v962
  %v968 = vlaneseq
  %v969 = vshrl.u32 %v968, 7
  %v970 = vsub.s32 0, %v969
  %v971 = vrot.slane %v920, %v970
  %v973 = vmul.f32 %v963, %v971
  %v974 = vmul.f32 %v964, %v971
  %v975 = vmul.f32 %v965, %v971
  %v976 = vmul.f32 %v966, %v971
  %v978 = vlaneseq
  %v979 = vshrl.u32 %v978, 7
  %v980 = vsub.s32 0, %v979
  %v981 = vrot.slane %v921, %v980
  %v983 = vadd.f32 %v973, %v981
  %v984 = vadd.f32 %v974, %v981
  %v985 = vadd.f32 %v975, %v981
  %v986 = vadd.f32 %v976, %v981
  %vm987 = vcmp.gt.f32.partialorder %v983, 0.0
  %vm988 = vcmp.gt.f32.partialorder %v984, 0.0
  %vm989 = vcmp.gt.f32.partialorder %v985, 0.0
  %vm990 = vcmp.gt.f32.partialorder %v986, 0.0
  %v991 = vmul.f32 %v983, 0.01
  %v992 = vmul.f32 %v984, 0.01
  %v993 = vmul.f32 %v985, 0.01
  %v994 = vmul.f32 %v986, 0.01
  %v995 = vsel %vm987, %v983, %v991
  %v996 = vsel %vm988, %v984, %v992
  %v997 = vsel %vm989, %v985, %v993
  %v998 = vsel %vm990, %v986, %v994
  %v999 = vld [vmem:[%s10] sm:$0xff]
  %v1000 = vld [vmem:[%s10 + $0x8] sm:$0xff]
  %v1001 = vld [vmem:[%s10 + $0x10] sm:$0xff]
  %v1002 = vld [vmem:[%s10 + $0x18] sm:$0xff]
  %v1003 = vld [vmem:[%s10 + $0x20] sm:$0xff]
  %v1004 = vld [vmem:[%s10 + $0x28] sm:$0xff]
  %v1005 = vld [vmem:[%s10 + $0x30] sm:$0xff]
  %v1006 = vld [vmem:[%s10 + $0x38] sm:$0xff]
  %v1007 = vld [vmem:[%s10 + $0x40] sm:$0xff]
  %v1008 = vld [vmem:[%s10 + $0x48] sm:$0xff]
  %v1009 = vld [vmem:[%s10 + $0x50] sm:$0xff]
  %v1010 = vld [vmem:[%s10 + $0x58] sm:$0xff]
  %v1011 = vld [vmem:[%s10 + $0x60] sm:$0xff]
  %v1012 = vld [vmem:[%s10 + $0x68] sm:$0xff]
  %v1013 = vld [vmem:[%s10 + $0x70] sm:$0xff]
  %v1014 = vld [vmem:[%s10 + $0x78] sm:$0xff]
  %v1015 = vld [vmem:[#allocation2] sm:$0x1]
  %v1017 = vlaneseq
  %v1018 = vshrl.u32 %v1017, 7
  %v1019 = vsub.s32 0, %v1018
  %v1020 = vrot.slane %v1015, %v1019
  %1022 = vmatprep.subr.mxu0 0.0
  %1023 = vmatpush1.msra.mxu0 %v1014
  %1024 = vmatprep.subr.mxu0 0.0
  %1025 = vmatpush1.msra.mxu0 %v1013
  %1026 = vmatprep.subr.mxu0 0.0
  %1027 = vmatpush1.msra.mxu0 %v1012
  %1028 = vmatprep.subr.mxu0 0.0
  %1029 = vmatpush1.msra.mxu0 %v1011
  %1030 = vmatprep.subr.mxu0 0.0
  %1031 = vmatpush1.msra.mxu0 %v1010
  %1032 = vmatprep.subr.mxu0 0.0
  %1033 = vmatpush1.msra.mxu0 %v1009
  %1034 = vmatprep.subr.mxu0 0.0
  %1035 = vmatpush1.msra.mxu0 %v1008
  %1036 = vmatprep.subr.mxu0 0.0
  %1037 = vmatpush1.msra.mxu0 %v1007
  %1038 = vmatprep.subr.mxu0 0.0
  %1039 = vmatpush1.msra.mxu0 %v1006
  %1040 = vmatprep.subr.mxu0 0.0
  %1041 = vmatpush1.msra.mxu0 %v1005
  %1042 = vmatprep.subr.mxu0 0.0
  %1043 = vmatpush1.msra.mxu0 %v1004
  %1044 = vmatprep.subr.mxu0 0.0
  %1045 = vmatpush1.msra.mxu0 %v1003
  %1046 = vmatprep.subr.mxu0 0.0
  %1047 = vmatpush1.msra.mxu0 %v1002
  %1048 = vmatprep.subr.mxu0 0.0
  %1049 = vmatpush1.msra.mxu0 %v1001
  %1050 = vmatprep.subr.mxu0 0.0
  %1051 = vmatpush1.msra.mxu0 %v1000
  %1052 = vmatprep.subr.mxu0 0.0
  %1053 = vmatpush1.msra.mxu0 %v999
  %1054 = vmatprep.subr.mxu0 0.0
  %1055 = vmatpush2.msra.mxu0 0.0
  %1056 = vmatprep.subr.mxu0 0.0
  %1057 = vmatpush2.msra.mxu0 0.0
  %1058 = vmatprep.subr.mxu0 0.0
  %1059 = vmatpush2.msra.mxu0 0.0
  %1060 = vmatprep.subr.mxu0 0.0
  %1061 = vmatpush2.msra.mxu0 0.0
  %1062 = vmatprep.subr.mxu0 0.0
  %1063 = vmatpush2.msra.mxu0 0.0
  %1064 = vmatprep.subr.mxu0 0.0
  %1065 = vmatpush2.msra.mxu0 0.0
  %1066 = vmatprep.subr.mxu0 0.0
  %1067 = vmatpush2.msra.mxu0 0.0
  %1068 = vmatprep.subr.mxu0 0.0
  %1069 = vmatpush2.msra.mxu0 0.0
  %1070 = vmatprep.subr.mxu0 0.0
  %1071 = vmatpush2.msra.mxu0 0.0
  %1072 = vmatprep.subr.mxu0 0.0
  %1073 = vmatpush2.msra.mxu0 0.0
  %1074 = vmatprep.subr.mxu0 0.0
  %1075 = vmatpush2.msra.mxu0 0.0
  %1076 = vmatprep.subr.mxu0 0.0
  %1077 = vmatpush2.msra.mxu0 0.0
  %1078 = vmatprep.subr.mxu0 0.0
  %1079 = vmatpush2.msra.mxu0 0.0
  %1080 = vmatprep.subr.mxu0 0.0
  %1081 = vmatpush2.msra.mxu0 0.0
  %1082 = vmatprep.subr.mxu0 0.0
  %1083 = vmatpush2.msra.mxu0 0.0
  %1084 = vmatprep.subr.mxu0 0.0
  %1085 = vmatpush2.msra.mxu0 0.0
  %1086 = vmatprep.mubr.f32.mxu0 0.0
  %1087 = vmatmul.mubr.f32.gmra.mxu0 %v995
  %v1088 = vpop.f32.mrf.mxu0
  %v1089 = vadd.f32 %v1020, %v1088
  %v1090 = vpop.f32.mrf.mxu0
  %1091 = vmatprep.mubr.f32.mxu0 0.0
  %1092 = vmatmul.mubr.f32.gmra.mxu0 %v996
  %v1093 = vpop.f32.mrf.mxu0
  %v1094 = vadd.f32 %v1020, %v1093
  %v1095 = vpop.f32.mrf.mxu0
  %1096 = vmatprep.mubr.f32.mxu0 0.0
  %1097 = vmatmul.mubr.f32.gmra.mxu0 %v997
  %v1098 = vpop.f32.mrf.mxu0
  %v1099 = vadd.f32 %v1020, %v1098
  %v1100 = vpop.f32.mrf.mxu0
  %1101 = vmatprep.mubr.f32.mxu0 0.0
  %1102 = vmatmul.mubr.f32.gmra.mxu0 %v998
  %v1103 = vpop.f32.mrf.mxu0
  %v1104 = vadd.f32 %v1020, %v1103
  %v1105 = vpop.f32.mrf.mxu0
  %1106 = vdwg.mxu0
  %v1107 = vld [vmem:[%s12] sm:$0x3]
  %v1108 = vld [vmem:[%s13] sm:$0x1]
  %v1109 = vld [vmem:[%s14] sm:$0x1]
  %v1110 = vld [vmem:[%s15] sm:$0x1]
  %v1111 = vld [vmem:[%s1] sm:$0xff]
  %v1112 = vld [vmem:[%s1 + $0x8] sm:$0xff]
  %v1113 = vld [vmem:[%s1 + $0x10] sm:$0xff]
  %v1114 = vld [vmem:[%s1 + $0x18] sm:$0xff]
  %1116 = vset.pattern.permute.xlu0 0
  %1117 = vperm.xlu0 %1116, %v1111
  %v1118 = vpop.permute.xlu0 %1117
  %1121 = vset.pattern.permute.xlu0 0
  %1122 = vperm.xlu0 %1121, %v1112
  %v1123 = vpop.permute.xlu0 %1122
  %1126 = vset.pattern.permute.xlu0 0
  %1127 = vperm.xlu0 %1126, %v1113
  %v1128 = vpop.permute.xlu0 %1127
  %1131 = vset.pattern.permute.xlu0 0
  %1132 = vperm.xlu0 %1131, %v1114
  %v1133 = vpop.permute.xlu0 %1132
  %v1135 = vlaneseq
  %v1136 = vshrl.u32 %v1135, 7
  %v1137 = vsub.s32 0, %v1136
  %v1138 = vrot.slane %v1107, %v1137
  %v1139 = vmul.f32 %v1118, %v1138
  %v1140 = vmul.f32 %v1123, %v1138
  %v1141 = vmul.f32 %v1128, %v1138
  %v1142 = vmul.f32 %v1133, %v1138
  %1144 = vset.pattern.permute.xlu0 0
  %1145 = vperm.xlu0 %1144, %v1089
  %v1146 = vpop.permute.xlu0 %1145
  %1149 = vset.pattern.permute.xlu0 0
  %1150 = vperm.xlu0 %1149, %v1094
  %v1151 = vpop.permute.xlu0 %1150
  %1154 = vset.pattern.permute.xlu0 0
  %1155 = vperm.xlu0 %1154, %v1099
  %v1156 = vpop.permute.xlu0 %1155
  %1159 = vset.pattern.permute.xlu0 0
  %1160 = vperm.xlu0 %1159, %v1104
  %v1161 = vpop.permute.xlu0 %1160
  %v1163 = vlaneseq
  %v1164 = vshrl.u32 %v1163, 7
  %v1165 = vsub.s32 1, %v1164
  %v1166 = vrot.slane %v1107, %v1165
  %v1167 = vmul.f32 %v1146, %v1166
  %v1168 = vmul.f32 %v1151, %v1166
  %v1169 = vmul.f32 %v1156, %v1166
  %v1170 = vmul.f32 %v1161, %v1166
  %v1171 = vadd.f32 %v1139, %v1167
  %v1172 = vadd.f32 %v1140, %v1168
  %v1173 = vadd.f32 %v1141, %v1169
  %v1174 = vadd.f32 %v1142, %v1170
  %v1176 = vlaneseq
  %v1177 = vshrl.u32 %v1176, 7
  %v1178 = vsub.s32 0, %v1177
  %v1179 = vrot.slane %v1108, %v1178
  %v1181 = vadd.f32 %v1171, %v1179
  %v1182 = vadd.f32 %v1172, %v1179
  %v1183 = vadd.f32 %v1173, %v1179
  %v1184 = vadd.f32 %v1174, %v1179
  %1185 = vadd.xlane.f32.xlu0 %v1181
  %v1186 = vpop.xlane.xlu0 %1185
  %1187 = vadd.xlane.f32.xlu0 %v1182
  %v1188 = vpop.xlane.xlu0 %1187
  %1189 = vadd.xlane.f32.xlu0 %v1183
  %v1190 = vpop.xlane.xlu0 %1189
  %1191 = vadd.xlane.f32.xlu0 %v1184
  %v1192 = vpop.xlane.xlu0 %1191
  %v1193 = vmul.f32 %v1186, %v930
  %v1194 = vmul.f32 %v1188, %v930
  %v1195 = vmul.f32 %v1190, %v930
  %v1196 = vmul.f32 %v1192, %v930
  %v1197 = vsub.f32 %v1181, %v1193
  %v1198 = vsub.f32 %v1182, %v1194
  %v1199 = vsub.f32 %v1183, %v1195
  %v1200 = vsub.f32 %v1184, %v1196
  %v1201 = vmul.f32 %v1197, %v1197
  %v1202 = vmul.f32 %v1198, %v1198
  %v1203 = vmul.f32 %v1199, %v1199
  %v1204 = vmul.f32 %v1200, %v1200
  %1205 = vadd.xlane.f32.xlu0 %v1201
  %v1206 = vpop.xlane.xlu0 %1205
  %1207 = vadd.xlane.f32.xlu0 %v1202
  %v1208 = vpop.xlane.xlu0 %1207
  %1209 = vadd.xlane.f32.xlu0 %v1203
  %v1210 = vpop.xlane.xlu0 %1209
  %1211 = vadd.xlane.f32.xlu0 %v1204
  %v1212 = vpop.xlane.xlu0 %1211
  %v1213 = vmul.f32 %v1206, %v930
  %v1214 = vmul.f32 %v1208, %v930
  %v1215 = vmul.f32 %v1210, %v930
  %v1216 = vmul.f32 %v1212, %v930
  %v1217 = vadd.f32 %v1213, 1e-05
  %v1218 = vadd.f32 %v1214, 1e-05
  %v1219 = vadd.f32 %v1215, 1e-05
  %v1220 = vadd.f32 %v1216, 1e-05
  %v1221 = vrsqrt.pop %v1217
  %v1222 = vrsqrt.pop %v1218
  %v1223 = vrsqrt.pop %v1219
  %v1224 = vrsqrt.pop %v1220
  %v1225 = vmul.f32 %v1197, %v1221
  %v1226 = vmul.f32 %v1198, %v1222
  %v1227 = vmul.f32 %v1199, %v1223
  %v1228 = vmul.f32 %v1200, %v1224
  %v1230 = vlaneseq
  %v1231 = vshrl.u32 %v1230, 7
  %v1232 = vsub.s32 0, %v1231
  %v1233 = vrot.slane %v1109, %v1232
  %v1235 = vmul.f32 %v1225, %v1233
  %v1236 = vmul.f32 %v1226, %v1233
  %v1237 = vmul.f32 %v1227, %v1233
  %v1238 = vmul.f32 %v1228, %v1233
  %v1240 = vlaneseq
  %v1241 = vshrl.u32 %v1240, 7
  %v1242 = vsub.s32 0, %v1241
  %v1243 = vrot.slane %v1110, %v1242
  %v1245 = vadd.f32 %v1235, %v1243
  %v1246 = vadd.f32 %v1236, %v1243
  %v1247 = vadd.f32 %v1237, %v1243
  %v1248 = vadd.f32 %v1238, %v1243
  %vm1249 = vcmp.gt.f32.partialorder %v1245, 0.0
  %vm1250 = vcmp.gt.f32.partialorder %v1246, 0.0
  %vm1251 = vcmp.gt.f32.partialorder %v1247, 0.0
  %vm1252 = vcmp.gt.f32.partialorder %v1248, 0.0
  %v1253 = vmul.f32 %v1245, 0.01
  %v1254 = vmul.f32 %v1246, 0.01
  %v1255 = vmul.f32 %v1247, 0.01
  %v1256 = vmul.f32 %v1248, 0.01
  %v1257 = vsel %vm1249, %v1245, %v1253
  %v1258 = vsel %vm1250, %v1246, %v1254
  %v1259 = vsel %vm1251, %v1247, %v1255
  %v1260 = vsel %vm1252, %v1248, %v1256
  %v1261 = vld [vmem:[%s16] sm:$0xf]
  %v1262 = vld [vmem:[%s16 + $0x4] sm:$0xf]
  %v1263 = vld [vmem:[%s16 + $0x8] sm:$0xf]
  %v1264 = vld [vmem:[%s16 + $0xc] sm:$0xf]
  %v1265 = vld [vmem:[%s16 + $0x10] sm:$0xf]
  %v1266 = vld [vmem:[%s16 + $0x14] sm:$0xf]
  %v1267 = vld [vmem:[%s16 + $0x18] sm:$0xf]
  %v1268 = vld [vmem:[%s16 + $0x1c] sm:$0xf]
  %v1269 = vld [vmem:[%s16 + $0x20] sm:$0xf]
  %v1270 = vld [vmem:[%s16 + $0x24] sm:$0xf]
  %v1271 = vld [vmem:[%s16 + $0x28] sm:$0xf]
  %v1272 = vld [vmem:[%s16 + $0x2c] sm:$0xf]
  %v1273 = vld [vmem:[%s16 + $0x30] sm:$0xf]
  %v1274 = vld [vmem:[%s16 + $0x34] sm:$0xf]
  %v1275 = vld [vmem:[%s16 + $0x38] sm:$0xf]
  %v1276 = vld [vmem:[%s16 + $0x3c] sm:$0xf]
  %v1277 = vpack.c.bf16 %v1258, %v1257
  %v1278 = vpack.c.bf16 %v1260, %v1259
  %v1279 = vld [vmem:[%s17] sm:$0x1]
  %v1281 = vlaneseq
  %v1282 = vshrl.u32 %v1281, 7
  %v1283 = vsub.s32 0, %v1282
  %v1284 = vrot.slane %v1279, %v1283
  %v1302 = vunpack.c.l.b16 %v1261
  %v1303 = vunpack.c.l.b16 %v1262
  %v1304 = vunpack.c.l.b16 %v1263
  %v1305 = vunpack.c.l.b16 %v1264
  %v1306 = vunpack.c.l.b16 %v1265
  %v1307 = vunpack.c.l.b16 %v1266
  %v1308 = vunpack.c.l.b16 %v1267
  %v1309 = vunpack.c.l.b16 %v1268
  %v1310 = vunpack.c.l.b16 %v1269
  %v1311 = vunpack.c.l.b16 %v1270
  %v1312 = vunpack.c.l.b16 %v1271
  %v1313 = vunpack.c.l.b16 %v1272
  %v1314 = vunpack.c.l.b16 %v1273
  %v1315 = vunpack.c.l.b16 %v1274
  %v1316 = vunpack.c.l.b16 %v1275
  %v1317 = vunpack.c.l.b16 %v1276
  %v1318 = vpack.c.b16 %v1303, %v1302
  %v1319 = vpack.c.b16 %v1305, %v1304
  %v1320 = vpack.c.b16 %v1307, %v1306
  %v1321 = vpack.c.b16 %v1309, %v1308
  %v1322 = vpack.c.b16 %v1311, %v1310
  %v1323 = vpack.c.b16 %v1313, %v1312
  %v1324 = vpack.c.b16 %v1315, %v1314
  %v1325 = vpack.c.b16 %v1317, %v1316
  %1334 = vmatprep.subr.bf16.mxu0 0
  %1335 = vmatpush1.bf16.msra.mxu0 %v1325
  %1336 = vmatprep.subr.bf16.mxu0 0
  %1337 = vmatpush1.bf16.msra.mxu0 %v1324
  %1338 = vmatprep.subr.bf16.mxu0 0
  %1339 = vmatpush1.bf16.msra.mxu0 %v1323
  %1340 = vmatprep.subr.bf16.mxu0 0
  %1341 = vmatpush1.bf16.msra.mxu0 %v1322
  %1342 = vmatprep.subr.bf16.mxu0 0
  %1343 = vmatpush1.bf16.msra.mxu0 %v1321
  %1344 = vmatprep.subr.bf16.mxu0 0
  %1345 = vmatpush1.bf16.msra.mxu0 %v1320
  %1346 = vmatprep.subr.bf16.mxu0 0
  %1347 = vmatpush1.bf16.msra.mxu0 %v1319
  %1348 = vmatprep.subr.bf16.mxu0 0
  %1349 = vmatpush1.bf16.msra.mxu0 %v1318
  %1350 = vmatprep.subr.bf16.mxu0 0
  %1351 = vmatpush2.bf16.msra.mxu0 0
  %1352 = vmatprep.subr.bf16.mxu0 0
  %1353 = vmatpush2.bf16.msra.mxu0 0
  %1354 = vmatprep.subr.bf16.mxu0 0
  %1355 = vmatpush2.bf16.msra.mxu0 0
  %1356 = vmatprep.subr.bf16.mxu0 0
  %1357 = vmatpush2.bf16.msra.mxu0 0
  %1358 = vmatprep.subr.bf16.mxu0 0
  %1359 = vmatpush2.bf16.msra.mxu0 0
  %1360 = vmatprep.subr.bf16.mxu0 0
  %1361 = vmatpush2.bf16.msra.mxu0 0
  %1362 = vmatprep.subr.bf16.mxu0 0
  %1363 = vmatpush2.bf16.msra.mxu0 0
  %1364 = vmatprep.subr.bf16.mxu0 0
  %1365 = vmatpush2.bf16.msra.mxu0 0
  %1366 = vmatprep.mubr.bf16.mxu0 0
  %1367 = vmatmul.mubr.bf16.gmra.mxu0 %v1277
  %v1368 = vpop.f32.mrf.mxu0
  %v1369 = vadd.f32 %v1284, %v1368
  %v1370 = vpop.f32.mrf.mxu0
  %v1371 = vpop.f32.mrf.mxu0
  %v1372 = vadd.f32 %v1284, %v1371
  %v1373 = vpop.f32.mrf.mxu0
  %1374 = vmatprep.mubr.bf16.mxu0 0
  %1375 = vmatmul.mubr.bf16.gmra.mxu0 %v1278
  %v1376 = vpop.f32.mrf.mxu0
  %v1377 = vadd.f32 %v1284, %v1376
  %v1378 = vpop.f32.mrf.mxu0
  %v1379 = vpop.f32.mrf.mxu0
  %v1380 = vadd.f32 %v1284, %v1379
  %v1381 = vpop.f32.mrf.mxu0
  %1382 = vdwg.mxu0
  %v1383 = vld [vmem:[%s18] sm:$0x1]
  %v1384 = vld [vmem:[%s19] sm:$0x1]
  %v1385 = vsel %vm209, %v1369, 0.0
  %1386 = vadd.xlane.f32.xlu0 %v1385
  %v1387 = vpop.xlane.xlu0 %1386
  %v1388 = vsel %vm209, %v1372, 0.0
  %1389 = vadd.xlane.f32.xlu0 %v1388
  %v1390 = vpop.xlane.xlu0 %1389
  %v1391 = vsel %vm209, %v1377, 0.0
  %1392 = vadd.xlane.f32.xlu0 %v1391
  %v1393 = vpop.xlane.xlu0 %1392
  %v1394 = vsel %vm209, %v1380, 0.0
  %1395 = vadd.xlane.f32.xlu0 %v1394
  %v1396 = vpop.xlane.xlu0 %1395
  %v1397 = vrcp.pop 64.0
  %v1398 = vmul.f32 %v1387, %v1397
  %v1399 = vmul.f32 %v1390, %v1397
  %v1400 = vmul.f32 %v1393, %v1397
  %v1401 = vmul.f32 %v1396, %v1397
  %v1402 = vsub.f32 %v1369, %v1398
  %v1403 = vsub.f32 %v1372, %v1399
  %v1404 = vsub.f32 %v1377, %v1400
  %v1405 = vsub.f32 %v1380, %v1401
  %v1406 = vmul.f32 %v1402, %v1402
  %v1407 = vmul.f32 %v1403, %v1403
  %v1408 = vmul.f32 %v1404, %v1404
  %v1409 = vmul.f32 %v1405, %v1405
  %v1410 = vsel %vm209, %v1406, 0.0
  %1411 = vadd.xlane.f32.xlu0 %v1410
  %v1412 = vpop.xlane.xlu0 %1411
  %v1413 = vsel %vm209, %v1407, 0.0
  %1414 = vadd.xlane.f32.xlu0 %v1413
  %v1415 = vpop.xlane.xlu0 %1414
  %v1416 = vsel %vm209, %v1408, 0.0
  %1417 = vadd.xlane.f32.xlu0 %v1416
  %v1418 = vpop.xlane.xlu0 %1417
  %v1419 = vsel %vm209, %v1409, 0.0
  %1420 = vadd.xlane.f32.xlu0 %v1419
  %v1421 = vpop.xlane.xlu0 %1420
  %v1422 = vmul.f32 %v1412, %v1397
  %v1423 = vmul.f32 %v1415, %v1397
  %v1424 = vmul.f32 %v1418, %v1397
  %v1425 = vmul.f32 %v1421, %v1397
  %v1426 = vadd.f32 %v1422, 1e-05
  %v1427 = vadd.f32 %v1423, 1e-05
  %v1428 = vadd.f32 %v1424, 1e-05
  %v1429 = vadd.f32 %v1425, 1e-05
  %v1430 = vrsqrt.pop %v1426
  %v1431 = vrsqrt.pop %v1427
  %v1432 = vrsqrt.pop %v1428
  %v1433 = vrsqrt.pop %v1429
  %v1434 = vmul.f32 %v1402, %v1430
  %v1435 = vmul.f32 %v1403, %v1431
  %v1436 = vmul.f32 %v1404, %v1432
  %v1437 = vmul.f32 %v1405, %v1433
  %v1439 = vlaneseq
  %v1440 = vshrl.u32 %v1439, 7
  %v1441 = vsub.s32 0, %v1440
  %v1442 = vrot.slane %v1383, %v1441
  %v1444 = vmul.f32 %v1434, %v1442
  %v1445 = vmul.f32 %v1435, %v1442
  %v1446 = vmul.f32 %v1436, %v1442
  %v1447 = vmul.f32 %v1437, %v1442
  %v1449 = vlaneseq
  %v1450 = vshrl.u32 %v1449, 7
  %v1451 = vsub.s32 0, %v1450
  %v1452 = vrot.slane %v1384, %v1451
  %v1454 = vadd.f32 %v1444, %v1452
  %v1455 = vadd.f32 %v1445, %v1452
  %v1456 = vadd.f32 %v1446, %v1452
  %v1457 = vadd.f32 %v1447, %v1452
  %vm1458 = vcmp.gt.f32.partialorder %v1454, 0.0
  %vm1459 = vcmp.gt.f32.partialorder %v1455, 0.0
  %vm1460 = vcmp.gt.f32.partialorder %v1456, 0.0
  %vm1461 = vcmp.gt.f32.partialorder %v1457, 0.0
  %v1462 = vmul.f32 %v1454, 0.01
  %v1463 = vmul.f32 %v1455, 0.01
  %v1464 = vmul.f32 %v1456, 0.01
  %v1465 = vmul.f32 %v1457, 0.01
  %v1466 = vsel %vm1458, %v1454, %v1462
  %v1467 = vsel %vm1459, %v1455, %v1463
  %v1468 = vsel %vm1460, %v1456, %v1464
  %v1469 = vsel %vm1461, %v1457, %v1465
  %v1470 = vld [vmem:[%s20] sm:$0xff]
  %v1471 = vld [vmem:[%s20 + $0x8] sm:$0xff]
  %v1472 = vld [vmem:[%s20 + $0x10] sm:$0xff]
  %v1473 = vld [vmem:[%s20 + $0x18] sm:$0xff]
  %v1474 = vld [vmem:[%s20 + $0x20] sm:$0xff]
  %v1475 = vld [vmem:[%s20 + $0x28] sm:$0xff]
  %v1476 = vld [vmem:[%s20 + $0x30] sm:$0xff]
  %v1477 = vld [vmem:[%s20 + $0x38] sm:$0xff]
  %v1478 = vld [vmem:[%s21] sm:$0x1]
  %v1480 = vlaneseq
  %v1481 = vshrl.u32 %v1480, 7
  %v1482 = vsub.s32 0, %v1481
  %v1483 = vrot.slane %v1478, %v1482
  %v1486 = vsel %vm209, %v1466, 0
  %v1489 = vsel %vm209, %v1467, 0
  %v1492 = vsel %vm209, %v1468, 0
  %v1495 = vsel %vm209, %v1469, 0
  %1497 = vmatprep.subr.mxu0 0.0
  %1498 = vmatpush1.msra.mxu0 0.0
  %1499 = vmatprep.subr.mxu0 0.0
  %1500 = vmatpush1.msra.mxu0 0.0
  %1501 = vmatprep.subr.mxu0 0.0
  %1502 = vmatpush1.msra.mxu0 0.0
  %1503 = vmatprep.subr.mxu0 0.0
  %1504 = vmatpush1.msra.mxu0 0.0
  %1505 = vmatprep.subr.mxu0 0.0
  %1506 = vmatpush1.msra.mxu0 0.0
  %1507 = vmatprep.subr.mxu0 0.0
  %1508 = vmatpush1.msra.mxu0 0.0
  %1509 = vmatprep.subr.mxu0 0.0
  %1510 = vmatpush1.msra.mxu0 0.0
  %1511 = vmatprep.subr.mxu0 0.0
  %1512 = vmatpush1.msra.mxu0 0.0
  %1513 = vmatprep.subr.mxu0 0.0
  %1514 = vmatpush1.msra.mxu0 %v1477
  %1515 = vmatprep.subr.mxu0 0.0
  %1516 = vmatpush1.msra.mxu0 %v1476
  %1517 = vmatprep.subr.mxu0 0.0
  %1518 = vmatpush1.msra.mxu0 %v1475
  %1519 = vmatprep.subr.mxu0 0.0
  %1520 = vmatpush1.msra.mxu0 %v1474
  %1521 = vmatprep.subr.mxu0 0.0
  %1522 = vmatpush1.msra.mxu0 %v1473
  %1523 = vmatprep.subr.mxu0 0.0
  %1524 = vmatpush1.msra.mxu0 %v1472
  %1525 = vmatprep.subr.mxu0 0.0
  %1526 = vmatpush1.msra.mxu0 %v1471
  %1527 = vmatprep.subr.mxu0 0.0
  %1528 = vmatpush1.msra.mxu0 %v1470
  %1529 = vmatprep.subr.mxu0 0.0
  %1530 = vmatpush2.msra.mxu0 0.0
  %1531 = vmatprep.subr.mxu0 0.0
  %1532 = vmatpush2.msra.mxu0 0.0
  %1533 = vmatprep.subr.mxu0 0.0
  %1534 = vmatpush2.msra.mxu0 0.0
  %1535 = vmatprep.subr.mxu0 0.0
  %1536 = vmatpush2.msra.mxu0 0.0
  %1537 = vmatprep.subr.mxu0 0.0
  %1538 = vmatpush2.msra.mxu0 0.0
  %1539 = vmatprep.subr.mxu0 0.0
  %1540 = vmatpush2.msra.mxu0 0.0
  %1541 = vmatprep.subr.mxu0 0.0
  %1542 = vmatpush2.msra.mxu0 0.0
  %1543 = vmatprep.subr.mxu0 0.0
  %1544 = vmatpush2.msra.mxu0 0.0
  %1545 = vmatprep.subr.mxu0 0.0
  %1546 = vmatpush2.msra.mxu0 0.0
  %1547 = vmatprep.subr.mxu0 0.0
  %1548 = vmatpush2.msra.mxu0 0.0
  %1549 = vmatprep.subr.mxu0 0.0
  %1550 = vmatpush2.msra.mxu0 0.0
  %1551 = vmatprep.subr.mxu0 0.0
  %1552 = vmatpush2.msra.mxu0 0.0
  %1553 = vmatprep.subr.mxu0 0.0
  %1554 = vmatpush2.msra.mxu0 0.0
  %1555 = vmatprep.subr.mxu0 0.0
  %1556 = vmatpush2.msra.mxu0 0.0
  %1557 = vmatprep.subr.mxu0 0.0
  %1558 = vmatpush2.msra.mxu0 0.0
  %1559 = vmatprep.subr.mxu0 0.0
  %1560 = vmatpush2.msra.mxu0 0.0
  %1561 = vmatprep.mubr.f32.mxu0 0.0
  %1562 = vmatmul.mubr.f32.gmra.mxu0 %v1486
  %v1563 = vpop.f32.mrf.mxu0
  %v1564 = vadd.f32 %v1483, %v1563
  %v1565 = vpop.f32.mrf.mxu0
  %1566 = vmatprep.mubr.f32.mxu0 0.0
  %1567 = vmatmul.mubr.f32.gmra.mxu0 %v1489
  %v1568 = vpop.f32.mrf.mxu0
  %v1569 = vadd.f32 %v1483, %v1568
  %v1570 = vpop.f32.mrf.mxu0
  %1571 = vmatprep.mubr.f32.mxu0 0.0
  %1572 = vmatmul.mubr.f32.gmra.mxu0 %v1492
  %v1573 = vpop.f32.mrf.mxu0
  %v1574 = vadd.f32 %v1483, %v1573
  %v1575 = vpop.f32.mrf.mxu0
  %1576 = vmatprep.mubr.f32.mxu0 0.0
  %1577 = vmatmul.mubr.f32.gmra.mxu0 %v1495
  %v1578 = vpop.f32.mrf.mxu0
  %v1579 = vadd.f32 %v1483, %v1578
  %v1580 = vpop.f32.mrf.mxu0
  %1581 = vdwg.mxu0
  %v1582 = vld [vmem:[%s22] sm:$0xff]
  %v1583 = vld [vmem:[%s22 + $0x8] sm:$0xff]
  %v1584 = vld [vmem:[%s22 + $0x10] sm:$0xff]
  %vm1585 = vcmask 64512
  %v1587 = vsel %vm1585, %v1564, 0
  %v1590 = vsel %vm1585, %v1569, 0
  %v1593 = vsel %vm1585, %v1574, 0
  %v1596 = vsel %vm1585, %v1579, 0
  %1598 = vmatprep.subr.mxu0 0.0
  %1599 = vmatpush1.msra.mxu0 0.0
  %1600 = vmatprep.subr.mxu0 0.0
  %1601 = vmatpush1.msra.mxu0 0.0
  %1602 = vmatprep.subr.mxu0 0.0
  %1603 = vmatpush1.msra.mxu0 0.0
  %1604 = vmatprep.subr.mxu0 0.0
  %1605 = vmatpush1.msra.mxu0 0.0
  %1606 = vmatprep.subr.mxu0 0.0
  %1607 = vmatpush1.msra.mxu0 0.0
  %1608 = vmatprep.subr.mxu0 0.0
  %1609 = vmatpush1.msra.mxu0 0.0
  %1610 = vmatprep.subr.mxu0 0.0
  %1611 = vmatpush1.msra.mxu0 0.0
  %1612 = vmatprep.subr.mxu0 0.0
  %1613 = vmatpush1.msra.mxu0 0.0
  %1614 = vmatprep.subr.mxu0 0.0
  %1615 = vmatpush1.msra.mxu0 0.0
  %1616 = vmatprep.subr.mxu0 0.0
  %1617 = vmatpush1.msra.mxu0 0.0
  %1618 = vmatprep.subr.mxu0 0.0
  %1619 = vmatpush1.msra.mxu0 0.0
  %1620 = vmatprep.subr.mxu0 0.0
  %1621 = vmatpush1.msra.mxu0 0.0
  %1622 = vmatprep.subr.mxu0 0.0
  %1623 = vmatpush1.msra.mxu0 0.0
  %1624 = vmatprep.subr.mxu0 0.0
  %1625 = vmatpush1.msra.mxu0 0.0
  %1626 = vmatprep.subr.mxu0 0.0
  %1627 = vmatpush1.msra.mxu0 0.0
  %1628 = vmatprep.subr.mxu0 %v1583
  %1629 = vmatpush1.msra.mxu0 %v1582
  %1630 = vmatprep.subr.mxu0 0.0
  %1631 = vmatpush2.msra.mxu0 0.0
  %1632 = vmatprep.subr.mxu0 0.0
  %1633 = vmatpush2.msra.mxu0 0.0
  %1634 = vmatprep.subr.mxu0 0.0
  %1635 = vmatpush2.msra.mxu0 0.0
  %1636 = vmatprep.subr.mxu0 0.0
  %1637 = vmatpush2.msra.mxu0 0.0
  %1638 = vmatprep.subr.mxu0 0.0
  %1639 = vmatpush2.msra.mxu0 0.0
  %1640 = vmatprep.subr.mxu0 0.0
  %1641 = vmatpush2.msra.mxu0 0.0
  %1642 = vmatprep.subr.mxu0 0.0
  %1643 = vmatpush2.msra.mxu0 0.0
  %1644 = vmatprep.subr.mxu0 0.0
  %1645 = vmatpush2.msra.mxu0 0.0
  %1646 = vmatprep.subr.mxu0 0.0
  %1647 = vmatpush2.msra.mxu0 0.0
  %1648 = vmatprep.subr.mxu0 0.0
  %1649 = vmatpush2.msra.mxu0 0.0
  %1650 = vmatprep.subr.mxu0 0.0
  %1651 = vmatpush2.msra.mxu0 0.0
  %1652 = vmatprep.subr.mxu0 0.0
  %1653 = vmatpush2.msra.mxu0 0.0
  %1654 = vmatprep.subr.mxu0 0.0
  %1655 = vmatpush2.msra.mxu0 0.0
  %1656 = vmatprep.subr.mxu0 0.0
  %1657 = vmatpush2.msra.mxu0 0.0
  %1658 = vmatprep.subr.mxu0 0.0
  %1659 = vmatpush2.msra.mxu0 0.0
  %1660 = vmatprep.subr.mxu0 0.0
  %1661 = vmatpush2.msra.mxu0 0.0
  %1662 = vmatprep.mubr.f32.mxu0 0.0
  %1663 = vmatmul.mubr.f32.gmra.mxu0 %v1587
  %v1664 = vpop.f32.mrf.mxu0
  %v1665 = vadd.f32 0.0, %v1664
  %v1666 = vpop.f32.mrf.mxu0
  %v1667 = vadd.f32 0.0, %v1666
  %1668 = vmatprep.mubr.f32.mxu0 0.0
  %1669 = vmatmul.mubr.f32.gmra.mxu0 %v1590
  %v1670 = vpop.f32.mrf.mxu0
  %v1671 = vadd.f32 0.0, %v1670
  %v1672 = vpop.f32.mrf.mxu0
  %v1673 = vadd.f32 0.0, %v1672
  %1674 = vmatprep.mubr.f32.mxu0 0.0
  %1675 = vmatmul.mubr.f32.gmra.mxu0 %v1593
  %v1676 = vpop.f32.mrf.mxu0
  %v1677 = vadd.f32 0.0, %v1676
  %v1678 = vpop.f32.mrf.mxu0
  %v1679 = vadd.f32 0.0, %v1678
  %1680 = vmatprep.mubr.f32.mxu0 0.0
  %1681 = vmatmul.mubr.f32.gmra.mxu0 %v1596
  %v1682 = vpop.f32.mrf.mxu0
  %v1683 = vadd.f32 0.0, %v1682
  %v1684 = vpop.f32.mrf.mxu0
  %v1685 = vadd.f32 0.0, %v1684
  %1686 = vdwg.mxu0
  %1687 = vmatprep.subr.mxu0 0.0
  %1688 = vmatpush1.msra.mxu0 0.0
  %1689 = vmatprep.subr.mxu0 0.0
  %1690 = vmatpush1.msra.mxu0 0.0
  %1691 = vmatprep.subr.mxu0 0.0
  %1692 = vmatpush1.msra.mxu0 0.0
  %1693 = vmatprep.subr.mxu0 0.0
  %1694 = vmatpush1.msra.mxu0 0.0
  %1695 = vmatprep.subr.mxu0 0.0
  %1696 = vmatpush1.msra.mxu0 0.0
  %1697 = vmatprep.subr.mxu0 0.0
  %1698 = vmatpush1.msra.mxu0 0.0
  %1699 = vmatprep.subr.mxu0 0.0
  %1700 = vmatpush1.msra.mxu0 0.0
  %1701 = vmatprep.subr.mxu0 0.0
  %1702 = vmatpush1.msra.mxu0 0.0
  %1703 = vmatprep.subr.mxu0 0.0
  %1704 = vmatpush1.msra.mxu0 0.0
  %1705 = vmatprep.subr.mxu0 0.0
  %1706 = vmatpush1.msra.mxu0 0.0
  %1707 = vmatprep.subr.mxu0 0.0
  %1708 = vmatpush1.msra.mxu0 0.0
  %1709 = vmatprep.subr.mxu0 0.0
  %1710 = vmatpush1.msra.mxu0 0.0
  %1711 = vmatprep.subr.mxu0 0.0
  %1712 = vmatpush1.msra.mxu0 0.0
  %1713 = vmatprep.subr.mxu0 0.0
  %1714 = vmatpush1.msra.mxu0 0.0
  %1715 = vmatprep.subr.mxu0 0.0
  %1716 = vmatpush1.msra.mxu0 0.0
  %1717 = vmatprep.subr.mxu0 0.0
  %1718 = vmatpush1.msra.mxu0 %v1584
  %1719 = vmatprep.subr.mxu0 0.0
  %1720 = vmatpush2.msra.mxu0 0.0
  %1721 = vmatprep.subr.mxu0 0.0
  %1722 = vmatpush2.msra.mxu0 0.0
  %1723 = vmatprep.subr.mxu0 0.0
  %1724 = vmatpush2.msra.mxu0 0.0
  %1725 = vmatprep.subr.mxu0 0.0
  %1726 = vmatpush2.msra.mxu0 0.0
  %1727 = vmatprep.subr.mxu0 0.0
  %1728 = vmatpush2.msra.mxu0 0.0
  %1729 = vmatprep.subr.mxu0 0.0
  %1730 = vmatpush2.msra.mxu0 0.0
  %1731 = vmatprep.subr.mxu0 0.0
  %1732 = vmatpush2.msra.mxu0 0.0
  %1733 = vmatprep.subr.mxu0 0.0
  %1734 = vmatpush2.msra.mxu0 0.0
  %1735 = vmatprep.subr.mxu0 0.0
  %1736 = vmatpush2.msra.mxu0 0.0
  %1737 = vmatprep.subr.mxu0 0.0
  %1738 = vmatpush2.msra.mxu0 0.0
  %1739 = vmatprep.subr.mxu0 0.0
  %1740 = vmatpush2.msra.mxu0 0.0
  %1741 = vmatprep.subr.mxu0 0.0
  %1742 = vmatpush2.msra.mxu0 0.0
  %1743 = vmatprep.subr.mxu0 0.0
  %1744 = vmatpush2.msra.mxu0 0.0
  %1745 = vmatprep.subr.mxu0 0.0
  %1746 = vmatpush2.msra.mxu0 0.0
  %1747 = vmatprep.subr.mxu0 0.0
  %1748 = vmatpush2.msra.mxu0 0.0
  %1749 = vmatprep.subr.mxu0 0.0
  %1750 = vmatpush2.msra.mxu0 0.0
  %1751 = vmatprep.mubr.f32.mxu0 0.0
  %1752 = vmatmul.mubr.f32.gmra.mxu0 %v1587
  %v1753 = vpop.f32.mrf.mxu0
  %v1754 = vadd.f32 0.0, %v1753
  %v1755 = vpop.f32.mrf.mxu0
  %1756 = vmatprep.mubr.f32.mxu0 0.0
  %1757 = vmatmul.mubr.f32.gmra.mxu0 %v1590
  %v1758 = vpop.f32.mrf.mxu0
  %v1759 = vadd.f32 0.0, %v1758
  %v1760 = vpop.f32.mrf.mxu0
  %1761 = vmatprep.mubr.f32.mxu0 0.0
  %1762 = vmatmul.mubr.f32.gmra.mxu0 %v1593
  %v1763 = vpop.f32.mrf.mxu0
  %v1764 = vadd.f32 0.0, %v1763
  %v1765 = vpop.f32.mrf.mxu0
  %1766 = vmatprep.mubr.f32.mxu0 0.0
  %1767 = vmatmul.mubr.f32.gmra.mxu0 %v1596
  %v1768 = vpop.f32.mrf.mxu0
  %v1769 = vadd.f32 0.0, %v1768
  %v1770 = vpop.f32.mrf.mxu0
  %1771 = vdwg.mxu0
  %1772 = vst [vmem:[%s23] sm:$0xff] %v1665
  %1773 = vst [vmem:[%s23 + $0x8] sm:$0xff] %v1667
  %1774 = vst [vmem:[%s23 + $0x10] sm:$0xff] %v1754
  %1775 = vst [vmem:[%s23 + $0x18] sm:$0xff] %v1671
  %1776 = vst [vmem:[%s23 + $0x20] sm:$0xff] %v1673
  %1777 = vst [vmem:[%s23 + $0x28] sm:$0xff] %v1759
  %1778 = vst [vmem:[%s23 + $0x30] sm:$0xff] %v1677
  %1779 = vst [vmem:[%s23 + $0x38] sm:$0xff] %v1679
  %1780 = vst [vmem:[%s23 + $0x40] sm:$0xff] %v1764
  %1781 = vst [vmem:[%s23 + $0x48] sm:$0xff] %v1683
  %1782 = vst [vmem:[%s23 + $0x50] sm:$0xff] %v1685
  %1783 = vst [vmem:[%s23 + $0x58] sm:$0xff] %v1769
  // Predicated region
  $region94: #{scregat_forward.6} parent=0 // pred_check
    _
  $region95: #{scregat_forward.6} parent=0 // pred_check_branch
    %1785 = sbr.rel (0) target = $region97
  $region96: #{scregat_forward.6} parent=0 // pred_region
    _
  $region97: #{scregat_forward.6} parent=0 // pred_fallthru
    _
  // Predicated region
  $region98: #{scregat_forward.6} parent=0 // pred_check
    _
  $region99: #{scregat_forward.6} parent=0 // pred_check_branch
    %1787 = sbr.rel (0) target = $region101
  $region100: #{scregat_forward.6} parent=0 // pred_region
    _
  $region101: #{scregat_forward.6} parent=0 // pred_fallthru
    _

// kernel: scregat_forward.8
$region0: #{scregat_forward.8}
  #allocation0 [shape = 'u32[]', space=smem, size = 0x4, offset = 0x4, fixed_abs, tag = 'smem constant byte address 0x4 - core index']
  #allocation1 [shape = 'u32[144,128]{1,0:T(1,128)}', space=vmem, size = 0x12000, scoped, tag = 'internal scratch']
  #allocation2 [shape = 's32[1]{0}', space=sflag, size = 0x4, scoped, tag = 'scoped memory for scregat_forward.8']
  #allocation3 [shape = 'u8[512]{0}', space=smem, size = 0x200, scoped, tag = 'prefetched SMEM operand 0']
  %s0 = inlined_call_operand.vmem [shape: s32[2], index: 0, kind: input, shape index: {}]
  %s1 = inlined_call_operand.vmem [shape: s32[1,256], index: 1, kind: input, shape index: {}]
  %s2 = inlined_call_operand.vmem [shape: f32[256,16], index: 2, kind: input, shape index: {}]
  %s3 = inlined_call_operand.vmem [shape: bf16[256,256], index: 3, kind: input, shape index: {}]
  %s4 = inlined_call_operand.vmem [shape: bf16[16,256], index: 4, kind: input, shape index: {}]
  %s5 = inlined_call_operand.vmem [shape: f32[16,256], index: 5, kind: input, shape index: {}]
  %s6 = inlined_call_operand.vmem [shape: f32[1,256], index: 6, kind: input, shape index: {}]
  %s7 = inlined_call_operand.vmem [shape: f32[32,256], index: 7, kind: output, shape index: {0}]
  %s8 = inlined_call_operand.vmem [shape: f32[32,16], index: 8, kind: output, shape index: {1}]
  %s9 = inlined_call_operand.vmem [shape: f32[256,16], index: 9, kind: output, shape index: {2}]
  %10 = xla_tuple %s7, %s8, %s9
  %s11 = sld [smem:[#allocation0]]
  $region81: #{scregat_forward.8} parent=0
    _
  %s13 = ssub.s32 1, %s11
  %s14 = scalar_select 0, %s13, %s11
  %s15 = sshll.u32 %s0, 4
  %s16 = int_to_ptr.vmem [resolvable:$true] %s15
  %18 = dma.vmem_to_smem %s16, 16, [#allocation3], [#allocation2]
  %19 = dma.done [#allocation2], 16
  %20 = sfence
  loop: start=0, step=1, limit=4
  $region2: #{scregat_forward.8} parent=0 // loop_pre_header
    _
  $region3: #{scregat_forward.8} parent=0 // loop_header
    %s22 = sphi 0, %s26
    %p23 = scmp.ge.s32.totalorder %s22, 4
    %s32 = sphi 0, %s34
    %s35 = sphi 0, %s32
    %s36 = sphi 0, %s35
    %s52 = sphi 0, %s36
    %s58 = sphi 0, %s60
    %s61 = sphi 0, %s58
    %s62 = sphi 0, %s61
    %s78 = sphi 0, %s62
    %s84 = sphi 0, %s86
    %s87 = sphi 0, %s84
    %s88 = sphi 0, %s87
    %s104 = sphi 0, %s88
    %s108 = sphi 0, %s108
    %s110 = sphi 0, %s108
    %s111 = sphi 0, %s110
    %s125 = sphi 0, %s111
    %s129 = sphi 0, %s129
    %s131 = sphi 0, %s129
    %s132 = sphi 0, %s131
    %s146 = sphi 0, %s132
    %s150 = sphi 0, %s150
    %s152 = sphi 0, %s150
    %s153 = sphi 0, %s152
    %s167 = sphi 0, %s153
    %s171 = sphi 0, %s171
    %s173 = sphi 0, %s171
    %s174 = sphi 0, %s173
    %s188 = sphi 0, %s174
    %s192 = sphi 0, %s192
    %s194 = sphi 0, %s192
    %s195 = sphi 0, %s194
    %s209 = sphi 0, %s195
    %s215 = sphi 0, %s217
    %s218 = sphi 0, %s215
    %s219 = sphi 0, %s218
    %s235 = sphi 0, %s219
  $region4: #{scregat_forward.8} parent=0 // loop_header_branch
    %25 = sbr.rel (%p23) target = $region8
  $region5: #{scregat_forward.8} parent=0 // loop_body
    %s27 = ssub.s32 %s22, 1
    %s28 = ssub.s32 %s22, 2
    %s29 = sadd.s32 %s22, 1
    %s30 = ssub.s32 %s22, %s29
    %p31 = scmp.eq.s32.totalorder %s30, 0
    %s33 = sadd.s32 %s32, 1
    %s34 = scalar_select %p31, %s32, %s33
    %p37 = pneg %p31
    %p38 = scmp.eq.s32.totalorder %s22, 1
    %p39 = por %p37, %p38
    %p40 = scmp.ne.s32.totalorder %s32, %s35
    %p41 = scmp.eq.s32.totalorder %s22, 0
    %p42 = por %p40, %p41
    %p43 = scmp.ne.s32.totalorder %s32, %s35
    %p44 = scmp.eq.s32.totalorder %s27, 1
    %p45 = por %p43, %p44
    %p46 = scmp.ne.s32.totalorder %s35, %s36
    %p47 = scmp.eq.s32.totalorder %s27, 0
    %p48 = por %p46, %p47
    %p49 = scmp.ne.s32.totalorder %s35, %s36
    %p50 = scmp.eq.s32.totalorder %s28, 1
    %p51 = por %p49, %p50
    %p53 = scmp.ne.s32.totalorder %s36, %s52
    %p54 = scmp.eq.s32.totalorder %s28, 0
    %p55 = por %p53, %p54
    %s56 = ssub.s32 %s22, %s29
    %p57 = scmp.eq.s32.totalorder %s56, 0
    %s59 = sadd.s32 %s58, 1
    %s60 = scalar_select %p57, %s58, %s59
    %p63 = pneg %p57
    %p64 = scmp.eq.s32.totalorder %s22, 1
    %p65 = por %p63, %p64
    %p66 = scmp.ne.s32.totalorder %s58, %s61
    %p67 = scmp.eq.s32.totalorder %s22, 0
    %p68 = por %p66, %p67
    %p69 = scmp.ne.s32.totalorder %s58, %s61
    %p70 = scmp.eq.s32.totalorder %s27, 1
    %p71 = por %p69, %p70
    %p72 = scmp.ne.s32.totalorder %s61, %s62
    %p73 = scmp.eq.s32.totalorder %s27, 0
    %p74 = por %p72, %p73
    %p75 = scmp.ne.s32.totalorder %s61, %s62
    %p76 = scmp.eq.s32.totalorder %s28, 1
    %p77 = por %p75, %p76
    %p79 = scmp.ne.s32.totalorder %s62, %s78
    %p80 = scmp.eq.s32.totalorder %s28, 0
    %p81 = por %p79, %p80
    %s82 = ssub.s32 %s22, %s29
    %p83 = scmp.eq.s32.totalorder %s82, 0
    %s85 = sadd.s32 %s84, 1
    %s86 = scalar_select %p83, %s84, %s85
    %p89 = pneg %p83
    %p90 = scmp.eq.s32.totalorder %s22, 1
    %p91 = por %p89, %p90
    %p92 = scmp.ne.s32.totalorder %s84, %s87
    %p93 = scmp.eq.s32.totalorder %s22, 0
    %p94 = por %p92, %p93
    %p95 = scmp.ne.s32.totalorder %s84, %s87
    %p96 = scmp.eq.s32.totalorder %s27, 1
    %p97 = por %p95, %p96
    %p98 = scmp.ne.s32.totalorder %s87, %s88
    %p99 = scmp.eq.s32.totalorder %s27, 0
    %p100 = por %p98, %p99
    %p101 = scmp.ne.s32.totalorder %s87, %s88
    %p102 = scmp.eq.s32.totalorder %s28, 1
    %p103 = por %p101, %p102
    %p105 = scmp.ne.s32.totalorder %s88, %s104
    %p106 = scmp.eq.s32.totalorder %s28, 0
    %p107 = por %p105, %p106
    %s109 = sadd.s32 %s108, 1
    %p112 = scmp.eq.s32.totalorder %s22, 1
    %p113 = scmp.ne.s32.totalorder %s108, %s110
    %p114 = scmp.eq.s32.totalorder %s22, 0
    %p115 = por %p113, %p114
    %p116 = scmp.ne.s32.totalorder %s108, %s110
    %p117 = scmp.eq.s32.totalorder %s27, 1
    %p118 = por %p116, %p117
    %p119 = scmp.ne.s32.totalorder %s110, %s111
    %p120 = scmp.eq.s32.totalorder %s27, 0
    %p121 = por %p119, %p120
    %p122 = scmp.ne.s32.totalorder %s110, %s111
    %p123 = scmp.eq.s32.totalorder %s28, 1
    %p124 = por %p122, %p123
    %p126 = scmp.ne.s32.totalorder %s111, %s125
    %p127 = scmp.eq.s32.totalorder %s28, 0
    %p128 = por %p126, %p127
    %s130 = sadd.s32 %s129, 1
    %p133 = scmp.eq.s32.totalorder %s22, 1
    %p134 = scmp.ne.s32.totalorder %s129, %s131
    %p135 = scmp.eq.s32.totalorder %s22, 0
    %p136 = por %p134, %p135
    %p137 = scmp.ne.s32.totalorder %s129, %s131
    %p138 = scmp.eq.s32.totalorder %s27, 1
    %p139 = por %p137, %p138
    %p140 = scmp.ne.s32.totalorder %s131, %s132
    %p141 = scmp.eq.s32.totalorder %s27, 0
    %p142 = por %p140, %p141
    %p143 = scmp.ne.s32.totalorder %s131, %s132
    %p144 = scmp.eq.s32.totalorder %s28, 1
    %p145 = por %p143, %p144
    %p147 = scmp.ne.s32.totalorder %s132, %s146
    %p148 = scmp.eq.s32.totalorder %s28, 0
    %p149 = por %p147, %p148
    %s151 = sadd.s32 %s150, 1
    %p154 = scmp.eq.s32.totalorder %s22, 1
    %p155 = scmp.ne.s32.totalorder %s150, %s152
    %p156 = scmp.eq.s32.totalorder %s22, 0
    %p157 = por %p155, %p156
    %p158 = scmp.ne.s32.totalorder %s150, %s152
    %p159 = scmp.eq.s32.totalorder %s27, 1
    %p160 = por %p158, %p159
    %p161 = scmp.ne.s32.totalorder %s152, %s153
    %p162 = scmp.eq.s32.totalorder %s27, 0
    %p163 = por %p161, %p162
    %p164 = scmp.ne.s32.totalorder %s152, %s153
    %p165 = scmp.eq.s32.totalorder %s28, 1
    %p166 = por %p164, %p165
    %p168 = scmp.ne.s32.totalorder %s153, %s167
    %p169 = scmp.eq.s32.totalorder %s28, 0
    %p170 = por %p168, %p169
    %s172 = sadd.s32 %s171, 1
    %p175 = scmp.eq.s32.totalorder %s22, 1
    %p176 = scmp.ne.s32.totalorder %s171, %s173
    %p177 = scmp.eq.s32.totalorder %s22, 0
    %p178 = por %p176, %p177
    %p179 = scmp.ne.s32.totalorder %s171, %s173
    %p180 = scmp.eq.s32.totalorder %s27, 1
    %p181 = por %p179, %p180
    %p182 = scmp.ne.s32.totalorder %s173, %s174
    %p183 = scmp.eq.s32.totalorder %s27, 0
    %p184 = por %p182, %p183
    %p185 = scmp.ne.s32.totalorder %s173, %s174
    %p186 = scmp.eq.s32.totalorder %s28, 1
    %p187 = por %p185, %p186
    %p189 = scmp.ne.s32.totalorder %s174, %s188
    %p190 = scmp.eq.s32.totalorder %s28, 0
    %p191 = por %p189, %p190
    %s193 = sadd.s32 %s192, 1
    %p196 = scmp.eq.s32.totalorder %s22, 1
    %p197 = scmp.ne.s32.totalorder %s192, %s194
    %p198 = scmp.eq.s32.totalorder %s22, 0
    %p199 = por %p197, %p198
    %p200 = scmp.ne.s32.totalorder %s192, %s194
    %p201 = scmp.eq.s32.totalorder %s27, 1
    %p202 = por %p200, %p201
    %p203 = scmp.ne.s32.totalorder %s194, %s195
    %p204 = scmp.eq.s32.totalorder %s27, 0
    %p205 = por %p203, %p204
    %p206 = scmp.ne.s32.totalorder %s194, %s195
    %p207 = scmp.eq.s32.totalorder %s28, 1
    %p208 = por %p206, %p207
    %p210 = scmp.ne.s32.totalorder %s195, %s209
    %p211 = scmp.eq.s32.totalorder %s28, 0
    %p212 = por %p210, %p211
    %s213 = ssub.s32 %s22, %s29
    %p214 = scmp.eq.s32.totalorder %s213, 0
    %s216 = sadd.s32 %s215, 1
    %s217 = scalar_select %p214, %s215, %s216
    %p220 = pneg %p214
    %p221 = scmp.eq.s32.totalorder %s22, 1
    %p222 = por %p220, %p221
    %p223 = scmp.ne.s32.totalorder %s215, %s218
    %p224 = scmp.eq.s32.totalorder %s22, 0
    %p225 = por %p223, %p224
    %p226 = scmp.ne.s32.totalorder %s215, %s218
    %p227 = scmp.eq.s32.totalorder %s27, 1
    %p228 = por %p226, %p227
    %p229 = scmp.ne.s32.totalorder %s218, %s219
    %p230 = scmp.eq.s32.totalorder %s27, 0
    %p231 = por %p229, %p230
    %p232 = scmp.ne.s32.totalorder %s218, %s219
    %p233 = scmp.eq.s32.totalorder %s28, 1
    %p234 = por %p232, %p233
    %p236 = scmp.ne.s32.totalorder %s219, %s235
    %p237 = scmp.eq.s32.totalorder %s28, 0
    %p238 = por %p236, %p237
    %p239 = scmp.le.s32.totalorder 1, %s22
    %p240 = scmp.lt.s32.totalorder %s22, 3
    %p241 = pnand %p239, %p240
    %p242 = pneg %p241
    // Predicated region
    $region9: #{scregat_forward.8} parent=5 // pred_check
      _
    $region10: #{scregat_forward.8} parent=5 // pred_check_branch
      %244 = sbr.rel (%p241) target = $region12
    $region11: #{scregat_forward.8} parent=5 // pred_region
      %s245 = ssub.s32 %s22, 1
      // Predicated region
      $region13: #{scregat_forward.8} parent=11 // pred_check
        %p246 = pneg %p121
      $region14: #{scregat_forward.8} parent=11 // pred_check_branch
        %248 = sbr.rel (%p246) target = $region16
      $region15: #{scregat_forward.8} parent=11 // pred_region
        _
      $region16: #{scregat_forward.8} parent=11 // pred_fallthru
        _
      // Predicated region
      $region17: #{scregat_forward.8} parent=11 // pred_check
        %p249 = pneg %p142
      $region18: #{scregat_forward.8} parent=11 // pred_check_branch
        %251 = sbr.rel (%p249) target = $region20
      $region19: #{scregat_forward.8} parent=11 // pred_region
        _
      $region20: #{scregat_forward.8} parent=11 // pred_fallthru
        _
      // Predicated region
      $region21: #{scregat_forward.8} parent=11 // pred_check
        %p252 = pneg %p163
      $region22: #{scregat_forward.8} parent=11 // pred_check_branch
        %254 = sbr.rel (%p252) target = $region24
      $region23: #{scregat_forward.8} parent=11 // pred_region
        _
      $region24: #{scregat_forward.8} parent=11 // pred_fallthru
        _
    $region12: #{scregat_forward.8} parent=5 // pred_fallthru
      _
    %p255 = scmp.lt.s32.totalorder %s22, 2
    // Predicated region
    $region25: #{scregat_forward.8} parent=5 // pred_check
      %p256 = pneg %p255
    $region26: #{scregat_forward.8} parent=5 // pred_check_branch
      %258 = sbr.rel (%p256) target = $region28
    $region27: #{scregat_forward.8} parent=5 // pred_region
      // Predicated region
      $region29: #{scregat_forward.8} parent=27 // pred_check
        %p259 = pneg %p42
      $region30: #{scregat_forward.8} parent=27 // pred_check_branch
        %261 = sbr.rel (%p259) target = $region32
      $region31: #{scregat_forward.8} parent=27 // pred_region
        %p262 = scmp.lt.s32.totalorder %s22, 1
        %s263 = scalar_select %p262, %s22, 1
        %s264 = scalar_lea.vmem %s1, %s263
      $region32: #{scregat_forward.8} parent=27 // pred_fallthru
        _
      // Predicated region
      $region33: #{scregat_forward.8} parent=27 // pred_check
        %p265 = pneg %p68
      $region34: #{scregat_forward.8} parent=27 // pred_check_branch
        %267 = sbr.rel (%p265) target = $region36
      $region35: #{scregat_forward.8} parent=27 // pred_region
        %s268 = smul.u32 16, %s22
        %p269 = scmp.lt.s32.totalorder %s268, 31
        %s270 = scalar_select %p269, %s268, 31
        %s271 = smul.addr %s270, 8
        %s272 = scalar_lea.vmem %s2, %s271
        %s273 = smul.u32 16, %s22
      $region36: #{scregat_forward.8} parent=27 // pred_fallthru
        _
      // Predicated region
      $region37: #{scregat_forward.8} parent=27 // pred_check
        %p274 = pneg %p94
      $region38: #{scregat_forward.8} parent=27 // pred_check_branch
        %276 = sbr.rel (%p274) target = $region40
      $region39: #{scregat_forward.8} parent=27 // pred_region
        %s277 = smul.u32 16, %s22
        %p278 = scmp.lt.s32.totalorder %s277, 31
        %s279 = scalar_select %p278, %s277, 31
        %s280 = smul.addr %s279, 2
        %s281 = smul.addr %s280, 4
        %s282 = scalar_lea.vmem %s3, %s281
        %s283 = smul.u32 16, %s22
      $region40: #{scregat_forward.8} parent=27 // pred_fallthru
        _
    $region28: #{scregat_forward.8} parent=5 // pred_fallthru
      _
    %p284 = scmp.le.s32.totalorder 1, %s22
    %p285 = scmp.lt.s32.totalorder %s22, 3
    %p286 = pnand %p284, %p285
    %p287 = pneg %p286
    // Predicated region
    $region41: #{scregat_forward.8} parent=5 // pred_check
      _
    $region42: #{scregat_forward.8} parent=5 // pred_check_branch
      %289 = sbr.rel (%p286) target = $region44
    $region43: #{scregat_forward.8} parent=5 // pred_region
      %s290 = ssub.s32 %s22, 1
      %p291 = scmp.lt.s32.totalorder %s27, 1
      %s292 = scalar_select %p291, %s27, 1
      %s293 = scalar_lea.vmem %s1, %s292
      %p294 = pneg %p48
      %p295 = pneg %p45
      %s296 = smul.u32 16, %s27
      %p297 = scmp.lt.s32.totalorder %s296, 31
      %s298 = scalar_select %p297, %s296, 31
      %s299 = smul.addr %s298, 8
      %s300 = scalar_lea.vmem %s2, %s299
      %p301 = pneg %p74
      %p302 = pneg %p71
      %s303 = smul.u32 16, %s27
      %p304 = scmp.lt.s32.totalorder %s303, 31
      %s305 = scalar_select %p304, %s303, 31
      %s306 = smul.addr %s305, 2
      %s307 = smul.addr %s306, 4
      %s308 = scalar_lea.vmem %s3, %s307
      %p309 = pneg %p100
      %p310 = pneg %p97
      %p311 = pneg %p121
      %p312 = pneg %p118
      %p313 = pneg %p142
      %p314 = pneg %p139
      %p315 = pneg %p163
      %p316 = pneg %p160
      %p317 = pneg %p184
      %p318 = pneg %p181
      %p319 = pneg %p205
      %p320 = pneg %p202
      %p321 = pneg %p231
      %p322 = pneg %p228
      %s323 = smul.u32 16, %s27
      %p324 = scmp.lt.s32.totalorder %s323, 31
      %s325 = scalar_select %p324, %s323, 31
      %s326 = smul.addr %s325, 8
      %s327 = scalar_lea.vmem %s9, %s326
      %p328 = scmp.lt.s32.totalorder %s27, 1
      %s329 = scalar_select %p328, %s27, 1
      %s330 = scalar_lea.vmem %s1, %s329
      %s331 = smul.u32 16, %s27
      %p332 = scmp.lt.s32.totalorder %s331, 31
      %s333 = scalar_select %p332, %s331, 31
      %s334 = smul.addr %s333, 8
      %s335 = scalar_lea.vmem %s2, %s334
      %s336 = smul.u32 16, %s27
      %s337 = smul.u32 16, %s27
      %p338 = scmp.lt.s32.totalorder %s337, 31
      %s339 = scalar_select %p338, %s337, 31
      %s340 = smul.addr %s339, 2
      %s341 = smul.addr %s340, 4
      %s342 = scalar_lea.vmem %s3, %s341
      %s343 = smul.u32 16, %s27
      %s344 = smul.u32 16, %s27
      %p345 = scmp.lt.s32.totalorder %s344, 31
      %s346 = scalar_select %p345, %s344, 31
      %s347 = smul.addr %s346, 8
      %s348 = scalar_lea.vmem %s9, %s347
      %s349 = smul.u32 16, %s27
      %p351 = scmp.eq.s32.totalorder %s27, 0
      // Predicated region
      $region45: #{scregat_forward.8} parent=43 // pred_check
        %p352 = pneg %p351
      $region46: #{scregat_forward.8} parent=43 // pred_check_branch
        %354 = sbr.rel (%p352) target = $region48
      $region47: #{scregat_forward.8} parent=43 // pred_region
        %355 = vst [vmem:[%s7] sm:$0xff] 0.0
        %356 = vst [vmem:[%s7 + $0x8] sm:$0xff] 0.0
        %357 = vst [vmem:[%s7 + $0x10] sm:$0xff] 0.0
        %358 = vst [vmem:[%s7 + $0x18] sm:$0xff] 0.0
        %359 = vst [vmem:[%s7 + $0x20] sm:$0xff] 0.0
        %360 = vst [vmem:[%s7 + $0x28] sm:$0xff] 0.0
        %361 = vst [vmem:[%s7 + $0x30] sm:$0xff] 0.0
        %362 = vst [vmem:[%s7 + $0x38] sm:$0xff] 0.0
        %vm363 = vcmask 130048
        %364 = vst.msk [vmem:[%s8] sm:$0xff] %vm363, 0.0
        %365 = vst.msk [vmem:[%s8 + $0x8] sm:$0xff] %vm363, 0.0
        %366 = vst.msk [vmem:[%s8 + $0x10] sm:$0xff] %vm363, 0.0
        %367 = vst.msk [vmem:[%s8 + $0x18] sm:$0xff] %vm363, 0.0
      $region48: #{scregat_forward.8} parent=43 // pred_fallthru
        _
      %s368 = sld [smem:[#allocation3 + %s27]]
      %v369 = vld [vmem:[%s335] sm:$0xff]
      %v370 = vld [vmem:[%s335 + $0x8] sm:$0xff]
      %v371 = vld [vmem:[%s335 + $0x10] sm:$0xff]
      %v372 = vld [vmem:[%s335 + $0x18] sm:$0xff]
      %v373 = vld [vmem:[%s335 + $0x20] sm:$0xff]
      %v374 = vld [vmem:[%s335 + $0x28] sm:$0xff]
      %v375 = vld [vmem:[%s335 + $0x30] sm:$0xff]
      %v376 = vld [vmem:[%s335 + $0x38] sm:$0xff]
      %v377 = vld [vmem:[%s335 + $0x40] sm:$0xff]
      %v378 = vld [vmem:[%s335 + $0x48] sm:$0xff]
      %v379 = vld [vmem:[%s335 + $0x50] sm:$0xff]
      %v380 = vld [vmem:[%s335 + $0x58] sm:$0xff]
      %v381 = vld [vmem:[%s335 + $0x60] sm:$0xff]
      %v382 = vld [vmem:[%s335 + $0x68] sm:$0xff]
      %v383 = vld [vmem:[%s335 + $0x70] sm:$0xff]
      %v384 = vld [vmem:[%s335 + $0x78] sm:$0xff]
      %v385 = vmul.f32 %v369, 1.442695
      %v386 = vpow.pop %v385
      %v387 = vmul.f32 %v370, 1.442695
      %v388 = vpow.pop %v387
      %v389 = vmul.f32 %v371, 1.442695
      %v390 = vpow.pop %v389
      %v391 = vmul.f32 %v372, 1.442695
      %v392 = vpow.pop %v391
      %v393 = vmul.f32 %v373, 1.442695
      %v394 = vpow.pop %v393
      %v395 = vmul.f32 %v374, 1.442695
      %v396 = vpow.pop %v395
      %v397 = vmul.f32 %v375, 1.442695
      %v398 = vpow.pop %v397
      %v399 = vmul.f32 %v376, 1.442695
      %v400 = vpow.pop %v399
      %v401 = vmul.f32 %v377, 1.442695
      %v402 = vpow.pop %v401
      %v403 = vmul.f32 %v378, 1.442695
      %v404 = vpow.pop %v403
      %v405 = vmul.f32 %v379, 1.442695
      %v406 = vpow.pop %v405
      %v407 = vmul.f32 %v380, 1.442695
      %v408 = vpow.pop %v407
      %v409 = vmul.f32 %v381, 1.442695
      %v410 = vpow.pop %v409
      %v411 = vmul.f32 %v382, 1.442695
      %v412 = vpow.pop %v411
      %v413 = vmul.f32 %v383, 1.442695
      %v414 = vpow.pop %v413
      %v415 = vmul.f32 %v384, 1.442695
      %v416 = vpow.pop %v415
      %vm417 = vcmask 130048
      %418 = vst.msk [vmem:[%s348] sm:$0xff] %vm417, %v386
      %419 = vst.msk [vmem:[%s348 + $0x8] sm:$0xff] %vm417, %v388
      %420 = vst.msk [vmem:[%s348 + $0x10] sm:$0xff] %vm417, %v390
      %421 = vst.msk [vmem:[%s348 + $0x18] sm:$0xff] %vm417, %v392
      %422 = vst.msk [vmem:[%s348 + $0x20] sm:$0xff] %vm417, %v394
      %423 = vst.msk [vmem:[%s348 + $0x28] sm:$0xff] %vm417, %v396
      %424 = vst.msk [vmem:[%s348 + $0x30] sm:$0xff] %vm417, %v398
      %425 = vst.msk [vmem:[%s348 + $0x38] sm:$0xff] %vm417, %v400
      %426 = vst.msk [vmem:[%s348 + $0x40] sm:$0xff] %vm417, %v402
      %427 = vst.msk [vmem:[%s348 + $0x48] sm:$0xff] %vm417, %v404
      %428 = vst.msk [vmem:[%s348 + $0x50] sm:$0xff] %vm417, %v406
      %429 = vst.msk [vmem:[%s348 + $0x58] sm:$0xff] %vm417, %v408
      %430 = vst.msk [vmem:[%s348 + $0x60] sm:$0xff] %vm417, %v410
      %431 = vst.msk [vmem:[%s348 + $0x68] sm:$0xff] %vm417, %v412
      %432 = vst.msk [vmem:[%s348 + $0x70] sm:$0xff] %vm417, %v414
      %433 = vst.msk [vmem:[%s348 + $0x78] sm:$0xff] %vm417, %v416
      %v434 = vpack.c.bf16 %v388, %v386
      %v435 = vpack.c.bf16 %v392, %v390
      %v436 = vpack.c.bf16 %v396, %v394
      %v437 = vpack.c.bf16 %v400, %v398
      %v438 = vpack.c.bf16 %v404, %v402
      %v439 = vpack.c.bf16 %v408, %v406
      %v440 = vpack.c.bf16 %v412, %v410
      %v441 = vpack.c.bf16 %v416, %v414
      %v442 = vld [vmem:[%s330] sm:$0x1]
      %v443 = vstv %s368
      %v444 = vsub.s32 %v442, %v443
      %v445 = vlaneseq
      %v446 = vshrl.u32 %v445, 7
      %v447 = vadd.s32 %v446, 8
      %v448 = vadd.s32 %v446, 16
      %v449 = vadd.s32 %v446, 24
      %v450 = vlaneseq
      %v451 = vshrl.u32 %v450, 7
      %v452 = vsub.s32 0, %v451
      %v453 = vrot.slane %v444, %v452
      %vm454 = vcmp.eq.s32.totalorder %v446, %v453
      %vm455 = vcmp.eq.s32.totalorder %v447, %v453
      %vm456 = vcmp.eq.s32.totalorder %v448, %v453
      %vm457 = vcmp.eq.s32.totalorder %v449, %v453
      %v458 = vsel %vm454, 1.0, 0.0
      %v459 = vsel %vm455, 1.0, 0.0
      %v460 = vsel %vm456, 1.0, 0.0
      %v461 = vsel %vm457, 1.0, 0.0
      %v462 = vpack.c.bf16 %v459, %v458
      %v463 = vpack.c.bf16 %v461, %v460
      %s464 = scalar_lea.vmem %s8, %s368
      %v465 = vld [vmem:[%s464] sm:$0xff]
      %v466 = vld [vmem:[%s464 + $0x8] sm:$0xff]
      %v467 = vld [vmem:[%s464 + $0x10] sm:$0xff]
      %v468 = vld [vmem:[%s464 + $0x18] sm:$0xff]
      %469 = vmatprep.subr.bf16.mxu0 0
      %470 = vmatpush1.bf16.msra.mxu0 %v441
      %471 = vmatprep.subr.bf16.mxu0 0
      %472 = vmatpush1.bf16.msra.mxu0 %v440
      %473 = vmatprep.subr.bf16.mxu0 0
      %474 = vmatpush1.bf16.msra.mxu0 %v439
      %475 = vmatprep.subr.bf16.mxu0 0
      %476 = vmatpush1.bf16.msra.mxu0 %v438
      %477 = vmatprep.subr.bf16.mxu0 0
      %478 = vmatpush1.bf16.msra.mxu0 %v437
      %479 = vmatprep.subr.bf16.mxu0 0
      %480 = vmatpush1.bf16.msra.mxu0 %v436
      %481 = vmatprep.subr.bf16.mxu0 0
      %482 = vmatpush1.bf16.msra.mxu0 %v435
      %483 = vmatprep.subr.bf16.mxu0 0
      %484 = vmatpush1.bf16.msra.mxu0 %v434
      %485 = vmatprep.subr.bf16.mxu0 0
      %486 = vmatpush2.bf16.msra.mxu0 0
      %487 = vmatprep.subr.bf16.mxu0 0
      %488 = vmatpush2.bf16.msra.mxu0 0
      %489 = vmatprep.subr.bf16.mxu0 0
      %490 = vmatpush2.bf16.msra.mxu0 0
      %491 = vmatprep.subr.bf16.mxu0 0
      %492 = vmatpush2.bf16.msra.mxu0 0
      %493 = vmatprep.subr.bf16.mxu0 0
      %494 = vmatpush2.bf16.msra.mxu0 0
      %495 = vmatprep.subr.bf16.mxu0 0
      %496 = vmatpush2.bf16.msra.mxu0 0
      %497 = vmatprep.subr.bf16.mxu0 0
      %498 = vmatpush2.bf16.msra.mxu0 0
      %499 = vmatprep.subr.bf16.mxu0 0
      %500 = vmatpush2.bf16.msra.mxu0 0
      %501 = vmatprep.mubr.bf16.mxu0 0
      %502 = vmatmul.mubr.bf16.gmra.mxu0 %v462
      %v503 = vpop.f32.mrf.mxu0
      %v504 = vadd.f32 0.0, %v503
      %v505 = vpop.f32.mrf.mxu0
      %v506 = vpop.f32.mrf.mxu0
      %v507 = vadd.f32 0.0, %v506
      %v508 = vpop.f32.mrf.mxu0
      %509 = vmatprep.mubr.bf16.mxu0 0
      %510 = vmatmul.mubr.bf16.gmra.mxu0 %v463
      %v511 = vpop.f32.mrf.mxu0
      %v512 = vadd.f32 0.0, %v511
      %v513 = vpop.f32.mrf.mxu0
      %v514 = vpop.f32.mrf.mxu0
      %v515 = vadd.f32 0.0, %v514
      %v516 = vpop.f32.mrf.mxu0
      %517 = vdwg.mxu0
      %v518 = vadd.f32 %v465, %v504
      %v519 = vadd.f32 %v466, %v507
      %v520 = vadd.f32 %v467, %v512
      %v521 = vadd.f32 %v468, %v515
      %522 = vst.msk [vmem:[%s464] sm:$0xff] %vm417, %v518
      %523 = vst.msk [vmem:[%s464 + $0x8] sm:$0xff] %vm417, %v519
      %524 = vst.msk [vmem:[%s464 + $0x10] sm:$0xff] %vm417, %v520
      %525 = vst.msk [vmem:[%s464 + $0x18] sm:$0xff] %vm417, %v521
      %v526 = vld [vmem:[%s4] sm:$0xff]
      %v527 = vld [vmem:[%s4 + $0x8] sm:$0xff]
      %v530 = vunpack.c.l.b16 %v526
      %v531 = vunpack.c.h.b16 %v526
      %v532 = vunpack.c.l.b16 %v527
      %v533 = vunpack.c.h.b16 %v527
      %v534 = vpack.c.b16 %v532, %v530
      %v535 = vpack.c.b16 %v533, %v531
      %v539 = vsel %vm417, %v434, 0
      %v542 = vsel %vm417, %v435, 0
      %v545 = vsel %vm417, %v436, 0
      %v548 = vsel %vm417, %v437, 0
      %v551 = vsel %vm417, %v438, 0
      %v554 = vsel %vm417, %v439, 0
      %v557 = vsel %vm417, %v440, 0
      %v560 = vsel %vm417, %v441, 0
      %562 = vmatprep.subr.bf16.mxu0 0
      %563 = vmatpush1.bf16.msra.mxu0 0
      %564 = vmatprep.subr.bf16.mxu0 0
      %565 = vmatpush1.bf16.msra.mxu0 0
      %566 = vmatprep.subr.bf16.mxu0 0
      %567 = vmatpush1.bf16.msra.mxu0 0
      %568 = vmatprep.subr.bf16.mxu0 0
      %569 = vmatpush1.bf16.msra.mxu0 0
      %570 = vmatprep.subr.bf16.mxu0 0
      %571 = vmatpush1.bf16.msra.mxu0 0
      %572 = vmatprep.subr.bf16.mxu0 0
      %573 = vmatpush1.bf16.msra.mxu0 0
      %574 = vmatprep.subr.bf16.mxu0 0
      %575 = vmatpush1.bf16.msra.mxu0 0
      %576 = vmatprep.subr.bf16.mxu0 %v535
      %577 = vmatpush1.bf16.msra.mxu0 %v534
      %578 = vmatprep.subr.bf16.mxu0 0
      %579 = vmatpush2.bf16.msra.mxu0 0
      %580 = vmatprep.subr.bf16.mxu0 0
      %581 = vmatpush2.bf16.msra.mxu0 0
      %582 = vmatprep.subr.bf16.mxu0 0
      %583 = vmatpush2.bf16.msra.mxu0 0
      %584 = vmatprep.subr.bf16.mxu0 0
      %585 = vmatpush2.bf16.msra.mxu0 0
      %586 = vmatprep.subr.bf16.mxu0 0
      %587 = vmatpush2.bf16.msra.mxu0 0
      %588 = vmatprep.subr.bf16.mxu0 0
      %589 = vmatpush2.bf16.msra.mxu0 0
      %590 = vmatprep.subr.bf16.mxu0 0
      %591 = vmatpush2.bf16.msra.mxu0 0
      %592 = vmatprep.subr.bf16.mxu0 0
      %593 = vmatpush2.bf16.msra.mxu0 0
      %594 = vmatprep.mubr.bf16.mxu0 0
      %595 = vmatmul.mubr.bf16.gmra.mxu0 %v539
      %v596 = vpop.f32.mrf.mxu0
      %v597 = vadd.f32 0.0, %v596
      %v598 = vpop.f32.mrf.mxu0
      %v599 = vadd.f32 0.0, %v598
      %v600 = vpop.f32.mrf.mxu0
      %v601 = vadd.f32 0.0, %v600
      %v602 = vpop.f32.mrf.mxu0
      %v603 = vadd.f32 0.0, %v602
      %604 = vmatprep.mubr.bf16.mxu0 0
      %605 = vmatmul.mubr.bf16.gmra.mxu0 %v542
      %v606 = vpop.f32.mrf.mxu0
      %v607 = vadd.f32 0.0, %v606
      %v608 = vpop.f32.mrf.mxu0
      %v609 = vadd.f32 0.0, %v608
      %v610 = vpop.f32.mrf.mxu0
      %v611 = vadd.f32 0.0, %v610
      %v612 = vpop.f32.mrf.mxu0
      %v613 = vadd.f32 0.0, %v612
      %614 = vmatprep.mubr.bf16.mxu0 0
      %615 = vmatmul.mubr.bf16.gmra.mxu0 %v545
      %v616 = vpop.f32.mrf.mxu0
      %v617 = vadd.f32 0.0, %v616
      %v618 = vpop.f32.mrf.mxu0
      %v619 = vadd.f32 0.0, %v618
      %v620 = vpop.f32.mrf.mxu0
      %v621 = vadd.f32 0.0, %v620
      %v622 = vpop.f32.mrf.mxu0
      %v623 = vadd.f32 0.0, %v622
      %624 = vmatprep.mubr.bf16.mxu0 0
      %625 = vmatmul.mubr.bf16.gmra.mxu0 %v548
      %v626 = vpop.f32.mrf.mxu0
      %v627 = vadd.f32 0.0, %v626
      %v628 = vpop.f32.mrf.mxu0
      %v629 = vadd.f32 0.0, %v628
      %v630 = vpop.f32.mrf.mxu0
      %v631 = vadd.f32 0.0, %v630
      %v632 = vpop.f32.mrf.mxu0
      %v633 = vadd.f32 0.0, %v632
      %634 = vmatprep.mubr.bf16.mxu0 0
      %635 = vmatmul.mubr.bf16.gmra.mxu0 %v551
      %v636 = vpop.f32.mrf.mxu0
      %v637 = vadd.f32 0.0, %v636
      %v638 = vpop.f32.mrf.mxu0
      %v639 = vadd.f32 0.0, %v638
      %v640 = vpop.f32.mrf.mxu0
      %v641 = vadd.f32 0.0, %v640
      %v642 = vpop.f32.mrf.mxu0
      %v643 = vadd.f32 0.0, %v642
      %644 = vmatprep.mubr.bf16.mxu0 0
      %645 = vmatmul.mubr.bf16.gmra.mxu0 %v554
      %v646 = vpop.f32.mrf.mxu0
      %v647 = vadd.f32 0.0, %v646
      %v648 = vpop.f32.mrf.mxu0
      %v649 = vadd.f32 0.0, %v648
      %v650 = vpop.f32.mrf.mxu0
      %v651 = vadd.f32 0.0, %v650
      %v652 = vpop.f32.mrf.mxu0
      %v653 = vadd.f32 0.0, %v652
      %654 = vmatprep.mubr.bf16.mxu0 0
      %655 = vmatmul.mubr.bf16.gmra.mxu0 %v557
      %v656 = vpop.f32.mrf.mxu0
      %v657 = vadd.f32 0.0, %v656
      %v658 = vpop.f32.mrf.mxu0
      %v659 = vadd.f32 0.0, %v658
      %v660 = vpop.f32.mrf.mxu0
      %v661 = vadd.f32 0.0, %v660
      %v662 = vpop.f32.mrf.mxu0
      %v663 = vadd.f32 0.0, %v662
      %664 = vmatprep.mubr.bf16.mxu0 0
      %665 = vmatmul.mubr.bf16.gmra.mxu0 %v560
      %v666 = vpop.f32.mrf.mxu0
      %v667 = vadd.f32 0.0, %v666
      %v668 = vpop.f32.mrf.mxu0
      %v669 = vadd.f32 0.0, %v668
      %v670 = vpop.f32.mrf.mxu0
      %v671 = vadd.f32 0.0, %v670
      %v672 = vpop.f32.mrf.mxu0
      %v673 = vadd.f32 0.0, %v672
      %674 = vdwg.mxu0
      %v675 = vld [vmem:[%s342] sm:$0xff]
      %v676 = vld [vmem:[%s342 + $0x8] sm:$0xff]
      %v677 = vld [vmem:[%s342 + $0x10] sm:$0xff]
      %v678 = vld [vmem:[%s342 + $0x18] sm:$0xff]
      %v679 = vld [vmem:[%s342 + $0x20] sm:$0xff]
      %v680 = vld [vmem:[%s342 + $0x28] sm:$0xff]
      %v681 = vld [vmem:[%s342 + $0x30] sm:$0xff]
      %v682 = vld [vmem:[%s342 + $0x38] sm:$0xff]
      %v683 = vld [vmem:[%s342 + $0x40] sm:$0xff]
      %v684 = vld [vmem:[%s342 + $0x48] sm:$0xff]
      %v685 = vld [vmem:[%s342 + $0x50] sm:$0xff]
      %v686 = vld [vmem:[%s342 + $0x58] sm:$0xff]
      %v687 = vld [vmem:[%s342 + $0x60] sm:$0xff]
      %v688 = vld [vmem:[%s342 + $0x68] sm:$0xff]
      %v689 = vld [vmem:[%s342 + $0x70] sm:$0xff]
      %v690 = vld [vmem:[%s342 + $0x78] sm:$0xff]
      %v691 = vunpack.c.l.bf16 %v675
      %v692 = vunpack.c.h.bf16 %v675
      %v693 = vunpack.c.l.bf16 %v676
      %v694 = vunpack.c.h.bf16 %v676
      %v695 = vunpack.c.l.bf16 %v677
      %v696 = vunpack.c.h.bf16 %v677
      %v697 = vunpack.c.l.bf16 %v678
      %v698 = vunpack.c.h.bf16 %v678
      %v699 = vunpack.c.l.bf16 %v679
      %v700 = vunpack.c.h.bf16 %v679
      %v701 = vunpack.c.l.bf16 %v680
      %v702 = vunpack.c.h.bf16 %v680
      %v703 = vunpack.c.l.bf16 %v681
      %v704 = vunpack.c.h.bf16 %v681
      %v705 = vunpack.c.l.bf16 %v682
      %v706 = vunpack.c.h.bf16 %v682
      %v707 = vunpack.c.l.bf16 %v683
      %v708 = vunpack.c.h.bf16 %v683
      %v709 = vunpack.c.l.bf16 %v684
      %v710 = vunpack.c.h.bf16 %v684
      %v711 = vunpack.c.l.bf16 %v685
      %v712 = vunpack.c.h.bf16 %v685
      %v713 = vunpack.c.l.bf16 %v686
      %v714 = vunpack.c.h.bf16 %v686
      %v715 = vunpack.c.l.bf16 %v687
      %v716 = vunpack.c.h.bf16 %v687
      %v717 = vunpack.c.l.bf16 %v688
      %v718 = vunpack.c.h.bf16 %v688
      %v719 = vunpack.c.l.bf16 %v689
      %v720 = vunpack.c.h.bf16 %v689
      %v721 = vunpack.c.l.bf16 %v690
      %v722 = vunpack.c.h.bf16 %v690
      %v723 = vmul.f32 %v691, %v597
      %v724 = vmul.f32 %v692, %v599
      %v725 = vmul.f32 %v693, %v601
      %v726 = vmul.f32 %v694, %v603
      %v727 = vmul.f32 %v695, %v607
      %v728 = vmul.f32 %v696, %v609
      %v729 = vmul.f32 %v697, %v611
      %v730 = vmul.f32 %v698, %v613
      %v731 = vmul.f32 %v699, %v617
      %v732 = vmul.f32 %v700, %v619
      %v733 = vmul.f32 %v701, %v621
      %v734 = vmul.f32 %v702, %v623
      %v735 = vmul.f32 %v703, %v627
      %v736 = vmul.f32 %v704, %v629
      %v737 = vmul.f32 %v705, %v631
      %v738 = vmul.f32 %v706, %v633
      %v739 = vmul.f32 %v707, %v637
      %v740 = vmul.f32 %v708, %v639
      %v741 = vmul.f32 %v709, %v641
      %v742 = vmul.f32 %v710, %v643
      %v743 = vmul.f32 %v711, %v647
      %v744 = vmul.f32 %v712, %v649
      %v745 = vmul.f32 %v713, %v651
      %v746 = vmul.f32 %v714, %v653
      %v747 = vmul.f32 %v715, %v657
      %v748 = vmul.f32 %v716, %v659
      %v749 = vmul.f32 %v717, %v661
      %v750 = vmul.f32 %v718, %v663
      %v751 = vmul.f32 %v719, %v667
      %v752 = vmul.f32 %v720, %v669
      %v753 = vmul.f32 %v721, %v671
      %v754 = vmul.f32 %v722, %v673
      %v755 = vpack.c.bf16 %v725, %v723
      %v756 = vpack.c.bf16 %v726, %v724
      %v757 = vpack.c.bf16 %v729, %v727
      %v758 = vpack.c.bf16 %v730, %v728
      %v759 = vpack.c.bf16 %v733, %v731
      %v760 = vpack.c.bf16 %v734, %v732
      %v761 = vpack.c.bf16 %v737, %v735
      %v762 = vpack.c.bf16 %v738, %v736
      %v763 = vpack.c.bf16 %v741, %v739
      %v764 = vpack.c.bf16 %v742, %v740
      %v765 = vpack.c.bf16 %v745, %v743
      %v766 = vpack.c.bf16 %v746, %v744
      %v767 = vpack.c.bf16 %v749, %v747
      %v768 = vpack.c.bf16 %v750, %v748
      %v769 = vpack.c.bf16 %v753, %v751
      %v770 = vpack.c.bf16 %v754, %v752
      %s771 = sshra.s32 %s368, 3
      %s772 = sand.u32 %s368, 7
      %s773 = smul.u32 %s771, 2
      %s774 = smul.addr %s773, 8
      %s775 = scalar_lea.vmem %s7, %s774
      %v776 = vld [vmem:[%s775] sm:$0xff]
      %v777 = vld [vmem:[%s775 + $0x8] sm:$0xff]
      %v778 = vld [vmem:[%s775 + $0x10] sm:$0xff]
      %v779 = vld [vmem:[%s775 + $0x18] sm:$0xff]
      %v780 = vld [vmem:[%s775 + $0x20] sm:$0xff]
      %v781 = vld [vmem:[%s775 + $0x28] sm:$0xff]
      %v782 = vld [vmem:[%s775 + $0x30] sm:$0xff]
      %v783 = vld [vmem:[%s775 + $0x38] sm:$0xff]
      %784 = vmatprep.subr.bf16.mxu0 %v770
      %785 = vmatpush1.bf16.msra.mxu0 %v769
      %786 = vmatprep.subr.bf16.mxu0 %v768
      %787 = vmatpush1.bf16.msra.mxu0 %v767
      %788 = vmatprep.subr.bf16.mxu0 %v766
      %789 = vmatpush1.bf16.msra.mxu0 %v765
      %790 = vmatprep.subr.bf16.mxu0 %v764
      %791 = vmatpush1.bf16.msra.mxu0 %v763
      %792 = vmatprep.subr.bf16.mxu0 %v762
      %793 = vmatpush1.bf16.msra.mxu0 %v761
      %794 = vmatprep.subr.bf16.mxu0 %v760
      %795 = vmatpush1.bf16.msra.mxu0 %v759
      %796 = vmatprep.subr.bf16.mxu0 %v758
      %797 = vmatpush1.bf16.msra.mxu0 %v757
      %798 = vmatprep.subr.bf16.mxu0 %v756
      %799 = vmatpush1.bf16.msra.mxu0 %v755
      %800 = vmatprep.subr.bf16.mxu0 0
      %801 = vmatpush2.bf16.msra.mxu0 0
      %802 = vmatprep.subr.bf16.mxu0 0
      %803 = vmatpush2.bf16.msra.mxu0 0
      %804 = vmatprep.subr.bf16.mxu0 0
      %805 = vmatpush2.bf16.msra.mxu0 0
      %806 = vmatprep.subr.bf16.mxu0 0
      %807 = vmatpush2.bf16.msra.mxu0 0
      %808 = vmatprep.subr.bf16.mxu0 0
      %809 = vmatpush2.bf16.msra.mxu0 0
      %810 = vmatprep.subr.bf16.mxu0 0
      %811 = vmatpush2.bf16.msra.mxu0 0
      %812 = vmatprep.subr.bf16.mxu0 0
      %813 = vmatpush2.bf16.msra.mxu0 0
      %814 = vmatprep.subr.bf16.mxu0 0
      %815 = vmatpush2.bf16.msra.mxu0 0
      %816 = vmatprep.mubr.bf16.mxu0 0
      %817 = vmatmul.mubr.bf16.gmra.mxu0 %v462
      %v818 = vpop.f32.mrf.mxu0
      %v819 = vadd.f32 0.0, %v818
      %v820 = vpop.f32.mrf.mxu0
      %v821 = vadd.f32 0.0, %v820
      %v822 = vpop.f32.mrf.mxu0
      %v823 = vadd.f32 0.0, %v822
      %v824 = vpop.f32.mrf.mxu0
      %v825 = vadd.f32 0.0, %v824
      %826 = vmatprep.mubr.bf16.mxu0 0
      %827 = vmatmul.mubr.bf16.gmra.mxu0 %v463
      %v828 = vpop.f32.mrf.mxu0
      %v829 = vadd.f32 0.0, %v828
      %v830 = vpop.f32.mrf.mxu0
      %v831 = vadd.f32 0.0, %v830
      %v832 = vpop.f32.mrf.mxu0
      %v833 = vadd.f32 0.0, %v832
      %v834 = vpop.f32.mrf.mxu0
      %v835 = vadd.f32 0.0, %v834
      %836 = vdwg.mxu0
      %v837 = vadd.f32 %v776, %v819
      %v838 = vadd.f32 %v777, %v821
      %v839 = vadd.f32 %v778, %v823
      %v840 = vadd.f32 %v779, %v825
      %v841 = vadd.f32 %v780, %v829
      %v842 = vadd.f32 %v781, %v831
      %v843 = vadd.f32 %v782, %v833
      %v844 = vadd.f32 %v783, %v835
      %845 = vst [vmem:[%s775] sm:$0xff] %v837
      %846 = vst [vmem:[%s775 + $0x8] sm:$0xff] %v838
      %847 = vst [vmem:[%s775 + $0x10] sm:$0xff] %v839
      %848 = vst [vmem:[%s775 + $0x18] sm:$0xff] %v840
      %849 = vst [vmem:[%s775 + $0x20] sm:$0xff] %v841
      %850 = vst [vmem:[%s775 + $0x28] sm:$0xff] %v842
      %851 = vst [vmem:[%s775 + $0x30] sm:$0xff] %v843
      %852 = vst [vmem:[%s775 + $0x38] sm:$0xff] %v844
      %p853 = scmp.eq.s32.totalorder %s27, 1
      // Predicated region
      $region49: #{scregat_forward.8} parent=43 // pred_check
        %p854 = pneg %p853
      $region50: #{scregat_forward.8} parent=43 // pred_check_branch
        %856 = sbr.rel (%p854) target = $region52
      $region51: #{scregat_forward.8} parent=43 // pred_region
        %v857 = vld [vmem:[%s8] sm:$0xff]
        %v858 = vld [vmem:[%s8 + $0x8] sm:$0xff]
        %v859 = vld [vmem:[%s8 + $0x10] sm:$0xff]
        %v860 = vld [vmem:[%s8 + $0x18] sm:$0xff]
        %v861 = vmax.f32 %v857, 1e-30
        %v862 = vmax.f32 %v858, 1e-30
        %v863 = vmax.f32 %v859, 1e-30
        %v864 = vmax.f32 %v860, 1e-30
        %v865 = vrcp.pop %v861
        %v866 = vmul.f32 1.0, %v865
        %v867 = vrcp.pop %v862
        %v868 = vmul.f32 1.0, %v867
        %v869 = vrcp.pop %v863
        %v870 = vmul.f32 1.0, %v869
        %v871 = vrcp.pop %v864
        %v872 = vmul.f32 1.0, %v871
        %v873 = vld [vmem:[%s5] sm:$0xff]
        %v874 = vld [vmem:[%s5 + $0x8] sm:$0xff]
        %v875 = vld [vmem:[%s5 + $0x10] sm:$0xff]
        %v876 = vld [vmem:[%s5 + $0x18] sm:$0xff]
        %v878 = vsel %vm417, %v866, 0
        %v881 = vsel %vm417, %v868, 0
        %v884 = vsel %vm417, %v870, 0
        %v887 = vsel %vm417, %v872, 0
        %889 = vmatprep.subr.mxu0 0.0
        %890 = vmatpush1.msra.mxu0 0.0
        %891 = vmatprep.subr.mxu0 0.0
        %892 = vmatpush1.msra.mxu0 0.0
        %893 = vmatprep.subr.mxu0 0.0
        %894 = vmatpush1.msra.mxu0 0.0
        %895 = vmatprep.subr.mxu0 0.0
        %896 = vmatpush1.msra.mxu0 0.0
        %897 = vmatprep.subr.mxu0 0.0
        %898 = vmatpush1.msra.mxu0 0.0
        %899 = vmatprep.subr.mxu0 0.0
        %900 = vmatpush1.msra.mxu0 0.0
        %901 = vmatprep.subr.mxu0 0.0
        %902 = vmatpush1.msra.mxu0 0.0
        %903 = vmatprep.subr.mxu0 0.0
        %904 = vmatpush1.msra.mxu0 0.0
        %905 = vmatprep.subr.mxu0 0.0
        %906 = vmatpush1.msra.mxu0 0.0
        %907 = vmatprep.subr.mxu0 0.0
        %908 = vmatpush1.msra.mxu0 0.0
        %909 = vmatprep.subr.mxu0 0.0
        %910 = vmatpush1.msra.mxu0 0.0
        %911 = vmatprep.subr.mxu0 0.0
        %912 = vmatpush1.msra.mxu0 0.0
        %913 = vmatprep.subr.mxu0 0.0
        %914 = vmatpush1.msra.mxu0 0.0
        %915 = vmatprep.subr.mxu0 0.0
        %916 = vmatpush1.msra.mxu0 0.0
        %917 = vmatprep.subr.mxu0 %v876
        %918 = vmatpush1.msra.mxu0 %v875
        %919 = vmatprep.subr.mxu0 %v874
        %920 = vmatpush1.msra.mxu0 %v873
        %921 = vmatprep.subr.mxu0 0.0
        %922 = vmatpush2.msra.mxu0 0.0
        %923 = vmatprep.subr.mxu0 0.0
        %924 = vmatpush2.msra.mxu0 0.0
        %925 = vmatprep.subr.mxu0 0.0
        %926 = vmatpush2.msra.mxu0 0.0
        %927 = vmatprep.subr.mxu0 0.0
        %928 = vmatpush2.msra.mxu0 0.0
        %929 = vmatprep.subr.mxu0 0.0
        %930 = vmatpush2.msra.mxu0 0.0
        %931 = vmatprep.subr.mxu0 0.0
        %932 = vmatpush2.msra.mxu0 0.0
        %933 = vmatprep.subr.mxu0 0.0
        %934 = vmatpush2.msra.mxu0 0.0
        %935 = vmatprep.subr.mxu0 0.0
        %936 = vmatpush2.msra.mxu0 0.0
        %937 = vmatprep.subr.mxu0 0.0
        %938 = vmatpush2.msra.mxu0 0.0
        %939 = vmatprep.subr.mxu0 0.0
        %940 = vmatpush2.msra.mxu0 0.0
        %941 = vmatprep.subr.mxu0 0.0
        %942 = vmatpush2.msra.mxu0 0.0
        %943 = vmatprep.subr.mxu0 0.0
        %944 = vmatpush2.msra.mxu0 0.0
        %945 = vmatprep.subr.mxu0 0.0
        %946 = vmatpush2.msra.mxu0 0.0
        %947 = vmatprep.subr.mxu0 0.0
        %948 = vmatpush2.msra.mxu0 0.0
        %949 = vmatprep.subr.mxu0 0.0
        %950 = vmatpush2.msra.mxu0 0.0
        %951 = vmatprep.subr.mxu0 0.0
        %952 = vmatpush2.msra.mxu0 0.0
        %953 = vmatprep.mubr.f32.mxu0 0.0
        %954 = vmatmul.mubr.f32.gmra.mxu0 %v878
        %v955 = vpop.f32.mrf.mxu0
        %v956 = vadd.f32 0.0, %v955
        %v957 = vpop.f32.mrf.mxu0
        %v958 = vadd.f32 0.0, %v957
        %959 = vmatprep.mubr.f32.mxu0 0.0
        %960 = vmatmul.mubr.f32.gmra.mxu0 %v881
        %v961 = vpop.f32.mrf.mxu0
        %v962 = vadd.f32 0.0, %v961
        %v963 = vpop.f32.mrf.mxu0
        %v964 = vadd.f32 0.0, %v963
        %965 = vmatprep.mubr.f32.mxu0 0.0
        %966 = vmatmul.mubr.f32.gmra.mxu0 %v884
        %v967 = vpop.f32.mrf.mxu0
        %v968 = vadd.f32 0.0, %v967
        %v969 = vpop.f32.mrf.mxu0
        %v970 = vadd.f32 0.0, %v969
        %971 = vmatprep.mubr.f32.mxu0 0.0
        %972 = vmatmul.mubr.f32.gmra.mxu0 %v887
        %v973 = vpop.f32.mrf.mxu0
        %v974 = vadd.f32 0.0, %v973
        %v975 = vpop.f32.mrf.mxu0
        %v976 = vadd.f32 0.0, %v975
        %977 = vdwg.mxu0
        %v978 = vld [vmem:[%s7] sm:$0xff]
        %v979 = vld [vmem:[%s7 + $0x8] sm:$0xff]
        %v980 = vld [vmem:[%s7 + $0x10] sm:$0xff]
        %v981 = vld [vmem:[%s7 + $0x18] sm:$0xff]
        %v982 = vld [vmem:[%s7 + $0x20] sm:$0xff]
        %v983 = vld [vmem:[%s7 + $0x28] sm:$0xff]
        %v984 = vld [vmem:[%s7 + $0x30] sm:$0xff]
        %v985 = vld [vmem:[%s7 + $0x38] sm:$0xff]
        %v986 = vmul.f32 %v978, %v956
        %v987 = vmul.f32 %v979, %v958
        %v988 = vmul.f32 %v980, %v962
        %v989 = vmul.f32 %v981, %v964
        %v990 = vmul.f32 %v982, %v968
        %v991 = vmul.f32 %v983, %v970
        %v992 = vmul.f32 %v984, %v974
        %v993 = vmul.f32 %v985, %v976
        %v994 = vld [vmem:[%s6] sm:$0x3]
        %v996 = vlaneseq
        %v997 = vshrl.u32 %v996, 7
        %v998 = vsub.s32 0, %v997
        %v999 = vrot.slane %v994, %v998
        %v1000 = vlaneseq
        %v1001 = vshrl.u32 %v1000, 7
        %v1002 = vsub.s32 1, %v1001
        %v1003 = vrot.slane %v994, %v1002
        %v1006 = vadd.f32 %v986, %v999
        %v1007 = vadd.f32 %v987, %v1003
        %v1008 = vadd.f32 %v988, %v999
        %v1009 = vadd.f32 %v989, %v1003
        %v1010 = vadd.f32 %v990, %v999
        %v1011 = vadd.f32 %v991, %v1003
        %v1012 = vadd.f32 %v992, %v999
        %v1013 = vadd.f32 %v993, %v1003
        %1014 = vst [vmem:[%s7] sm:$0xff] %v1006
        %1015 = vst [vmem:[%s7 + $0x8] sm:$0xff] %v1007
        %1016 = vst [vmem:[%s7 + $0x10] sm:$0xff] %v1008
        %1017 = vst [vmem:[%s7 + $0x18] sm:$0xff] %v1009
        %1018 = vst [vmem:[%s7 + $0x20] sm:$0xff] %v1010
        %1019 = vst [vmem:[%s7 + $0x28] sm:$0xff] %v1011
        %1020 = vst [vmem:[%s7 + $0x30] sm:$0xff] %v1012
        %1021 = vst [vmem:[%s7 + $0x38] sm:$0xff] %v1013
      $region52: #{scregat_forward.8} parent=43 // pred_fallthru
        _
      %s1022 = smul.u32 16, %s27
      %p1023 = scmp.lt.s32.totalorder %s1022, 31
      %s1024 = scalar_select %p1023, %s1022, 31
      %s1025 = smul.addr %s1024, 8
      %s1026 = scalar_lea.vmem %s9, %s1025
      // Predicated region
      $region53: #{scregat_forward.8} parent=43 // pred_check
        %p1027 = pneg %p181
      $region54: #{scregat_forward.8} parent=43 // pred_check_branch
        %1029 = sbr.rel (%p1027) target = $region56
      $region55: #{scregat_forward.8} parent=43 // pred_region
        _
      $region56: #{scregat_forward.8} parent=43 // pred_fallthru
        _
      // Predicated region
      $region57: #{scregat_forward.8} parent=43 // pred_check
        %p1030 = pneg %p202
      $region58: #{scregat_forward.8} parent=43 // pred_check_branch
        %1032 = sbr.rel (%p1030) target = $region60
      $region59: #{scregat_forward.8} parent=43 // pred_region
        _
      $region60: #{scregat_forward.8} parent=43 // pred_fallthru
        _
      // Predicated region
      $region61: #{scregat_forward.8} parent=43 // pred_check
        %p1033 = pneg %p228
      $region62: #{scregat_forward.8} parent=43 // pred_check_branch
        %1035 = sbr.rel (%p1033) target = $region64
      $region63: #{scregat_forward.8} parent=43 // pred_region
        %s1036 = smul.u32 16, %s27
      $region64: #{scregat_forward.8} parent=43 // pred_fallthru
        _
      // Predicated region
      $region65: #{scregat_forward.8} parent=43 // pred_check
        %p1037 = pneg %p181
      $region66: #{scregat_forward.8} parent=43 // pred_check_branch
        %1039 = sbr.rel (%p1037) target = $region68
      $region67: #{scregat_forward.8} parent=43 // pred_region
        _
      $region68: #{scregat_forward.8} parent=43 // pred_fallthru
        _
      // Predicated region
      $region69: #{scregat_forward.8} parent=43 // pred_check
        %p1040 = pneg %p202
      $region70: #{scregat_forward.8} parent=43 // pred_check_branch
        %1042 = sbr.rel (%p1040) target = $region72
      $region71: #{scregat_forward.8} parent=43 // pred_region
        _
      $region72: #{scregat_forward.8} parent=43 // pred_fallthru
        _
    $region44: #{scregat_forward.8} parent=5 // pred_fallthru
      _
    %p1043 = scmp.le.s32.totalorder 2, %s22
    // Predicated region
    $region73: #{scregat_forward.8} parent=5 // pred_check
      %p1044 = pneg %p1043
    $region74: #{scregat_forward.8} parent=5 // pred_check_branch
      %1046 = sbr.rel (%p1044) target = $region76
    $region75: #{scregat_forward.8} parent=5 // pred_region
      %s1047 = ssub.s32 %s22, 2
      // Predicated region
      $region77: #{scregat_forward.8} parent=75 // pred_check
        %p1048 = pneg %p234
      $region78: #{scregat_forward.8} parent=75 // pred_check_branch
        %1050 = sbr.rel (%p1048) target = $region80
      $region79: #{scregat_forward.8} parent=75 // pred_region
        %s1051 = smul.u32 16, %s28
        %p1052 = scmp.lt.s32.totalorder %s1051, 31
        %s1053 = scalar_select %p1052, %s1051, 31
        %s1054 = smul.addr %s1053, 8
        %s1055 = scalar_lea.vmem %s9, %s1054
      $region80: #{scregat_forward.8} parent=75 // pred_fallthru
        _
    $region76: #{scregat_forward.8} parent=5 // pred_fallthru
      _
  $region6: #{scregat_forward.8} parent=0 // loop_footer
    %s26 = sadd.s32 1, %s22
  $region7: #{scregat_forward.8} parent=0 // loop_footer_branch
    %21 = sbr.rel target = $region3
  $region8: #{scregat_forward.8} parent=0 // loop_exit
    _

// kernel: scregat_forward.9
$region0: #{scregat_forward.9}
  #allocation0 [shape = 'u32[]', space=smem, size = 0x4, offset = 0x4, fixed_abs, tag = 'smem constant byte address 0x4 - core index']
  #allocation1 [shape = 'u32[144,128]{1,0:T(1,128)}', space=vmem, size = 0x12000, scoped, tag = 'internal scratch']
  %s0 = inlined_call_operand.vmem [shape: bf16[32,256], index: 0, kind: input, shape index: {}]
  %s1 = inlined_call_operand.vmem [shape: bf16[256,16], index: 1, kind: input, shape index: {}]
  %s2 = inlined_call_operand.vmem [shape: f32[1,16], index: 2, kind: input, shape index: {}]
  %s3 = inlined_call_operand.vmem [shape: f32[16,384], index: 3, kind: input, shape index: {}]
  %s4 = inlined_call_operand.vmem [shape: f32[32,384], index: 4, kind: output, shape index: {}]
  %s5 = sld [smem:[#allocation0]]
  $region26: #{scregat_forward.9} parent=0
    _
  %s7 = ssub.s32 1, %s5
  %s8 = scalar_select 0, %s7, %s5
  // Predicated region
  $region2: #{scregat_forward.9} parent=0 // pred_check
    _
  $region3: #{scregat_forward.9} parent=0 // pred_check_branch
    %10 = sbr.rel (0) target = $region5
  $region4: #{scregat_forward.9} parent=0 // pred_region
    _
  $region5: #{scregat_forward.9} parent=0 // pred_fallthru
    _
  // Predicated region
  $region6: #{scregat_forward.9} parent=0 // pred_check
    _
  $region7: #{scregat_forward.9} parent=0 // pred_check_branch
    %12 = sbr.rel (0) target = $region9
  $region8: #{scregat_forward.9} parent=0 // pred_region
    _
  $region9: #{scregat_forward.9} parent=0 // pred_fallthru
    _
  // Predicated region
  $region10: #{scregat_forward.9} parent=0 // pred_check
    _
  $region11: #{scregat_forward.9} parent=0 // pred_check_branch
    %14 = sbr.rel (0) target = $region13
  $region12: #{scregat_forward.9} parent=0 // pred_region
    _
  $region13: #{scregat_forward.9} parent=0 // pred_fallthru
    _
  // Predicated region
  $region14: #{scregat_forward.9} parent=0 // pred_check
    _
  $region15: #{scregat_forward.9} parent=0 // pred_check_branch
    %16 = sbr.rel (0) target = $region17
  $region16: #{scregat_forward.9} parent=0 // pred_region
    _
  $region17: #{scregat_forward.9} parent=0 // pred_fallthru
    _
  %v18 = vld [vmem:[%s0] sm:$0xff]
  %v19 = vld [vmem:[%s0 + $0x8] sm:$0xff]
  %v20 = vld [vmem:[%s0 + $0x10] sm:$0xff]
  %v21 = vld [vmem:[%s0 + $0x18] sm:$0xff]
  %v22 = vld [vmem:[%s1] sm:$0xf]
  %v23 = vld [vmem:[%s1 + $0x4] sm:$0xf]
  %v24 = vld [vmem:[%s1 + $0x8] sm:$0xf]
  %v25 = vld [vmem:[%s1 + $0xc] sm:$0xf]
  %v26 = vld [vmem:[%s1 + $0x10] sm:$0xf]
  %v27 = vld [vmem:[%s1 + $0x14] sm:$0xf]
  %v28 = vld [vmem:[%s1 + $0x18] sm:$0xf]
  %v29 = vld [vmem:[%s1 + $0x1c] sm:$0xf]
  %v30 = vld [vmem:[%s1 + $0x20] sm:$0xf]
  %v31 = vld [vmem:[%s1 + $0x24] sm:$0xf]
  %v32 = vld [vmem:[%s1 + $0x28] sm:$0xf]
  %v33 = vld [vmem:[%s1 + $0x2c] sm:$0xf]
  %v34 = vld [vmem:[%s1 + $0x30] sm:$0xf]
  %v35 = vld [vmem:[%s1 + $0x34] sm:$0xf]
  %v36 = vld [vmem:[%s1 + $0x38] sm:$0xf]
  %v37 = vld [vmem:[%s1 + $0x3c] sm:$0xf]
  %v38 = vld [vmem:[%s1 + $0x40] sm:$0xf]
  %v39 = vld [vmem:[%s1 + $0x44] sm:$0xf]
  %v40 = vld [vmem:[%s1 + $0x48] sm:$0xf]
  %v41 = vld [vmem:[%s1 + $0x4c] sm:$0xf]
  %v42 = vld [vmem:[%s1 + $0x50] sm:$0xf]
  %v43 = vld [vmem:[%s1 + $0x54] sm:$0xf]
  %v44 = vld [vmem:[%s1 + $0x58] sm:$0xf]
  %v45 = vld [vmem:[%s1 + $0x5c] sm:$0xf]
  %v46 = vld [vmem:[%s1 + $0x60] sm:$0xf]
  %v47 = vld [vmem:[%s1 + $0x64] sm:$0xf]
  %v48 = vld [vmem:[%s1 + $0x68] sm:$0xf]
  %v49 = vld [vmem:[%s1 + $0x6c] sm:$0xf]
  %v50 = vld [vmem:[%s1 + $0x70] sm:$0xf]
  %v51 = vld [vmem:[%s1 + $0x74] sm:$0xf]
  %v52 = vld [vmem:[%s1 + $0x78] sm:$0xf]
  %v53 = vld [vmem:[%s1 + $0x7c] sm:$0xf]
  %v54 = vld [vmem:[%s2] sm:$0x1]
  %v56 = vlaneseq
  %v57 = vshrl.u32 %v56, 7
  %v58 = vsub.s32 0, %v57
  %v59 = vrot.slane %v54, %v58
  %v65 = vunpack.c.l.b16 %v18
  %v66 = vunpack.c.h.b16 %v18
  %v67 = vunpack.c.l.b16 %v19
  %v68 = vunpack.c.h.b16 %v19
  %v69 = vunpack.c.l.b16 %v20
  %v70 = vunpack.c.h.b16 %v20
  %v71 = vunpack.c.l.b16 %v21
  %v72 = vunpack.c.h.b16 %v21
  %v73 = vpack.c.b16 %v67, %v65
  %v74 = vpack.c.b16 %v68, %v66
  %v75 = vpack.c.b16 %v71, %v69
  %v76 = vpack.c.b16 %v72, %v70
  %v113 = vunpack.c.l.b16 %v22
  %v114 = vunpack.c.l.b16 %v23
  %v115 = vunpack.c.l.b16 %v24
  %v116 = vunpack.c.l.b16 %v25
  %v117 = vunpack.c.l.b16 %v26
  %v118 = vunpack.c.l.b16 %v27
  %v119 = vunpack.c.l.b16 %v28
  %v120 = vunpack.c.l.b16 %v29
  %v121 = vunpack.c.l.b16 %v30
  %v122 = vunpack.c.l.b16 %v31
  %v123 = vunpack.c.l.b16 %v32
  %v124 = vunpack.c.l.b16 %v33
  %v125 = vunpack.c.l.b16 %v34
  %v126 = vunpack.c.l.b16 %v35
  %v127 = vunpack.c.l.b16 %v36
  %v128 = vunpack.c.l.b16 %v37
  %v129 = vunpack.c.l.b16 %v38
  %v130 = vunpack.c.l.b16 %v39
  %v131 = vunpack.c.l.b16 %v40
  %v132 = vunpack.c.l.b16 %v41
  %v133 = vunpack.c.l.b16 %v42
  %v134 = vunpack.c.l.b16 %v43
  %v135 = vunpack.c.l.b16 %v44
  %v136 = vunpack.c.l.b16 %v45
  %v137 = vunpack.c.l.b16 %v46
  %v138 = vunpack.c.l.b16 %v47
  %v139 = vunpack.c.l.b16 %v48
  %v140 = vunpack.c.l.b16 %v49
  %v141 = vunpack.c.l.b16 %v50
  %v142 = vunpack.c.l.b16 %v51
  %v143 = vunpack.c.l.b16 %v52
  %v144 = vunpack.c.l.b16 %v53
  %v145 = vpack.c.b16 %v114, %v113
  %v146 = vpack.c.b16 %v116, %v115
  %v147 = vpack.c.b16 %v118, %v117
  %v148 = vpack.c.b16 %v120, %v119
  %v149 = vpack.c.b16 %v122, %v121
  %v150 = vpack.c.b16 %v124, %v123
  %v151 = vpack.c.b16 %v126, %v125
  %v152 = vpack.c.b16 %v128, %v127
  %v153 = vpack.c.b16 %v130, %v129
  %v154 = vpack.c.b16 %v132, %v131
  %v155 = vpack.c.b16 %v134, %v133
  %v156 = vpack.c.b16 %v136, %v135
  %v157 = vpack.c.b16 %v138, %v137
  %v158 = vpack.c.b16 %v140, %v139
  %v159 = vpack.c.b16 %v142, %v141
  %v160 = vpack.c.b16 %v144, %v143
  %177 = vmatprep.subr.bf16.mxu0 0
  %178 = vmatpush1.bf16.msra.mxu0 %v152
  %179 = vmatprep.subr.bf16.mxu0 0
  %180 = vmatpush1.bf16.msra.mxu0 %v151
  %181 = vmatprep.subr.bf16.mxu0 0
  %182 = vmatpush1.bf16.msra.mxu0 %v150
  %183 = vmatprep.subr.bf16.mxu0 0
  %184 = vmatpush1.bf16.msra.mxu0 %v149
  %185 = vmatprep.subr.bf16.mxu0 0
  %186 = vmatpush1.bf16.msra.mxu0 %v148
  %187 = vmatprep.subr.bf16.mxu0 0
  %188 = vmatpush1.bf16.msra.mxu0 %v147
  %189 = vmatprep.subr.bf16.mxu0 0
  %190 = vmatpush1.bf16.msra.mxu0 %v146
  %191 = vmatprep.subr.bf16.mxu0 0
  %192 = vmatpush1.bf16.msra.mxu0 %v145
  %193 = vmatprep.subr.bf16.mxu0 0
  %194 = vmatpush2.bf16.msra.mxu0 %v160
  %195 = vmatprep.subr.bf16.mxu0 0
  %196 = vmatpush2.bf16.msra.mxu0 %v159
  %197 = vmatprep.subr.bf16.mxu0 0
  %198 = vmatpush2.bf16.msra.mxu0 %v158
  %199 = vmatprep.subr.bf16.mxu0 0
  %200 = vmatpush2.bf16.msra.mxu0 %v157
  %201 = vmatprep.subr.bf16.mxu0 0
  %202 = vmatpush2.bf16.msra.mxu0 %v156
  %203 = vmatprep.subr.bf16.mxu0 0
  %204 = vmatpush2.bf16.msra.mxu0 %v155
  %205 = vmatprep.subr.bf16.mxu0 0
  %206 = vmatpush2.bf16.msra.mxu0 %v154
  %207 = vmatprep.subr.bf16.mxu0 0
  %208 = vmatpush2.bf16.msra.mxu0 %v153
  %209 = vmatprep.mubr.bf16.mxu0 %v74
  %210 = vmatmul.mubr.bf16.gmra.mxu0 %v73
  %v211 = vpop.f32.mrf.mxu0
  %v212 = vadd.f32 %v59, %v211
  %v213 = vpop.f32.mrf.mxu0
  %v214 = vpop.f32.mrf.mxu0
  %v215 = vadd.f32 %v59, %v214
  %v216 = vpop.f32.mrf.mxu0
  %217 = vmatprep.mubr.bf16.mxu0 %v76
  %218 = vmatmul.mubr.bf16.gmra.mxu0 %v75
  %v219 = vpop.f32.mrf.mxu0
  %v220 = vadd.f32 %v59, %v219
  %v221 = vpop.f32.mrf.mxu0
  %v222 = vpop.f32.mrf.mxu0
  %v223 = vadd.f32 %v59, %v222
  %v224 = vpop.f32.mrf.mxu0
  %225 = vdwg.mxu0
  %vm226 = vcmp.gt.f32.partialorder %v212, 0.0
  %vm227 = vcmp.gt.f32.partialorder %v215, 0.0
  %vm228 = vcmp.gt.f32.partialorder %v220, 0.0
  %vm229 = vcmp.gt.f32.partialorder %v223, 0.0
  %v230 = vmul.f32 %v212, 0.01
  %v231 = vmul.f32 %v215, 0.01
  %v232 = vmul.f32 %v220, 0.01
  %v233 = vmul.f32 %v223, 0.01
  %v234 = vsel %vm226, %v212, %v230
  %v235 = vsel %vm227, %v215, %v231
  %v236 = vsel %vm228, %v220, %v232
  %v237 = vsel %vm229, %v223, %v233
  %v238 = vld [vmem:[%s3] sm:$0xff]
  %v239 = vld [vmem:[%s3 + $0x8] sm:$0xff]
  %v240 = vld [vmem:[%s3 + $0x10] sm:$0xff]
  %v241 = vld [vmem:[%s3 + $0x18] sm:$0xff]
  %v242 = vld [vmem:[%s3 + $0x20] sm:$0xff]
  %v243 = vld [vmem:[%s3 + $0x28] sm:$0xff]
  %vm244 = vcmask 130048
  %v246 = vsel %vm244, %v234, 0
  %v249 = vsel %vm244, %v235, 0
  %v252 = vsel %vm244, %v236, 0
  %v255 = vsel %vm244, %v237, 0
  %257 = vmatprep.subr.mxu0 0.0
  %258 = vmatpush1.msra.mxu0 0.0
  %259 = vmatprep.subr.mxu0 0.0
  %260 = vmatpush1.msra.mxu0 0.0
  %261 = vmatprep.subr.mxu0 0.0
  %262 = vmatpush1.msra.mxu0 0.0
  %263 = vmatprep.subr.mxu0 0.0
  %264 = vmatpush1.msra.mxu0 0.0
  %265 = vmatprep.subr.mxu0 0.0
  %266 = vmatpush1.msra.mxu0 0.0
  %267 = vmatprep.subr.mxu0 0.0
  %268 = vmatpush1.msra.mxu0 0.0
  %269 = vmatprep.subr.mxu0 0.0
  %270 = vmatpush1.msra.mxu0 0.0
  %271 = vmatprep.subr.mxu0 0.0
  %272 = vmatpush1.msra.mxu0 0.0
  %273 = vmatprep.subr.mxu0 0.0
  %274 = vmatpush1.msra.mxu0 0.0
  %275 = vmatprep.subr.mxu0 0.0
  %276 = vmatpush1.msra.mxu0 0.0
  %277 = vmatprep.subr.mxu0 0.0
  %278 = vmatpush1.msra.mxu0 0.0
  %279 = vmatprep.subr.mxu0 0.0
  %280 = vmatpush1.msra.mxu0 0.0
  %281 = vmatprep.subr.mxu0 0.0
  %282 = vmatpush1.msra.mxu0 0.0
  %283 = vmatprep.subr.mxu0 0.0
  %284 = vmatpush1.msra.mxu0 0.0
  %285 = vmatprep.subr.mxu0 %v242
  %286 = vmatpush1.msra.mxu0 %v241
  %287 = vmatprep.subr.mxu0 %v239
  %288 = vmatpush1.msra.mxu0 %v238
  %289 = vmatprep.subr.mxu0 0.0
  %290 = vmatpush2.msra.mxu0 0.0
  %291 = vmatprep.subr.mxu0 0.0
  %292 = vmatpush2.msra.mxu0 0.0
  %293 = vmatprep.subr.mxu0 0.0
  %294 = vmatpush2.msra.mxu0 0.0
  %295 = vmatprep.subr.mxu0 0.0
  %296 = vmatpush2.msra.mxu0 0.0
  %297 = vmatprep.subr.mxu0 0.0
  %298 = vmatpush2.msra.mxu0 0.0
  %299 = vmatprep.subr.mxu0 0.0
  %300 = vmatpush2.msra.mxu0 0.0
  %301 = vmatprep.subr.mxu0 0.0
  %302 = vmatpush2.msra.mxu0 0.0
  %303 = vmatprep.subr.mxu0 0.0
  %304 = vmatpush2.msra.mxu0 0.0
  %305 = vmatprep.subr.mxu0 0.0
  %306 = vmatpush2.msra.mxu0 0.0
  %307 = vmatprep.subr.mxu0 0.0
  %308 = vmatpush2.msra.mxu0 0.0
  %309 = vmatprep.subr.mxu0 0.0
  %310 = vmatpush2.msra.mxu0 0.0
  %311 = vmatprep.subr.mxu0 0.0
  %312 = vmatpush2.msra.mxu0 0.0
  %313 = vmatprep.subr.mxu0 0.0
  %314 = vmatpush2.msra.mxu0 0.0
  %315 = vmatprep.subr.mxu0 0.0
  %316 = vmatpush2.msra.mxu0 0.0
  %317 = vmatprep.subr.mxu0 0.0
  %318 = vmatpush2.msra.mxu0 0.0
  %319 = vmatprep.subr.mxu0 0.0
  %320 = vmatpush2.msra.mxu0 0.0
  %321 = vmatprep.mubr.f32.mxu0 0.0
  %322 = vmatmul.mubr.f32.gmra.mxu0 %v246
  %v323 = vpop.f32.mrf.mxu0
  %v324 = vadd.f32 0.0, %v323
  %v325 = vpop.f32.mrf.mxu0
  %v326 = vadd.f32 0.0, %v325
  %327 = vmatprep.mubr.f32.mxu0 0.0
  %328 = vmatmul.mubr.f32.gmra.mxu0 %v249
  %v329 = vpop.f32.mrf.mxu0
  %v330 = vadd.f32 0.0, %v329
  %v331 = vpop.f32.mrf.mxu0
  %v332 = vadd.f32 0.0, %v331
  %333 = vmatprep.mubr.f32.mxu0 0.0
  %334 = vmatmul.mubr.f32.gmra.mxu0 %v252
  %v335 = vpop.f32.mrf.mxu0
  %v336 = vadd.f32 0.0, %v335
  %v337 = vpop.f32.mrf.mxu0
  %v338 = vadd.f32 0.0, %v337
  %339 = vmatprep.mubr.f32.mxu0 0.0
  %340 = vmatmul.mubr.f32.gmra.mxu0 %v255
  %v341 = vpop.f32.mrf.mxu0
  %v342 = vadd.f32 0.0, %v341
  %v343 = vpop.f32.mrf.mxu0
  %v344 = vadd.f32 0.0, %v343
  %345 = vdwg.mxu0
  %346 = vmatprep.subr.mxu0 0.0
  %347 = vmatpush1.msra.mxu0 0.0
  %348 = vmatprep.subr.mxu0 0.0
  %349 = vmatpush1.msra.mxu0 0.0
  %350 = vmatprep.subr.mxu0 0.0
  %351 = vmatpush1.msra.mxu0 0.0
  %352 = vmatprep.subr.mxu0 0.0
  %353 = vmatpush1.msra.mxu0 0.0
  %354 = vmatprep.subr.mxu0 0.0
  %355 = vmatpush1.msra.mxu0 0.0
  %356 = vmatprep.subr.mxu0 0.0
  %357 = vmatpush1.msra.mxu0 0.0
  %358 = vmatprep.subr.mxu0 0.0
  %359 = vmatpush1.msra.mxu0 0.0
  %360 = vmatprep.subr.mxu0 0.0
  %361 = vmatpush1.msra.mxu0 0.0
  %362 = vmatprep.subr.mxu0 0.0
  %363 = vmatpush1.msra.mxu0 0.0
  %364 = vmatprep.subr.mxu0 0.0
  %365 = vmatpush1.msra.mxu0 0.0
  %366 = vmatprep.subr.mxu0 0.0
  %367 = vmatpush1.msra.mxu0 0.0
  %368 = vmatprep.subr.mxu0 0.0
  %369 = vmatpush1.msra.mxu0 0.0
  %370 = vmatprep.subr.mxu0 0.0
  %371 = vmatpush1.msra.mxu0 0.0
  %372 = vmatprep.subr.mxu0 0.0
  %373 = vmatpush1.msra.mxu0 0.0
  %374 = vmatprep.subr.mxu0 0.0
  %375 = vmatpush1.msra.mxu0 %v243
  %376 = vmatprep.subr.mxu0 0.0
  %377 = vmatpush1.msra.mxu0 %v240
  %378 = vmatprep.subr.mxu0 0.0
  %379 = vmatpush2.msra.mxu0 0.0
  %380 = vmatprep.subr.mxu0 0.0
  %381 = vmatpush2.msra.mxu0 0.0
  %382 = vmatprep.subr.mxu0 0.0
  %383 = vmatpush2.msra.mxu0 0.0
  %384 = vmatprep.subr.mxu0 0.0
  %385 = vmatpush2.msra.mxu0 0.0
  %386 = vmatprep.subr.mxu0 0.0
  %387 = vmatpush2.msra.mxu0 0.0
  %388 = vmatprep.subr.mxu0 0.0
  %389 = vmatpush2.msra.mxu0 0.0
  %390 = vmatprep.subr.mxu0 0.0
  %391 = vmatpush2.msra.mxu0 0.0
  %392 = vmatprep.subr.mxu0 0.0
  %393 = vmatpush2.msra.mxu0 0.0
  %394 = vmatprep.subr.mxu0 0.0
  %395 = vmatpush2.msra.mxu0 0.0
  %396 = vmatprep.subr.mxu0 0.0
  %397 = vmatpush2.msra.mxu0 0.0
  %398 = vmatprep.subr.mxu0 0.0
  %399 = vmatpush2.msra.mxu0 0.0
  %400 = vmatprep.subr.mxu0 0.0
  %401 = vmatpush2.msra.mxu0 0.0
  %402 = vmatprep.subr.mxu0 0.0
  %403 = vmatpush2.msra.mxu0 0.0
  %404 = vmatprep.subr.mxu0 0.0
  %405 = vmatpush2.msra.mxu0 0.0
  %406 = vmatprep.subr.mxu0 0.0
  %407 = vmatpush2.msra.mxu0 0.0
  %408 = vmatprep.subr.mxu0 0.0
  %409 = vmatpush2.msra.mxu0 0.0
  %410 = vmatprep.mubr.f32.mxu0 0.0
  %411 = vmatmul.mubr.f32.gmra.mxu0 %v246
  %v412 = vpop.f32.mrf.mxu0
  %v413 = vadd.f32 0.0, %v412
  %v414 = vpop.f32.mrf.mxu0
  %415 = vmatprep.mubr.f32.mxu0 0.0
  %416 = vmatmul.mubr.f32.gmra.mxu0 %v249
  %v417 = vpop.f32.mrf.mxu0
  %v418 = vadd.f32 0.0, %v417
  %v419 = vpop.f32.mrf.mxu0
  %420 = vmatprep.mubr.f32.mxu0 0.0
  %421 = vmatmul.mubr.f32.gmra.mxu0 %v252
  %v422 = vpop.f32.mrf.mxu0
  %v423 = vadd.f32 0.0, %v422
  %v424 = vpop.f32.mrf.mxu0
  %425 = vmatprep.mubr.f32.mxu0 0.0
  %426 = vmatmul.mubr.f32.gmra.mxu0 %v255
  %v427 = vpop.f32.mrf.mxu0
  %v428 = vadd.f32 0.0, %v427
  %v429 = vpop.f32.mrf.mxu0
  %430 = vdwg.mxu0
  %431 = vst [vmem:[%s4] sm:$0xff] %v324
  %432 = vst [vmem:[%s4 + $0x8] sm:$0xff] %v326
  %433 = vst [vmem:[%s4 + $0x10] sm:$0xff] %v413
  %434 = vst [vmem:[%s4 + $0x18] sm:$0xff] %v330
  %435 = vst [vmem:[%s4 + $0x20] sm:$0xff] %v332
  %436 = vst [vmem:[%s4 + $0x28] sm:$0xff] %v418
  %437 = vst [vmem:[%s4 + $0x30] sm:$0xff] %v336
  %438 = vst [vmem:[%s4 + $0x38] sm:$0xff] %v338
  %439 = vst [vmem:[%s4 + $0x40] sm:$0xff] %v423
  %440 = vst [vmem:[%s4 + $0x48] sm:$0xff] %v342
  %441 = vst [vmem:[%s4 + $0x50] sm:$0xff] %v344
  %442 = vst [vmem:[%s4 + $0x58] sm:$0xff] %v428
  // Predicated region
  $region18: #{scregat_forward.9} parent=0 // pred_check
    _
  $region19: #{scregat_forward.9} parent=0 // pred_check_branch
    %444 = sbr.rel (0) target = $region21
  $region20: #{scregat_forward.9} parent=0 // pred_region
    _
  $region21: #{scregat_forward.9} parent=0 // pred_fallthru
    _
  // Predicated region
  $region22: #{scregat_forward.9} parent=0 // pred_check
    _
  $region23: #{scregat_forward.9} parent=0 // pred_check_branch
    %446 = sbr.rel (0) target = $region25
  $region24: #{scregat_forward.9} parent=0 // pred_region
    _
  $region25: #{scregat_forward.9} parent=0 // pred_fallthru
    _

// kernel: scregat_forward.10
$region0: #{scregat_forward.10}
  #allocation0 [shape = 'u32[]', space=smem, size = 0x4, offset = 0x4, fixed_abs, tag = 'smem constant byte address 0x4 - core index']
  #allocation1 [shape = 'u32[144,128]{1,0:T(1,128)}', space=vmem, size = 0x12000, scoped, tag = 'internal scratch']
  #allocation2 [shape = 's32[1]{0}', space=sflag, size = 0x4, scoped, tag = 'scoped memory for scregat_forward.10']
  #allocation3 [shape = 'u8[512]{0}', space=smem, size = 0x200, scoped, tag = 'prefetched SMEM operand 0']
  %s0 = inlined_call_operand.vmem [shape: s32[2], index: 0, kind: input, shape index: {}]
  %s1 = inlined_call_operand.vmem [shape: s32[1,256], index: 1, kind: input, shape index: {}]
  %s2 = inlined_call_operand.vmem [shape: f32[256,16], index: 2, kind: input, shape index: {}]
  %s3 = inlined_call_operand.vmem [shape: bf16[256,256], index: 3, kind: input, shape index: {}]
  %s4 = inlined_call_operand.vmem [shape: bf16[16,256], index: 4, kind: input, shape index: {}]
  %s5 = inlined_call_operand.vmem [shape: f32[16,256], index: 5, kind: input, shape index: {}]
  %s6 = inlined_call_operand.vmem [shape: f32[1,256], index: 6, kind: input, shape index: {}]
  %s7 = inlined_call_operand.vmem [shape: f32[32,256], index: 7, kind: output, shape index: {0}]
  %s8 = inlined_call_operand.hbm [shape: f32[32,16], index: 8, kind: output, shape index: {1}]
  %9 = xla_tuple %s7, %s8
  %s10 = sld [smem:[#allocation0]]
  $region73: #{scregat_forward.10} parent=0
    _
  %s12 = ssub.s32 1, %s10
  %s13 = scalar_select 0, %s12, %s10
  %s14 = sshll.u32 %s0, 4
  %s15 = int_to_ptr.vmem [resolvable:$true] %s14
  %17 = dma.vmem_to_smem %s15, 16, [#allocation3], [#allocation2]
  %18 = dma.done [#allocation2], 16
  %19 = sfence
  $region1: #{scregat_forward.10} parent=0
    #allocation4 [shape = 'u8[16384]{0}', space=vmem, size = 0x4000, scoped, tag = 'output window, operand 1, single buffered']
    #allocation5 [shape = 's32[2]{0}', space=sflag, size = 0x8, scoped, tag = 'scoped memory for scregat_forward.10']
    %20 = vsyncpa [#allocation5], 0
    loop: start=0, step=1, limit=4
    $region2: #{scregat_forward.10} parent=1 // loop_pre_header
      _
    $region3: #{scregat_forward.10} parent=1 // loop_header
      %s22 = sphi 0, %s26
      %p23 = scmp.ge.s32.totalorder %s22, 4
      %s32 = sphi 0, %s34
      %s35 = sphi 0, %s32
      %s36 = sphi 0, %s35
      %s52 = sphi 0, %s36
      %s58 = sphi 0, %s60
      %s61 = sphi 0, %s58
      %s62 = sphi 0, %s61
      %s78 = sphi 0, %s62
      %s84 = sphi 0, %s86
      %s87 = sphi 0, %s84
      %s88 = sphi 0, %s87
      %s104 = sphi 0, %s88
      %s108 = sphi 0, %s108
      %s110 = sphi 0, %s108
      %s111 = sphi 0, %s110
      %s125 = sphi 0, %s111
      %s129 = sphi 0, %s129
      %s131 = sphi 0, %s129
      %s132 = sphi 0, %s131
      %s146 = sphi 0, %s132
      %s150 = sphi 0, %s150
      %s152 = sphi 0, %s150
      %s153 = sphi 0, %s152
      %s167 = sphi 0, %s153
      %s171 = sphi 0, %s171
      %s173 = sphi 0, %s171
      %s174 = sphi 0, %s173
      %s188 = sphi 0, %s174
      %s192 = sphi 0, %s192
      %s194 = sphi 0, %s192
      %s195 = sphi 0, %s194
      %s209 = sphi 0, %s195
    $region4: #{scregat_forward.10} parent=1 // loop_header_branch
      %25 = sbr.rel (%p23) target = $region8
    $region5: #{scregat_forward.10} parent=1 // loop_body
      %s27 = ssub.s32 %s22, 1
      %s28 = ssub.s32 %s22, 2
      %s29 = sadd.s32 %s22, 1
      %s30 = ssub.s32 %s22, %s29
      %p31 = scmp.eq.s32.totalorder %s30, 0
      %s33 = sadd.s32 %s32, 1
      %s34 = scalar_select %p31, %s32, %s33
      %p37 = pneg %p31
      %p38 = scmp.eq.s32.totalorder %s22, 1
      %p39 = por %p37, %p38
      %p40 = scmp.ne.s32.totalorder %s32, %s35
      %p41 = scmp.eq.s32.totalorder %s22, 0
      %p42 = por %p40, %p41
      %p43 = scmp.ne.s32.totalorder %s32, %s35
      %p44 = scmp.eq.s32.totalorder %s27, 1
      %p45 = por %p43, %p44
      %p46 = scmp.ne.s32.totalorder %s35, %s36
      %p47 = scmp.eq.s32.totalorder %s27, 0
      %p48 = por %p46, %p47
      %p49 = scmp.ne.s32.totalorder %s35, %s36
      %p50 = scmp.eq.s32.totalorder %s28, 1
      %p51 = por %p49, %p50
      %p53 = scmp.ne.s32.totalorder %s36, %s52
      %p54 = scmp.eq.s32.totalorder %s28, 0
      %p55 = por %p53, %p54
      %s56 = ssub.s32 %s22, %s29
      %p57 = scmp.eq.s32.totalorder %s56, 0
      %s59 = sadd.s32 %s58, 1
      %s60 = scalar_select %p57, %s58, %s59
      %p63 = pneg %p57
      %p64 = scmp.eq.s32.totalorder %s22, 1
      %p65 = por %p63, %p64
      %p66 = scmp.ne.s32.totalorder %s58, %s61
      %p67 = scmp.eq.s32.totalorder %s22, 0
      %p68 = por %p66, %p67
      %p69 = scmp.ne.s32.totalorder %s58, %s61
      %p70 = scmp.eq.s32.totalorder %s27, 1
      %p71 = por %p69, %p70
      %p72 = scmp.ne.s32.totalorder %s61, %s62
      %p73 = scmp.eq.s32.totalorder %s27, 0
      %p74 = por %p72, %p73
      %p75 = scmp.ne.s32.totalorder %s61, %s62
      %p76 = scmp.eq.s32.totalorder %s28, 1
      %p77 = por %p75, %p76
      %p79 = scmp.ne.s32.totalorder %s62, %s78
      %p80 = scmp.eq.s32.totalorder %s28, 0
      %p81 = por %p79, %p80
      %s82 = ssub.s32 %s22, %s29
      %p83 = scmp.eq.s32.totalorder %s82, 0
      %s85 = sadd.s32 %s84, 1
      %s86 = scalar_select %p83, %s84, %s85
      %p89 = pneg %p83
      %p90 = scmp.eq.s32.totalorder %s22, 1
      %p91 = por %p89, %p90
      %p92 = scmp.ne.s32.totalorder %s84, %s87
      %p93 = scmp.eq.s32.totalorder %s22, 0
      %p94 = por %p92, %p93
      %p95 = scmp.ne.s32.totalorder %s84, %s87
      %p96 = scmp.eq.s32.totalorder %s27, 1
      %p97 = por %p95, %p96
      %p98 = scmp.ne.s32.totalorder %s87, %s88
      %p99 = scmp.eq.s32.totalorder %s27, 0
      %p100 = por %p98, %p99
      %p101 = scmp.ne.s32.totalorder %s87, %s88
      %p102 = scmp.eq.s32.totalorder %s28, 1
      %p103 = por %p101, %p102
      %p105 = scmp.ne.s32.totalorder %s88, %s104
      %p106 = scmp.eq.s32.totalorder %s28, 0
      %p107 = por %p105, %p106
      %s109 = sadd.s32 %s108, 1
      %p112 = scmp.eq.s32.totalorder %s22, 1
      %p113 = scmp.ne.s32.totalorder %s108, %s110
      %p114 = scmp.eq.s32.totalorder %s22, 0
      %p115 = por %p113, %p114
      %p116 = scmp.ne.s32.totalorder %s108, %s110
      %p117 = scmp.eq.s32.totalorder %s27, 1
      %p118 = por %p116, %p117
      %p119 = scmp.ne.s32.totalorder %s110, %s111
      %p120 = scmp.eq.s32.totalorder %s27, 0
      %p121 = por %p119, %p120
      %p122 = scmp.ne.s32.totalorder %s110, %s111
      %p123 = scmp.eq.s32.totalorder %s28, 1
      %p124 = por %p122, %p123
      %p126 = scmp.ne.s32.totalorder %s111, %s125
      %p127 = scmp.eq.s32.totalorder %s28, 0
      %p128 = por %p126, %p127
      %s130 = sadd.s32 %s129, 1
      %p133 = scmp.eq.s32.totalorder %s22, 1
      %p134 = scmp.ne.s32.totalorder %s129, %s131
      %p135 = scmp.eq.s32.totalorder %s22, 0
      %p136 = por %p134, %p135
      %p137 = scmp.ne.s32.totalorder %s129, %s131
      %p138 = scmp.eq.s32.totalorder %s27, 1
      %p139 = por %p137, %p138
      %p140 = scmp.ne.s32.totalorder %s131, %s132
      %p141 = scmp.eq.s32.totalorder %s27, 0
      %p142 = por %p140, %p141
      %p143 = scmp.ne.s32.totalorder %s131, %s132
      %p144 = scmp.eq.s32.totalorder %s28, 1
      %p145 = por %p143, %p144
      %p147 = scmp.ne.s32.totalorder %s132, %s146
      %p148 = scmp.eq.s32.totalorder %s28, 0
      %p149 = por %p147, %p148
      %s151 = sadd.s32 %s150, 1
      %p154 = scmp.eq.s32.totalorder %s22, 1
      %p155 = scmp.ne.s32.totalorder %s150, %s152
      %p156 = scmp.eq.s32.totalorder %s22, 0
      %p157 = por %p155, %p156
      %p158 = scmp.ne.s32.totalorder %s150, %s152
      %p159 = scmp.eq.s32.totalorder %s27, 1
      %p160 = por %p158, %p159
      %p161 = scmp.ne.s32.totalorder %s152, %s153
      %p162 = scmp.eq.s32.totalorder %s27, 0
      %p163 = por %p161, %p162
      %p164 = scmp.ne.s32.totalorder %s152, %s153
      %p165 = scmp.eq.s32.totalorder %s28, 1
      %p166 = por %p164, %p165
      %p168 = scmp.ne.s32.totalorder %s153, %s167
      %p169 = scmp.eq.s32.totalorder %s28, 0
      %p170 = por %p168, %p169
      %s172 = sadd.s32 %s171, 1
      %p175 = scmp.eq.s32.totalorder %s22, 1
      %p176 = scmp.ne.s32.totalorder %s171, %s173
      %p177 = scmp.eq.s32.totalorder %s22, 0
      %p178 = por %p176, %p177
      %p179 = scmp.ne.s32.totalorder %s171, %s173
      %p180 = scmp.eq.s32.totalorder %s27, 1
      %p181 = por %p179, %p180
      %p182 = scmp.ne.s32.totalorder %s173, %s174
      %p183 = scmp.eq.s32.totalorder %s27, 0
      %p184 = por %p182, %p183
      %p185 = scmp.ne.s32.totalorder %s173, %s174
      %p186 = scmp.eq.s32.totalorder %s28, 1
      %p187 = por %p185, %p186
      %p189 = scmp.ne.s32.totalorder %s174, %s188
      %p190 = scmp.eq.s32.totalorder %s28, 0
      %p191 = por %p189, %p190
      %s193 = sadd.s32 %s192, 1
      %p196 = scmp.eq.s32.totalorder %s22, 1
      %p197 = scmp.ne.s32.totalorder %s192, %s194
      %p198 = scmp.eq.s32.totalorder %s22, 0
      %p199 = por %p197, %p198
      %p200 = scmp.ne.s32.totalorder %s192, %s194
      %p201 = scmp.eq.s32.totalorder %s27, 1
      %p202 = por %p200, %p201
      %p203 = scmp.ne.s32.totalorder %s194, %s195
      %p204 = scmp.eq.s32.totalorder %s27, 0
      %p205 = por %p203, %p204
      %p206 = scmp.ne.s32.totalorder %s194, %s195
      %p207 = scmp.eq.s32.totalorder %s28, 1
      %p208 = por %p206, %p207
      %p210 = scmp.ne.s32.totalorder %s195, %s209
      %p211 = scmp.eq.s32.totalorder %s28, 0
      %p212 = por %p210, %p211
      %p213 = scmp.le.s32.totalorder 1, %s22
      %p214 = scmp.lt.s32.totalorder %s22, 3
      %p215 = pnand %p213, %p214
      %p216 = pneg %p215
      // Predicated region
      $region9: #{scregat_forward.10} parent=5 // pred_check
        _
      $region10: #{scregat_forward.10} parent=5 // pred_check_branch
        %218 = sbr.rel (%p215) target = $region12
      $region11: #{scregat_forward.10} parent=5 // pred_region
        %s219 = ssub.s32 %s22, 1
        // Predicated region
        $region13: #{scregat_forward.10} parent=11 // pred_check
          %p220 = pneg %p121
        $region14: #{scregat_forward.10} parent=11 // pred_check_branch
          %222 = sbr.rel (%p220) target = $region16
        $region15: #{scregat_forward.10} parent=11 // pred_region
          _
        $region16: #{scregat_forward.10} parent=11 // pred_fallthru
          _
        // Predicated region
        $region17: #{scregat_forward.10} parent=11 // pred_check
          %p223 = pneg %p142
        $region18: #{scregat_forward.10} parent=11 // pred_check_branch
          %225 = sbr.rel (%p223) target = $region20
        $region19: #{scregat_forward.10} parent=11 // pred_region
          _
        $region20: #{scregat_forward.10} parent=11 // pred_fallthru
          _
        // Predicated region
        $region21: #{scregat_forward.10} parent=11 // pred_check
          %p226 = pneg %p163
        $region22: #{scregat_forward.10} parent=11 // pred_check_branch
          %228 = sbr.rel (%p226) target = $region24
        $region23: #{scregat_forward.10} parent=11 // pred_region
          _
        $region24: #{scregat_forward.10} parent=11 // pred_fallthru
          _
      $region12: #{scregat_forward.10} parent=5 // pred_fallthru
        _
      %p229 = scmp.lt.s32.totalorder %s22, 2
      // Predicated region
      $region25: #{scregat_forward.10} parent=5 // pred_check
        %p230 = pneg %p229
      $region26: #{scregat_forward.10} parent=5 // pred_check_branch
        %232 = sbr.rel (%p230) target = $region28
      $region27: #{scregat_forward.10} parent=5 // pred_region
        // Predicated region
        $region29: #{scregat_forward.10} parent=27 // pred_check
          %p233 = pneg %p42
        $region30: #{scregat_forward.10} parent=27 // pred_check_branch
          %235 = sbr.rel (%p233) target = $region32
        $region31: #{scregat_forward.10} parent=27 // pred_region
          %p236 = scmp.lt.s32.totalorder %s22, 1
          %s237 = scalar_select %p236, %s22, 1
          %s238 = scalar_lea.vmem %s1, %s237
        $region32: #{scregat_forward.10} parent=27 // pred_fallthru
          _
        // Predicated region
        $region33: #{scregat_forward.10} parent=27 // pred_check
          %p239 = pneg %p68
        $region34: #{scregat_forward.10} parent=27 // pred_check_branch
          %241 = sbr.rel (%p239) target = $region36
        $region35: #{scregat_forward.10} parent=27 // pred_region
          %s242 = smul.u32 16, %s22
          %p243 = scmp.lt.s32.totalorder %s242, 31
          %s244 = scalar_select %p243, %s242, 31
          %s245 = smul.addr %s244, 8
          %s246 = scalar_lea.vmem %s2, %s245
          %s247 = smul.u32 16, %s22
        $region36: #{scregat_forward.10} parent=27 // pred_fallthru
          _
        // Predicated region
        $region37: #{scregat_forward.10} parent=27 // pred_check
          %p248 = pneg %p94
        $region38: #{scregat_forward.10} parent=27 // pred_check_branch
          %250 = sbr.rel (%p248) target = $region40
        $region39: #{scregat_forward.10} parent=27 // pred_region
          %s251 = smul.u32 16, %s22
          %p252 = scmp.lt.s32.totalorder %s251, 31
          %s253 = scalar_select %p252, %s251, 31
          %s254 = smul.addr %s253, 2
          %s255 = smul.addr %s254, 4
          %s256 = scalar_lea.vmem %s3, %s255
          %s257 = smul.u32 16, %s22
        $region40: #{scregat_forward.10} parent=27 // pred_fallthru
          _
      $region28: #{scregat_forward.10} parent=5 // pred_fallthru
        _
      %p258 = scmp.le.s32.totalorder 1, %s22
      %p259 = scmp.lt.s32.totalorder %s22, 3
      %p260 = pnand %p258, %p259
      %p261 = pneg %p260
      // Predicated region
      $region41: #{scregat_forward.10} parent=5 // pred_check
        _
      $region42: #{scregat_forward.10} parent=5 // pred_check_branch
        %263 = sbr.rel (%p260) target = $region44
      $region43: #{scregat_forward.10} parent=5 // pred_region
        %s264 = ssub.s32 %s22, 1
        %p265 = scmp.lt.s32.totalorder %s27, 1
        %s266 = scalar_select %p265, %s27, 1
        %s267 = scalar_lea.vmem %s1, %s266
        %p268 = pneg %p48
        %p269 = pneg %p45
        %s270 = smul.u32 16, %s27
        %p271 = scmp.lt.s32.totalorder %s270, 31
        %s272 = scalar_select %p271, %s270, 31
        %s273 = smul.addr %s272, 8
        %s274 = scalar_lea.vmem %s2, %s273
        %p275 = pneg %p74
        %p276 = pneg %p71
        %s277 = smul.u32 16, %s27
        %p278 = scmp.lt.s32.totalorder %s277, 31
        %s279 = scalar_select %p278, %s277, 31
        %s280 = smul.addr %s279, 2
        %s281 = smul.addr %s280, 4
        %s282 = scalar_lea.vmem %s3, %s281
        %p283 = pneg %p100
        %p284 = pneg %p97
        %p285 = pneg %p121
        %p286 = pneg %p118
        %p287 = pneg %p142
        %p288 = pneg %p139
        %p289 = pneg %p163
        %p290 = pneg %p160
        %p291 = pneg %p184
        %p292 = pneg %p181
        %p293 = pneg %p205
        %p294 = pneg %p202
        %p295 = scmp.lt.s32.totalorder %s27, 1
        %s296 = scalar_select %p295, %s27, 1
        %s297 = scalar_lea.vmem %s1, %s296
        %s298 = smul.u32 16, %s27
        %p299 = scmp.lt.s32.totalorder %s298, 31
        %s300 = scalar_select %p299, %s298, 31
        %s301 = smul.addr %s300, 8
        %s302 = scalar_lea.vmem %s2, %s301
        %s303 = smul.u32 16, %s27
        %s304 = smul.u32 16, %s27
        %p305 = scmp.lt.s32.totalorder %s304, 31
        %s306 = scalar_select %p305, %s304, 31
        %s307 = smul.addr %s306, 2
        %s308 = smul.addr %s307, 4
        %s309 = scalar_lea.vmem %s3, %s308
        %s310 = smul.u32 16, %s27
        %p312 = scmp.eq.s32.totalorder %s27, 0
        // Predicated region
        $region45: #{scregat_forward.10} parent=43 // pred_check
          %p313 = pneg %p312
        $region46: #{scregat_forward.10} parent=43 // pred_check_branch
          %315 = sbr.rel (%p313) target = $region48
        $region47: #{scregat_forward.10} parent=43 // pred_region
          %316 = vst [vmem:[%s7] sm:$0xff] 0.0
          %317 = vst [vmem:[%s7 + $0x8] sm:$0xff] 0.0
          %318 = vst [vmem:[%s7 + $0x10] sm:$0xff] 0.0
          %319 = vst [vmem:[%s7 + $0x18] sm:$0xff] 0.0
          %320 = vst [vmem:[%s7 + $0x20] sm:$0xff] 0.0
          %321 = vst [vmem:[%s7 + $0x28] sm:$0xff] 0.0
          %322 = vst [vmem:[%s7 + $0x30] sm:$0xff] 0.0
          %323 = vst [vmem:[%s7 + $0x38] sm:$0xff] 0.0
          %vm324 = vcmask 130048
          %325 = vst.msk [vmem:[#allocation4] sm:$0xff] %vm324, 0.0
          %326 = vst.msk [vmem:[#allocation4 + $0x8] sm:$0xff] %vm324, 0.0
          %327 = vst.msk [vmem:[#allocation4 + $0x10] sm:$0xff] %vm324, 0.0
          %328 = vst.msk [vmem:[#allocation4 + $0x18] sm:$0xff] %vm324, 0.0
        $region48: #{scregat_forward.10} parent=43 // pred_fallthru
          _
        %s329 = sld [smem:[#allocation3 + %s27]]
        %v330 = vld [vmem:[%s302] sm:$0xff]
        %v331 = vld [vmem:[%s302 + $0x8] sm:$0xff]
        %v332 = vld [vmem:[%s302 + $0x10] sm:$0xff]
        %v333 = vld [vmem:[%s302 + $0x18] sm:$0xff]
        %v334 = vld [vmem:[%s302 + $0x20] sm:$0xff]
        %v335 = vld [vmem:[%s302 + $0x28] sm:$0xff]
        %v336 = vld [vmem:[%s302 + $0x30] sm:$0xff]
        %v337 = vld [vmem:[%s302 + $0x38] sm:$0xff]
        %v338 = vld [vmem:[%s302 + $0x40] sm:$0xff]
        %v339 = vld [vmem:[%s302 + $0x48] sm:$0xff]
        %v340 = vld [vmem:[%s302 + $0x50] sm:$0xff]
        %v341 = vld [vmem:[%s302 + $0x58] sm:$0xff]
        %v342 = vld [vmem:[%s302 + $0x60] sm:$0xff]
        %v343 = vld [vmem:[%s302 + $0x68] sm:$0xff]
        %v344 = vld [vmem:[%s302 + $0x70] sm:$0xff]
        %v345 = vld [vmem:[%s302 + $0x78] sm:$0xff]
        %v346 = vmul.f32 %v330, 1.442695
        %v347 = vpow.pop %v346
        %v348 = vmul.f32 %v331, 1.442695
        %v349 = vpow.pop %v348
        %v350 = vmul.f32 %v332, 1.442695
        %v351 = vpow.pop %v350
        %v352 = vmul.f32 %v333, 1.442695
        %v353 = vpow.pop %v352
        %v354 = vmul.f32 %v334, 1.442695
        %v355 = vpow.pop %v354
        %v356 = vmul.f32 %v335, 1.442695
        %v357 = vpow.pop %v356
        %v358 = vmul.f32 %v336, 1.442695
        %v359 = vpow.pop %v358
        %v360 = vmul.f32 %v337, 1.442695
        %v361 = vpow.pop %v360
        %v362 = vmul.f32 %v338, 1.442695
        %v363 = vpow.pop %v362
        %v364 = vmul.f32 %v339, 1.442695
        %v365 = vpow.pop %v364
        %v366 = vmul.f32 %v340, 1.442695
        %v367 = vpow.pop %v366
        %v368 = vmul.f32 %v341, 1.442695
        %v369 = vpow.pop %v368
        %v370 = vmul.f32 %v342, 1.442695
        %v371 = vpow.pop %v370
        %v372 = vmul.f32 %v343, 1.442695
        %v373 = vpow.pop %v372
        %v374 = vmul.f32 %v344, 1.442695
        %v375 = vpow.pop %v374
        %v376 = vmul.f32 %v345, 1.442695
        %v377 = vpow.pop %v376
        %v378 = vpack.c.bf16 %v349, %v347
        %v379 = vpack.c.bf16 %v353, %v351
        %v380 = vpack.c.bf16 %v357, %v355
        %v381 = vpack.c.bf16 %v361, %v359
        %v382 = vpack.c.bf16 %v365, %v363
        %v383 = vpack.c.bf16 %v369, %v367
        %v384 = vpack.c.bf16 %v373, %v371
        %v385 = vpack.c.bf16 %v377, %v375
        %v386 = vld [vmem:[%s297] sm:$0x1]
        %v387 = vstv %s329
        %v388 = vsub.s32 %v386, %v387
        %v389 = vlaneseq
        %v390 = vshrl.u32 %v389, 7
        %v391 = vadd.s32 %v390, 8
        %v392 = vadd.s32 %v390, 16
        %v393 = vadd.s32 %v390, 24
        %v394 = vlaneseq
        %v395 = vshrl.u32 %v394, 7
        %v396 = vsub.s32 0, %v395
        %v397 = vrot.slane %v388, %v396
        %vm398 = vcmp.eq.s32.totalorder %v390, %v397
        %vm399 = vcmp.eq.s32.totalorder %v391, %v397
        %vm400 = vcmp.eq.s32.totalorder %v392, %v397
        %vm401 = vcmp.eq.s32.totalorder %v393, %v397
        %v402 = vsel %vm398, 1.0, 0.0
        %v403 = vsel %vm399, 1.0, 0.0
        %v404 = vsel %vm400, 1.0, 0.0
        %v405 = vsel %vm401, 1.0, 0.0
        %v406 = vpack.c.bf16 %v403, %v402
        %v407 = vpack.c.bf16 %v405, %v404
        %s408 = scalar_lea.vmem [#allocation4], %s329
        %v409 = vld [vmem:[%s408] sm:$0xff]
        %v410 = vld [vmem:[%s408 + $0x8] sm:$0xff]
        %v411 = vld [vmem:[%s408 + $0x10] sm:$0xff]
        %v412 = vld [vmem:[%s408 + $0x18] sm:$0xff]
        %413 = vmatprep.subr.bf16.mxu0 0
        %414 = vmatpush1.bf16.msra.mxu0 %v385
        %415 = vmatprep.subr.bf16.mxu0 0
        %416 = vmatpush1.bf16.msra.mxu0 %v384
        %417 = vmatprep.subr.bf16.mxu0 0
        %418 = vmatpush1.bf16.msra.mxu0 %v383
        %419 = vmatprep.subr.bf16.mxu0 0
        %420 = vmatpush1.bf16.msra.mxu0 %v382
        %421 = vmatprep.subr.bf16.mxu0 0
        %422 = vmatpush1.bf16.msra.mxu0 %v381
        %423 = vmatprep.subr.bf16.mxu0 0
        %424 = vmatpush1.bf16.msra.mxu0 %v380
        %425 = vmatprep.subr.bf16.mxu0 0
        %426 = vmatpush1.bf16.msra.mxu0 %v379
        %427 = vmatprep.subr.bf16.mxu0 0
        %428 = vmatpush1.bf16.msra.mxu0 %v378
        %429 = vmatprep.subr.bf16.mxu0 0
        %430 = vmatpush2.bf16.msra.mxu0 0
        %431 = vmatprep.subr.bf16.mxu0 0
        %432 = vmatpush2.bf16.msra.mxu0 0
        %433 = vmatprep.subr.bf16.mxu0 0
        %434 = vmatpush2.bf16.msra.mxu0 0
        %435 = vmatprep.subr.bf16.mxu0 0
        %436 = vmatpush2.bf16.msra.mxu0 0
        %437 = vmatprep.subr.bf16.mxu0 0
        %438 = vmatpush2.bf16.msra.mxu0 0
        %439 = vmatprep.subr.bf16.mxu0 0
        %440 = vmatpush2.bf16.msra.mxu0 0
        %441 = vmatprep.subr.bf16.mxu0 0
        %442 = vmatpush2.bf16.msra.mxu0 0
        %443 = vmatprep.subr.bf16.mxu0 0
        %444 = vmatpush2.bf16.msra.mxu0 0
        %445 = vmatprep.mubr.bf16.mxu0 0
        %446 = vmatmul.mubr.bf16.gmra.mxu0 %v406
        %v447 = vpop.f32.mrf.mxu0
        %v448 = vadd.f32 0.0, %v447
        %v449 = vpop.f32.mrf.mxu0
        %v450 = vpop.f32.mrf.mxu0
        %v451 = vadd.f32 0.0, %v450
        %v452 = vpop.f32.mrf.mxu0
        %453 = vmatprep.mubr.bf16.mxu0 0
        %454 = vmatmul.mubr.bf16.gmra.mxu0 %v407
        %v455 = vpop.f32.mrf.mxu0
        %v456 = vadd.f32 0.0, %v455
        %v457 = vpop.f32.mrf.mxu0
        %v458 = vpop.f32.mrf.mxu0
        %v459 = vadd.f32 0.0, %v458
        %v460 = vpop.f32.mrf.mxu0
        %461 = vdwg.mxu0
        %v462 = vadd.f32 %v409, %v448
        %v463 = vadd.f32 %v410, %v451
        %v464 = vadd.f32 %v411, %v456
        %v465 = vadd.f32 %v412, %v459
        %vm466 = vcmask 130048
        %467 = vst.msk [vmem:[%s408] sm:$0xff] %vm466, %v462
        %468 = vst.msk [vmem:[%s408 + $0x8] sm:$0xff] %vm466, %v463
        %469 = vst.msk [vmem:[%s408 + $0x10] sm:$0xff] %vm466, %v464
        %470 = vst.msk [vmem:[%s408 + $0x18] sm:$0xff] %vm466, %v465
        %v471 = vld [vmem:[%s4] sm:$0xff]
        %v472 = vld [vmem:[%s4 + $0x8] sm:$0xff]
        %v475 = vunpack.c.l.b16 %v471
        %v476 = vunpack.c.h.b16 %v471
        %v477 = vunpack.c.l.b16 %v472
        %v478 = vunpack.c.h.b16 %v472
        %v479 = vpack.c.b16 %v477, %v475
        %v480 = vpack.c.b16 %v478, %v476
        %v484 = vsel %vm466, %v378, 0
        %v487 = vsel %vm466, %v379, 0
        %v490 = vsel %vm466, %v380, 0
        %v493 = vsel %vm466, %v381, 0
        %v496 = vsel %vm466, %v382, 0
        %v499 = vsel %vm466, %v383, 0
        %v502 = vsel %vm466, %v384, 0
        %v505 = vsel %vm466, %v385, 0
        %507 = vmatprep.subr.bf16.mxu0 0
        %508 = vmatpush1.bf16.msra.mxu0 0
        %509 = vmatprep.subr.bf16.mxu0 0
        %510 = vmatpush1.bf16.msra.mxu0 0
        %511 = vmatprep.subr.bf16.mxu0 0
        %512 = vmatpush1.bf16.msra.mxu0 0
        %513 = vmatprep.subr.bf16.mxu0 0
        %514 = vmatpush1.bf16.msra.mxu0 0
        %515 = vmatprep.subr.bf16.mxu0 0
        %516 = vmatpush1.bf16.msra.mxu0 0
        %517 = vmatprep.subr.bf16.mxu0 0
        %518 = vmatpush1.bf16.msra.mxu0 0
        %519 = vmatprep.subr.bf16.mxu0 0
        %520 = vmatpush1.bf16.msra.mxu0 0
        %521 = vmatprep.subr.bf16.mxu0 %v480
        %522 = vmatpush1.bf16.msra.mxu0 %v479
        %523 = vmatprep.subr.bf16.mxu0 0
        %524 = vmatpush2.bf16.msra.mxu0 0
        %525 = vmatprep.subr.bf16.mxu0 0
        %526 = vmatpush2.bf16.msra.mxu0 0
        %527 = vmatprep.subr.bf16.mxu0 0
        %528 = vmatpush2.bf16.msra.mxu0 0
        %529 = vmatprep.subr.bf16.mxu0 0
        %530 = vmatpush2.bf16.msra.mxu0 0
        %531 = vmatprep.subr.bf16.mxu0 0
        %532 = vmatpush2.bf16.msra.mxu0 0
        %533 = vmatprep.subr.bf16.mxu0 0
        %534 = vmatpush2.bf16.msra.mxu0 0
        %535 = vmatprep.subr.bf16.mxu0 0
        %536 = vmatpush2.bf16.msra.mxu0 0
        %537 = vmatprep.subr.bf16.mxu0 0
        %538 = vmatpush2.bf16.msra.mxu0 0
        %539 = vmatprep.mubr.bf16.mxu0 0
        %540 = vmatmul.mubr.bf16.gmra.mxu0 %v484
        %v541 = vpop.f32.mrf.mxu0
        %v542 = vadd.f32 0.0, %v541
        %v543 = vpop.f32.mrf.mxu0
        %v544 = vadd.f32 0.0, %v543
        %v545 = vpop.f32.mrf.mxu0
        %v546 = vadd.f32 0.0, %v545
        %v547 = vpop.f32.mrf.mxu0
        %v548 = vadd.f32 0.0, %v547
        %549 = vmatprep.mubr.bf16.mxu0 0
        %550 = vmatmul.mubr.bf16.gmra.mxu0 %v487
        %v551 = vpop.f32.mrf.mxu0
        %v552 = vadd.f32 0.0, %v551
        %v553 = vpop.f32.mrf.mxu0
        %v554 = vadd.f32 0.0, %v553
        %v555 = vpop.f32.mrf.mxu0
        %v556 = vadd.f32 0.0, %v555
        %v557 = vpop.f32.mrf.mxu0
        %v558 = vadd.f32 0.0, %v557
        %559 = vmatprep.mubr.bf16.mxu0 0
        %560 = vmatmul.mubr.bf16.gmra.mxu0 %v490
        %v561 = vpop.f32.mrf.mxu0
        %v562 = vadd.f32 0.0, %v561
        %v563 = vpop.f32.mrf.mxu0
        %v564 = vadd.f32 0.0, %v563
        %v565 = vpop.f32.mrf.mxu0
        %v566 = vadd.f32 0.0, %v565
        %v567 = vpop.f32.mrf.mxu0
        %v568 = vadd.f32 0.0, %v567
        %569 = vmatprep.mubr.bf16.mxu0 0
        %570 = vmatmul.mubr.bf16.gmra.mxu0 %v493
        %v571 = vpop.f32.mrf.mxu0
        %v572 = vadd.f32 0.0, %v571
        %v573 = vpop.f32.mrf.mxu0
        %v574 = vadd.f32 0.0, %v573
        %v575 = vpop.f32.mrf.mxu0
        %v576 = vadd.f32 0.0, %v575
        %v577 = vpop.f32.mrf.mxu0
        %v578 = vadd.f32 0.0, %v577
        %579 = vmatprep.mubr.bf16.mxu0 0
        %580 = vmatmul.mubr.bf16.gmra.mxu0 %v496
        %v581 = vpop.f32.mrf.mxu0
        %v582 = vadd.f32 0.0, %v581
        %v583 = vpop.f32.mrf.mxu0
        %v584 = vadd.f32 0.0, %v583
        %v585 = vpop.f32.mrf.mxu0
        %v586 = vadd.f32 0.0, %v585
        %v587 = vpop.f32.mrf.mxu0
        %v588 = vadd.f32 0.0, %v587
        %589 = vmatprep.mubr.bf16.mxu0 0
        %590 = vmatmul.mubr.bf16.gmra.mxu0 %v499
        %v591 = vpop.f32.mrf.mxu0
        %v592 = vadd.f32 0.0, %v591
        %v593 = vpop.f32.mrf.mxu0
        %v594 = vadd.f32 0.0, %v593
        %v595 = vpop.f32.mrf.mxu0
        %v596 = vadd.f32 0.0, %v595
        %v597 = vpop.f32.mrf.mxu0
        %v598 = vadd.f32 0.0, %v597
        %599 = vmatprep.mubr.bf16.mxu0 0
        %600 = vmatmul.mubr.bf16.gmra.mxu0 %v502
        %v601 = vpop.f32.mrf.mxu0
        %v602 = vadd.f32 0.0, %v601
        %v603 = vpop.f32.mrf.mxu0
        %v604 = vadd.f32 0.0, %v603
        %v605 = vpop.f32.mrf.mxu0
        %v606 = vadd.f32 0.0, %v605
        %v607 = vpop.f32.mrf.mxu0
        %v608 = vadd.f32 0.0, %v607
        %609 = vmatprep.mubr.bf16.mxu0 0
        %610 = vmatmul.mubr.bf16.gmra.mxu0 %v505
        %v611 = vpop.f32.mrf.mxu0
        %v612 = vadd.f32 0.0, %v611
        %v613 = vpop.f32.mrf.mxu0
        %v614 = vadd.f32 0.0, %v613
        %v615 = vpop.f32.mrf.mxu0
        %v616 = vadd.f32 0.0, %v615
        %v617 = vpop.f32.mrf.mxu0
        %v618 = vadd.f32 0.0, %v617
        %619 = vdwg.mxu0
        %v620 = vld [vmem:[%s309] sm:$0xff]
        %v621 = vld [vmem:[%s309 + $0x8] sm:$0xff]
        %v622 = vld [vmem:[%s309 + $0x10] sm:$0xff]
        %v623 = vld [vmem:[%s309 + $0x18] sm:$0xff]
        %v624 = vld [vmem:[%s309 + $0x20] sm:$0xff]
        %v625 = vld [vmem:[%s309 + $0x28] sm:$0xff]
        %v626 = vld [vmem:[%s309 + $0x30] sm:$0xff]
        %v627 = vld [vmem:[%s309 + $0x38] sm:$0xff]
        %v628 = vld [vmem:[%s309 + $0x40] sm:$0xff]
        %v629 = vld [vmem:[%s309 + $0x48] sm:$0xff]
        %v630 = vld [vmem:[%s309 + $0x50] sm:$0xff]
        %v631 = vld [vmem:[%s309 + $0x58] sm:$0xff]
        %v632 = vld [vmem:[%s309 + $0x60] sm:$0xff]
        %v633 = vld [vmem:[%s309 + $0x68] sm:$0xff]
        %v634 = vld [vmem:[%s309 + $0x70] sm:$0xff]
        %v635 = vld [vmem:[%s309 + $0x78] sm:$0xff]
        %v636 = vunpack.c.l.bf16 %v620
        %v637 = vunpack.c.h.bf16 %v620
        %v638 = vunpack.c.l.bf16 %v621
        %v639 = vunpack.c.h.bf16 %v621
        %v640 = vunpack.c.l.bf16 %v622
        %v641 = vunpack.c.h.bf16 %v622
        %v642 = vunpack.c.l.bf16 %v623
        %v643 = vunpack.c.h.bf16 %v623
        %v644 = vunpack.c.l.bf16 %v624
        %v645 = vunpack.c.h.bf16 %v624
        %v646 = vunpack.c.l.bf16 %v625
        %v647 = vunpack.c.h.bf16 %v625
        %v648 = vunpack.c.l.bf16 %v626
        %v649 = vunpack.c.h.bf16 %v626
        %v650 = vunpack.c.l.bf16 %v627
        %v651 = vunpack.c.h.bf16 %v627
        %v652 = vunpack.c.l.bf16 %v628
        %v653 = vunpack.c.h.bf16 %v628
        %v654 = vunpack.c.l.bf16 %v629
        %v655 = vunpack.c.h.bf16 %v629
        %v656 = vunpack.c.l.bf16 %v630
        %v657 = vunpack.c.h.bf16 %v630
        %v658 = vunpack.c.l.bf16 %v631
        %v659 = vunpack.c.h.bf16 %v631
        %v660 = vunpack.c.l.bf16 %v632
        %v661 = vunpack.c.h.bf16 %v632
        %v662 = vunpack.c.l.bf16 %v633
        %v663 = vunpack.c.h.bf16 %v633
        %v664 = vunpack.c.l.bf16 %v634
        %v665 = vunpack.c.h.bf16 %v634
        %v666 = vunpack.c.l.bf16 %v635
        %v667 = vunpack.c.h.bf16 %v635
        %v668 = vmul.f32 %v636, %v542
        %v669 = vmul.f32 %v637, %v544
        %v670 = vmul.f32 %v638, %v546
        %v671 = vmul.f32 %v639, %v548
        %v672 = vmul.f32 %v640, %v552
        %v673 = vmul.f32 %v641, %v554
        %v674 = vmul.f32 %v642, %v556
        %v675 = vmul.f32 %v643, %v558
        %v676 = vmul.f32 %v644, %v562
        %v677 = vmul.f32 %v645, %v564
        %v678 = vmul.f32 %v646, %v566
        %v679 = vmul.f32 %v647, %v568
        %v680 = vmul.f32 %v648, %v572
        %v681 = vmul.f32 %v649, %v574
        %v682 = vmul.f32 %v650, %v576
        %v683 = vmul.f32 %v651, %v578
        %v684 = vmul.f32 %v652, %v582
        %v685 = vmul.f32 %v653, %v584
        %v686 = vmul.f32 %v654, %v586
        %v687 = vmul.f32 %v655, %v588
        %v688 = vmul.f32 %v656, %v592
        %v689 = vmul.f32 %v657, %v594
        %v690 = vmul.f32 %v658, %v596
        %v691 = vmul.f32 %v659, %v598
        %v692 = vmul.f32 %v660, %v602
        %v693 = vmul.f32 %v661, %v604
        %v694 = vmul.f32 %v662, %v606
        %v695 = vmul.f32 %v663, %v608
        %v696 = vmul.f32 %v664, %v612
        %v697 = vmul.f32 %v665, %v614
        %v698 = vmul.f32 %v666, %v616
        %v699 = vmul.f32 %v667, %v618
        %v700 = vpack.c.bf16 %v670, %v668
        %v701 = vpack.c.bf16 %v671, %v669
        %v702 = vpack.c.bf16 %v674, %v672
        %v703 = vpack.c.bf16 %v675, %v673
        %v704 = vpack.c.bf16 %v678, %v676
        %v705 = vpack.c.bf16 %v679, %v677
        %v706 = vpack.c.bf16 %v682, %v680
        %v707 = vpack.c.bf16 %v683, %v681
        %v708 = vpack.c.bf16 %v686, %v684
        %v709 = vpack.c.bf16 %v687, %v685
        %v710 = vpack.c.bf16 %v690, %v688
        %v711 = vpack.c.bf16 %v691, %v689
        %v712 = vpack.c.bf16 %v694, %v692
        %v713 = vpack.c.bf16 %v695, %v693
        %v714 = vpack.c.bf16 %v698, %v696
        %v715 = vpack.c.bf16 %v699, %v697
        %s716 = sshra.s32 %s329, 3
        %s717 = sand.u32 %s329, 7
        %s718 = smul.u32 %s716, 2
        %s719 = smul.addr %s718, 8
        %s720 = scalar_lea.vmem %s7, %s719
        %v721 = vld [vmem:[%s720] sm:$0xff]
        %v722 = vld [vmem:[%s720 + $0x8] sm:$0xff]
        %v723 = vld [vmem:[%s720 + $0x10] sm:$0xff]
        %v724 = vld [vmem:[%s720 + $0x18] sm:$0xff]
        %v725 = vld [vmem:[%s720 + $0x20] sm:$0xff]
        %v726 = vld [vmem:[%s720 + $0x28] sm:$0xff]
        %v727 = vld [vmem:[%s720 + $0x30] sm:$0xff]
        %v728 = vld [vmem:[%s720 + $0x38] sm:$0xff]
        %729 = vmatprep.subr.bf16.mxu0 %v715
        %730 = vmatpush1.bf16.msra.mxu0 %v714
        %731 = vmatprep.subr.bf16.mxu0 %v713
        %732 = vmatpush1.bf16.msra.mxu0 %v712
        %733 = vmatprep.subr.bf16.mxu0 %v711
        %734 = vmatpush1.bf16.msra.mxu0 %v710
        %735 = vmatprep.subr.bf16.mxu0 %v709
        %736 = vmatpush1.bf16.msra.mxu0 %v708
        %737 = vmatprep.subr.bf16.mxu0 %v707
        %738 = vmatpush1.bf16.msra.mxu0 %v706
        %739 = vmatprep.subr.bf16.mxu0 %v705
        %740 = vmatpush1.bf16.msra.mxu0 %v704
        %741 = vmatprep.subr.bf16.mxu0 %v703
        %742 = vmatpush1.bf16.msra.mxu0 %v702
        %743 = vmatprep.subr.bf16.mxu0 %v701
        %744 = vmatpush1.bf16.msra.mxu0 %v700
        %745 = vmatprep.subr.bf16.mxu0 0
        %746 = vmatpush2.bf16.msra.mxu0 0
        %747 = vmatprep.subr.bf16.mxu0 0
        %748 = vmatpush2.bf16.msra.mxu0 0
        %749 = vmatprep.subr.bf16.mxu0 0
        %750 = vmatpush2.bf16.msra.mxu0 0
        %751 = vmatprep.subr.bf16.mxu0 0
        %752 = vmatpush2.bf16.msra.mxu0 0
        %753 = vmatprep.subr.bf16.mxu0 0
        %754 = vmatpush2.bf16.msra.mxu0 0
        %755 = vmatprep.subr.bf16.mxu0 0
        %756 = vmatpush2.bf16.msra.mxu0 0
        %757 = vmatprep.subr.bf16.mxu0 0
        %758 = vmatpush2.bf16.msra.mxu0 0
        %759 = vmatprep.subr.bf16.mxu0 0
        %760 = vmatpush2.bf16.msra.mxu0 0
        %761 = vmatprep.mubr.bf16.mxu0 0
        %762 = vmatmul.mubr.bf16.gmra.mxu0 %v406
        %v763 = vpop.f32.mrf.mxu0
        %v764 = vadd.f32 0.0, %v763
        %v765 = vpop.f32.mrf.mxu0
        %v766 = vadd.f32 0.0, %v765
        %v767 = vpop.f32.mrf.mxu0
        %v768 = vadd.f32 0.0, %v767
        %v769 = vpop.f32.mrf.mxu0
        %v770 = vadd.f32 0.0, %v769
        %771 = vmatprep.mubr.bf16.mxu0 0
        %772 = vmatmul.mubr.bf16.gmra.mxu0 %v407
        %v773 = vpop.f32.mrf.mxu0
        %v774 = vadd.f32 0.0, %v773
        %v775 = vpop.f32.mrf.mxu0
        %v776 = vadd.f32 0.0, %v775
        %v777 = vpop.f32.mrf.mxu0
        %v778 = vadd.f32 0.0, %v777
        %v779 = vpop.f32.mrf.mxu0
        %v780 = vadd.f32 0.0, %v779
        %781 = vdwg.mxu0
        %v782 = vadd.f32 %v721, %v764
        %v783 = vadd.f32 %v722, %v766
        %v784 = vadd.f32 %v723, %v768
        %v785 = vadd.f32 %v724, %v770
        %v786 = vadd.f32 %v725, %v774
        %v787 = vadd.f32 %v726, %v776
        %v788 = vadd.f32 %v727, %v778
        %v789 = vadd.f32 %v728, %v780
        %790 = vst [vmem:[%s720] sm:$0xff] %v782
        %791 = vst [vmem:[%s720 + $0x8] sm:$0xff] %v783
        %792 = vst [vmem:[%s720 + $0x10] sm:$0xff] %v784
        %793 = vst [vmem:[%s720 + $0x18] sm:$0xff] %v785
        %794 = vst [vmem:[%s720 + $0x20] sm:$0xff] %v786
        %795 = vst [vmem:[%s720 + $0x28] sm:$0xff] %v787
        %796 = vst [vmem:[%s720 + $0x30] sm:$0xff] %v788
        %797 = vst [vmem:[%s720 + $0x38] sm:$0xff] %v789
        %p798 = scmp.eq.s32.totalorder %s27, 1
        // Predicated region
        $region49: #{scregat_forward.10} parent=43 // pred_check
          %p799 = pneg %p798
        $region50: #{scregat_forward.10} parent=43 // pred_check_branch
          %801 = sbr.rel (%p799) target = $region52
        $region51: #{scregat_forward.10} parent=43 // pred_region
          %v802 = vld [vmem:[#allocation4] sm:$0xff]
          %v803 = vld [vmem:[#allocation4 + $0x8] sm:$0xff]
          %v804 = vld [vmem:[#allocation4 + $0x10] sm:$0xff]
          %v805 = vld [vmem:[#allocation4 + $0x18] sm:$0xff]
          %v806 = vmax.f32 %v802, 1e-30
          %v807 = vmax.f32 %v803, 1e-30
          %v808 = vmax.f32 %v804, 1e-30
          %v809 = vmax.f32 %v805, 1e-30
          %v810 = vrcp.pop %v806
          %v811 = vmul.f32 1.0, %v810
          %v812 = vrcp.pop %v807
          %v813 = vmul.f32 1.0, %v812
          %v814 = vrcp.pop %v808
          %v815 = vmul.f32 1.0, %v814
          %v816 = vrcp.pop %v809
          %v817 = vmul.f32 1.0, %v816
          %v818 = vld [vmem:[%s5] sm:$0xff]
          %v819 = vld [vmem:[%s5 + $0x8] sm:$0xff]
          %v820 = vld [vmem:[%s5 + $0x10] sm:$0xff]
          %v821 = vld [vmem:[%s5 + $0x18] sm:$0xff]
          %v823 = vsel %vm466, %v811, 0
          %v826 = vsel %vm466, %v813, 0
          %v829 = vsel %vm466, %v815, 0
          %v832 = vsel %vm466, %v817, 0
          %834 = vmatprep.subr.mxu0 0.0
          %835 = vmatpush1.msra.mxu0 0.0
          %836 = vmatprep.subr.mxu0 0.0
          %837 = vmatpush1.msra.mxu0 0.0
          %838 = vmatprep.subr.mxu0 0.0
          %839 = vmatpush1.msra.mxu0 0.0
          %840 = vmatprep.subr.mxu0 0.0
          %841 = vmatpush1.msra.mxu0 0.0
          %842 = vmatprep.subr.mxu0 0.0
          %843 = vmatpush1.msra.mxu0 0.0
          %844 = vmatprep.subr.mxu0 0.0
          %845 = vmatpush1.msra.mxu0 0.0
          %846 = vmatprep.subr.mxu0 0.0
          %847 = vmatpush1.msra.mxu0 0.0
          %848 = vmatprep.subr.mxu0 0.0
          %849 = vmatpush1.msra.mxu0 0.0
          %850 = vmatprep.subr.mxu0 0.0
          %851 = vmatpush1.msra.mxu0 0.0
          %852 = vmatprep.subr.mxu0 0.0
          %853 = vmatpush1.msra.mxu0 0.0
          %854 = vmatprep.subr.mxu0 0.0
          %855 = vmatpush1.msra.mxu0 0.0
          %856 = vmatprep.subr.mxu0 0.0
          %857 = vmatpush1.msra.mxu0 0.0
          %858 = vmatprep.subr.mxu0 0.0
          %859 = vmatpush1.msra.mxu0 0.0
          %860 = vmatprep.subr.mxu0 0.0
          %861 = vmatpush1.msra.mxu0 0.0
          %862 = vmatprep.subr.mxu0 %v821
          %863 = vmatpush1.msra.mxu0 %v820
          %864 = vmatprep.subr.mxu0 %v819
          %865 = vmatpush1.msra.mxu0 %v818
          %866 = vmatprep.subr.mxu0 0.0
          %867 = vmatpush2.msra.mxu0 0.0
          %868 = vmatprep.subr.mxu0 0.0
          %869 = vmatpush2.msra.mxu0 0.0
          %870 = vmatprep.subr.mxu0 0.0
          %871 = vmatpush2.msra.mxu0 0.0
          %872 = vmatprep.subr.mxu0 0.0
          %873 = vmatpush2.msra.mxu0 0.0
          %874 = vmatprep.subr.mxu0 0.0
          %875 = vmatpush2.msra.mxu0 0.0
          %876 = vmatprep.subr.mxu0 0.0
          %877 = vmatpush2.msra.mxu0 0.0
          %878 = vmatprep.subr.mxu0 0.0
          %879 = vmatpush2.msra.mxu0 0.0
          %880 = vmatprep.subr.mxu0 0.0
          %881 = vmatpush2.msra.mxu0 0.0
          %882 = vmatprep.subr.mxu0 0.0
          %883 = vmatpush2.msra.mxu0 0.0
          %884 = vmatprep.subr.mxu0 0.0
          %885 = vmatpush2.msra.mxu0 0.0
          %886 = vmatprep.subr.mxu0 0.0
          %887 = vmatpush2.msra.mxu0 0.0
          %888 = vmatprep.subr.mxu0 0.0
          %889 = vmatpush2.msra.mxu0 0.0
          %890 = vmatprep.subr.mxu0 0.0
          %891 = vmatpush2.msra.mxu0 0.0
          %892 = vmatprep.subr.mxu0 0.0
          %893 = vmatpush2.msra.mxu0 0.0
          %894 = vmatprep.subr.mxu0 0.0
          %895 = vmatpush2.msra.mxu0 0.0
          %896 = vmatprep.subr.mxu0 0.0
          %897 = vmatpush2.msra.mxu0 0.0
          %898 = vmatprep.mubr.f32.mxu0 0.0
          %899 = vmatmul.mubr.f32.gmra.mxu0 %v823
          %v900 = vpop.f32.mrf.mxu0
          %v901 = vadd.f32 0.0, %v900
          %v902 = vpop.f32.mrf.mxu0
          %v903 = vadd.f32 0.0, %v902
          %904 = vmatprep.mubr.f32.mxu0 0.0
          %905 = vmatmul.mubr.f32.gmra.mxu0 %v826
          %v906 = vpop.f32.mrf.mxu0
          %v907 = vadd.f32 0.0, %v906
          %v908 = vpop.f32.mrf.mxu0
          %v909 = vadd.f32 0.0, %v908
          %910 = vmatprep.mubr.f32.mxu0 0.0
          %911 = vmatmul.mubr.f32.gmra.mxu0 %v829
          %v912 = vpop.f32.mrf.mxu0
          %v913 = vadd.f32 0.0, %v912
          %v914 = vpop.f32.mrf.mxu0
          %v915 = vadd.f32 0.0, %v914
          %916 = vmatprep.mubr.f32.mxu0 0.0
          %917 = vmatmul.mubr.f32.gmra.mxu0 %v832
          %v918 = vpop.f32.mrf.mxu0
          %v919 = vadd.f32 0.0, %v918
          %v920 = vpop.f32.mrf.mxu0
          %v921 = vadd.f32 0.0, %v920
          %922 = vdwg.mxu0
          %v923 = vld [vmem:[%s7] sm:$0xff]
          %v924 = vld [vmem:[%s7 + $0x8] sm:$0xff]
          %v925 = vld [vmem:[%s7 + $0x10] sm:$0xff]
          %v926 = vld [vmem:[%s7 + $0x18] sm:$0xff]
          %v927 = vld [vmem:[%s7 + $0x20] sm:$0xff]
          %v928 = vld [vmem:[%s7 + $0x28] sm:$0xff]
          %v929 = vld [vmem:[%s7 + $0x30] sm:$0xff]
          %v930 = vld [vmem:[%s7 + $0x38] sm:$0xff]
          %v931 = vmul.f32 %v923, %v901
          %v932 = vmul.f32 %v924, %v903
          %v933 = vmul.f32 %v925, %v907
          %v934 = vmul.f32 %v926, %v909
          %v935 = vmul.f32 %v927, %v913
          %v936 = vmul.f32 %v928, %v915
          %v937 = vmul.f32 %v929, %v919
          %v938 = vmul.f32 %v930, %v921
          %v939 = vld [vmem:[%s6] sm:$0x3]
          %v941 = vlaneseq
          %v942 = vshrl.u32 %v941, 7
          %v943 = vsub.s32 0, %v942
          %v944 = vrot.slane %v939, %v943
          %v945 = vlaneseq
          %v946 = vshrl.u32 %v945, 7
          %v947 = vsub.s32 1, %v946
          %v948 = vrot.slane %v939, %v947
          %v951 = vadd.f32 %v931, %v944
          %v952 = vadd.f32 %v932, %v948
          %v953 = vadd.f32 %v933, %v944
          %v954 = vadd.f32 %v934, %v948
          %v955 = vadd.f32 %v935, %v944
          %v956 = vadd.f32 %v936, %v948
          %v957 = vadd.f32 %v937, %v944
          %v958 = vadd.f32 %v938, %v948
          %959 = vst [vmem:[%s7] sm:$0xff] %v951
          %960 = vst [vmem:[%s7 + $0x8] sm:$0xff] %v952
          %961 = vst [vmem:[%s7 + $0x10] sm:$0xff] %v953
          %962 = vst [vmem:[%s7 + $0x18] sm:$0xff] %v954
          %963 = vst [vmem:[%s7 + $0x20] sm:$0xff] %v955
          %964 = vst [vmem:[%s7 + $0x28] sm:$0xff] %v956
          %965 = vst [vmem:[%s7 + $0x30] sm:$0xff] %v957
          %966 = vst [vmem:[%s7 + $0x38] sm:$0xff] %v958
        $region52: #{scregat_forward.10} parent=43 // pred_fallthru
          _
        // Predicated region
        $region53: #{scregat_forward.10} parent=43 // pred_check
          %p967 = pneg %p181
        $region54: #{scregat_forward.10} parent=43 // pred_check_branch
          %969 = sbr.rel (%p967) target = $region56
        $region55: #{scregat_forward.10} parent=43 // pred_region
          _
        $region56: #{scregat_forward.10} parent=43 // pred_fallthru
          _
        // Predicated region
        $region57: #{scregat_forward.10} parent=43 // pred_check
          %p970 = pneg %p202
        $region58: #{scregat_forward.10} parent=43 // pred_check_branch
          %972 = sbr.rel (%p970) target = $region60
        $region59: #{scregat_forward.10} parent=43 // pred_region
          %s974 = ssub.s32 512, 512
          %975 = vsyncadd [#allocation5], %s974
          %s976 = sshll.u32 [#allocation4], 4
          %s977 = int_to_ptr.vmem [resolvable:$true] %s976
          %982 = dma.vmem_to_hbm [thread:$0]  %s977, 512, %s8, [#allocation5], 128, 128, 8
        $region60: #{scregat_forward.10} parent=43 // pred_fallthru
          _
        // Predicated region
        $region61: #{scregat_forward.10} parent=43 // pred_check
          %p983 = pneg %p181
        $region62: #{scregat_forward.10} parent=43 // pred_check_branch
          %985 = sbr.rel (%p983) target = $region64
        $region63: #{scregat_forward.10} parent=43 // pred_region
          _
        $region64: #{scregat_forward.10} parent=43 // pred_fallthru
          _
        // Predicated region
        $region65: #{scregat_forward.10} parent=43 // pred_check
          %p986 = pneg %p202
        $region66: #{scregat_forward.10} parent=43 // pred_check_branch
          %988 = sbr.rel (%p986) target = $region68
        $region67: #{scregat_forward.10} parent=43 // pred_region
          %989 = dma.done [#allocation5], 512
        $region68: #{scregat_forward.10} parent=43 // pred_fallthru
          _
      $region44: #{scregat_forward.10} parent=5 // pred_fallthru
        _
      %p990 = scmp.le.s32.totalorder 2, %s22
      // Predicated region
      $region69: #{scregat_forward.10} parent=5 // pred_check
        %p991 = pneg %p990
      $region70: #{scregat_forward.10} parent=5 // pred_check_branch
        %993 = sbr.rel (%p991) target = $region72
      $region71: #{scregat_forward.10} parent=5 // pred_region
        %s994 = ssub.s32 %s22, 2
      $region72: #{scregat_forward.10} parent=5 // pred_fallthru
        _
    $region6: #{scregat_forward.10} parent=1 // loop_footer
      %s26 = sadd.s32 1, %s22
    $region7: #{scregat_forward.10} parent=1 // loop_footer_branch
      %21 = sbr.rel target = $region3
    $region8: #{scregat_forward.10} parent=1 // loop_exit
      _
    %995 = vsyncpa [#allocation5], 1
    %s996 = scalar_lea.sflag [#allocation5], 1
    %997 = vsyncpa %s996, 1

// kernel: scregat_forward.11
$region0: #{scregat_forward.11}
  #allocation0 [shape = 'u32[]', space=smem, size = 0x4, offset = 0x4, fixed_abs, tag = 'smem constant byte address 0x4 - core index']
  #allocation1 [shape = 'u32[144,128]{1,0:T(1,128)}', space=vmem, size = 0x12000, scoped, tag = 'internal scratch']
  %s0 = inlined_call_operand.vmem [shape: bf16[32,256], index: 0, kind: input, shape index: {}]
  %s1 = inlined_call_operand.vmem [shape: bf16[256,16], index: 1, kind: input, shape index: {}]
  %s2 = inlined_call_operand.vmem [shape: f32[1,16], index: 2, kind: input, shape index: {}]
  %s3 = inlined_call_operand.vmem [shape: f32[32,16], index: 3, kind: output, shape index: {}]
  %s4 = sld [smem:[#allocation0]]
  $region22: #{scregat_forward.11} parent=0
    _
  %s6 = ssub.s32 1, %s4
  %s7 = scalar_select 0, %s6, %s4
  // Predicated region
  $region2: #{scregat_forward.11} parent=0 // pred_check
    _
  $region3: #{scregat_forward.11} parent=0 // pred_check_branch
    %9 = sbr.rel (0) target = $region5
  $region4: #{scregat_forward.11} parent=0 // pred_region
    _
  $region5: #{scregat_forward.11} parent=0 // pred_fallthru
    _
  // Predicated region
  $region6: #{scregat_forward.11} parent=0 // pred_check
    _
  $region7: #{scregat_forward.11} parent=0 // pred_check_branch
    %11 = sbr.rel (0) target = $region9
  $region8: #{scregat_forward.11} parent=0 // pred_region
    _
  $region9: #{scregat_forward.11} parent=0 // pred_fallthru
    _
  // Predicated region
  $region10: #{scregat_forward.11} parent=0 // pred_check
    _
  $region11: #{scregat_forward.11} parent=0 // pred_check_branch
    %13 = sbr.rel (0) target = $region13
  $region12: #{scregat_forward.11} parent=0 // pred_region
    _
  $region13: #{scregat_forward.11} parent=0 // pred_fallthru
    _
  %v15 = vld [vmem:[%s0] sm:$0xff]
  %v16 = vld [vmem:[%s0 + $0x8] sm:$0xff]
  %v17 = vld [vmem:[%s0 + $0x10] sm:$0xff]
  %v18 = vld [vmem:[%s0 + $0x18] sm:$0xff]
  %v19 = vld [vmem:[%s1] sm:$0xf]
  %v20 = vld [vmem:[%s1 + $0x4] sm:$0xf]
  %v21 = vld [vmem:[%s1 + $0x8] sm:$0xf]
  %v22 = vld [vmem:[%s1 + $0xc] sm:$0xf]
  %v23 = vld [vmem:[%s1 + $0x10] sm:$0xf]
  %v24 = vld [vmem:[%s1 + $0x14] sm:$0xf]
  %v25 = vld [vmem:[%s1 + $0x18] sm:$0xf]
  %v26 = vld [vmem:[%s1 + $0x1c] sm:$0xf]
  %v27 = vld [vmem:[%s1 + $0x20] sm:$0xf]
  %v28 = vld [vmem:[%s1 + $0x24] sm:$0xf]
  %v29 = vld [vmem:[%s1 + $0x28] sm:$0xf]
  %v30 = vld [vmem:[%s1 + $0x2c] sm:$0xf]
  %v31 = vld [vmem:[%s1 + $0x30] sm:$0xf]
  %v32 = vld [vmem:[%s1 + $0x34] sm:$0xf]
  %v33 = vld [vmem:[%s1 + $0x38] sm:$0xf]
  %v34 = vld [vmem:[%s1 + $0x3c] sm:$0xf]
  %v35 = vld [vmem:[%s1 + $0x40] sm:$0xf]
  %v36 = vld [vmem:[%s1 + $0x44] sm:$0xf]
  %v37 = vld [vmem:[%s1 + $0x48] sm:$0xf]
  %v38 = vld [vmem:[%s1 + $0x4c] sm:$0xf]
  %v39 = vld [vmem:[%s1 + $0x50] sm:$0xf]
  %v40 = vld [vmem:[%s1 + $0x54] sm:$0xf]
  %v41 = vld [vmem:[%s1 + $0x58] sm:$0xf]
  %v42 = vld [vmem:[%s1 + $0x5c] sm:$0xf]
  %v43 = vld [vmem:[%s1 + $0x60] sm:$0xf]
  %v44 = vld [vmem:[%s1 + $0x64] sm:$0xf]
  %v45 = vld [vmem:[%s1 + $0x68] sm:$0xf]
  %v46 = vld [vmem:[%s1 + $0x6c] sm:$0xf]
  %v47 = vld [vmem:[%s1 + $0x70] sm:$0xf]
  %v48 = vld [vmem:[%s1 + $0x74] sm:$0xf]
  %v49 = vld [vmem:[%s1 + $0x78] sm:$0xf]
  %v50 = vld [vmem:[%s1 + $0x7c] sm:$0xf]
  %v51 = vld [vmem:[%s2] sm:$0x1]
  %v53 = vlaneseq
  %v54 = vshrl.u32 %v53, 7
  %v55 = vsub.s32 0, %v54
  %v56 = vrot.slane %v51, %v55
  %v62 = vunpack.c.l.b16 %v15
  %v63 = vunpack.c.h.b16 %v15
  %v64 = vunpack.c.l.b16 %v16
  %v65 = vunpack.c.h.b16 %v16
  %v66 = vunpack.c.l.b16 %v17
  %v67 = vunpack.c.h.b16 %v17
  %v68 = vunpack.c.l.b16 %v18
  %v69 = vunpack.c.h.b16 %v18
  %v70 = vpack.c.b16 %v64, %v62
  %v71 = vpack.c.b16 %v65, %v63
  %v72 = vpack.c.b16 %v68, %v66
  %v73 = vpack.c.b16 %v69, %v67
  %v110 = vunpack.c.l.b16 %v19
  %v111 = vunpack.c.l.b16 %v20
  %v112 = vunpack.c.l.b16 %v21
  %v113 = vunpack.c.l.b16 %v22
  %v114 = vunpack.c.l.b16 %v23
  %v115 = vunpack.c.l.b16 %v24
  %v116 = vunpack.c.l.b16 %v25
  %v117 = vunpack.c.l.b16 %v26
  %v118 = vunpack.c.l.b16 %v27
  %v119 = vunpack.c.l.b16 %v28
  %v120 = vunpack.c.l.b16 %v29
  %v121 = vunpack.c.l.b16 %v30
  %v122 = vunpack.c.l.b16 %v31
  %v123 = vunpack.c.l.b16 %v32
  %v124 = vunpack.c.l.b16 %v33
  %v125 = vunpack.c.l.b16 %v34
  %v126 = vunpack.c.l.b16 %v35
  %v127 = vunpack.c.l.b16 %v36
  %v128 = vunpack.c.l.b16 %v37
  %v129 = vunpack.c.l.b16 %v38
  %v130 = vunpack.c.l.b16 %v39
  %v131 = vunpack.c.l.b16 %v40
  %v132 = vunpack.c.l.b16 %v41
  %v133 = vunpack.c.l.b16 %v42
  %v134 = vunpack.c.l.b16 %v43
  %v135 = vunpack.c.l.b16 %v44
  %v136 = vunpack.c.l.b16 %v45
  %v137 = vunpack.c.l.b16 %v46
  %v138 = vunpack.c.l.b16 %v47
  %v139 = vunpack.c.l.b16 %v48
  %v140 = vunpack.c.l.b16 %v49
  %v141 = vunpack.c.l.b16 %v50
  %v142 = vpack.c.b16 %v111, %v110
  %v143 = vpack.c.b16 %v113, %v112
  %v144 = vpack.c.b16 %v115, %v114
  %v145 = vpack.c.b16 %v117, %v116
  %v146 = vpack.c.b16 %v119, %v118
  %v147 = vpack.c.b16 %v121, %v120
  %v148 = vpack.c.b16 %v123, %v122
  %v149 = vpack.c.b16 %v125, %v124
  %v150 = vpack.c.b16 %v127, %v126
  %v151 = vpack.c.b16 %v129, %v128
  %v152 = vpack.c.b16 %v131, %v130
  %v153 = vpack.c.b16 %v133, %v132
  %v154 = vpack.c.b16 %v135, %v134
  %v155 = vpack.c.b16 %v137, %v136
  %v156 = vpack.c.b16 %v139, %v138
  %v157 = vpack.c.b16 %v141, %v140
  %174 = vmatprep.subr.bf16.mxu0 0
  %175 = vmatpush1.bf16.msra.mxu0 %v149
  %176 = vmatprep.subr.bf16.mxu0 0
  %177 = vmatpush1.bf16.msra.mxu0 %v148
  %178 = vmatprep.subr.bf16.mxu0 0
  %179 = vmatpush1.bf16.msra.mxu0 %v147
  %180 = vmatprep.subr.bf16.mxu0 0
  %181 = vmatpush1.bf16.msra.mxu0 %v146
  %182 = vmatprep.subr.bf16.mxu0 0
  %183 = vmatpush1.bf16.msra.mxu0 %v145
  %184 = vmatprep.subr.bf16.mxu0 0
  %185 = vmatpush1.bf16.msra.mxu0 %v144
  %186 = vmatprep.subr.bf16.mxu0 0
  %187 = vmatpush1.bf16.msra.mxu0 %v143
  %188 = vmatprep.subr.bf16.mxu0 0
  %189 = vmatpush1.bf16.msra.mxu0 %v142
  %190 = vmatprep.subr.bf16.mxu0 0
  %191 = vmatpush2.bf16.msra.mxu0 %v157
  %192 = vmatprep.subr.bf16.mxu0 0
  %193 = vmatpush2.bf16.msra.mxu0 %v156
  %194 = vmatprep.subr.bf16.mxu0 0
  %195 = vmatpush2.bf16.msra.mxu0 %v155
  %196 = vmatprep.subr.bf16.mxu0 0
  %197 = vmatpush2.bf16.msra.mxu0 %v154
  %198 = vmatprep.subr.bf16.mxu0 0
  %199 = vmatpush2.bf16.msra.mxu0 %v153
  %200 = vmatprep.subr.bf16.mxu0 0
  %201 = vmatpush2.bf16.msra.mxu0 %v152
  %202 = vmatprep.subr.bf16.mxu0 0
  %203 = vmatpush2.bf16.msra.mxu0 %v151
  %204 = vmatprep.subr.bf16.mxu0 0
  %205 = vmatpush2.bf16.msra.mxu0 %v150
  %206 = vmatprep.mubr.bf16.mxu0 %v71
  %207 = vmatmul.mubr.bf16.gmra.mxu0 %v70
  %v208 = vpop.f32.mrf.mxu0
  %v209 = vadd.f32 %v56, %v208
  %v210 = vpop.f32.mrf.mxu0
  %v211 = vpop.f32.mrf.mxu0
  %v212 = vadd.f32 %v56, %v211
  %v213 = vpop.f32.mrf.mxu0
  %214 = vmatprep.mubr.bf16.mxu0 %v73
  %215 = vmatmul.mubr.bf16.gmra.mxu0 %v72
  %v216 = vpop.f32.mrf.mxu0
  %v217 = vadd.f32 %v56, %v216
  %v218 = vpop.f32.mrf.mxu0
  %v219 = vpop.f32.mrf.mxu0
  %v220 = vadd.f32 %v56, %v219
  %v221 = vpop.f32.mrf.mxu0
  %222 = vdwg.mxu0
  %vm223 = vcmp.gt.f32.partialorder %v209, 0.0
  %vm224 = vcmp.gt.f32.partialorder %v212, 0.0
  %vm225 = vcmp.gt.f32.partialorder %v217, 0.0
  %vm226 = vcmp.gt.f32.partialorder %v220, 0.0
  %v227 = vmul.f32 %v209, 0.01
  %v228 = vmul.f32 %v212, 0.01
  %v229 = vmul.f32 %v217, 0.01
  %v230 = vmul.f32 %v220, 0.01
  %v231 = vsel %vm223, %v209, %v227
  %v232 = vsel %vm224, %v212, %v228
  %v233 = vsel %vm225, %v217, %v229
  %v234 = vsel %vm226, %v220, %v230
  %vm235 = vcmask 130048
  %236 = vst.msk [vmem:[%s3] sm:$0xff] %vm235, %v231
  %237 = vst.msk [vmem:[%s3 + $0x8] sm:$0xff] %vm235, %v232
  %238 = vst.msk [vmem:[%s3 + $0x10] sm:$0xff] %vm235, %v233
  %239 = vst.msk [vmem:[%s3 + $0x18] sm:$0xff] %vm235, %v234
  // Predicated region
  $region14: #{scregat_forward.11} parent=0 // pred_check
    _
  $region15: #{scregat_forward.11} parent=0 // pred_check_branch
    %241 = sbr.rel (0) target = $region17
  $region16: #{scregat_forward.11} parent=0 // pred_region
    _
  $region17: #{scregat_forward.11} parent=0 // pred_fallthru
    _
  // Predicated region
  $region18: #{scregat_forward.11} parent=0 // pred_check
    _
  $region19: #{scregat_forward.11} parent=0 // pred_check_branch
    %243 = sbr.rel (0) target = $region21
  $region20: #{scregat_forward.11} parent=0 // pred_region
    _
  $region21: #{scregat_forward.11} parent=0 // pred_fallthru
    _

// kernel: div.26
$region0: #{div.26}
  #allocation0 [shape = 's32[1]{0}', space=sflag, size = 0x4, scoped, tag = 'scoped memory for div.26']
  %s0 = inlined_call_operand.vmem [shape: f32[64,16], index: 0, kind: input, shape index: {}]
  %s1 = inlined_call_operand.vmem [shape: f32[64,16], index: 1, kind: input, shape index: {}]
  %s2 = inlined_call_operand.vmem [shape: f32[64,16], index: 2, kind: output, shape index: {}]
  %v3 = vld [vmem:[%s0] sm:$0xff]
  %v4 = vld [vmem:[%s1] sm:$0xff]
  %5 = xla_tuple %v3, %v4
  %6 = xla_tuple %5
  %v7 = vrcp.pop %v4
  %v8 = vmul.f32 %v3, %v7
  %9 = xla_tuple %v8
  %10 = vst [vmem:[%s2] sm:$0xff] %v8
  %s11 = scalar_lea.vmem %s0, 8
  %v12 = vld [vmem:[%s11] sm:$0xff]
  %s13 = scalar_lea.vmem %s1, 8
  %v14 = vld [vmem:[%s13] sm:$0xff]
  %15 = xla_tuple %v12, %v14
  %16 = xla_tuple %15
  %v17 = vrcp.pop %v14
  %v18 = vmul.f32 %v12, %v17
  %19 = xla_tuple %v18
  %s20 = scalar_lea.vmem %s2, 8
  %21 = vst [vmem:[%s20] sm:$0xff] %v18
  %s22 = scalar_lea.vmem %s0, 16
  %v23 = vld [vmem:[%s22] sm:$0xff]
  %s24 = scalar_lea.vmem %s1, 16
  %v25 = vld [vmem:[%s24] sm:$0xff]
  %26 = xla_tuple %v23, %v25
  %27 = xla_tuple %26
  %v28 = vrcp.pop %v25
  %v29 = vmul.f32 %v23, %v28
  %30 = xla_tuple %v29
  %s31 = scalar_lea.vmem %s2, 16
  %32 = vst [vmem:[%s31] sm:$0xff] %v29
  %s33 = scalar_lea.vmem %s0, 24
  %v34 = vld [vmem:[%s33] sm:$0xff]
  %s35 = scalar_lea.vmem %s1, 24
  %v36 = vld [vmem:[%s35] sm:$0xff]
  %37 = xla_tuple %v34, %v36
  %38 = xla_tuple %37
  %v39 = vrcp.pop %v36
  %v40 = vmul.f32 %v34, %v39
  %41 = xla_tuple %v40
  %s42 = scalar_lea.vmem %s2, 24
  %43 = vst [vmem:[%s42] sm:$0xff] %v40
  %s44 = scalar_lea.vmem %s0, 32
  %v45 = vld [vmem:[%s44] sm:$0xff]
  %s46 = scalar_lea.vmem %s1, 32
  %v47 = vld [vmem:[%s46] sm:$0xff]
  %48 = xla_tuple %v45, %v47
  %49 = xla_tuple %48
  %v50 = vrcp.pop %v47
  %v51 = vmul.f32 %v45, %v50
  %52 = xla_tuple %v51
  %s53 = scalar_lea.vmem %s2, 32
  %54 = vst [vmem:[%s53] sm:$0xff] %v51
  %s55 = scalar_lea.vmem %s0, 40
  %v56 = vld [vmem:[%s55] sm:$0xff]
  %s57 = scalar_lea.vmem %s1, 40
  %v58 = vld [vmem:[%s57] sm:$0xff]
  %59 = xla_tuple %v56, %v58
  %60 = xla_tuple %59
  %v61 = vrcp.pop %v58
  %v62 = vmul.f32 %v56, %v61
  %63 = xla_tuple %v62
  %s64 = scalar_lea.vmem %s2, 40
  %65 = vst [vmem:[%s64] sm:$0xff] %v62
  %s66 = scalar_lea.vmem %s0, 48
  %v67 = vld [vmem:[%s66] sm:$0xff]
  %s68 = scalar_lea.vmem %s1, 48
  %v69 = vld [vmem:[%s68] sm:$0xff]
  %70 = xla_tuple %v67, %v69
  %71 = xla_tuple %70
  %v72 = vrcp.pop %v69
  %v73 = vmul.f32 %v67, %v72
  %74 = xla_tuple %v73
  %s75 = scalar_lea.vmem %s2, 48
  %76 = vst [vmem:[%s75] sm:$0xff] %v73
  %s77 = scalar_lea.vmem %s0, 56
  %v78 = vld [vmem:[%s77] sm:$0xff]
  %s79 = scalar_lea.vmem %s1, 56
  %v80 = vld [vmem:[%s79] sm:$0xff]
  %81 = xla_tuple %v78, %v80
  %82 = xla_tuple %81
  %v83 = vrcp.pop %v80
  %v84 = vmul.f32 %v78, %v83
  %85 = xla_tuple %v84
  %s86 = scalar_lea.vmem %s2, 56
  %87 = vst [vmem:[%s86] sm:$0xff] %v84

</llo_original>
